<compile_context>
chip_gen: v7x
topology: tpu7x:2x2x1
jax: 0.10.0
libtpu: 0.0.40
codegen_flags: <defaults>
</compile_context>

<pallas_src>
import functools

import jax
import jax.numpy as jnp
from jax.experimental import pallas as pl
from jax.experimental.pallas import tpu as pltpu


# ----------------------------------------------------------------------------
# Fused ResidualGroup kernel
# ----------------------------------------------------------------------------
def _resgroup_kernel(x_ref, w1_ref, b1_ref, w2_ref, b2_ref, o_ref,
                     act_sc, pad_sc, *, H, W, CP, Wp2, P0, short_skip, cdtype):
    # x_ref : (1, H, W, CP)       f32 input feature map (channels lane-padded)
    # w*_ref: (NB, 9, CP, CP)     cdtype (bf16) weights, ALL blocks (resident)
    # b*_ref: (NB, 1, CP)         f32 biases, ALL blocks (resident)
    # o_ref : (1, H, W, CP)       f32 output (resident across the block axis)
    # act_sc: (H*Wp2, CP)   f32   row-flattened activation carried across blocks
    # pad_sc: (PADR, CP)  cdtype  zero-haloed, row-flattened frame buffer
    b = pl.program_id(1)
    nb = pl.num_programs(1)
    HWp = H * Wp2
    fill_start = P0 + Wp2 + 1          # multiple of 8 by construction of P0

    # Column-validity mask for the row-flattened layout: flat row i = y*Wp2 + x
    # holds a real pixel iff x < W.  Computed once, used by both convs.
    valid = jax.lax.broadcasted_iota(jnp.int32, (H, Wp2, CP), 1) < W

    @pl.when(b == 0)
    def _init():
        # Zero the haloed frame once per batch element.  Gate on the block
        # index (restarts at 0 for every image on every core), never on a
        # "first grid step ever" condition.  Halo / padding rows & columns are
        # never written afterwards, so they stay exactly zero.
        pad_sc[...] = jnp.zeros_like(pad_sc)
        # Load this image into the row-flattened activation carry (f32).
        for y in range(H):
            act_sc[pl.ds(y * Wp2, W), :] = x_ref[0, y]

    def conv3x3(v_flat, w_ref, bias_ref):
        # v_flat: (H*Wp2, CP) f32.  Invalid columns (x >= W) may hold junk and
        # are zeroed here (select, so even NaN garbage cannot leak) so the
        # frame halo stays exactly zero -> correct "same" padding.
        v3 = v_flat.reshape(H, Wp2, CP)
        fill = jnp.where(valid, jnp.maximum(v3, 0.0), 0.0).astype(cdtype)
        pad_sc[pl.ds(fill_start, HWp), :] = fill.reshape(HWp, CP)
        # 9 accumulating K=CP matmuls on contiguous shifted windows of the
        # flattened frame (no im2col materialization), f32 accumulation.
        acc = None
        for t in range(9):
            dy, dx = divmod(t, 3)
            lhs = pad_sc[pl.ds(P0 + dy * Wp2 + dx, HWp), :]
            part = jnp.dot(lhs, w_ref[b, t],
                           preferred_element_type=jnp.float32)
            acc = part if acc is None else acc + part
        return acc + bias_ref[b]                     # (1, CP) broadcast, f32

    act = act_sc[...]                                # (H*Wp2, CP) f32
    h = conv3x3(act, w1_ref, b1_ref)
    h = conv3x3(h, w2_ref, b2_ref)
    new_act = act + h                                # fused block residual add
    act_sc[...] = new_act

    @pl.when(b == nb - 1)
    def _finish():
        out = new_act.reshape(H, Wp2, CP)[:, :W, :]  # drop halo columns
        if short_skip:
            out = out + x_ref[0]                     # fused group short skip
        o_ref[...] = out[None].astype(o_ref.dtype)


# ----------------------------------------------------------------------------
# Host-side packing + wrapper
# ----------------------------------------------------------------------------
def pack_group_params(blocks, planes, compute_dtype=jnp.bfloat16):
    """Pack per-block PyTorch-layout params into lane-padded per-tap layout."""
    C = planes
    CP = max(128, ((C + 127) // 128) * 128)

    def pack_w(w):  # (Cout, Cin, 3, 3) -> (9, CP, CP) with [tap, cin, cout]
        w9 = jnp.transpose(w, (2, 3, 1, 0)).reshape(9, C, C)
        return jnp.pad(w9, ((0, 0), (0, CP - C), (0, CP - C))).astype(compute_dtype)

    def pack_b(bias):
        return jnp.pad(bias, (0, CP - C)).reshape(1, CP).astype(jnp.float32)

    return {
        "CP": CP,
        "w1": jnp.stack([pack_w(blk["w1"]) for blk in blocks]),
        "b1": jnp.stack([pack_b(blk["b1"]) for blk in blocks]),
        "w2": jnp.stack([pack_w(blk["w2"]) for blk in blocks]),
        "b2": jnp.stack([pack_b(blk["b2"]) for blk in blocks]),
    }


def residual_group_forward(x_nchw, packed, *, short_skip=False,
                           compute_dtype=jnp.bfloat16):
    """ResidualGroup forward. x: (N, C, H, W) PyTorch layout. Returns NCHW."""
    N, C, H, W = x_nchw.shape
    CP = packed["CP"]
    NB = packed["w1"].shape[0]

    Wp2 = ((W + 2 + 7) // 8) * 8          # padded frame width, sublane aligned
    P0 = (-(Wp2 + 1)) % 8                 # prologue rows -> aligned fill store
    PADR = ((P0 + (H + 2) * Wp2 + 2 + 7) // 8) * 8   # frame rows + window slack

    # NCHW -> NHWC, lane-pad channels to CP (padded lanes stay exactly zero).
    x = jnp.transpose(x_nchw, (0, 2, 3, 1)).astype(jnp.float32)
    x = jnp.pad(x, ((0, 0), (0, 0), (0, 0), (0, CP - C)))

    kernel = functools.partial(_resgroup_kernel, H=H, W=W, CP=CP, Wp2=Wp2,
                               P0=P0, short_skip=short_skip, cdtype=compute_dtype)

    # Explicit VMEM budget: x/out blocks (double-buffered), resident weights
    # (assume 2 buffers), biases, activation carry, haloed frame + headroom.
    cbytes = jnp.dtype(compute_dtype).itemsize
    budget = (2 * 2 * H * W * CP * 4
              + 2 * 2 * NB * 9 * CP * CP * cbytes
              + 2 * 2 * NB * 8 * CP * 4
              + H * Wp2 * CP * 4
              + PADR * CP * cbytes)
    vmem_limit = int(min(max(2 * budget, 32 * 2**20), 64 * 2**20))

    out = pl.pallas_call(
        kernel,
        out_shape=jax.ShapeDtypeStruct((N, H, W, CP), jnp.float32),
        grid=(N, NB),
        in_specs=[
            pl.BlockSpec((1, H, W, CP), lambda n, b: (n, 0, 0, 0)),       # x
            pl.BlockSpec((NB, 9, CP, CP), lambda n, b: (0, 0, 0, 0)),     # w1 (resident)
            pl.BlockSpec((NB, 1, CP), lambda n, b: (0, 0, 0)),            # b1 (resident)
            pl.BlockSpec((NB, 9, CP, CP), lambda n, b: (0, 0, 0, 0)),     # w2 (resident)
            pl.BlockSpec((NB, 1, CP), lambda n, b: (0, 0, 0)),            # b2 (resident)
        ],
        out_specs=pl.BlockSpec((1, H, W, CP), lambda n, b: (n, 0, 0, 0)),
        scratch_shapes=[
            pltpu.VMEM((H * Wp2, CP), jnp.float32),      # activation carry
            pltpu.VMEM((PADR, CP), compute_dtype),       # zero-haloed frame
        ],
        compiler_params=pltpu.CompilerParams(
            dimension_semantics=("parallel", "arbitrary"),
            vmem_limit_bytes=vmem_limit),
    )(x, packed["w1"], packed["b1"], packed["w2"], packed["b2"])

    out = out[..., :C]
    return jnp.transpose(out, (0, 3, 1, 2))


# ----------------------------------------------------------------------------
# Pure-JAX reference (f32) for correctness checking
# ----------------------------------------------------------------------------
def _ref_conv3x3(x_nhwc, w_oihw, bias):
    out = jax.lax.conv_general_dilated(
        x_nhwc, jnp.transpose(w_oihw, (2, 3, 1, 0)),
        window_strides=(1, 1), padding=((1, 1), (1, 1)),
        dimension_numbers=("NHWC", "HWIO", "NHWC"))
    return out + bias


def ref_residual_group(x_nchw, blocks, short_skip):
    x = jnp.transpose(x_nchw, (0, 2, 3, 1)).astype(jnp.float32)
    res = x
    for blk in blocks:
        h = _ref_conv3x3(jax.nn.relu(res), blk["w1"], blk["b1"])
        h = _ref_conv3x3(jax.nn.relu(h), blk["w2"], blk["b2"])
        res = res + h
    if short_skip:
        res = res + x
    return jnp.transpose(res, (0, 3, 1, 2))


# ----------------------------------------------------------------------------
# Test
# ----------------------------------------------------------------------------
if __name__ == "__main__":
    key = jax.random.PRNGKey(0)
    B, C, H, W = 2, 16, 16, 16        # feature map with planes=16 channels
    N_RESBLOCKS = 2
    SHORT_SKIP = True

    keys = jax.random.split(key, 1 + 4 * N_RESBLOCKS)
    x = jax.random.normal(keys[0], (B, C, H, W), jnp.float32)

    blocks = []
    ki = 1
    for _ in range(N_RESBLOCKS):
        w1 = jax.random.normal(keys[ki], (C, C, 3, 3), jnp.float32) / jnp.sqrt(9.0 * C); ki += 1
        b1 = 0.01 * jax.random.normal(keys[ki], (C,), jnp.float32); ki += 1
        w2 = jax.random.normal(keys[ki], (C, C, 3, 3), jnp.float32) / jnp.sqrt(9.0 * C); ki += 1
        b2 = 0.01 * jax.random.normal(keys[ki], (C,), jnp.float32); ki += 1
        blocks.append({"w1": w1, "b1": b1, "w2": w2, "b2": b2})

    packed = pack_group_params(blocks, planes=C)
    out = residual_group_forward(x, packed, short_skip=SHORT_SKIP)
    out = jax.block_until_ready(out)

    assert out.shape == (B, C, H, W), out.shape
    assert bool(jnp.all(jnp.isfinite(out)))

    ref = ref_residual_group(x, blocks, SHORT_SKIP)
    max_err = float(jnp.max(jnp.abs(out - ref)))
    # bf16 MXU operands with f32 accumulation; tighter than the old 1e-1 bound.
    assert max_err < 5e-2, f"max abs err {max_err}"

    print("KERNEL_OK")
</pallas_src>

<mosaic_0001>
module attributes {stable_mosaic.version = 11 : i64} {
  func.func @_resgroup_kernel(%arg0: i32, %arg1: i32, %arg2: memref<1x16x16x128xf32, #tpu.memory_space<vmem>>, %arg3: memref<2x9x128x128xbf16, #tpu.memory_space<vmem>>, %arg4: memref<2x1x128xf32, #tpu.memory_space<vmem>>, %arg5: memref<2x9x128x128xbf16, #tpu.memory_space<vmem>>, %arg6: memref<2x1x128xf32, #tpu.memory_space<vmem>>, %arg7: memref<1x16x16x128xf32, #tpu.memory_space<vmem>>, %arg8: memref<384x128xf32, #tpu.memory_space<vmem>>, %arg9: memref<448x128xbf16, #tpu.memory_space<vmem>>) attributes {dimension_semantics = [#tpu.dimension_semantics<parallel>, #tpu.dimension_semantics<arbitrary>], iteration_bounds = array<i64: 2, 2>, scalar_prefetch = 0 : i64, scratch_operands = 2 : i64, tpu.core_type = #tpu.core_type<tc>, window_params = [{transform_indices = @transform_0, window_bounds = array<i64: 1, 16, 16, 128>}, {pipeline_mode = #tpu.pipeline_mode<synchronous>, transform_indices = @transform_1, window_bounds = array<i64: 2, 9, 128, 128>}, {pipeline_mode = #tpu.pipeline_mode<synchronous>, transform_indices = @transform_2, window_bounds = array<i64: 2, 1, 128>}, {pipeline_mode = #tpu.pipeline_mode<synchronous>, transform_indices = @transform_3, window_bounds = array<i64: 2, 9, 128, 128>}, {pipeline_mode = #tpu.pipeline_mode<synchronous>, transform_indices = @transform_4, window_bounds = array<i64: 2, 1, 128>}, {transform_indices = @transform_5, window_bounds = array<i64: 1, 16, 16, 128>}]} {
    %0 = tpu.iota {dimensions = array<i32: 1>} : vector<16x24x128xi32>
    %c16_i32 = arith.constant 16 : i32
    %1 = vector.broadcast %c16_i32 : i32 to vector<16x24x128xi32>
    %2 = arith.cmpi slt, %0, %1 : vector<16x24x128xi32>
    %c0_i32 = arith.constant 0 : i32
    %3 = arith.cmpi eq, %arg1, %c0_i32 : i32
    %4 = arith.extui %3 : i1 to i32
    %c0_i32_0 = arith.constant 0 : i32
    %5 = arith.cmpi ne, %4, %c0_i32_0 : i32
    scf.if %5 {
      %cst_109 = arith.constant 0.000000e+00 : bf16
      %144 = vector.broadcast %cst_109 : bf16 to vector<448x128xbf16>
      %c0_110 = arith.constant 0 : index
      %c0_111 = arith.constant 0 : index
      %145 = vector.load %arg9[%c0_110, %c0_111] : memref<448x128xbf16, #tpu.memory_space<vmem>>, vector<448x128xbf16>
      tpu.vector_store %arg9[%c0_110, %c0_111], %144 {strides = array<i32>} : memref<448x128xbf16, #tpu.memory_space<vmem>>, vector<448x128xbf16>,
      %c0_112 = arith.constant 0 : index
      %c0_113 = arith.constant 0 : index
      %c0_114 = arith.constant 0 : index
      %c0_115 = arith.constant 0 : index
      %146 = vector.load %arg2[%c0_112, %c0_113, %c0_114, %c0_115] : memref<1x16x16x128xf32, #tpu.memory_space<vmem>>, vector<1x1x16x128xf32>
      %147 = vector.shape_cast %146 : vector<1x1x16x128xf32> to vector<16x128xf32>
      %c0_116 = arith.constant 0 : index
      %c0_117 = arith.constant 0 : index
      %148 = vector.load %arg8[%c0_116, %c0_117] : memref<384x128xf32, #tpu.memory_space<vmem>>, vector<16x128xf32>
      tpu.vector_store %arg8[%c0_116, %c0_117], %147 {strides = array<i32>} : memref<384x128xf32, #tpu.memory_space<vmem>>, vector<16x128xf32>,
      %c0_118 = arith.constant 0 : index
      %c1_119 = arith.constant 1 : index
      %c0_120 = arith.constant 0 : index
      %c0_121 = arith.constant 0 : index
      %149 = vector.load %arg2[%c0_118, %c1_119, %c0_120, %c0_121] : memref<1x16x16x128xf32, #tpu.memory_space<vmem>>, vector<1x1x16x128xf32>
      %150 = vector.shape_cast %149 : vector<1x1x16x128xf32> to vector<16x128xf32>
      %c24 = arith.constant 24 : index
      %c0_122 = arith.constant 0 : index
      %151 = vector.load %arg8[%c24, %c0_122] : memref<384x128xf32, #tpu.memory_space<vmem>>, vector<16x128xf32>
      tpu.vector_store %arg8[%c24, %c0_122], %150 {strides = array<i32>} : memref<384x128xf32, #tpu.memory_space<vmem>>, vector<16x128xf32>,
      %c0_123 = arith.constant 0 : index
      %c2_124 = arith.constant 2 : index
      %c0_125 = arith.constant 0 : index
      %c0_126 = arith.constant 0 : index
      %152 = vector.load %arg2[%c0_123, %c2_124, %c0_125, %c0_126] : memref<1x16x16x128xf32, #tpu.memory_space<vmem>>, vector<1x1x16x128xf32>
      %153 = vector.shape_cast %152 : vector<1x1x16x128xf32> to vector<16x128xf32>
      %c48 = arith.constant 48 : index
      %c0_127 = arith.constant 0 : index
      %154 = vector.load %arg8[%c48, %c0_127] : memref<384x128xf32, #tpu.memory_space<vmem>>, vector<16x128xf32>
      tpu.vector_store %arg8[%c48, %c0_127], %153 {strides = array<i32>} : memref<384x128xf32, #tpu.memory_space<vmem>>, vector<16x128xf32>,
      %c0_128 = arith.constant 0 : index
      %c3_129 = arith.constant 3 : index
      %c0_130 = arith.constant 0 : index
      %c0_131 = arith.constant 0 : index
      %155 = vector.load %arg2[%c0_128, %c3_129, %c0_130, %c0_131] : memref<1x16x16x128xf32, #tpu.memory_space<vmem>>, vector<1x1x16x128xf32>
      %156 = vector.shape_cast %155 : vector<1x1x16x128xf32> to vector<16x128xf32>
      %c72 = arith.constant 72 : index
      %c0_132 = arith.constant 0 : index
      %157 = vector.load %arg8[%c72, %c0_132] : memref<384x128xf32, #tpu.memory_space<vmem>>, vector<16x128xf32>
      tpu.vector_store %arg8[%c72, %c0_132], %156 {strides = array<i32>} : memref<384x128xf32, #tpu.memory_space<vmem>>, vector<16x128xf32>,
      %c0_133 = arith.constant 0 : index
      %c4_134 = arith.constant 4 : index
      %c0_135 = arith.constant 0 : index
      %c0_136 = arith.constant 0 : index
      %158 = vector.load %arg2[%c0_133, %c4_134, %c0_135, %c0_136] : memref<1x16x16x128xf32, #tpu.memory_space<vmem>>, vector<1x1x16x128xf32>
      %159 = vector.shape_cast %158 : vector<1x1x16x128xf32> to vector<16x128xf32>
      %c96 = arith.constant 96 : index
      %c0_137 = arith.constant 0 : index
      %160 = vector.load %arg8[%c96, %c0_137] : memref<384x128xf32, #tpu.memory_space<vmem>>, vector<16x128xf32>
      tpu.vector_store %arg8[%c96, %c0_137], %159 {strides = array<i32>} : memref<384x128xf32, #tpu.memory_space<vmem>>, vector<16x128xf32>,
      %c0_138 = arith.constant 0 : index
      %c5_139 = arith.constant 5 : index
      %c0_140 = arith.constant 0 : index
      %c0_141 = arith.constant 0 : index
      %161 = vector.load %arg2[%c0_138, %c5_139, %c0_140, %c0_141] : memref<1x16x16x128xf32, #tpu.memory_space<vmem>>, vector<1x1x16x128xf32>
      %162 = vector.shape_cast %161 : vector<1x1x16x128xf32> to vector<16x128xf32>
      %c120 = arith.constant 120 : index
      %c0_142 = arith.constant 0 : index
      %163 = vector.load %arg8[%c120, %c0_142] : memref<384x128xf32, #tpu.memory_space<vmem>>, vector<16x128xf32>
      tpu.vector_store %arg8[%c120, %c0_142], %162 {strides = array<i32>} : memref<384x128xf32, #tpu.memory_space<vmem>>, vector<16x128xf32>,
      %c0_143 = arith.constant 0 : index
      %c6_144 = arith.constant 6 : index
      %c0_145 = arith.constant 0 : index
      %c0_146 = arith.constant 0 : index
      %164 = vector.load %arg2[%c0_143, %c6_144, %c0_145, %c0_146] : memref<1x16x16x128xf32, #tpu.memory_space<vmem>>, vector<1x1x16x128xf32>
      %165 = vector.shape_cast %164 : vector<1x1x16x128xf32> to vector<16x128xf32>
      %c144 = arith.constant 144 : index
      %c0_147 = arith.constant 0 : index
      %166 = vector.load %arg8[%c144, %c0_147] : memref<384x128xf32, #tpu.memory_space<vmem>>, vector<16x128xf32>
      tpu.vector_store %arg8[%c144, %c0_147], %165 {strides = array<i32>} : memref<384x128xf32, #tpu.memory_space<vmem>>, vector<16x128xf32>,
      %c0_148 = arith.constant 0 : index
      %c7_149 = arith.constant 7 : index
      %c0_150 = arith.constant 0 : index
      %c0_151 = arith.constant 0 : index
      %167 = vector.load %arg2[%c0_148, %c7_149, %c0_150, %c0_151] : memref<1x16x16x128xf32, #tpu.memory_space<vmem>>, vector<1x1x16x128xf32>
      %168 = vector.shape_cast %167 : vector<1x1x16x128xf32> to vector<16x128xf32>
      %c168 = arith.constant 168 : index
      %c0_152 = arith.constant 0 : index
      %169 = vector.load %arg8[%c168, %c0_152] : memref<384x128xf32, #tpu.memory_space<vmem>>, vector<16x128xf32>
      tpu.vector_store %arg8[%c168, %c0_152], %168 {strides = array<i32>} : memref<384x128xf32, #tpu.memory_space<vmem>>, vector<16x128xf32>,
      %c0_153 = arith.constant 0 : index
      %c8_154 = arith.constant 8 : index
      %c0_155 = arith.constant 0 : index
      %c0_156 = arith.constant 0 : index
      %170 = vector.load %arg2[%c0_153, %c8_154, %c0_155, %c0_156] : memref<1x16x16x128xf32, #tpu.memory_space<vmem>>, vector<1x1x16x128xf32>
      %171 = vector.shape_cast %170 : vector<1x1x16x128xf32> to vector<16x128xf32>
      %c192 = arith.constant 192 : index
      %c0_157 = arith.constant 0 : index
      %172 = vector.load %arg8[%c192, %c0_157] : memref<384x128xf32, #tpu.memory_space<vmem>>, vector<16x128xf32>
      tpu.vector_store %arg8[%c192, %c0_157], %171 {strides = array<i32>} : memref<384x128xf32, #tpu.memory_space<vmem>>, vector<16x128xf32>,
      %c0_158 = arith.constant 0 : index
      %c9_159 = arith.constant 9 : index
      %c0_160 = arith.constant 0 : index
      %c0_161 = arith.constant 0 : index
      %173 = vector.load %arg2[%c0_158, %c9_159, %c0_160, %c0_161] : memref<1x16x16x128xf32, #tpu.memory_space<vmem>>, vector<1x1x16x128xf32>
      %174 = vector.shape_cast %173 : vector<1x1x16x128xf32> to vector<16x128xf32>
      %c216 = arith.constant 216 : index
      %c0_162 = arith.constant 0 : index
      %175 = vector.load %arg8[%c216, %c0_162] : memref<384x128xf32, #tpu.memory_space<vmem>>, vector<16x128xf32>
      tpu.vector_store %arg8[%c216, %c0_162], %174 {strides = array<i32>} : memref<384x128xf32, #tpu.memory_space<vmem>>, vector<16x128xf32>,
      %c0_163 = arith.constant 0 : index
      %c10 = arith.constant 10 : index
      %c0_164 = arith.constant 0 : index
      %c0_165 = arith.constant 0 : index
      %176 = vector.load %arg2[%c0_163, %c10, %c0_164, %c0_165] : memref<1x16x16x128xf32, #tpu.memory_space<vmem>>, vector<1x1x16x128xf32>
      %177 = vector.shape_cast %176 : vector<1x1x16x128xf32> to vector<16x128xf32>
      %c240 = arith.constant 240 : index
      %c0_166 = arith.constant 0 : index
      %178 = vector.load %arg8[%c240, %c0_166] : memref<384x128xf32, #tpu.memory_space<vmem>>, vector<16x128xf32>
      tpu.vector_store %arg8[%c240, %c0_166], %177 {strides = array<i32>} : memref<384x128xf32, #tpu.memory_space<vmem>>, vector<16x128xf32>,
      %c0_167 = arith.constant 0 : index
      %c11 = arith.constant 11 : index
      %c0_168 = arith.constant 0 : index
      %c0_169 = arith.constant 0 : index
      %179 = vector.load %arg2[%c0_167, %c11, %c0_168, %c0_169] : memref<1x16x16x128xf32, #tpu.memory_space<vmem>>, vector<1x1x16x128xf32>
      %180 = vector.shape_cast %179 : vector<1x1x16x128xf32> to vector<16x128xf32>
      %c264 = arith.constant 264 : index
      %c0_170 = arith.constant 0 : index
      %181 = vector.load %arg8[%c264, %c0_170] : memref<384x128xf32, #tpu.memory_space<vmem>>, vector<16x128xf32>
      tpu.vector_store %arg8[%c264, %c0_170], %180 {strides = array<i32>} : memref<384x128xf32, #tpu.memory_space<vmem>>, vector<16x128xf32>,
      %c0_171 = arith.constant 0 : index
      %c12 = arith.constant 12 : index
      %c0_172 = arith.constant 0 : index
      %c0_173 = arith.constant 0 : index
      %182 = vector.load %arg2[%c0_171, %c12, %c0_172, %c0_173] : memref<1x16x16x128xf32, #tpu.memory_space<vmem>>, vector<1x1x16x128xf32>
      %183 = vector.shape_cast %182 : vector<1x1x16x128xf32> to vector<16x128xf32>
      %c288 = arith.constant 288 : index
      %c0_174 = arith.constant 0 : index
      %184 = vector.load %arg8[%c288, %c0_174] : memref<384x128xf32, #tpu.memory_space<vmem>>, vector<16x128xf32>
      tpu.vector_store %arg8[%c288, %c0_174], %183 {strides = array<i32>} : memref<384x128xf32, #tpu.memory_space<vmem>>, vector<16x128xf32>,
      %c0_175 = arith.constant 0 : index
      %c13 = arith.constant 13 : index
      %c0_176 = arith.constant 0 : index
      %c0_177 = arith.constant 0 : index
      %185 = vector.load %arg2[%c0_175, %c13, %c0_176, %c0_177] : memref<1x16x16x128xf32, #tpu.memory_space<vmem>>, vector<1x1x16x128xf32>
      %186 = vector.shape_cast %185 : vector<1x1x16x128xf32> to vector<16x128xf32>
      %c312 = arith.constant 312 : index
      %c0_178 = arith.constant 0 : index
      %187 = vector.load %arg8[%c312, %c0_178] : memref<384x128xf32, #tpu.memory_space<vmem>>, vector<16x128xf32>
      tpu.vector_store %arg8[%c312, %c0_178], %186 {strides = array<i32>} : memref<384x128xf32, #tpu.memory_space<vmem>>, vector<16x128xf32>,
      %c0_179 = arith.constant 0 : index
      %c14 = arith.constant 14 : index
      %c0_180 = arith.constant 0 : index
      %c0_181 = arith.constant 0 : index
      %188 = vector.load %arg2[%c0_179, %c14, %c0_180, %c0_181] : memref<1x16x16x128xf32, #tpu.memory_space<vmem>>, vector<1x1x16x128xf32>
      %189 = vector.shape_cast %188 : vector<1x1x16x128xf32> to vector<16x128xf32>
      %c336 = arith.constant 336 : index
      %c0_182 = arith.constant 0 : index
      %190 = vector.load %arg8[%c336, %c0_182] : memref<384x128xf32, #tpu.memory_space<vmem>>, vector<16x128xf32>
      tpu.vector_store %arg8[%c336, %c0_182], %189 {strides = array<i32>} : memref<384x128xf32, #tpu.memory_space<vmem>>, vector<16x128xf32>,
      %c0_183 = arith.constant 0 : index
      %c15 = arith.constant 15 : index
      %c0_184 = arith.constant 0 : index
      %c0_185 = arith.constant 0 : index
      %191 = vector.load %arg2[%c0_183, %c15, %c0_184, %c0_185] : memref<1x16x16x128xf32, #tpu.memory_space<vmem>>, vector<1x1x16x128xf32>
      %192 = vector.shape_cast %191 : vector<1x1x16x128xf32> to vector<16x128xf32>
      %c360 = arith.constant 360 : index
      %c0_186 = arith.constant 0 : index
      %193 = vector.load %arg8[%c360, %c0_186] : memref<384x128xf32, #tpu.memory_space<vmem>>, vector<16x128xf32>
      tpu.vector_store %arg8[%c360, %c0_186], %192 {strides = array<i32>} : memref<384x128xf32, #tpu.memory_space<vmem>>, vector<16x128xf32>,
    } else {
    }
    %c0 = arith.constant 0 : index
    %c0_1 = arith.constant 0 : index
    %6 = vector.load %arg8[%c0, %c0_1] : memref<384x128xf32, #tpu.memory_space<vmem>>, vector<384x128xf32>
    %7 = vector.shape_cast %6 : vector<384x128xf32> to vector<16x24x128xf32>
    %cst = arith.constant 0.000000e+00 : f32
    %8 = vector.broadcast %cst : f32 to vector<16x24x128xf32>
    %9 = arith.maximumf %7, %8 : vector<16x24x128xf32>
    %cst_2 = arith.constant 0.000000e+00 : f32
    %10 = vector.broadcast %cst_2 : f32 to vector<16x24x128xf32>
    %11 = arith.select %2, %9, %10 : vector<16x24x128xi1>, vector<16x24x128xf32>
    %12 = arith.truncf %11 : vector<16x24x128xf32> to vector<16x24x128xbf16>
    %13 = vector.shape_cast %12 : vector<16x24x128xbf16> to vector<384x128xbf16>
    %c32 = arith.constant 32 : index
    %c0_3 = arith.constant 0 : index
    %14 = vector.load %arg9[%c32, %c0_3] : memref<448x128xbf16, #tpu.memory_space<vmem>>, vector<384x128xbf16>
    tpu.vector_store %arg9[%c32, %c0_3], %13 {strides = array<i32>} : memref<448x128xbf16, #tpu.memory_space<vmem>>, vector<384x128xbf16>,
    %c7 = arith.constant 7 : index
    %c0_4 = arith.constant 0 : index
    %15 = vector.load %arg9[%c7, %c0_4] : memref<448x128xbf16, #tpu.memory_space<vmem>>, vector<384x128xbf16>
    %16 = arith.index_cast %arg1 : i32 to index
    %c0_5 = arith.constant 0 : index
    %c0_6 = arith.constant 0 : index
    %c0_7 = arith.constant 0 : index
    %17 = vector.load %arg3[%16, %c0_5, %c0_6, %c0_7] : memref<2x9x128x128xbf16, #tpu.memory_space<vmem>>, vector<1x1x128x128xbf16>
    %18 = vector.shape_cast %17 : vector<1x1x128x128xbf16> to vector<128x128xbf16>
    %cst_8 = arith.constant dense<0.000000e+00> : vector<384x128xf32>
    %19 = tpu.matmul %15, %18, %cst_8 {dimension_numbers = #tpu.dot_dimension_numbers<[1], [0], [0], [1], [0, 0, 1, 1], [], []>} : vector<384x128xbf16>, vector<128x128xbf16>, vector<384x128xf32> -> vector<384x128xf32>
    %c8 = arith.constant 8 : index
    %c0_9 = arith.constant 0 : index
    %20 = vector.load %arg9[%c8, %c0_9] : memref<448x128xbf16, #tpu.memory_space<vmem>>, vector<384x128xbf16>
    %21 = arith.index_cast %arg1 : i32 to index
    %c1 = arith.constant 1 : index
    %c0_10 = arith.constant 0 : index
    %c0_11 = arith.constant 0 : index
    %22 = vector.load %arg3[%21, %c1, %c0_10, %c0_11] : memref<2x9x128x128xbf16, #tpu.memory_space<vmem>>, vector<1x1x128x128xbf16>
    %23 = vector.shape_cast %22 : vector<1x1x128x128xbf16> to vector<128x128xbf16>
    %cst_12 = arith.constant dense<0.000000e+00> : vector<384x128xf32>
    %24 = tpu.matmul %20, %23, %cst_12 {dimension_numbers = #tpu.dot_dimension_numbers<[1], [0], [0], [1], [0, 0, 1, 1], [], []>} : vector<384x128xbf16>, vector<128x128xbf16>, vector<384x128xf32> -> vector<384x128xf32>
    %25 = arith.addf %19, %24 : vector<384x128xf32>
    %c9 = arith.constant 9 : index
    %c0_13 = arith.constant 0 : index
    %26 = vector.load %arg9[%c9, %c0_13] : memref<448x128xbf16, #tpu.memory_space<vmem>>, vector<384x128xbf16>
    %27 = arith.index_cast %arg1 : i32 to index
    %c2 = arith.constant 2 : index
    %c0_14 = arith.constant 0 : index
    %c0_15 = arith.constant 0 : index
    %28 = vector.load %arg3[%27, %c2, %c0_14, %c0_15] : memref<2x9x128x128xbf16, #tpu.memory_space<vmem>>, vector<1x1x128x128xbf16>
    %29 = vector.shape_cast %28 : vector<1x1x128x128xbf16> to vector<128x128xbf16>
    %cst_16 = arith.constant dense<0.000000e+00> : vector<384x128xf32>
    %30 = tpu.matmul %26, %29, %cst_16 {dimension_numbers = #tpu.dot_dimension_numbers<[1], [0], [0], [1], [0, 0, 1, 1], [], []>} : vector<384x128xbf16>, vector<128x128xbf16>, vector<384x128xf32> -> vector<384x128xf32>
    %31 = arith.addf %25, %30 : vector<384x128xf32>
    %c31 = arith.constant 31 : index
    %c0_17 = arith.constant 0 : index
    %32 = vector.load %arg9[%c31, %c0_17] : memref<448x128xbf16, #tpu.memory_space<vmem>>, vector<384x128xbf16>
    %33 = arith.index_cast %arg1 : i32 to index
    %c3 = arith.constant 3 : index
    %c0_18 = arith.constant 0 : index
    %c0_19 = arith.constant 0 : index
    %34 = vector.load %arg3[%33, %c3, %c0_18, %c0_19] : memref<2x9x128x128xbf16, #tpu.memory_space<vmem>>, vector<1x1x128x128xbf16>
    %35 = vector.shape_cast %34 : vector<1x1x128x128xbf16> to vector<128x128xbf16>
    %cst_20 = arith.constant dense<0.000000e+00> : vector<384x128xf32>
    %36 = tpu.matmul %32, %35, %cst_20 {dimension_numbers = #tpu.dot_dimension_numbers<[1], [0], [0], [1], [0, 0, 1, 1], [], []>} : vector<384x128xbf16>, vector<128x128xbf16>, vector<384x128xf32> -> vector<384x128xf32>
    %37 = arith.addf %31, %36 : vector<384x128xf32>
    %c32_21 = arith.constant 32 : index
    %c0_22 = arith.constant 0 : index
    %38 = vector.load %arg9[%c32_21, %c0_22] : memref<448x128xbf16, #tpu.memory_space<vmem>>, vector<384x128xbf16>
    %39 = arith.index_cast %arg1 : i32 to index
    %c4 = arith.constant 4 : index
    %c0_23 = arith.constant 0 : index
    %c0_24 = arith.constant 0 : index
    %40 = vector.load %arg3[%39, %c4, %c0_23, %c0_24] : memref<2x9x128x128xbf16, #tpu.memory_space<vmem>>, vector<1x1x128x128xbf16>
    %41 = vector.shape_cast %40 : vector<1x1x128x128xbf16> to vector<128x128xbf16>
    %cst_25 = arith.constant dense<0.000000e+00> : vector<384x128xf32>
    %42 = tpu.matmul %38, %41, %cst_25 {dimension_numbers = #tpu.dot_dimension_numbers<[1], [0], [0], [1], [0, 0, 1, 1], [], []>} : vector<384x128xbf16>, vector<128x128xbf16>, vector<384x128xf32> -> vector<384x128xf32>
    %43 = arith.addf %37, %42 : vector<384x128xf32>
    %c33 = arith.constant 33 : index
    %c0_26 = arith.constant 0 : index
    %44 = vector.load %arg9[%c33, %c0_26] : memref<448x128xbf16, #tpu.memory_space<vmem>>, vector<384x128xbf16>
    %45 = arith.index_cast %arg1 : i32 to index
    %c5 = arith.constant 5 : index
    %c0_27 = arith.constant 0 : index
    %c0_28 = arith.constant 0 : index
    %46 = vector.load %arg3[%45, %c5, %c0_27, %c0_28] : memref<2x9x128x128xbf16, #tpu.memory_space<vmem>>, vector<1x1x128x128xbf16>
    %47 = vector.shape_cast %46 : vector<1x1x128x128xbf16> to vector<128x128xbf16>
    %cst_29 = arith.constant dense<0.000000e+00> : vector<384x128xf32>
    %48 = tpu.matmul %44, %47, %cst_29 {dimension_numbers = #tpu.dot_dimension_numbers<[1], [0], [0], [1], [0, 0, 1, 1], [], []>} : vector<384x128xbf16>, vector<128x128xbf16>, vector<384x128xf32> -> vector<384x128xf32>
    %49 = arith.addf %43, %48 : vector<384x128xf32>
    %c55 = arith.constant 55 : index
    %c0_30 = arith.constant 0 : index
    %50 = vector.load %arg9[%c55, %c0_30] : memref<448x128xbf16, #tpu.memory_space<vmem>>, vector<384x128xbf16>
    %51 = arith.index_cast %arg1 : i32 to index
    %c6 = arith.constant 6 : index
    %c0_31 = arith.constant 0 : index
    %c0_32 = arith.constant 0 : index
    %52 = vector.load %arg3[%51, %c6, %c0_31, %c0_32] : memref<2x9x128x128xbf16, #tpu.memory_space<vmem>>, vector<1x1x128x128xbf16>
    %53 = vector.shape_cast %52 : vector<1x1x128x128xbf16> to vector<128x128xbf16>
    %cst_33 = arith.constant dense<0.000000e+00> : vector<384x128xf32>
    %54 = tpu.matmul %50, %53, %cst_33 {dimension_numbers = #tpu.dot_dimension_numbers<[1], [0], [0], [1], [0, 0, 1, 1], [], []>} : vector<384x128xbf16>, vector<128x128xbf16>, vector<384x128xf32> -> vector<384x128xf32>
    %55 = arith.addf %49, %54 : vector<384x128xf32>
    %c56 = arith.constant 56 : index
    %c0_34 = arith.constant 0 : index
    %56 = vector.load %arg9[%c56, %c0_34] : memref<448x128xbf16, #tpu.memory_space<vmem>>, vector<384x128xbf16>
    %57 = arith.index_cast %arg1 : i32 to index
    %c7_35 = arith.constant 7 : index
    %c0_36 = arith.constant 0 : index
    %c0_37 = arith.constant 0 : index
    %58 = vector.load %arg3[%57, %c7_35, %c0_36, %c0_37] : memref<2x9x128x128xbf16, #tpu.memory_space<vmem>>, vector<1x1x128x128xbf16>
    %59 = vector.shape_cast %58 : vector<1x1x128x128xbf16> to vector<128x128xbf16>
    %cst_38 = arith.constant dense<0.000000e+00> : vector<384x128xf32>
    %60 = tpu.matmul %56, %59, %cst_38 {dimension_numbers = #tpu.dot_dimension_numbers<[1], [0], [0], [1], [0, 0, 1, 1], [], []>} : vector<384x128xbf16>, vector<128x128xbf16>, vector<384x128xf32> -> vector<384x128xf32>
    %61 = arith.addf %55, %60 : vector<384x128xf32>
    %c57 = arith.constant 57 : index
    %c0_39 = arith.constant 0 : index
    %62 = vector.load %arg9[%c57, %c0_39] : memref<448x128xbf16, #tpu.memory_space<vmem>>, vector<384x128xbf16>
    %63 = arith.index_cast %arg1 : i32 to index
    %c8_40 = arith.constant 8 : index
    %c0_41 = arith.constant 0 : index
    %c0_42 = arith.constant 0 : index
    %64 = vector.load %arg3[%63, %c8_40, %c0_41, %c0_42] : memref<2x9x128x128xbf16, #tpu.memory_space<vmem>>, vector<1x1x128x128xbf16>
    %65 = vector.shape_cast %64 : vector<1x1x128x128xbf16> to vector<128x128xbf16>
    %cst_43 = arith.constant dense<0.000000e+00> : vector<384x128xf32>
    %66 = tpu.matmul %62, %65, %cst_43 {dimension_numbers = #tpu.dot_dimension_numbers<[1], [0], [0], [1], [0, 0, 1, 1], [], []>} : vector<384x128xbf16>, vector<128x128xbf16>, vector<384x128xf32> -> vector<384x128xf32>
    %67 = arith.addf %61, %66 : vector<384x128xf32>
    %68 = arith.index_cast %arg1 : i32 to index
    %c0_44 = arith.constant 0 : index
    %c0_45 = arith.constant 0 : index
    %69 = vector.load %arg4[%68, %c0_44, %c0_45] : memref<2x1x128xf32, #tpu.memory_space<vmem>>, vector<1x1x128xf32>
    %70 = vector.shape_cast %69 : vector<1x1x128xf32> to vector<1x128xf32>
    %71 = vector.broadcast %70 : vector<1x128xf32> to vector<384x128xf32>
    %72 = arith.addf %67, %71 : vector<384x128xf32>
    %73 = vector.shape_cast %72 : vector<384x128xf32> to vector<16x24x128xf32>
    %cst_46 = arith.constant 0.000000e+00 : f32
    %74 = vector.broadcast %cst_46 : f32 to vector<16x24x128xf32>
    %75 = arith.maximumf %73, %74 : vector<16x24x128xf32>
    %cst_47 = arith.constant 0.000000e+00 : f32
    %76 = vector.broadcast %cst_47 : f32 to vector<16x24x128xf32>
    %77 = arith.select %2, %75, %76 : vector<16x24x128xi1>, vector<16x24x128xf32>
    %78 = arith.truncf %77 : vector<16x24x128xf32> to vector<16x24x128xbf16>
    %79 = vector.shape_cast %78 : vector<16x24x128xbf16> to vector<384x128xbf16>
    %c32_48 = arith.constant 32 : index
    %c0_49 = arith.constant 0 : index
    %80 = vector.load %arg9[%c32_48, %c0_49] : memref<448x128xbf16, #tpu.memory_space<vmem>>, vector<384x128xbf16>
    tpu.vector_store %arg9[%c32_48, %c0_49], %79 {strides = array<i32>} : memref<448x128xbf16, #tpu.memory_space<vmem>>, vector<384x128xbf16>,
    %c7_50 = arith.constant 7 : index
    %c0_51 = arith.constant 0 : index
    %81 = vector.load %arg9[%c7_50, %c0_51] : memref<448x128xbf16, #tpu.memory_space<vmem>>, vector<384x128xbf16>
    %82 = arith.index_cast %arg1 : i32 to index
    %c0_52 = arith.constant 0 : index
    %c0_53 = arith.constant 0 : index
    %c0_54 = arith.constant 0 : index
    %83 = vector.load %arg5[%82, %c0_52, %c0_53, %c0_54] : memref<2x9x128x128xbf16, #tpu.memory_space<vmem>>, vector<1x1x128x128xbf16>
    %84 = vector.shape_cast %83 : vector<1x1x128x128xbf16> to vector<128x128xbf16>
    %cst_55 = arith.constant dense<0.000000e+00> : vector<384x128xf32>
    %85 = tpu.matmul %81, %84, %cst_55 {dimension_numbers = #tpu.dot_dimension_numbers<[1], [0], [0], [1], [0, 0, 1, 1], [], []>} : vector<384x128xbf16>, vector<128x128xbf16>, vector<384x128xf32> -> vector<384x128xf32>
    %c8_56 = arith.constant 8 : index
    %c0_57 = arith.constant 0 : index
    %86 = vector.load %arg9[%c8_56, %c0_57] : memref<448x128xbf16, #tpu.memory_space<vmem>>, vector<384x128xbf16>
    %87 = arith.index_cast %arg1 : i32 to index
    %c1_58 = arith.constant 1 : index
    %c0_59 = arith.constant 0 : index
    %c0_60 = arith.constant 0 : index
    %88 = vector.load %arg5[%87, %c1_58, %c0_59, %c0_60] : memref<2x9x128x128xbf16, #tpu.memory_space<vmem>>, vector<1x1x128x128xbf16>
    %89 = vector.shape_cast %88 : vector<1x1x128x128xbf16> to vector<128x128xbf16>
    %cst_61 = arith.constant dense<0.000000e+00> : vector<384x128xf32>
    %90 = tpu.matmul %86, %89, %cst_61 {dimension_numbers = #tpu.dot_dimension_numbers<[1], [0], [0], [1], [0, 0, 1, 1], [], []>} : vector<384x128xbf16>, vector<128x128xbf16>, vector<384x128xf32> -> vector<384x128xf32>
    %91 = arith.addf %85, %90 : vector<384x128xf32>
    %c9_62 = arith.constant 9 : index
    %c0_63 = arith.constant 0 : index
    %92 = vector.load %arg9[%c9_62, %c0_63] : memref<448x128xbf16, #tpu.memory_space<vmem>>, vector<384x128xbf16>
    %93 = arith.index_cast %arg1 : i32 to index
    %c2_64 = arith.constant 2 : index
    %c0_65 = arith.constant 0 : index
    %c0_66 = arith.constant 0 : index
    %94 = vector.load %arg5[%93, %c2_64, %c0_65, %c0_66] : memref<2x9x128x128xbf16, #tpu.memory_space<vmem>>, vector<1x1x128x128xbf16>
    %95 = vector.shape_cast %94 : vector<1x1x128x128xbf16> to vector<128x128xbf16>
    %cst_67 = arith.constant dense<0.000000e+00> : vector<384x128xf32>
    %96 = tpu.matmul %92, %95, %cst_67 {dimension_numbers = #tpu.dot_dimension_numbers<[1], [0], [0], [1], [0, 0, 1, 1], [], []>} : vector<384x128xbf16>, vector<128x128xbf16>, vector<384x128xf32> -> vector<384x128xf32>
    %97 = arith.addf %91, %96 : vector<384x128xf32>
    %c31_68 = arith.constant 31 : index
    %c0_69 = arith.constant 0 : index
    %98 = vector.load %arg9[%c31_68, %c0_69] : memref<448x128xbf16, #tpu.memory_space<vmem>>, vector<384x128xbf16>
    %99 = arith.index_cast %arg1 : i32 to index
    %c3_70 = arith.constant 3 : index
    %c0_71 = arith.constant 0 : index
    %c0_72 = arith.constant 0 : index
    %100 = vector.load %arg5[%99, %c3_70, %c0_71, %c0_72] : memref<2x9x128x128xbf16, #tpu.memory_space<vmem>>, vector<1x1x128x128xbf16>
    %101 = vector.shape_cast %100 : vector<1x1x128x128xbf16> to vector<128x128xbf16>
    %cst_73 = arith.constant dense<0.000000e+00> : vector<384x128xf32>
    %102 = tpu.matmul %98, %101, %cst_73 {dimension_numbers = #tpu.dot_dimension_numbers<[1], [0], [0], [1], [0, 0, 1, 1], [], []>} : vector<384x128xbf16>, vector<128x128xbf16>, vector<384x128xf32> -> vector<384x128xf32>
    %103 = arith.addf %97, %102 : vector<384x128xf32>
    %c32_74 = arith.constant 32 : index
    %c0_75 = arith.constant 0 : index
    %104 = vector.load %arg9[%c32_74, %c0_75] : memref<448x128xbf16, #tpu.memory_space<vmem>>, vector<384x128xbf16>
    %105 = arith.index_cast %arg1 : i32 to index
    %c4_76 = arith.constant 4 : index
    %c0_77 = arith.constant 0 : index
    %c0_78 = arith.constant 0 : index
    %106 = vector.load %arg5[%105, %c4_76, %c0_77, %c0_78] : memref<2x9x128x128xbf16, #tpu.memory_space<vmem>>, vector<1x1x128x128xbf16>
    %107 = vector.shape_cast %106 : vector<1x1x128x128xbf16> to vector<128x128xbf16>
    %cst_79 = arith.constant dense<0.000000e+00> : vector<384x128xf32>
    %108 = tpu.matmul %104, %107, %cst_79 {dimension_numbers = #tpu.dot_dimension_numbers<[1], [0], [0], [1], [0, 0, 1, 1], [], []>} : vector<384x128xbf16>, vector<128x128xbf16>, vector<384x128xf32> -> vector<384x128xf32>
    %109 = arith.addf %103, %108 : vector<384x128xf32>
    %c33_80 = arith.constant 33 : index
    %c0_81 = arith.constant 0 : index
    %110 = vector.load %arg9[%c33_80, %c0_81] : memref<448x128xbf16, #tpu.memory_space<vmem>>, vector<384x128xbf16>
    %111 = arith.index_cast %arg1 : i32 to index
    %c5_82 = arith.constant 5 : index
    %c0_83 = arith.constant 0 : index
    %c0_84 = arith.constant 0 : index
    %112 = vector.load %arg5[%111, %c5_82, %c0_83, %c0_84] : memref<2x9x128x128xbf16, #tpu.memory_space<vmem>>, vector<1x1x128x128xbf16>
    %113 = vector.shape_cast %112 : vector<1x1x128x128xbf16> to vector<128x128xbf16>
    %cst_85 = arith.constant dense<0.000000e+00> : vector<384x128xf32>
    %114 = tpu.matmul %110, %113, %cst_85 {dimension_numbers = #tpu.dot_dimension_numbers<[1], [0], [0], [1], [0, 0, 1, 1], [], []>} : vector<384x128xbf16>, vector<128x128xbf16>, vector<384x128xf32> -> vector<384x128xf32>
    %115 = arith.addf %109, %114 : vector<384x128xf32>
    %c55_86 = arith.constant 55 : index
    %c0_87 = arith.constant 0 : index
    %116 = vector.load %arg9[%c55_86, %c0_87] : memref<448x128xbf16, #tpu.memory_space<vmem>>, vector<384x128xbf16>
    %117 = arith.index_cast %arg1 : i32 to index
    %c6_88 = arith.constant 6 : index
    %c0_89 = arith.constant 0 : index
    %c0_90 = arith.constant 0 : index
    %118 = vector.load %arg5[%117, %c6_88, %c0_89, %c0_90] : memref<2x9x128x128xbf16, #tpu.memory_space<vmem>>, vector<1x1x128x128xbf16>
    %119 = vector.shape_cast %118 : vector<1x1x128x128xbf16> to vector<128x128xbf16>
    %cst_91 = arith.constant dense<0.000000e+00> : vector<384x128xf32>
    %120 = tpu.matmul %116, %119, %cst_91 {dimension_numbers = #tpu.dot_dimension_numbers<[1], [0], [0], [1], [0, 0, 1, 1], [], []>} : vector<384x128xbf16>, vector<128x128xbf16>, vector<384x128xf32> -> vector<384x128xf32>
    %121 = arith.addf %115, %120 : vector<384x128xf32>
    %c56_92 = arith.constant 56 : index
    %c0_93 = arith.constant 0 : index
    %122 = vector.load %arg9[%c56_92, %c0_93] : memref<448x128xbf16, #tpu.memory_space<vmem>>, vector<384x128xbf16>
    %123 = arith.index_cast %arg1 : i32 to index
    %c7_94 = arith.constant 7 : index
    %c0_95 = arith.constant 0 : index
    %c0_96 = arith.constant 0 : index
    %124 = vector.load %arg5[%123, %c7_94, %c0_95, %c0_96] : memref<2x9x128x128xbf16, #tpu.memory_space<vmem>>, vector<1x1x128x128xbf16>
    %125 = vector.shape_cast %124 : vector<1x1x128x128xbf16> to vector<128x128xbf16>
    %cst_97 = arith.constant dense<0.000000e+00> : vector<384x128xf32>
    %126 = tpu.matmul %122, %125, %cst_97 {dimension_numbers = #tpu.dot_dimension_numbers<[1], [0], [0], [1], [0, 0, 1, 1], [], []>} : vector<384x128xbf16>, vector<128x128xbf16>, vector<384x128xf32> -> vector<384x128xf32>
    %127 = arith.addf %121, %126 : vector<384x128xf32>
    %c57_98 = arith.constant 57 : index
    %c0_99 = arith.constant 0 : index
    %128 = vector.load %arg9[%c57_98, %c0_99] : memref<448x128xbf16, #tpu.memory_space<vmem>>, vector<384x128xbf16>
    %129 = arith.index_cast %arg1 : i32 to index
    %c8_100 = arith.constant 8 : index
    %c0_101 = arith.constant 0 : index
    %c0_102 = arith.constant 0 : index
    %130 = vector.load %arg5[%129, %c8_100, %c0_101, %c0_102] : memref<2x9x128x128xbf16, #tpu.memory_space<vmem>>, vector<1x1x128x128xbf16>
    %131 = vector.shape_cast %130 : vector<1x1x128x128xbf16> to vector<128x128xbf16>
    %cst_103 = arith.constant dense<0.000000e+00> : vector<384x128xf32>
    %132 = tpu.matmul %128, %131, %cst_103 {dimension_numbers = #tpu.dot_dimension_numbers<[1], [0], [0], [1], [0, 0, 1, 1], [], []>} : vector<384x128xbf16>, vector<128x128xbf16>, vector<384x128xf32> -> vector<384x128xf32>
    %133 = arith.addf %127, %132 : vector<384x128xf32>
    %134 = arith.index_cast %arg1 : i32 to index
    %c0_104 = arith.constant 0 : index
    %c0_105 = arith.constant 0 : index
    %135 = vector.load %arg6[%134, %c0_104, %c0_105] : memref<2x1x128xf32, #tpu.memory_space<vmem>>, vector<1x1x128xf32>
    %136 = vector.shape_cast %135 : vector<1x1x128xf32> to vector<1x128xf32>
    %137 = vector.broadcast %136 : vector<1x128xf32> to vector<384x128xf32>
    %138 = arith.addf %133, %137 : vector<384x128xf32>
    %139 = arith.addf %6, %138 : vector<384x128xf32>
    %c0_106 = arith.constant 0 : index
    %c0_107 = arith.constant 0 : index
    %140 = vector.load %arg8[%c0_106, %c0_107] : memref<384x128xf32, #tpu.memory_space<vmem>>, vector<384x128xf32>
    tpu.vector_store %arg8[%c0_106, %c0_107], %139 {strides = array<i32>} : memref<384x128xf32, #tpu.memory_space<vmem>>, vector<384x128xf32>,
    %c1_i32 = arith.constant 1 : i32
    %141 = arith.cmpi eq, %arg1, %c1_i32 : i32
    %142 = arith.extui %141 : i1 to i32
    %c0_i32_108 = arith.constant 0 : i32
    %143 = arith.cmpi ne, %142, %c0_i32_108 : i32
    scf.if %143 {
      %144 = vector.shape_cast %139 : vector<384x128xf32> to vector<16x24x128xf32>
      %145 = vector.extract_strided_slice %144 {offsets = [0, 0, 0], sizes = [16, 16, 128], strides = [1, 1, 1]} : vector<16x24x128xf32> to vector<16x16x128xf32>
      %c0_109 = arith.constant 0 : index
      %c0_110 = arith.constant 0 : index
      %c0_111 = arith.constant 0 : index
      %c0_112 = arith.constant 0 : index
      %146 = vector.load %arg2[%c0_109, %c0_110, %c0_111, %c0_112] : memref<1x16x16x128xf32, #tpu.memory_space<vmem>>, vector<1x16x16x128xf32>
      %147 = vector.shape_cast %146 : vector<1x16x16x128xf32> to vector<16x16x128xf32>
      %148 = arith.addf %145, %147 : vector<16x16x128xf32>
      %149 = vector.shape_cast %148 : vector<16x16x128xf32> to vector<1x16x16x128xf32>
      %c0_113 = arith.constant 0 : index
      %c0_114 = arith.constant 0 : index
      %c0_115 = arith.constant 0 : index
      %c0_116 = arith.constant 0 : index
      %150 = vector.load %arg7[%c0_113, %c0_114, %c0_115, %c0_116] : memref<1x16x16x128xf32, #tpu.memory_space<vmem>>, vector<1x16x16x128xf32>
      tpu.vector_store %arg7[%c0_113, %c0_114, %c0_115, %c0_116], %149 {strides = array<i32>} : memref<1x16x16x128xf32, #tpu.memory_space<vmem>>, vector<1x16x16x128xf32>,
    } else {
    }
    return
  }
  func.func @transform_0(%arg0: i32, %arg1: i32) -> (i32, i32, i32, i32) {
    %c0_i32 = arith.constant 0 : i32
    %c0_i32_0 = arith.constant 0 : i32
    %c0_i32_1 = arith.constant 0 : i32
    %c0_i32_2 = arith.constant 0 : i32
    return %arg0, %c0_i32, %c0_i32_0, %c0_i32_1 : i32, i32, i32, i32
  }
  func.func @transform_1(%arg0: i32, %arg1: i32) -> (i32, i32, i32, i32) {
    %c0_i32 = arith.constant 0 : i32
    %c0_i32_0 = arith.constant 0 : i32
    %c0_i32_1 = arith.constant 0 : i32
    %c0_i32_2 = arith.constant 0 : i32
    %c0_i32_3 = arith.constant 0 : i32
    return %c0_i32, %c0_i32_0, %c0_i32_1, %c0_i32_2 : i32, i32, i32, i32
  }
  func.func @transform_2(%arg0: i32, %arg1: i32) -> (i32, i32, i32) {
    %c0_i32 = arith.constant 0 : i32
    %c0_i32_0 = arith.constant 0 : i32
    %c0_i32_1 = arith.constant 0 : i32
    %c0_i32_2 = arith.constant 0 : i32
    return %c0_i32, %c0_i32_0, %c0_i32_1 : i32, i32, i32
  }
  func.func @transform_3(%arg0: i32, %arg1: i32) -> (i32, i32, i32, i32) {
    %c0_i32 = arith.constant 0 : i32
    %c0_i32_0 = arith.constant 0 : i32
    %c0_i32_1 = arith.constant 0 : i32
    %c0_i32_2 = arith.constant 0 : i32
    %c0_i32_3 = arith.constant 0 : i32
    return %c0_i32, %c0_i32_0, %c0_i32_1, %c0_i32_2 : i32, i32, i32, i32
  }
  func.func @transform_4(%arg0: i32, %arg1: i32) -> (i32, i32, i32) {
    %c0_i32 = arith.constant 0 : i32
    %c0_i32_0 = arith.constant 0 : i32
    %c0_i32_1 = arith.constant 0 : i32
    %c0_i32_2 = arith.constant 0 : i32
    return %c0_i32, %c0_i32_0, %c0_i32_1 : i32, i32, i32
  }
  func.func @transform_5(%arg0: i32, %arg1: i32) -> (i32, i32, i32, i32) {
    %c0_i32 = arith.constant 0 : i32
    %c0_i32_0 = arith.constant 0 : i32
    %c0_i32_1 = arith.constant 0 : i32
    %c0_i32_2 = arith.constant 0 : i32
    return %arg0, %c0_i32, %c0_i32_0, %c0_i32_1 : i32, i32, i32, i32
  }
}

</mosaic_0001>

<llo_original>
// kernel: tpu_custom_call.1
$region0: #{tpu_custom_call.1}
  #allocation0 [shape = 'u32[]', space=smem, size = 0x4, offset = 0x4, fixed_abs, tag = 'smem constant byte address 0x4 - core index']
  #allocation1 [shape = 'u32[144,128]{1,0:T(1,128)}', space=vmem, size = 0x12000, scoped, tag = 'internal scratch']
  #allocation2 [shape = 'f32[384,128]{1,0:T(8,128)}', space=vmem, size = 0x30000, scoped, tag = 'scratch operand']
  #allocation3 [shape = 'bf16[448,128]{1,0:T(16,128)(2,1)}', space=vmem, size = 0x1c000, scoped, tag = 'scratch operand']
  %s0 = inlined_call_operand.hbm [shape: f32[2,16,16,128], index: 0, kind: input, shape index: {}]
  %s1 = inlined_call_operand.hbm [shape: bf16[2,9,128,128], index: 1, kind: input, shape index: {}]
  %s2 = inlined_call_operand.vmem [shape: f32[2,1,128], index: 2, kind: input, shape index: {}]
  %s3 = inlined_call_operand.hbm [shape: bf16[2,9,128,128], index: 3, kind: input, shape index: {}]
  %s4 = inlined_call_operand.vmem [shape: f32[2,1,128], index: 4, kind: input, shape index: {}]
  %s5 = inlined_call_operand.hbm [shape: f32[2,16,16,128], index: 5, kind: output, shape index: {}]
  %s6 = sld [smem:[#allocation0]]
  $region73: #{tpu_custom_call.1} parent=0
    _
  %s8 = ssub.s32 1, %s6
  %s9 = scalar_select 0, %s8, %s6
  $region1: #{tpu_custom_call.1} parent=0
    #allocation4 [shape = 'u8[262144]{0}', space=vmem, size = 0x40000, scoped, tag = 'input window, operand 0']
    #allocation5 [shape = 's32[2]{0}', space=sflag, size = 0x8, scoped, tag = 'scoped memory for tpu_custom_call.1']
    #allocation6 [shape = 's32[2]{0}', space=sflag, size = 0x8, scoped, tag = 'scoped memory for tpu_custom_call.1']
    #allocation7 [shape = 'u8[589824]{0}', space=vmem, size = 0x90000, scoped, tag = 'input window, operand 1, single buffered']
    #allocation8 [shape = 's32[1]{0}', space=sflag, size = 0x4, scoped, tag = 'scoped memory for tpu_custom_call.1']
    #allocation9 [shape = 'u8[589824]{0}', space=vmem, size = 0x90000, scoped, tag = 'input window, operand 3, single buffered']
    #allocation10 [shape = 'u8[262144]{0}', space=vmem, size = 0x40000, scoped, tag = 'output window, operand 0']
    %10 = vsyncpa [#allocation5], 0
    %s11 = scalar_lea.sflag [#allocation5], 1
    %12 = vsyncpa %s11, 0
    %13 = vsyncpa [#allocation8], 0
    %14 = vsyncpa [#allocation6], 0
    %s15 = scalar_lea.sflag [#allocation6], 1
    %16 = vsyncpa %s15, 0
    loop: start=0, step=1, limit=6
    $region2: #{tpu_custom_call.1} parent=1 // loop_pre_header
      _
    $region3: #{tpu_custom_call.1} parent=1 // loop_header
      %s18 = sphi 0, %s22
      %p19 = scmp.ge.s32.totalorder %s18, 6
      %s25 = sphi 0, %s37
      %s26 = sphi 0, %s33
      %s27 = sphi 0, %s25
      %s28 = sphi 0, %s26
      %s29 = sphi 0, %s27
      %s30 = sphi 0, %s28
      %s40 = sphi 0, %s42
      %s43 = sphi 0, %s40
      %s44 = sphi 0, %s43
      %s60 = sphi 0, %s44
      %s64 = sphi 0, %s64
      %s66 = sphi 0, %s64
      %s67 = sphi 0, %s66
      %s81 = sphi 0, %s67
      %s85 = sphi 0, %s85
      %s87 = sphi 0, %s85
      %s88 = sphi 0, %s87
      %s102 = sphi 0, %s88
      %s106 = sphi 0, %s106
      %s108 = sphi 0, %s106
      %s109 = sphi 0, %s108
      %s123 = sphi 0, %s109
      %s127 = sphi 0, %s127
      %s129 = sphi 0, %s127
      %s130 = sphi 0, %s129
      %s144 = sphi 0, %s130
      %s150 = sphi 0, %s152
      %s153 = sphi 0, %s150
      %s154 = sphi 0, %s153
      %s170 = sphi 0, %s154
    $region4: #{tpu_custom_call.1} parent=1 // loop_header_branch
      %21 = sbr.rel (%p19) target = $region8
    $region5: #{tpu_custom_call.1} parent=1 // loop_body
      %s23 = ssub.s32 %s18, 1
      %s24 = ssub.s32 %s18, 2
      %s31 = sadd.s32 1, %s26
      %p32 = scmp.ge.s32.totalorder %s31, 2
      %s33 = scalar_select %p32, 0, %s31
      %s34 = sadd.s32 1, %s25
      %s35 = scalar_select %p32, %s34, %s25
      %p36 = scmp.ge.s32.totalorder %s35, 2
      %s37 = scalar_select %p36, 0, %s35
      %s38 = ssub.s32 %s25, %s37
      %p39 = scmp.eq.s32.totalorder %s38, 0
      %s41 = sadd.s32 %s40, 1
      %s42 = scalar_select %p39, %s40, %s41
      %p45 = pneg %p39
      %p46 = scmp.eq.s32.totalorder %s18, 3
      %p47 = por %p45, %p46
      %p48 = scmp.ne.s32.totalorder %s40, %s43
      %p49 = scmp.eq.s32.totalorder %s18, 0
      %p50 = por %p48, %p49
      %p51 = scmp.ne.s32.totalorder %s40, %s43
      %p52 = scmp.eq.s32.totalorder %s23, 3
      %p53 = por %p51, %p52
      %p54 = scmp.ne.s32.totalorder %s43, %s44
      %p55 = scmp.eq.s32.totalorder %s23, 0
      %p56 = por %p54, %p55
      %p57 = scmp.ne.s32.totalorder %s43, %s44
      %p58 = scmp.eq.s32.totalorder %s24, 3
      %p59 = por %p57, %p58
      %p61 = scmp.ne.s32.totalorder %s44, %s60
      %p62 = scmp.eq.s32.totalorder %s24, 0
      %p63 = por %p61, %p62
      %s65 = sadd.s32 %s64, 1
      %p68 = scmp.eq.s32.totalorder %s18, 3
      %p69 = scmp.ne.s32.totalorder %s64, %s66
      %p70 = scmp.eq.s32.totalorder %s18, 0
      %p71 = por %p69, %p70
      %p72 = scmp.ne.s32.totalorder %s64, %s66
      %p73 = scmp.eq.s32.totalorder %s23, 3
      %p74 = por %p72, %p73
      %p75 = scmp.ne.s32.totalorder %s66, %s67
      %p76 = scmp.eq.s32.totalorder %s23, 0
      %p77 = por %p75, %p76
      %p78 = scmp.ne.s32.totalorder %s66, %s67
      %p79 = scmp.eq.s32.totalorder %s24, 3
      %p80 = por %p78, %p79
      %p82 = scmp.ne.s32.totalorder %s67, %s81
      %p83 = scmp.eq.s32.totalorder %s24, 0
      %p84 = por %p82, %p83
      %s86 = sadd.s32 %s85, 1
      %p89 = scmp.eq.s32.totalorder %s18, 3
      %p90 = scmp.ne.s32.totalorder %s85, %s87
      %p91 = scmp.eq.s32.totalorder %s18, 0
      %p92 = por %p90, %p91
      %p93 = scmp.ne.s32.totalorder %s85, %s87
      %p94 = scmp.eq.s32.totalorder %s23, 3
      %p95 = por %p93, %p94
      %p96 = scmp.ne.s32.totalorder %s87, %s88
      %p97 = scmp.eq.s32.totalorder %s23, 0
      %p98 = por %p96, %p97
      %p99 = scmp.ne.s32.totalorder %s87, %s88
      %p100 = scmp.eq.s32.totalorder %s24, 3
      %p101 = por %p99, %p100
      %p103 = scmp.ne.s32.totalorder %s88, %s102
      %p104 = scmp.eq.s32.totalorder %s24, 0
      %p105 = por %p103, %p104
      %s107 = sadd.s32 %s106, 1
      %p110 = scmp.eq.s32.totalorder %s18, 3
      %p111 = scmp.ne.s32.totalorder %s106, %s108
      %p112 = scmp.eq.s32.totalorder %s18, 0
      %p113 = por %p111, %p112
      %p114 = scmp.ne.s32.totalorder %s106, %s108
      %p115 = scmp.eq.s32.totalorder %s23, 3
      %p116 = por %p114, %p115
      %p117 = scmp.ne.s32.totalorder %s108, %s109
      %p118 = scmp.eq.s32.totalorder %s23, 0
      %p119 = por %p117, %p118
      %p120 = scmp.ne.s32.totalorder %s108, %s109
      %p121 = scmp.eq.s32.totalorder %s24, 3
      %p122 = por %p120, %p121
      %p124 = scmp.ne.s32.totalorder %s109, %s123
      %p125 = scmp.eq.s32.totalorder %s24, 0
      %p126 = por %p124, %p125
      %s128 = sadd.s32 %s127, 1
      %p131 = scmp.eq.s32.totalorder %s18, 3
      %p132 = scmp.ne.s32.totalorder %s127, %s129
      %p133 = scmp.eq.s32.totalorder %s18, 0
      %p134 = por %p132, %p133
      %p135 = scmp.ne.s32.totalorder %s127, %s129
      %p136 = scmp.eq.s32.totalorder %s23, 3
      %p137 = por %p135, %p136
      %p138 = scmp.ne.s32.totalorder %s129, %s130
      %p139 = scmp.eq.s32.totalorder %s23, 0
      %p140 = por %p138, %p139
      %p141 = scmp.ne.s32.totalorder %s129, %s130
      %p142 = scmp.eq.s32.totalorder %s24, 3
      %p143 = por %p141, %p142
      %p145 = scmp.ne.s32.totalorder %s130, %s144
      %p146 = scmp.eq.s32.totalorder %s24, 0
      %p147 = por %p145, %p146
      %s148 = ssub.s32 %s25, %s37
      %p149 = scmp.eq.s32.totalorder %s148, 0
      %s151 = sadd.s32 %s150, 1
      %s152 = scalar_select %p149, %s150, %s151
      %p155 = pneg %p149
      %p156 = scmp.eq.s32.totalorder %s18, 3
      %p157 = por %p155, %p156
      %p158 = scmp.ne.s32.totalorder %s150, %s153
      %p159 = scmp.eq.s32.totalorder %s18, 0
      %p160 = por %p158, %p159
      %p161 = scmp.ne.s32.totalorder %s150, %s153
      %p162 = scmp.eq.s32.totalorder %s23, 3
      %p163 = por %p161, %p162
      %p164 = scmp.ne.s32.totalorder %s153, %s154
      %p165 = scmp.eq.s32.totalorder %s23, 0
      %p166 = por %p164, %p165
      %p167 = scmp.ne.s32.totalorder %s153, %s154
      %p168 = scmp.eq.s32.totalorder %s24, 3
      %p169 = por %p167, %p168
      %p171 = scmp.ne.s32.totalorder %s154, %s170
      %p172 = scmp.eq.s32.totalorder %s24, 0
      %p173 = por %p171, %p172
      %p174 = scmp.le.s32.totalorder 1, %s18
      %p175 = scmp.lt.s32.totalorder %s18, 5
      %p176 = pnand %p174, %p175
      %p177 = pneg %p176
      // Predicated region
      $region9: #{tpu_custom_call.1} parent=5 // pred_check
        _
      $region10: #{tpu_custom_call.1} parent=5 // pred_check_branch
        %179 = sbr.rel (%p176) target = $region12
      $region11: #{tpu_custom_call.1} parent=5 // pred_region
        %s180 = ssub.s32 %s18, 1
        // Predicated region
        $region13: #{tpu_custom_call.1} parent=11 // pred_check
          %p181 = pneg %p77
        $region14: #{tpu_custom_call.1} parent=11 // pred_check_branch
          %183 = sbr.rel (%p181) target = $region16
        $region15: #{tpu_custom_call.1} parent=11 // pred_region
          %s185 = ssub.s32 18432, 18432
          %186 = vsyncadd [#allocation8], %s185
          %s187 = sshll.u32 [#allocation7], 4
          %s188 = int_to_ptr.vmem [resolvable:$true] %s187
          %193 = dma.hbm_to_vmem [thread:$0]  %s1, 18432, %s188, [#allocation8], 64, 64, 4
        $region16: #{tpu_custom_call.1} parent=11 // pred_fallthru
          _
        // Predicated region
        $region17: #{tpu_custom_call.1} parent=11 // pred_check
          %p194 = pneg %p98
        $region18: #{tpu_custom_call.1} parent=11 // pred_check_branch
          %196 = sbr.rel (%p194) target = $region20
        $region19: #{tpu_custom_call.1} parent=11 // pred_region
          _
        $region20: #{tpu_custom_call.1} parent=11 // pred_fallthru
          _
        // Predicated region
        $region21: #{tpu_custom_call.1} parent=11 // pred_check
          %p197 = pneg %p119
        $region22: #{tpu_custom_call.1} parent=11 // pred_check_branch
          %199 = sbr.rel (%p197) target = $region24
        $region23: #{tpu_custom_call.1} parent=11 // pred_region
          %s201 = ssub.s32 18432, 18432
          %202 = vsyncadd [#allocation8], %s201
          %s203 = sshll.u32 [#allocation9], 4
          %s204 = int_to_ptr.vmem [resolvable:$true] %s203
          %209 = dma.hbm_to_vmem [thread:$0]  %s3, 18432, %s204, [#allocation8], 64, 64, 4
        $region24: #{tpu_custom_call.1} parent=11 // pred_fallthru
          _
        // Predicated region
        $region25: #{tpu_custom_call.1} parent=11 // pred_check
          %p210 = pneg %p140
        $region26: #{tpu_custom_call.1} parent=11 // pred_check_branch
          %212 = sbr.rel (%p210) target = $region28
        $region27: #{tpu_custom_call.1} parent=11 // pred_region
          _
        $region28: #{tpu_custom_call.1} parent=11 // pred_fallthru
          _
      $region12: #{tpu_custom_call.1} parent=5 // pred_fallthru
        _
      %p213 = scmp.lt.s32.totalorder %s18, 4
      // Predicated region
      $region29: #{tpu_custom_call.1} parent=5 // pred_check
        %p214 = pneg %p213
      $region30: #{tpu_custom_call.1} parent=5 // pred_check_branch
        %216 = sbr.rel (%p214) target = $region32
      $region31: #{tpu_custom_call.1} parent=5 // pred_region
        // Predicated region
        $region33: #{tpu_custom_call.1} parent=31 // pred_check
          %p217 = pneg %p50
        $region34: #{tpu_custom_call.1} parent=31 // pred_check_branch
          %219 = sbr.rel (%p217) target = $region36
        $region35: #{tpu_custom_call.1} parent=31 // pred_region
          %s220 = sand.u32 %s40, 1
          %s221 = scalar_lea.sflag [#allocation5], %s220
          %s222 = sand.u32 %s40, 1
          %s223 = smul.addr %s222, 256
          %s224 = scalar_lea.vmem [#allocation4], %s223
          %s226 = ssub.s32 4096, 4096
          %227 = vsyncadd %s221, %s226
          %s228 = smul.addr %s25, 32
          %s229 = smul.addr %s228, 128
          %s230 = scalar_lea.hbm %s0, %s229
          %s231 = sshll.u32 %s224, 4
          %s232 = int_to_ptr.vmem [resolvable:$true] %s231
          %237 = dma.hbm_to_vmem [thread:$0]  %s230, 4096, %s232, %s221, 128, 128, 8
        $region36: #{tpu_custom_call.1} parent=31 // pred_fallthru
          _
      $region32: #{tpu_custom_call.1} parent=5 // pred_fallthru
        _
      %p238 = scmp.le.s32.totalorder 1, %s18
      %p239 = scmp.lt.s32.totalorder %s18, 5
      %p240 = pnand %p238, %p239
      %p241 = pneg %p240
      // Predicated region
      $region37: #{tpu_custom_call.1} parent=5 // pred_check
        _
      $region38: #{tpu_custom_call.1} parent=5 // pred_check_branch
        %243 = sbr.rel (%p240) target = $region40
      $region39: #{tpu_custom_call.1} parent=5 // pred_region
        %s244 = ssub.s32 %s18, 1
        %s245 = sand.u32 %s43, 1
        %s246 = scalar_lea.sflag [#allocation5], %s245
        %s247 = sand.u32 %s43, 1
        %s248 = smul.addr %s247, 256
        %s249 = scalar_lea.vmem [#allocation4], %s248
        // Predicated region
        $region41: #{tpu_custom_call.1} parent=39 // pred_check
          %p250 = pneg %p56
        $region42: #{tpu_custom_call.1} parent=39 // pred_check_branch
          %252 = sbr.rel (%p250) target = $region44
        $region43: #{tpu_custom_call.1} parent=39 // pred_region
          %253 = dma.done %s246, 4096
        $region44: #{tpu_custom_call.1} parent=39 // pred_fallthru
          _
        // Predicated region
        $region45: #{tpu_custom_call.1} parent=39 // pred_check
          %p254 = pneg %p77
        $region46: #{tpu_custom_call.1} parent=39 // pred_check_branch
          %256 = sbr.rel (%p254) target = $region48
        $region47: #{tpu_custom_call.1} parent=39 // pred_region
          %257 = dma.done [#allocation8], 18432
        $region48: #{tpu_custom_call.1} parent=39 // pred_fallthru
          _
        // Predicated region
        $region49: #{tpu_custom_call.1} parent=39 // pred_check
          %p258 = pneg %p119
        $region50: #{tpu_custom_call.1} parent=39 // pred_check_branch
          %260 = sbr.rel (%p258) target = $region52
        $region51: #{tpu_custom_call.1} parent=39 // pred_region
          %261 = dma.done [#allocation8], 18432
        $region52: #{tpu_custom_call.1} parent=39 // pred_fallthru
          _
        %s262 = sand.u32 %s43, 1
        %s263 = scalar_lea.sflag [#allocation5], %s262
        %s264 = sand.u32 %s43, 1
        %s265 = smul.addr %s264, 256
        %s266 = scalar_lea.vmem [#allocation4], %s265
        %p267 = pneg %p56
        %p268 = pneg %p53
        %p269 = pneg %p77
        %p270 = pneg %p74
        %p271 = pneg %p98
        %p272 = pneg %p95
        %p273 = pneg %p119
        %p274 = pneg %p116
        %p275 = pneg %p140
        %p276 = pneg %p137
        %p277 = pneg %p166
        %p278 = pneg %p163
        %s279 = sand.u32 %s153, 1
        %s280 = scalar_lea.sflag [#allocation6], %s279
        %s281 = sand.u32 %s153, 1
        %s282 = smul.addr %s281, 256
        %s283 = scalar_lea.vmem [#allocation10], %s282
        %v285 = vlaneseq
        %v286 = vshrl.u32 %v285, 7
        %v287 = vadd.s32 %v286, 8
        %v288 = vadd.s32 %v286, 16
        %vm289 = vcmp.lt.s32.totalorder %v286, 16
        %vm290 = vcmp.lt.s32.totalorder %v287, 16
        %vm291 = vcmp.lt.s32.totalorder %v288, 16
        %p292 = scmp.eq.s32.totalorder %s28, 0
        // Predicated region
        $region53: #{tpu_custom_call.1} parent=39 // pred_check
          %p293 = pneg %p292
        $region54: #{tpu_custom_call.1} parent=39 // pred_check_branch
          %295 = sbr.rel (%p293) target = $region56
        $region55: #{tpu_custom_call.1} parent=39 // pred_region
          %296 = vst [vmem:[#allocation3] sm:$0xff] 0
          %297 = vst [vmem:[#allocation3 + $0x8] sm:$0xff] 0
          %298 = vst [vmem:[#allocation3 + $0x10] sm:$0xff] 0
          %299 = vst [vmem:[#allocation3 + $0x18] sm:$0xff] 0
          %300 = vst [vmem:[#allocation3 + $0x20] sm:$0xff] 0
          %301 = vst [vmem:[#allocation3 + $0x28] sm:$0xff] 0
          %302 = vst [vmem:[#allocation3 + $0x30] sm:$0xff] 0
          %303 = vst [vmem:[#allocation3 + $0x38] sm:$0xff] 0
          %304 = vst [vmem:[#allocation3 + $0x40] sm:$0xff] 0
          %305 = vst [vmem:[#allocation3 + $0x48] sm:$0xff] 0
          %306 = vst [vmem:[#allocation3 + $0x50] sm:$0xff] 0
          %307 = vst [vmem:[#allocation3 + $0x58] sm:$0xff] 0
          %308 = vst [vmem:[#allocation3 + $0x60] sm:$0xff] 0
          %309 = vst [vmem:[#allocation3 + $0x68] sm:$0xff] 0
          %310 = vst [vmem:[#allocation3 + $0x70] sm:$0xff] 0
          %311 = vst [vmem:[#allocation3 + $0x78] sm:$0xff] 0
          %312 = vst [vmem:[#allocation3 + $0x80] sm:$0xff] 0
          %313 = vst [vmem:[#allocation3 + $0x88] sm:$0xff] 0
          %314 = vst [vmem:[#allocation3 + $0x90] sm:$0xff] 0
          %315 = vst [vmem:[#allocation3 + $0x98] sm:$0xff] 0
          %316 = vst [vmem:[#allocation3 + $0xa0] sm:$0xff] 0
          %317 = vst [vmem:[#allocation3 + $0xa8] sm:$0xff] 0
          %318 = vst [vmem:[#allocation3 + $0xb0] sm:$0xff] 0
          %319 = vst [vmem:[#allocation3 + $0xb8] sm:$0xff] 0
          %320 = vst [vmem:[#allocation3 + $0xc0] sm:$0xff] 0
          %321 = vst [vmem:[#allocation3 + $0xc8] sm:$0xff] 0
          %322 = vst [vmem:[#allocation3 + $0xd0] sm:$0xff] 0
          %323 = vst [vmem:[#allocation3 + $0xd8] sm:$0xff] 0
          %v324 = vld [vmem:[%s249] sm:$0xff]
          %v325 = vld [vmem:[%s249 + $0x8] sm:$0xff]
          %326 = vst [vmem:[#allocation2] sm:$0xff] %v324
          %327 = vst [vmem:[#allocation2 + $0x8] sm:$0xff] %v325
          %s328 = scalar_lea.vmem %s249, 16 [#allocation4]
          %v329 = vld [vmem:[%s328] sm:$0xff]
          %v330 = vld [vmem:[%s328 + $0x8] sm:$0xff]
          %331 = vst [vmem:[#allocation2 + $0x18] sm:$0xff] %v329
          %332 = vst [vmem:[#allocation2 + $0x20] sm:$0xff] %v330
          %s333 = scalar_lea.vmem %s249, 32 [#allocation4]
          %v334 = vld [vmem:[%s333] sm:$0xff]
          %v335 = vld [vmem:[%s333 + $0x8] sm:$0xff]
          %336 = vst [vmem:[#allocation2 + $0x30] sm:$0xff] %v334
          %337 = vst [vmem:[#allocation2 + $0x38] sm:$0xff] %v335
          %s338 = scalar_lea.vmem %s249, 48 [#allocation4]
          %v339 = vld [vmem:[%s338] sm:$0xff]
          %v340 = vld [vmem:[%s338 + $0x8] sm:$0xff]
          %341 = vst [vmem:[#allocation2 + $0x48] sm:$0xff] %v339
          %342 = vst [vmem:[#allocation2 + $0x50] sm:$0xff] %v340
          %s343 = scalar_lea.vmem %s249, 64 [#allocation4]
          %v344 = vld [vmem:[%s343] sm:$0xff]
          %v345 = vld [vmem:[%s343 + $0x8] sm:$0xff]
          %346 = vst [vmem:[#allocation2 + $0x60] sm:$0xff] %v344
          %347 = vst [vmem:[#allocation2 + $0x68] sm:$0xff] %v345
          %s348 = scalar_lea.vmem %s249, 80 [#allocation4]
          %v349 = vld [vmem:[%s348] sm:$0xff]
          %v350 = vld [vmem:[%s348 + $0x8] sm:$0xff]
          %351 = vst [vmem:[#allocation2 + $0x78] sm:$0xff] %v349
          %352 = vst [vmem:[#allocation2 + $0x80] sm:$0xff] %v350
          %s353 = scalar_lea.vmem %s249, 96 [#allocation4]
          %v354 = vld [vmem:[%s353] sm:$0xff]
          %v355 = vld [vmem:[%s353 + $0x8] sm:$0xff]
          %356 = vst [vmem:[#allocation2 + $0x90] sm:$0xff] %v354
          %357 = vst [vmem:[#allocation2 + $0x98] sm:$0xff] %v355
          %s358 = scalar_lea.vmem %s249, 112 [#allocation4]
          %v359 = vld [vmem:[%s358] sm:$0xff]
          %v360 = vld [vmem:[%s358 + $0x8] sm:$0xff]
          %361 = vst [vmem:[#allocation2 + $0xa8] sm:$0xff] %v359
          %362 = vst [vmem:[#allocation2 + $0xb0] sm:$0xff] %v360
          %s363 = scalar_lea.vmem %s249, 128 [#allocation4]
          %v364 = vld [vmem:[%s363] sm:$0xff]
          %v365 = vld [vmem:[%s363 + $0x8] sm:$0xff]
          %366 = vst [vmem:[#allocation2 + $0xc0] sm:$0xff] %v364
          %367 = vst [vmem:[#allocation2 + $0xc8] sm:$0xff] %v365
          %s368 = scalar_lea.vmem %s249, 144 [#allocation4]
          %v369 = vld [vmem:[%s368] sm:$0xff]
          %v370 = vld [vmem:[%s368 + $0x8] sm:$0xff]
          %371 = vst [vmem:[#allocation2 + $0xd8] sm:$0xff] %v369
          %372 = vst [vmem:[#allocation2 + $0xe0] sm:$0xff] %v370
          %s373 = scalar_lea.vmem %s249, 160 [#allocation4]
          %v374 = vld [vmem:[%s373] sm:$0xff]
          %v375 = vld [vmem:[%s373 + $0x8] sm:$0xff]
          %376 = vst [vmem:[#allocation2 + $0xf0] sm:$0xff] %v374
          %377 = vst [vmem:[#allocation2 + $0xf8] sm:$0xff] %v375
          %s378 = scalar_lea.vmem %s249, 176 [#allocation4]
          %v379 = vld [vmem:[%s378] sm:$0xff]
          %v380 = vld [vmem:[%s378 + $0x8] sm:$0xff]
          %381 = vst [vmem:[#allocation2 + $0x108] sm:$0xff] %v379
          %382 = vst [vmem:[#allocation2 + $0x110] sm:$0xff] %v380
          %s383 = scalar_lea.vmem %s249, 192 [#allocation4]
          %v384 = vld [vmem:[%s383] sm:$0xff]
          %v385 = vld [vmem:[%s383 + $0x8] sm:$0xff]
          %386 = vst [vmem:[#allocation2 + $0x120] sm:$0xff] %v384
          %387 = vst [vmem:[#allocation2 + $0x128] sm:$0xff] %v385
          %s388 = scalar_lea.vmem %s249, 208 [#allocation4]
          %v389 = vld [vmem:[%s388] sm:$0xff]
          %v390 = vld [vmem:[%s388 + $0x8] sm:$0xff]
          %391 = vst [vmem:[#allocation2 + $0x138] sm:$0xff] %v389
          %392 = vst [vmem:[#allocation2 + $0x140] sm:$0xff] %v390
          %s393 = scalar_lea.vmem %s249, 224 [#allocation4]
          %v394 = vld [vmem:[%s393] sm:$0xff]
          %v395 = vld [vmem:[%s393 + $0x8] sm:$0xff]
          %396 = vst [vmem:[#allocation2 + $0x150] sm:$0xff] %v394
          %397 = vst [vmem:[#allocation2 + $0x158] sm:$0xff] %v395
          %s398 = scalar_lea.vmem %s249, 240 [#allocation4]
          %v399 = vld [vmem:[%s398] sm:$0xff]
          %v400 = vld [vmem:[%s398 + $0x8] sm:$0xff]
          %401 = vst [vmem:[#allocation2 + $0x168] sm:$0xff] %v399
          %402 = vst [vmem:[#allocation2 + $0x170] sm:$0xff] %v400
        $region56: #{tpu_custom_call.1} parent=39 // pred_fallthru
          _
        %v403 = vld [vmem:[#allocation2] sm:$0xff]
        %v404 = vld [vmem:[#allocation2 + $0x8] sm:$0xff]
        %v405 = vld [vmem:[#allocation2 + $0x10] sm:$0xff]
        %v406 = vld [vmem:[#allocation2 + $0x18] sm:$0xff]
        %v407 = vld [vmem:[#allocation2 + $0x20] sm:$0xff]
        %v408 = vld [vmem:[#allocation2 + $0x28] sm:$0xff]
        %v409 = vld [vmem:[#allocation2 + $0x30] sm:$0xff]
        %v410 = vld [vmem:[#allocation2 + $0x38] sm:$0xff]
        %v411 = vld [vmem:[#allocation2 + $0x40] sm:$0xff]
        %v412 = vld [vmem:[#allocation2 + $0x48] sm:$0xff]
        %v413 = vld [vmem:[#allocation2 + $0x50] sm:$0xff]
        %v414 = vld [vmem:[#allocation2 + $0x58] sm:$0xff]
        %v415 = vld [vmem:[#allocation2 + $0x60] sm:$0xff]
        %v416 = vld [vmem:[#allocation2 + $0x68] sm:$0xff]
        %v417 = vld [vmem:[#allocation2 + $0x70] sm:$0xff]
        %v418 = vld [vmem:[#allocation2 + $0x78] sm:$0xff]
        %v419 = vld [vmem:[#allocation2 + $0x80] sm:$0xff]
        %v420 = vld [vmem:[#allocation2 + $0x88] sm:$0xff]
        %v421 = vld [vmem:[#allocation2 + $0x90] sm:$0xff]
        %v422 = vld [vmem:[#allocation2 + $0x98] sm:$0xff]
        %v423 = vld [vmem:[#allocation2 + $0xa0] sm:$0xff]
        %v424 = vld [vmem:[#allocation2 + $0xa8] sm:$0xff]
        %v425 = vld [vmem:[#allocation2 + $0xb0] sm:$0xff]
        %v426 = vld [vmem:[#allocation2 + $0xb8] sm:$0xff]
        %v427 = vld [vmem:[#allocation2 + $0xc0] sm:$0xff]
        %v428 = vld [vmem:[#allocation2 + $0xc8] sm:$0xff]
        %v429 = vld [vmem:[#allocation2 + $0xd0] sm:$0xff]
        %v430 = vld [vmem:[#allocation2 + $0xd8] sm:$0xff]
        %v431 = vld [vmem:[#allocation2 + $0xe0] sm:$0xff]
        %v432 = vld [vmem:[#allocation2 + $0xe8] sm:$0xff]
        %v433 = vld [vmem:[#allocation2 + $0xf0] sm:$0xff]
        %v434 = vld [vmem:[#allocation2 + $0xf8] sm:$0xff]
        %v435 = vld [vmem:[#allocation2 + $0x100] sm:$0xff]
        %v436 = vld [vmem:[#allocation2 + $0x108] sm:$0xff]
        %v437 = vld [vmem:[#allocation2 + $0x110] sm:$0xff]
        %v438 = vld [vmem:[#allocation2 + $0x118] sm:$0xff]
        %v439 = vld [vmem:[#allocation2 + $0x120] sm:$0xff]
        %v440 = vld [vmem:[#allocation2 + $0x128] sm:$0xff]
        %v441 = vld [vmem:[#allocation2 + $0x130] sm:$0xff]
        %v442 = vld [vmem:[#allocation2 + $0x138] sm:$0xff]
        %v443 = vld [vmem:[#allocation2 + $0x140] sm:$0xff]
        %v444 = vld [vmem:[#allocation2 + $0x148] sm:$0xff]
        %v445 = vld [vmem:[#allocation2 + $0x150] sm:$0xff]
        %v446 = vld [vmem:[#allocation2 + $0x158] sm:$0xff]
        %v447 = vld [vmem:[#allocation2 + $0x160] sm:$0xff]
        %v448 = vld [vmem:[#allocation2 + $0x168] sm:$0xff]
        %v449 = vld [vmem:[#allocation2 + $0x170] sm:$0xff]
        %v450 = vld [vmem:[#allocation2 + $0x178] sm:$0xff]
        %v451 = vmax.f32 %v403, 0.0
        %v452 = vmax.f32 %v404, 0.0
        %v453 = vmax.f32 %v405, 0.0
        %v454 = vmax.f32 %v406, 0.0
        %v455 = vmax.f32 %v407, 0.0
        %v456 = vmax.f32 %v408, 0.0
        %v457 = vmax.f32 %v409, 0.0
        %v458 = vmax.f32 %v410, 0.0
        %v459 = vmax.f32 %v411, 0.0
        %v460 = vmax.f32 %v412, 0.0
        %v461 = vmax.f32 %v413, 0.0
        %v462 = vmax.f32 %v414, 0.0
        %v463 = vmax.f32 %v415, 0.0
        %v464 = vmax.f32 %v416, 0.0
        %v465 = vmax.f32 %v417, 0.0
        %v466 = vmax.f32 %v418, 0.0
        %v467 = vmax.f32 %v419, 0.0
        %v468 = vmax.f32 %v420, 0.0
        %v469 = vmax.f32 %v421, 0.0
        %v470 = vmax.f32 %v422, 0.0
        %v471 = vmax.f32 %v423, 0.0
        %v472 = vmax.f32 %v424, 0.0
        %v473 = vmax.f32 %v425, 0.0
        %v474 = vmax.f32 %v426, 0.0
        %v475 = vmax.f32 %v427, 0.0
        %v476 = vmax.f32 %v428, 0.0
        %v477 = vmax.f32 %v429, 0.0
        %v478 = vmax.f32 %v430, 0.0
        %v479 = vmax.f32 %v431, 0.0
        %v480 = vmax.f32 %v432, 0.0
        %v481 = vmax.f32 %v433, 0.0
        %v482 = vmax.f32 %v434, 0.0
        %v483 = vmax.f32 %v435, 0.0
        %v484 = vmax.f32 %v436, 0.0
        %v485 = vmax.f32 %v437, 0.0
        %v486 = vmax.f32 %v438, 0.0
        %v487 = vmax.f32 %v439, 0.0
        %v488 = vmax.f32 %v440, 0.0
        %v489 = vmax.f32 %v441, 0.0
        %v490 = vmax.f32 %v442, 0.0
        %v491 = vmax.f32 %v443, 0.0
        %v492 = vmax.f32 %v444, 0.0
        %v493 = vmax.f32 %v445, 0.0
        %v494 = vmax.f32 %v446, 0.0
        %v495 = vmax.f32 %v447, 0.0
        %v496 = vmax.f32 %v448, 0.0
        %v497 = vmax.f32 %v449, 0.0
        %v498 = vmax.f32 %v450, 0.0
        %v499 = vsel %vm289, %v451, 0.0
        %v500 = vsel %vm290, %v452, 0.0
        %v501 = vsel %vm291, %v453, 0.0
        %v502 = vsel %vm289, %v454, 0.0
        %v503 = vsel %vm290, %v455, 0.0
        %v504 = vsel %vm291, %v456, 0.0
        %v505 = vsel %vm289, %v457, 0.0
        %v506 = vsel %vm290, %v458, 0.0
        %v507 = vsel %vm291, %v459, 0.0
        %v508 = vsel %vm289, %v460, 0.0
        %v509 = vsel %vm290, %v461, 0.0
        %v510 = vsel %vm291, %v462, 0.0
        %v511 = vsel %vm289, %v463, 0.0
        %v512 = vsel %vm290, %v464, 0.0
        %v513 = vsel %vm291, %v465, 0.0
        %v514 = vsel %vm289, %v466, 0.0
        %v515 = vsel %vm290, %v467, 0.0
        %v516 = vsel %vm291, %v468, 0.0
        %v517 = vsel %vm289, %v469, 0.0
        %v518 = vsel %vm290, %v470, 0.0
        %v519 = vsel %vm291, %v471, 0.0
        %v520 = vsel %vm289, %v472, 0.0
        %v521 = vsel %vm290, %v473, 0.0
        %v522 = vsel %vm291, %v474, 0.0
        %v523 = vsel %vm289, %v475, 0.0
        %v524 = vsel %vm290, %v476, 0.0
        %v525 = vsel %vm291, %v477, 0.0
        %v526 = vsel %vm289, %v478, 0.0
        %v527 = vsel %vm290, %v479, 0.0
        %v528 = vsel %vm291, %v480, 0.0
        %v529 = vsel %vm289, %v481, 0.0
        %v530 = vsel %vm290, %v482, 0.0
        %v531 = vsel %vm291, %v483, 0.0
        %v532 = vsel %vm289, %v484, 0.0
        %v533 = vsel %vm290, %v485, 0.0
        %v534 = vsel %vm291, %v486, 0.0
        %v535 = vsel %vm289, %v487, 0.0
        %v536 = vsel %vm290, %v488, 0.0
        %v537 = vsel %vm291, %v489, 0.0
        %v538 = vsel %vm289, %v490, 0.0
        %v539 = vsel %vm290, %v491, 0.0
        %v540 = vsel %vm291, %v492, 0.0
        %v541 = vsel %vm289, %v493, 0.0
        %v542 = vsel %vm290, %v494, 0.0
        %v543 = vsel %vm291, %v495, 0.0
        %v544 = vsel %vm289, %v496, 0.0
        %v545 = vsel %vm290, %v497, 0.0
        %v546 = vsel %vm291, %v498, 0.0
        %v547 = vpack.c.bf16 %v500, %v499
        %v548 = vpack.c.bf16 %v501, %v501
        %v549 = vpack.c.bf16 %v503, %v502
        %v550 = vpack.c.bf16 %v504, %v504
        %v551 = vpack.c.bf16 %v506, %v505
        %v552 = vpack.c.bf16 %v507, %v507
        %v553 = vpack.c.bf16 %v509, %v508
        %v554 = vpack.c.bf16 %v510, %v510
        %v555 = vpack.c.bf16 %v512, %v511
        %v556 = vpack.c.bf16 %v513, %v513
        %v557 = vpack.c.bf16 %v515, %v514
        %v558 = vpack.c.bf16 %v516, %v516
        %v559 = vpack.c.bf16 %v518, %v517
        %v560 = vpack.c.bf16 %v519, %v519
        %v561 = vpack.c.bf16 %v521, %v520
        %v562 = vpack.c.bf16 %v522, %v522
        %v563 = vpack.c.bf16 %v524, %v523
        %v564 = vpack.c.bf16 %v525, %v525
        %v565 = vpack.c.bf16 %v527, %v526
        %v566 = vpack.c.bf16 %v528, %v528
        %v567 = vpack.c.bf16 %v530, %v529
        %v568 = vpack.c.bf16 %v531, %v531
        %v569 = vpack.c.bf16 %v533, %v532
        %v570 = vpack.c.bf16 %v534, %v534
        %v571 = vpack.c.bf16 %v536, %v535
        %v572 = vpack.c.bf16 %v537, %v537
        %v573 = vpack.c.bf16 %v539, %v538
        %v574 = vpack.c.bf16 %v540, %v540
        %v575 = vpack.c.bf16 %v542, %v541
        %v576 = vpack.c.bf16 %v543, %v543
        %v577 = vpack.c.bf16 %v545, %v544
        %v578 = vpack.c.bf16 %v546, %v546
        %v611 = vunpack.c.l.b16 %v547
        %v612 = vunpack.c.h.b16 %v547
        %v613 = vunpack.c.l.b16 %v548
        %v614 = vunpack.c.l.b16 %v549
        %v615 = vunpack.c.h.b16 %v549
        %v616 = vunpack.c.l.b16 %v550
        %v617 = vunpack.c.l.b16 %v551
        %v618 = vunpack.c.h.b16 %v551
        %v619 = vunpack.c.l.b16 %v552
        %v620 = vunpack.c.l.b16 %v553
        %v621 = vunpack.c.h.b16 %v553
        %v622 = vunpack.c.l.b16 %v554
        %v623 = vunpack.c.l.b16 %v555
        %v624 = vunpack.c.h.b16 %v555
        %v625 = vunpack.c.l.b16 %v556
        %v626 = vunpack.c.l.b16 %v557
        %v627 = vunpack.c.h.b16 %v557
        %v628 = vunpack.c.l.b16 %v558
        %v629 = vunpack.c.l.b16 %v559
        %v630 = vunpack.c.h.b16 %v559
        %v631 = vunpack.c.l.b16 %v560
        %v632 = vunpack.c.l.b16 %v561
        %v633 = vunpack.c.h.b16 %v561
        %v634 = vunpack.c.l.b16 %v562
        %v635 = vunpack.c.l.b16 %v563
        %v636 = vunpack.c.h.b16 %v563
        %v637 = vunpack.c.l.b16 %v564
        %v638 = vunpack.c.l.b16 %v565
        %v639 = vunpack.c.h.b16 %v565
        %v640 = vunpack.c.l.b16 %v566
        %v641 = vunpack.c.l.b16 %v567
        %v642 = vunpack.c.h.b16 %v567
        %v643 = vunpack.c.l.b16 %v568
        %v644 = vunpack.c.l.b16 %v569
        %v645 = vunpack.c.h.b16 %v569
        %v646 = vunpack.c.l.b16 %v570
        %v647 = vunpack.c.l.b16 %v571
        %v648 = vunpack.c.h.b16 %v571
        %v649 = vunpack.c.l.b16 %v572
        %v650 = vunpack.c.l.b16 %v573
        %v651 = vunpack.c.h.b16 %v573
        %v652 = vunpack.c.l.b16 %v574
        %v653 = vunpack.c.l.b16 %v575
        %v654 = vunpack.c.h.b16 %v575
        %v655 = vunpack.c.l.b16 %v576
        %v656 = vunpack.c.l.b16 %v577
        %v657 = vunpack.c.h.b16 %v577
        %v658 = vunpack.c.l.b16 %v578
        %v659 = vpack.c.b16 %v612, %v611
        %v660 = vpack.c.b16 %v614, %v613
        %v661 = vpack.c.b16 %v616, %v615
        %v662 = vpack.c.b16 %v618, %v617
        %v663 = vpack.c.b16 %v620, %v619
        %v664 = vpack.c.b16 %v622, %v621
        %v665 = vpack.c.b16 %v624, %v623
        %v666 = vpack.c.b16 %v626, %v625
        %v667 = vpack.c.b16 %v628, %v627
        %v668 = vpack.c.b16 %v630, %v629
        %v669 = vpack.c.b16 %v632, %v631
        %v670 = vpack.c.b16 %v634, %v633
        %v671 = vpack.c.b16 %v636, %v635
        %v672 = vpack.c.b16 %v638, %v637
        %v673 = vpack.c.b16 %v640, %v639
        %v674 = vpack.c.b16 %v642, %v641
        %v675 = vpack.c.b16 %v644, %v643
        %v676 = vpack.c.b16 %v646, %v645
        %v677 = vpack.c.b16 %v648, %v647
        %v678 = vpack.c.b16 %v650, %v649
        %v679 = vpack.c.b16 %v652, %v651
        %v680 = vpack.c.b16 %v654, %v653
        %v681 = vpack.c.b16 %v656, %v655
        %v682 = vpack.c.b16 %v658, %v657
        %707 = vst [vmem:[#allocation3 + $0x10] sm:$0xff] %v659
        %708 = vst [vmem:[#allocation3 + $0x18] sm:$0xff] %v660
        %709 = vst [vmem:[#allocation3 + $0x20] sm:$0xff] %v661
        %710 = vst [vmem:[#allocation3 + $0x28] sm:$0xff] %v662
        %711 = vst [vmem:[#allocation3 + $0x30] sm:$0xff] %v663
        %712 = vst [vmem:[#allocation3 + $0x38] sm:$0xff] %v664
        %713 = vst [vmem:[#allocation3 + $0x40] sm:$0xff] %v665
        %714 = vst [vmem:[#allocation3 + $0x48] sm:$0xff] %v666
        %715 = vst [vmem:[#allocation3 + $0x50] sm:$0xff] %v667
        %716 = vst [vmem:[#allocation3 + $0x58] sm:$0xff] %v668
        %717 = vst [vmem:[#allocation3 + $0x60] sm:$0xff] %v669
        %718 = vst [vmem:[#allocation3 + $0x68] sm:$0xff] %v670
        %719 = vst [vmem:[#allocation3 + $0x70] sm:$0xff] %v671
        %720 = vst [vmem:[#allocation3 + $0x78] sm:$0xff] %v672
        %721 = vst [vmem:[#allocation3 + $0x80] sm:$0xff] %v673
        %722 = vst [vmem:[#allocation3 + $0x88] sm:$0xff] %v674
        %723 = vst [vmem:[#allocation3 + $0x90] sm:$0xff] %v675
        %724 = vst [vmem:[#allocation3 + $0x98] sm:$0xff] %v676
        %725 = vst [vmem:[#allocation3 + $0xa0] sm:$0xff] %v677
        %726 = vst [vmem:[#allocation3 + $0xa8] sm:$0xff] %v678
        %727 = vst [vmem:[#allocation3 + $0xb0] sm:$0xff] %v679
        %728 = vst [vmem:[#allocation3 + $0xb8] sm:$0xff] %v680
        %729 = vst [vmem:[#allocation3 + $0xc0] sm:$0xff] %v681
        %730 = vst [vmem:[#allocation3 + $0xc8] sm:$0xff] %v682
        %v731 = vld [vmem:[#allocation3] sm:$0xf8]
        %v732 = vld [vmem:[#allocation3 + $0x8] sm:$0xff]
        %v733 = vld [vmem:[#allocation3 + $0x10] sm:$0xff]
        %v734 = vld [vmem:[#allocation3 + $0x18] sm:$0xff]
        %v735 = vld [vmem:[#allocation3 + $0x20] sm:$0xff]
        %v736 = vld [vmem:[#allocation3 + $0x28] sm:$0xff]
        %v737 = vld [vmem:[#allocation3 + $0x30] sm:$0xff]
        %v738 = vld [vmem:[#allocation3 + $0x38] sm:$0xff]
        %v739 = vld [vmem:[#allocation3 + $0x40] sm:$0xff]
        %v740 = vld [vmem:[#allocation3 + $0x48] sm:$0xff]
        %v741 = vld [vmem:[#allocation3 + $0x50] sm:$0xff]
        %v742 = vld [vmem:[#allocation3 + $0x58] sm:$0xff]
        %v743 = vld [vmem:[#allocation3 + $0x60] sm:$0xff]
        %v744 = vld [vmem:[#allocation3 + $0x68] sm:$0xff]
        %v745 = vld [vmem:[#allocation3 + $0x70] sm:$0xff]
        %v746 = vld [vmem:[#allocation3 + $0x78] sm:$0xff]
        %v747 = vld [vmem:[#allocation3 + $0x80] sm:$0xff]
        %v748 = vld [vmem:[#allocation3 + $0x88] sm:$0xff]
        %v749 = vld [vmem:[#allocation3 + $0x90] sm:$0xff]
        %v750 = vld [vmem:[#allocation3 + $0x98] sm:$0xff]
        %v751 = vld [vmem:[#allocation3 + $0xa0] sm:$0xff]
        %v752 = vld [vmem:[#allocation3 + $0xa8] sm:$0xff]
        %v753 = vld [vmem:[#allocation3 + $0xb0] sm:$0xff]
        %v754 = vld [vmem:[#allocation3 + $0xb8] sm:$0xff]
        %v755 = vld [vmem:[#allocation3 + $0xc0] sm:$0xf]
        %s756 = smul.u32 %s28, 144
        %s757 = smul.addr %s756, 4
        %s758 = scalar_lea.vmem [#allocation7], %s757
        %v759 = vld [vmem:[%s758] sm:$0xf]
        %v760 = vld [vmem:[%s758 + $0x4] sm:$0xf]
        %v761 = vld [vmem:[%s758 + $0x8] sm:$0xf]
        %v762 = vld [vmem:[%s758 + $0xc] sm:$0xf]
        %v763 = vld [vmem:[%s758 + $0x10] sm:$0xf]
        %v764 = vld [vmem:[%s758 + $0x14] sm:$0xf]
        %v765 = vld [vmem:[%s758 + $0x18] sm:$0xf]
        %v766 = vld [vmem:[%s758 + $0x1c] sm:$0xf]
        %v767 = vld [vmem:[%s758 + $0x20] sm:$0xf]
        %v768 = vld [vmem:[%s758 + $0x24] sm:$0xf]
        %v769 = vld [vmem:[%s758 + $0x28] sm:$0xf]
        %v770 = vld [vmem:[%s758 + $0x2c] sm:$0xf]
        %v771 = vld [vmem:[%s758 + $0x30] sm:$0xf]
        %v772 = vld [vmem:[%s758 + $0x34] sm:$0xf]
        %v773 = vld [vmem:[%s758 + $0x38] sm:$0xf]
        %v774 = vld [vmem:[%s758 + $0x3c] sm:$0xf]
        %v775 = vld [vmem:[#allocation3] sm:$0xf0]
        %s776 = sadd.s32 16, %s756
        %s777 = smul.addr %s776, 4
        %s778 = scalar_lea.vmem [#allocation7], %s777
        %v779 = vld [vmem:[%s778] sm:$0xf]
        %v780 = vld [vmem:[%s778 + $0x4] sm:$0xf]
        %v781 = vld [vmem:[%s778 + $0x8] sm:$0xf]
        %v782 = vld [vmem:[%s778 + $0xc] sm:$0xf]
        %v783 = vld [vmem:[%s778 + $0x10] sm:$0xf]
        %v784 = vld [vmem:[%s778 + $0x14] sm:$0xf]
        %v785 = vld [vmem:[%s778 + $0x18] sm:$0xf]
        %v786 = vld [vmem:[%s778 + $0x1c] sm:$0xf]
        %v787 = vld [vmem:[%s778 + $0x20] sm:$0xf]
        %v788 = vld [vmem:[%s778 + $0x24] sm:$0xf]
        %v789 = vld [vmem:[%s778 + $0x28] sm:$0xf]
        %v790 = vld [vmem:[%s778 + $0x2c] sm:$0xf]
        %v791 = vld [vmem:[%s778 + $0x30] sm:$0xf]
        %v792 = vld [vmem:[%s778 + $0x34] sm:$0xf]
        %v793 = vld [vmem:[%s778 + $0x38] sm:$0xf]
        %v794 = vld [vmem:[%s778 + $0x3c] sm:$0xf]
        %vm820 = vcmask 1043456
        %v821 = vrot.slane %v775, 4
        %v822 = vrot.slane %v732, 4
        %v823 = vsel %vm820, %v821, %v822
        %v824 = vrot.slane %v733, 4
        %v825 = vsel %vm820, %v822, %v824
        %v826 = vrot.slane %v734, 4
        %v827 = vsel %vm820, %v824, %v826
        %v828 = vrot.slane %v735, 4
        %v829 = vsel %vm820, %v826, %v828
        %v830 = vrot.slane %v736, 4
        %v831 = vsel %vm820, %v828, %v830
        %v832 = vrot.slane %v737, 4
        %v833 = vsel %vm820, %v830, %v832
        %v834 = vrot.slane %v738, 4
        %v835 = vsel %vm820, %v832, %v834
        %v836 = vrot.slane %v739, 4
        %v837 = vsel %vm820, %v834, %v836
        %v838 = vrot.slane %v740, 4
        %v839 = vsel %vm820, %v836, %v838
        %v840 = vrot.slane %v741, 4
        %v841 = vsel %vm820, %v838, %v840
        %v842 = vrot.slane %v742, 4
        %v843 = vsel %vm820, %v840, %v842
        %v844 = vrot.slane %v743, 4
        %v845 = vsel %vm820, %v842, %v844
        %v846 = vrot.slane %v744, 4
        %v847 = vsel %vm820, %v844, %v846
        %v848 = vrot.slane %v745, 4
        %v849 = vsel %vm820, %v846, %v848
        %v850 = vrot.slane %v746, 4
        %v851 = vsel %vm820, %v848, %v850
        %v852 = vrot.slane %v747, 4
        %v853 = vsel %vm820, %v850, %v852
        %v854 = vrot.slane %v748, 4
        %v855 = vsel %vm820, %v852, %v854
        %v856 = vrot.slane %v749, 4
        %v857 = vsel %vm820, %v854, %v856
        %v858 = vrot.slane %v750, 4
        %v859 = vsel %vm820, %v856, %v858
        %v860 = vrot.slane %v751, 4
        %v861 = vsel %vm820, %v858, %v860
        %v862 = vrot.slane %v752, 4
        %v863 = vsel %vm820, %v860, %v862
        %v864 = vrot.slane %v753, 4
        %v865 = vsel %vm820, %v862, %v864
        %v866 = vrot.slane %v754, 4
        %v867 = vsel %vm820, %v864, %v866
        %v868 = vrot.slane %v755, 4
        %v869 = vsel %vm820, %v866, %v868
        %v910 = vunpack.c.l.b16 %v779
        %v911 = vunpack.c.l.b16 %v780
        %v912 = vunpack.c.l.b16 %v781
        %v913 = vunpack.c.l.b16 %v782
        %v914 = vunpack.c.l.b16 %v783
        %v915 = vunpack.c.l.b16 %v784
        %v916 = vunpack.c.l.b16 %v785
        %v917 = vunpack.c.l.b16 %v786
        %v918 = vunpack.c.l.b16 %v787
        %v919 = vunpack.c.l.b16 %v788
        %v920 = vunpack.c.l.b16 %v789
        %v921 = vunpack.c.l.b16 %v790
        %v922 = vunpack.c.l.b16 %v791
        %v923 = vunpack.c.l.b16 %v792
        %v924 = vunpack.c.l.b16 %v793
        %v925 = vunpack.c.l.b16 %v794
        %v926 = vpack.c.b16 %v911, %v910
        %v927 = vpack.c.b16 %v913, %v912
        %v928 = vpack.c.b16 %v915, %v914
        %v929 = vpack.c.b16 %v917, %v916
        %v930 = vpack.c.b16 %v919, %v918
        %v931 = vpack.c.b16 %v921, %v920
        %v932 = vpack.c.b16 %v923, %v922
        %v933 = vpack.c.b16 %v925, %v924
        %942 = vmatprep.subr.bf16.mxu0 0
        %943 = vmatpush1.bf16.msra.mxu0 %v926
        %944 = vmatprep.subr.bf16.mxu0 0
        %945 = vmatpush1.bf16.msra.mxu0 %v927
        %946 = vmatprep.subr.bf16.mxu0 0
        %947 = vmatpush1.bf16.msra.mxu0 %v928
        %948 = vmatprep.subr.bf16.mxu0 0
        %949 = vmatpush1.bf16.msra.mxu0 %v929
        %950 = vmatprep.subr.bf16.mxu0 0
        %951 = vmatpush1.bf16.msra.mxu0 %v930
        %952 = vmatprep.subr.bf16.mxu0 0
        %953 = vmatpush1.bf16.msra.mxu0 %v931
        %954 = vmatprep.subr.bf16.mxu0 0
        %955 = vmatpush1.bf16.msra.mxu0 %v932
        %956 = vmatprep.subr.bf16.mxu0 0
        %957 = vmatpush1.bf16.msra.mxu0 %v933
        %958 = vmatprep.subr.bf16.mxu0 0
        %959 = vmatpush1.bf16.msra.mxu0 0
        %960 = vmatprep.subr.bf16.mxu0 0
        %961 = vmatpush1.bf16.msra.mxu0 0
        %962 = vmatprep.subr.bf16.mxu0 0
        %963 = vmatpush1.bf16.msra.mxu0 0
        %964 = vmatprep.subr.bf16.mxu0 0
        %965 = vmatpush1.bf16.msra.mxu0 0
        %966 = vmatprep.subr.bf16.mxu0 0
        %967 = vmatpush1.bf16.msra.mxu0 0
        %968 = vmatprep.subr.bf16.mxu0 0
        %969 = vmatpush1.bf16.msra.mxu0 0
        %970 = vmatprep.subr.bf16.mxu0 0
        %971 = vmatpush1.bf16.msra.mxu0 0
        %972 = vmatprep.subr.bf16.mxu0 0
        %973 = vmatpush1.bf16.msra.mxu0 0
        %974 = vmatprep.mubr.bf16.mxu0 0
        %975 = vmatmul.mubr.bf16.gmra.mrb[0].mxu0 %v823
        %v976 = vpop.f32.mrb[0].mxu0
        %v977 = vadd.f32 0.0, %v976
        %v978 = vpop.f32.mrb[0].mxu0
        %v979 = vpop.f32.mrb[0].mxu0
        %v980 = vadd.f32 0.0, %v979
        %v981 = vpop.f32.mrb[0].mxu0
        %982 = vmatprep.mubr.bf16.mxu0 0
        %983 = vmatmul.mubr.bf16.gmra.mrb[0].mxu0 %v825
        %v984 = vpop.f32.mrb[0].mxu0
        %v985 = vadd.f32 0.0, %v984
        %v986 = vpop.f32.mrb[0].mxu0
        %v987 = vpop.f32.mrb[0].mxu0
        %v988 = vadd.f32 0.0, %v987
        %v989 = vpop.f32.mrb[0].mxu0
        %990 = vmatprep.mubr.bf16.mxu0 0
        %991 = vmatmul.mubr.bf16.gmra.mrb[0].mxu0 %v827
        %v992 = vpop.f32.mrb[0].mxu0
        %v993 = vadd.f32 0.0, %v992
        %v994 = vpop.f32.mrb[0].mxu0
        %v995 = vpop.f32.mrb[0].mxu0
        %v996 = vadd.f32 0.0, %v995
        %v997 = vpop.f32.mrb[0].mxu0
        %998 = vmatprep.mubr.bf16.mxu0 0
        %999 = vmatmul.mubr.bf16.gmra.mrb[0].mxu0 %v829
        %v1000 = vpop.f32.mrb[0].mxu0
        %v1001 = vadd.f32 0.0, %v1000
        %v1002 = vpop.f32.mrb[0].mxu0
        %v1003 = vpop.f32.mrb[0].mxu0
        %v1004 = vadd.f32 0.0, %v1003
        %v1005 = vpop.f32.mrb[0].mxu0
        %1006 = vmatprep.mubr.bf16.mxu0 0
        %1007 = vmatmul.mubr.bf16.gmra.mrb[0].mxu0 %v831
        %v1008 = vpop.f32.mrb[0].mxu0
        %v1009 = vadd.f32 0.0, %v1008
        %v1010 = vpop.f32.mrb[0].mxu0
        %v1011 = vpop.f32.mrb[0].mxu0
        %v1012 = vadd.f32 0.0, %v1011
        %v1013 = vpop.f32.mrb[0].mxu0
        %1014 = vmatprep.mubr.bf16.mxu0 0
        %1015 = vmatmul.mubr.bf16.gmra.mrb[0].mxu0 %v833
        %v1016 = vpop.f32.mrb[0].mxu0
        %v1017 = vadd.f32 0.0, %v1016
        %v1018 = vpop.f32.mrb[0].mxu0
        %v1019 = vpop.f32.mrb[0].mxu0
        %v1020 = vadd.f32 0.0, %v1019
        %v1021 = vpop.f32.mrb[0].mxu0
        %1022 = vmatprep.mubr.bf16.mxu0 0
        %1023 = vmatmul.mubr.bf16.gmra.mrb[0].mxu0 %v835
        %v1024 = vpop.f32.mrb[0].mxu0
        %v1025 = vadd.f32 0.0, %v1024
        %v1026 = vpop.f32.mrb[0].mxu0
        %v1027 = vpop.f32.mrb[0].mxu0
        %v1028 = vadd.f32 0.0, %v1027
        %v1029 = vpop.f32.mrb[0].mxu0
        %1030 = vmatprep.mubr.bf16.mxu0 0
        %1031 = vmatmul.mubr.bf16.gmra.mrb[0].mxu0 %v837
        %v1032 = vpop.f32.mrb[0].mxu0
        %v1033 = vadd.f32 0.0, %v1032
        %v1034 = vpop.f32.mrb[0].mxu0
        %v1035 = vpop.f32.mrb[0].mxu0
        %v1036 = vadd.f32 0.0, %v1035
        %v1037 = vpop.f32.mrb[0].mxu0
        %1038 = vmatprep.mubr.bf16.mxu0 0
        %1039 = vmatmul.mubr.bf16.gmra.mrb[0].mxu0 %v839
        %v1040 = vpop.f32.mrb[0].mxu0
        %v1041 = vadd.f32 0.0, %v1040
        %v1042 = vpop.f32.mrb[0].mxu0
        %v1043 = vpop.f32.mrb[0].mxu0
        %v1044 = vadd.f32 0.0, %v1043
        %v1045 = vpop.f32.mrb[0].mxu0
        %1046 = vmatprep.mubr.bf16.mxu0 0
        %1047 = vmatmul.mubr.bf16.gmra.mrb[0].mxu0 %v841
        %v1048 = vpop.f32.mrb[0].mxu0
        %v1049 = vadd.f32 0.0, %v1048
        %v1050 = vpop.f32.mrb[0].mxu0
        %v1051 = vpop.f32.mrb[0].mxu0
        %v1052 = vadd.f32 0.0, %v1051
        %v1053 = vpop.f32.mrb[0].mxu0
        %1054 = vmatprep.mubr.bf16.mxu0 0
        %1055 = vmatmul.mubr.bf16.gmra.mrb[0].mxu0 %v843
        %v1056 = vpop.f32.mrb[0].mxu0
        %v1057 = vadd.f32 0.0, %v1056
        %v1058 = vpop.f32.mrb[0].mxu0
        %v1059 = vpop.f32.mrb[0].mxu0
        %v1060 = vadd.f32 0.0, %v1059
        %v1061 = vpop.f32.mrb[0].mxu0
        %1062 = vmatprep.mubr.bf16.mxu0 0
        %1063 = vmatmul.mubr.bf16.gmra.mrb[0].mxu0 %v845
        %v1064 = vpop.f32.mrb[0].mxu0
        %v1065 = vadd.f32 0.0, %v1064
        %v1066 = vpop.f32.mrb[0].mxu0
        %v1067 = vpop.f32.mrb[0].mxu0
        %v1068 = vadd.f32 0.0, %v1067
        %v1069 = vpop.f32.mrb[0].mxu0
        %1070 = vmatprep.mubr.bf16.mxu0 0
        %1071 = vmatmul.mubr.bf16.gmra.mrb[0].mxu0 %v847
        %v1072 = vpop.f32.mrb[0].mxu0
        %v1073 = vadd.f32 0.0, %v1072
        %v1074 = vpop.f32.mrb[0].mxu0
        %v1075 = vpop.f32.mrb[0].mxu0
        %v1076 = vadd.f32 0.0, %v1075
        %v1077 = vpop.f32.mrb[0].mxu0
        %1078 = vmatprep.mubr.bf16.mxu0 0
        %1079 = vmatmul.mubr.bf16.gmra.mrb[0].mxu0 %v849
        %v1080 = vpop.f32.mrb[0].mxu0
        %v1081 = vadd.f32 0.0, %v1080
        %v1082 = vpop.f32.mrb[0].mxu0
        %v1083 = vpop.f32.mrb[0].mxu0
        %v1084 = vadd.f32 0.0, %v1083
        %v1085 = vpop.f32.mrb[0].mxu0
        %1086 = vmatprep.mubr.bf16.mxu0 0
        %1087 = vmatmul.mubr.bf16.gmra.mrb[0].mxu0 %v851
        %v1088 = vpop.f32.mrb[0].mxu0
        %v1089 = vadd.f32 0.0, %v1088
        %v1090 = vpop.f32.mrb[0].mxu0
        %v1091 = vpop.f32.mrb[0].mxu0
        %v1092 = vadd.f32 0.0, %v1091
        %v1093 = vpop.f32.mrb[0].mxu0
        %1094 = vmatprep.mubr.bf16.mxu0 0
        %1095 = vmatmul.mubr.bf16.gmra.mrb[0].mxu0 %v853
        %v1096 = vpop.f32.mrb[0].mxu0
        %v1097 = vadd.f32 0.0, %v1096
        %v1098 = vpop.f32.mrb[0].mxu0
        %v1099 = vpop.f32.mrb[0].mxu0
        %v1100 = vadd.f32 0.0, %v1099
        %v1101 = vpop.f32.mrb[0].mxu0
        %1102 = vmatprep.mubr.bf16.mxu0 0
        %1103 = vmatmul.mubr.bf16.gmra.mrb[0].mxu0 %v855
        %v1104 = vpop.f32.mrb[0].mxu0
        %v1105 = vadd.f32 0.0, %v1104
        %v1106 = vpop.f32.mrb[0].mxu0
        %v1107 = vpop.f32.mrb[0].mxu0
        %v1108 = vadd.f32 0.0, %v1107
        %v1109 = vpop.f32.mrb[0].mxu0
        %1110 = vmatprep.mubr.bf16.mxu0 0
        %1111 = vmatmul.mubr.bf16.gmra.mrb[0].mxu0 %v857
        %v1112 = vpop.f32.mrb[0].mxu0
        %v1113 = vadd.f32 0.0, %v1112
        %v1114 = vpop.f32.mrb[0].mxu0
        %v1115 = vpop.f32.mrb[0].mxu0
        %v1116 = vadd.f32 0.0, %v1115
        %v1117 = vpop.f32.mrb[0].mxu0
        %1118 = vmatprep.mubr.bf16.mxu0 0
        %1119 = vmatmul.mubr.bf16.gmra.mrb[0].mxu0 %v859
        %v1120 = vpop.f32.mrb[0].mxu0
        %v1121 = vadd.f32 0.0, %v1120
        %v1122 = vpop.f32.mrb[0].mxu0
        %v1123 = vpop.f32.mrb[0].mxu0
        %v1124 = vadd.f32 0.0, %v1123
        %v1125 = vpop.f32.mrb[0].mxu0
        %1126 = vmatprep.mubr.bf16.mxu0 0
        %1127 = vmatmul.mubr.bf16.gmra.mrb[0].mxu0 %v861
        %v1128 = vpop.f32.mrb[0].mxu0
        %v1129 = vadd.f32 0.0, %v1128
        %v1130 = vpop.f32.mrb[0].mxu0
        %v1131 = vpop.f32.mrb[0].mxu0
        %v1132 = vadd.f32 0.0, %v1131
        %v1133 = vpop.f32.mrb[0].mxu0
        %1134 = vmatprep.mubr.bf16.mxu0 0
        %1135 = vmatmul.mubr.bf16.gmra.mrb[0].mxu0 %v863
        %v1136 = vpop.f32.mrb[0].mxu0
        %v1137 = vadd.f32 0.0, %v1136
        %v1138 = vpop.f32.mrb[0].mxu0
        %v1139 = vpop.f32.mrb[0].mxu0
        %v1140 = vadd.f32 0.0, %v1139
        %v1141 = vpop.f32.mrb[0].mxu0
        %1142 = vmatprep.mubr.bf16.mxu0 0
        %1143 = vmatmul.mubr.bf16.gmra.mrb[0].mxu0 %v865
        %v1144 = vpop.f32.mrb[0].mxu0
        %v1145 = vadd.f32 0.0, %v1144
        %v1146 = vpop.f32.mrb[0].mxu0
        %v1147 = vpop.f32.mrb[0].mxu0
        %v1148 = vadd.f32 0.0, %v1147
        %v1149 = vpop.f32.mrb[0].mxu0
        %1150 = vmatprep.mubr.bf16.mxu0 0
        %1151 = vmatmul.mubr.bf16.gmra.mrb[0].mxu0 %v867
        %v1152 = vpop.f32.mrb[0].mxu0
        %v1153 = vadd.f32 0.0, %v1152
        %v1154 = vpop.f32.mrb[0].mxu0
        %v1155 = vpop.f32.mrb[0].mxu0
        %v1156 = vadd.f32 0.0, %v1155
        %v1157 = vpop.f32.mrb[0].mxu0
        %1158 = vmatprep.mubr.bf16.mxu0 0
        %1159 = vmatmul.mubr.bf16.gmra.mrb[0].mxu0 %v869
        %v1160 = vpop.f32.mrb[0].mxu0
        %v1161 = vadd.f32 0.0, %v1160
        %v1162 = vpop.f32.mrb[0].mxu0
        %v1163 = vpop.f32.mrb[0].mxu0
        %v1164 = vadd.f32 0.0, %v1163
        %v1165 = vpop.f32.mrb[0].mxu0
        %1166 = vdwg.mxu0
        %vm1167 = vsmask.f32 4352
        %v1169 = vshrl.u32 %v731, 16
        %v1171 = vrot.slane %v1169, 3
        %v1172 = vshll.u32 %v731, 16
        %v1174 = vrot.slane %v1172, 4
        %v1175 = vor.u32 %v1171, %v1174
        %v1177 = vshrl.u32 %v732, 16
        %v1179 = vrot.slane %v1177, 3
        %v1180 = vshll.u32 %v732, 16
        %v1182 = vrot.slane %v1180, 4
        %v1183 = vor.u32 %v1179, %v1182
        %v1184 = vsel %vm1167, %v1175, %v1183
        %v1186 = vshrl.u32 %v733, 16
        %v1188 = vrot.slane %v1186, 3
        %v1189 = vshll.u32 %v733, 16
        %v1191 = vrot.slane %v1189, 4
        %v1192 = vor.u32 %v1188, %v1191
        %v1193 = vsel %vm1167, %v1183, %v1192
        %v1195 = vshrl.u32 %v734, 16
        %v1197 = vrot.slane %v1195, 3
        %v1198 = vshll.u32 %v734, 16
        %v1200 = vrot.slane %v1198, 4
        %v1201 = vor.u32 %v1197, %v1200
        %v1202 = vsel %vm1167, %v1192, %v1201
        %v1204 = vshrl.u32 %v735, 16
        %v1206 = vrot.slane %v1204, 3
        %v1207 = vshll.u32 %v735, 16
        %v1209 = vrot.slane %v1207, 4
        %v1210 = vor.u32 %v1206, %v1209
        %v1211 = vsel %vm1167, %v1201, %v1210
        %v1213 = vshrl.u32 %v736, 16
        %v1215 = vrot.slane %v1213, 3
        %v1216 = vshll.u32 %v736, 16
        %v1218 = vrot.slane %v1216, 4
        %v1219 = vor.u32 %v1215, %v1218
        %v1220 = vsel %vm1167, %v1210, %v1219
        %v1222 = vshrl.u32 %v737, 16
        %v1224 = vrot.slane %v1222, 3
        %v1225 = vshll.u32 %v737, 16
        %v1227 = vrot.slane %v1225, 4
        %v1228 = vor.u32 %v1224, %v1227
        %v1229 = vsel %vm1167, %v1219, %v1228
        %v1231 = vshrl.u32 %v738, 16
        %v1233 = vrot.slane %v1231, 3
        %v1234 = vshll.u32 %v738, 16
        %v1236 = vrot.slane %v1234, 4
        %v1237 = vor.u32 %v1233, %v1236
        %v1238 = vsel %vm1167, %v1228, %v1237
        %v1240 = vshrl.u32 %v739, 16
        %v1242 = vrot.slane %v1240, 3
        %v1243 = vshll.u32 %v739, 16
        %v1245 = vrot.slane %v1243, 4
        %v1246 = vor.u32 %v1242, %v1245
        %v1247 = vsel %vm1167, %v1237, %v1246
        %v1249 = vshrl.u32 %v740, 16
        %v1251 = vrot.slane %v1249, 3
        %v1252 = vshll.u32 %v740, 16
        %v1254 = vrot.slane %v1252, 4
        %v1255 = vor.u32 %v1251, %v1254
        %v1256 = vsel %vm1167, %v1246, %v1255
        %v1258 = vshrl.u32 %v741, 16
        %v1260 = vrot.slane %v1258, 3
        %v1261 = vshll.u32 %v741, 16
        %v1263 = vrot.slane %v1261, 4
        %v1264 = vor.u32 %v1260, %v1263
        %v1265 = vsel %vm1167, %v1255, %v1264
        %v1267 = vshrl.u32 %v742, 16
        %v1269 = vrot.slane %v1267, 3
        %v1270 = vshll.u32 %v742, 16
        %v1272 = vrot.slane %v1270, 4
        %v1273 = vor.u32 %v1269, %v1272
        %v1274 = vsel %vm1167, %v1264, %v1273
        %v1276 = vshrl.u32 %v743, 16
        %v1278 = vrot.slane %v1276, 3
        %v1279 = vshll.u32 %v743, 16
        %v1281 = vrot.slane %v1279, 4
        %v1282 = vor.u32 %v1278, %v1281
        %v1283 = vsel %vm1167, %v1273, %v1282
        %v1285 = vshrl.u32 %v744, 16
        %v1287 = vrot.slane %v1285, 3
        %v1288 = vshll.u32 %v744, 16
        %v1290 = vrot.slane %v1288, 4
        %v1291 = vor.u32 %v1287, %v1290
        %v1292 = vsel %vm1167, %v1282, %v1291
        %v1294 = vshrl.u32 %v745, 16
        %v1296 = vrot.slane %v1294, 3
        %v1297 = vshll.u32 %v745, 16
        %v1299 = vrot.slane %v1297, 4
        %v1300 = vor.u32 %v1296, %v1299
        %v1301 = vsel %vm1167, %v1291, %v1300
        %v1303 = vshrl.u32 %v746, 16
        %v1305 = vrot.slane %v1303, 3
        %v1306 = vshll.u32 %v746, 16
        %v1308 = vrot.slane %v1306, 4
        %v1309 = vor.u32 %v1305, %v1308
        %v1310 = vsel %vm1167, %v1300, %v1309
        %v1312 = vshrl.u32 %v747, 16
        %v1314 = vrot.slane %v1312, 3
        %v1315 = vshll.u32 %v747, 16
        %v1317 = vrot.slane %v1315, 4
        %v1318 = vor.u32 %v1314, %v1317
        %v1319 = vsel %vm1167, %v1309, %v1318
        %v1321 = vshrl.u32 %v748, 16
        %v1323 = vrot.slane %v1321, 3
        %v1324 = vshll.u32 %v748, 16
        %v1326 = vrot.slane %v1324, 4
        %v1327 = vor.u32 %v1323, %v1326
        %v1328 = vsel %vm1167, %v1318, %v1327
        %v1330 = vshrl.u32 %v749, 16
        %v1332 = vrot.slane %v1330, 3
        %v1333 = vshll.u32 %v749, 16
        %v1335 = vrot.slane %v1333, 4
        %v1336 = vor.u32 %v1332, %v1335
        %v1337 = vsel %vm1167, %v1327, %v1336
        %v1339 = vshrl.u32 %v750, 16
        %v1341 = vrot.slane %v1339, 3
        %v1342 = vshll.u32 %v750, 16
        %v1344 = vrot.slane %v1342, 4
        %v1345 = vor.u32 %v1341, %v1344
        %v1346 = vsel %vm1167, %v1336, %v1345
        %v1348 = vshrl.u32 %v751, 16
        %v1350 = vrot.slane %v1348, 3
        %v1351 = vshll.u32 %v751, 16
        %v1353 = vrot.slane %v1351, 4
        %v1354 = vor.u32 %v1350, %v1353
        %v1355 = vsel %vm1167, %v1345, %v1354
        %v1357 = vshrl.u32 %v752, 16
        %v1359 = vrot.slane %v1357, 3
        %v1360 = vshll.u32 %v752, 16
        %v1362 = vrot.slane %v1360, 4
        %v1363 = vor.u32 %v1359, %v1362
        %v1364 = vsel %vm1167, %v1354, %v1363
        %v1366 = vshrl.u32 %v753, 16
        %v1368 = vrot.slane %v1366, 3
        %v1369 = vshll.u32 %v753, 16
        %v1371 = vrot.slane %v1369, 4
        %v1372 = vor.u32 %v1368, %v1371
        %v1373 = vsel %vm1167, %v1363, %v1372
        %v1375 = vshrl.u32 %v754, 16
        %v1377 = vrot.slane %v1375, 3
        %v1378 = vshll.u32 %v754, 16
        %v1380 = vrot.slane %v1378, 4
        %v1381 = vor.u32 %v1377, %v1380
        %v1382 = vsel %vm1167, %v1372, %v1381
        %v1384 = vshrl.u32 %v755, 16
        %v1386 = vrot.slane %v1384, 3
        %v1387 = vshll.u32 %v755, 16
        %v1389 = vrot.slane %v1387, 4
        %v1390 = vor.u32 %v1386, %v1389
        %v1391 = vsel %vm1167, %v1381, %v1390
        %v1432 = vunpack.c.l.b16 %v759
        %v1433 = vunpack.c.l.b16 %v760
        %v1434 = vunpack.c.l.b16 %v761
        %v1435 = vunpack.c.l.b16 %v762
        %v1436 = vunpack.c.l.b16 %v763
        %v1437 = vunpack.c.l.b16 %v764
        %v1438 = vunpack.c.l.b16 %v765
        %v1439 = vunpack.c.l.b16 %v766
        %v1440 = vunpack.c.l.b16 %v767
        %v1441 = vunpack.c.l.b16 %v768
        %v1442 = vunpack.c.l.b16 %v769
        %v1443 = vunpack.c.l.b16 %v770
        %v1444 = vunpack.c.l.b16 %v771
        %v1445 = vunpack.c.l.b16 %v772
        %v1446 = vunpack.c.l.b16 %v773
        %v1447 = vunpack.c.l.b16 %v774
        %v1448 = vpack.c.b16 %v1433, %v1432
        %v1449 = vpack.c.b16 %v1435, %v1434
        %v1450 = vpack.c.b16 %v1437, %v1436
        %v1451 = vpack.c.b16 %v1439, %v1438
        %v1452 = vpack.c.b16 %v1441, %v1440
        %v1453 = vpack.c.b16 %v1443, %v1442
        %v1454 = vpack.c.b16 %v1445, %v1444
        %v1455 = vpack.c.b16 %v1447, %v1446
        %1464 = vmatprep.subr.bf16.mxu0 0
        %1465 = vmatpush1.bf16.msra.mxu0 %v1448
        %1466 = vmatprep.subr.bf16.mxu0 0
        %1467 = vmatpush1.bf16.msra.mxu0 %v1449
        %1468 = vmatprep.subr.bf16.mxu0 0
        %1469 = vmatpush1.bf16.msra.mxu0 %v1450
        %1470 = vmatprep.subr.bf16.mxu0 0
        %1471 = vmatpush1.bf16.msra.mxu0 %v1451
        %1472 = vmatprep.subr.bf16.mxu0 0
        %1473 = vmatpush1.bf16.msra.mxu0 %v1452
        %1474 = vmatprep.subr.bf16.mxu0 0
        %1475 = vmatpush1.bf16.msra.mxu0 %v1453
        %1476 = vmatprep.subr.bf16.mxu0 0
        %1477 = vmatpush1.bf16.msra.mxu0 %v1454
        %1478 = vmatprep.subr.bf16.mxu0 0
        %1479 = vmatpush1.bf16.msra.mxu0 %v1455
        %1480 = vmatprep.subr.bf16.mxu0 0
        %1481 = vmatpush1.bf16.msra.mxu0 0
        %1482 = vmatprep.subr.bf16.mxu0 0
        %1483 = vmatpush1.bf16.msra.mxu0 0
        %1484 = vmatprep.subr.bf16.mxu0 0
        %1485 = vmatpush1.bf16.msra.mxu0 0
        %1486 = vmatprep.subr.bf16.mxu0 0
        %1487 = vmatpush1.bf16.msra.mxu0 0
        %1488 = vmatprep.subr.bf16.mxu0 0
        %1489 = vmatpush1.bf16.msra.mxu0 0
        %1490 = vmatprep.subr.bf16.mxu0 0
        %1491 = vmatpush1.bf16.msra.mxu0 0
        %1492 = vmatprep.subr.bf16.mxu0 0
        %1493 = vmatpush1.bf16.msra.mxu0 0
        %1494 = vmatprep.subr.bf16.mxu0 0
        %1495 = vmatpush1.bf16.msra.mxu0 0
        %1496 = vmatprep.mubr.bf16.mxu0 0
        %1497 = vmatmul.mubr.bf16.gmra.mrb[0].mxu0 %v1184
        %v1498 = vpop.f32.mrb[0].mxu0
        %v1499 = vadd.f32 %v977, %v1498
        %v1500 = vpop.f32.mrb[0].mxu0
        %v1501 = vpop.f32.mrb[0].mxu0
        %v1502 = vadd.f32 %v980, %v1501
        %v1503 = vpop.f32.mrb[0].mxu0
        %1504 = vmatprep.mubr.bf16.mxu0 0
        %1505 = vmatmul.mubr.bf16.gmra.mrb[0].mxu0 %v1193
        %v1506 = vpop.f32.mrb[0].mxu0
        %v1507 = vadd.f32 %v985, %v1506
        %v1508 = vpop.f32.mrb[0].mxu0
        %v1509 = vpop.f32.mrb[0].mxu0
        %v1510 = vadd.f32 %v988, %v1509
        %v1511 = vpop.f32.mrb[0].mxu0
        %1512 = vmatprep.mubr.bf16.mxu0 0
        %1513 = vmatmul.mubr.bf16.gmra.mrb[0].mxu0 %v1202
        %v1514 = vpop.f32.mrb[0].mxu0
        %v1515 = vadd.f32 %v993, %v1514
        %v1516 = vpop.f32.mrb[0].mxu0
        %v1517 = vpop.f32.mrb[0].mxu0
        %v1518 = vadd.f32 %v996, %v1517
        %v1519 = vpop.f32.mrb[0].mxu0
        %1520 = vmatprep.mubr.bf16.mxu0 0
        %1521 = vmatmul.mubr.bf16.gmra.mrb[0].mxu0 %v1211
        %v1522 = vpop.f32.mrb[0].mxu0
        %v1523 = vadd.f32 %v1001, %v1522
        %v1524 = vpop.f32.mrb[0].mxu0
        %v1525 = vpop.f32.mrb[0].mxu0
        %v1526 = vadd.f32 %v1004, %v1525
        %v1527 = vpop.f32.mrb[0].mxu0
        %1528 = vmatprep.mubr.bf16.mxu0 0
        %1529 = vmatmul.mubr.bf16.gmra.mrb[0].mxu0 %v1220
        %v1530 = vpop.f32.mrb[0].mxu0
        %v1531 = vadd.f32 %v1009, %v1530
        %v1532 = vpop.f32.mrb[0].mxu0
        %v1533 = vpop.f32.mrb[0].mxu0
        %v1534 = vadd.f32 %v1012, %v1533
        %v1535 = vpop.f32.mrb[0].mxu0
        %1536 = vmatprep.mubr.bf16.mxu0 0
        %1537 = vmatmul.mubr.bf16.gmra.mrb[0].mxu0 %v1229
        %v1538 = vpop.f32.mrb[0].mxu0
        %v1539 = vadd.f32 %v1017, %v1538
        %v1540 = vpop.f32.mrb[0].mxu0
        %v1541 = vpop.f32.mrb[0].mxu0
        %v1542 = vadd.f32 %v1020, %v1541
        %v1543 = vpop.f32.mrb[0].mxu0
        %1544 = vmatprep.mubr.bf16.mxu0 0
        %1545 = vmatmul.mubr.bf16.gmra.mrb[0].mxu0 %v1238
        %v1546 = vpop.f32.mrb[0].mxu0
        %v1547 = vadd.f32 %v1025, %v1546
        %v1548 = vpop.f32.mrb[0].mxu0
        %v1549 = vpop.f32.mrb[0].mxu0
        %v1550 = vadd.f32 %v1028, %v1549
        %v1551 = vpop.f32.mrb[0].mxu0
        %1552 = vmatprep.mubr.bf16.mxu0 0
        %1553 = vmatmul.mubr.bf16.gmra.mrb[0].mxu0 %v1247
        %v1554 = vpop.f32.mrb[0].mxu0
        %v1555 = vadd.f32 %v1033, %v1554
        %v1556 = vpop.f32.mrb[0].mxu0
        %v1557 = vpop.f32.mrb[0].mxu0
        %v1558 = vadd.f32 %v1036, %v1557
        %v1559 = vpop.f32.mrb[0].mxu0
        %1560 = vmatprep.mubr.bf16.mxu0 0
        %1561 = vmatmul.mubr.bf16.gmra.mrb[0].mxu0 %v1256
        %v1562 = vpop.f32.mrb[0].mxu0
        %v1563 = vadd.f32 %v1041, %v1562
        %v1564 = vpop.f32.mrb[0].mxu0
        %v1565 = vpop.f32.mrb[0].mxu0
        %v1566 = vadd.f32 %v1044, %v1565
        %v1567 = vpop.f32.mrb[0].mxu0
        %1568 = vmatprep.mubr.bf16.mxu0 0
        %1569 = vmatmul.mubr.bf16.gmra.mrb[0].mxu0 %v1265
        %v1570 = vpop.f32.mrb[0].mxu0
        %v1571 = vadd.f32 %v1049, %v1570
        %v1572 = vpop.f32.mrb[0].mxu0
        %v1573 = vpop.f32.mrb[0].mxu0
        %v1574 = vadd.f32 %v1052, %v1573
        %v1575 = vpop.f32.mrb[0].mxu0
        %1576 = vmatprep.mubr.bf16.mxu0 0
        %1577 = vmatmul.mubr.bf16.gmra.mrb[0].mxu0 %v1274
        %v1578 = vpop.f32.mrb[0].mxu0
        %v1579 = vadd.f32 %v1057, %v1578
        %v1580 = vpop.f32.mrb[0].mxu0
        %v1581 = vpop.f32.mrb[0].mxu0
        %v1582 = vadd.f32 %v1060, %v1581
        %v1583 = vpop.f32.mrb[0].mxu0
        %1584 = vmatprep.mubr.bf16.mxu0 0
        %1585 = vmatmul.mubr.bf16.gmra.mrb[0].mxu0 %v1283
        %v1586 = vpop.f32.mrb[0].mxu0
        %v1587 = vadd.f32 %v1065, %v1586
        %v1588 = vpop.f32.mrb[0].mxu0
        %v1589 = vpop.f32.mrb[0].mxu0
        %v1590 = vadd.f32 %v1068, %v1589
        %v1591 = vpop.f32.mrb[0].mxu0
        %1592 = vmatprep.mubr.bf16.mxu0 0
        %1593 = vmatmul.mubr.bf16.gmra.mrb[0].mxu0 %v1292
        %v1594 = vpop.f32.mrb[0].mxu0
        %v1595 = vadd.f32 %v1073, %v1594
        %v1596 = vpop.f32.mrb[0].mxu0
        %v1597 = vpop.f32.mrb[0].mxu0
        %v1598 = vadd.f32 %v1076, %v1597
        %v1599 = vpop.f32.mrb[0].mxu0
        %1600 = vmatprep.mubr.bf16.mxu0 0
        %1601 = vmatmul.mubr.bf16.gmra.mrb[0].mxu0 %v1301
        %v1602 = vpop.f32.mrb[0].mxu0
        %v1603 = vadd.f32 %v1081, %v1602
        %v1604 = vpop.f32.mrb[0].mxu0
        %v1605 = vpop.f32.mrb[0].mxu0
        %v1606 = vadd.f32 %v1084, %v1605
        %v1607 = vpop.f32.mrb[0].mxu0
        %1608 = vmatprep.mubr.bf16.mxu0 0
        %1609 = vmatmul.mubr.bf16.gmra.mrb[0].mxu0 %v1310
        %v1610 = vpop.f32.mrb[0].mxu0
        %v1611 = vadd.f32 %v1089, %v1610
        %v1612 = vpop.f32.mrb[0].mxu0
        %v1613 = vpop.f32.mrb[0].mxu0
        %v1614 = vadd.f32 %v1092, %v1613
        %v1615 = vpop.f32.mrb[0].mxu0
        %1616 = vmatprep.mubr.bf16.mxu0 0
        %1617 = vmatmul.mubr.bf16.gmra.mrb[0].mxu0 %v1319
        %v1618 = vpop.f32.mrb[0].mxu0
        %v1619 = vadd.f32 %v1097, %v1618
        %v1620 = vpop.f32.mrb[0].mxu0
        %v1621 = vpop.f32.mrb[0].mxu0
        %v1622 = vadd.f32 %v1100, %v1621
        %v1623 = vpop.f32.mrb[0].mxu0
        %1624 = vmatprep.mubr.bf16.mxu0 0
        %1625 = vmatmul.mubr.bf16.gmra.mrb[0].mxu0 %v1328
        %v1626 = vpop.f32.mrb[0].mxu0
        %v1627 = vadd.f32 %v1105, %v1626
        %v1628 = vpop.f32.mrb[0].mxu0
        %v1629 = vpop.f32.mrb[0].mxu0
        %v1630 = vadd.f32 %v1108, %v1629
        %v1631 = vpop.f32.mrb[0].mxu0
        %1632 = vmatprep.mubr.bf16.mxu0 0
        %1633 = vmatmul.mubr.bf16.gmra.mrb[0].mxu0 %v1337
        %v1634 = vpop.f32.mrb[0].mxu0
        %v1635 = vadd.f32 %v1113, %v1634
        %v1636 = vpop.f32.mrb[0].mxu0
        %v1637 = vpop.f32.mrb[0].mxu0
        %v1638 = vadd.f32 %v1116, %v1637
        %v1639 = vpop.f32.mrb[0].mxu0
        %1640 = vmatprep.mubr.bf16.mxu0 0
        %1641 = vmatmul.mubr.bf16.gmra.mrb[0].mxu0 %v1346
        %v1642 = vpop.f32.mrb[0].mxu0
        %v1643 = vadd.f32 %v1121, %v1642
        %v1644 = vpop.f32.mrb[0].mxu0
        %v1645 = vpop.f32.mrb[0].mxu0
        %v1646 = vadd.f32 %v1124, %v1645
        %v1647 = vpop.f32.mrb[0].mxu0
        %1648 = vmatprep.mubr.bf16.mxu0 0
        %1649 = vmatmul.mubr.bf16.gmra.mrb[0].mxu0 %v1355
        %v1650 = vpop.f32.mrb[0].mxu0
        %v1651 = vadd.f32 %v1129, %v1650
        %v1652 = vpop.f32.mrb[0].mxu0
        %v1653 = vpop.f32.mrb[0].mxu0
        %v1654 = vadd.f32 %v1132, %v1653
        %v1655 = vpop.f32.mrb[0].mxu0
        %1656 = vmatprep.mubr.bf16.mxu0 0
        %1657 = vmatmul.mubr.bf16.gmra.mrb[0].mxu0 %v1364
        %v1658 = vpop.f32.mrb[0].mxu0
        %v1659 = vadd.f32 %v1137, %v1658
        %v1660 = vpop.f32.mrb[0].mxu0
        %v1661 = vpop.f32.mrb[0].mxu0
        %v1662 = vadd.f32 %v1140, %v1661
        %v1663 = vpop.f32.mrb[0].mxu0
        %1664 = vmatprep.mubr.bf16.mxu0 0
        %1665 = vmatmul.mubr.bf16.gmra.mrb[0].mxu0 %v1373
        %v1666 = vpop.f32.mrb[0].mxu0
        %v1667 = vadd.f32 %v1145, %v1666
        %v1668 = vpop.f32.mrb[0].mxu0
        %v1669 = vpop.f32.mrb[0].mxu0
        %v1670 = vadd.f32 %v1148, %v1669
        %v1671 = vpop.f32.mrb[0].mxu0
        %1672 = vmatprep.mubr.bf16.mxu0 0
        %1673 = vmatmul.mubr.bf16.gmra.mrb[0].mxu0 %v1382
        %v1674 = vpop.f32.mrb[0].mxu0
        %v1675 = vadd.f32 %v1153, %v1674
        %v1676 = vpop.f32.mrb[0].mxu0
        %v1677 = vpop.f32.mrb[0].mxu0
        %v1678 = vadd.f32 %v1156, %v1677
        %v1679 = vpop.f32.mrb[0].mxu0
        %1680 = vmatprep.mubr.bf16.mxu0 0
        %1681 = vmatmul.mubr.bf16.gmra.mrb[0].mxu0 %v1391
        %v1682 = vpop.f32.mrb[0].mxu0
        %v1683 = vadd.f32 %v1161, %v1682
        %v1684 = vpop.f32.mrb[0].mxu0
        %v1685 = vpop.f32.mrb[0].mxu0
        %v1686 = vadd.f32 %v1164, %v1685
        %v1687 = vpop.f32.mrb[0].mxu0
        %1688 = vdwg.mxu0
        %v1689 = vld [vmem:[#allocation3 + $0xc0] sm:$0x1f]
        %s1690 = sadd.s32 32, %s756
        %s1691 = smul.addr %s1690, 4
        %s1692 = scalar_lea.vmem [#allocation7], %s1691
        %v1693 = vld [vmem:[%s1692] sm:$0xf]
        %v1694 = vld [vmem:[%s1692 + $0x4] sm:$0xf]
        %v1695 = vld [vmem:[%s1692 + $0x8] sm:$0xf]
        %v1696 = vld [vmem:[%s1692 + $0xc] sm:$0xf]
        %v1697 = vld [vmem:[%s1692 + $0x10] sm:$0xf]
        %v1698 = vld [vmem:[%s1692 + $0x14] sm:$0xf]
        %v1699 = vld [vmem:[%s1692 + $0x18] sm:$0xf]
        %v1700 = vld [vmem:[%s1692 + $0x1c] sm:$0xf]
        %v1701 = vld [vmem:[%s1692 + $0x20] sm:$0xf]
        %v1702 = vld [vmem:[%s1692 + $0x24] sm:$0xf]
        %v1703 = vld [vmem:[%s1692 + $0x28] sm:$0xf]
        %v1704 = vld [vmem:[%s1692 + $0x2c] sm:$0xf]
        %v1705 = vld [vmem:[%s1692 + $0x30] sm:$0xf]
        %v1706 = vld [vmem:[%s1692 + $0x34] sm:$0xf]
        %v1707 = vld [vmem:[%s1692 + $0x38] sm:$0xf]
        %v1708 = vld [vmem:[%s1692 + $0x3c] sm:$0xf]
        %vm1709 = vsmask.f32 3328
        %v1711 = vshrl.u32 %v775, 16
        %v1713 = vrot.slane %v1711, 4
        %v1714 = vshll.u32 %v775, 16
        %v1716 = vrot.slane %v1714, 5
        %v1717 = vor.u32 %v1713, %v1716
        %v1718 = vrot.slane %v1177, 4
        %v1719 = vrot.slane %v1180, 5
        %v1720 = vor.u32 %v1718, %v1719
        %v1721 = vsel %vm1709, %v1717, %v1720
        %v1722 = vrot.slane %v1186, 4
        %v1723 = vrot.slane %v1189, 5
        %v1724 = vor.u32 %v1722, %v1723
        %v1725 = vsel %vm1709, %v1720, %v1724
        %v1726 = vrot.slane %v1195, 4
        %v1727 = vrot.slane %v1198, 5
        %v1728 = vor.u32 %v1726, %v1727
        %v1729 = vsel %vm1709, %v1724, %v1728
        %v1730 = vrot.slane %v1204, 4
        %v1731 = vrot.slane %v1207, 5
        %v1732 = vor.u32 %v1730, %v1731
        %v1733 = vsel %vm1709, %v1728, %v1732
        %v1734 = vrot.slane %v1213, 4
        %v1735 = vrot.slane %v1216, 5
        %v1736 = vor.u32 %v1734, %v1735
        %v1737 = vsel %vm1709, %v1732, %v1736
        %v1738 = vrot.slane %v1222, 4
        %v1739 = vrot.slane %v1225, 5
        %v1740 = vor.u32 %v1738, %v1739
        %v1741 = vsel %vm1709, %v1736, %v1740
        %v1742 = vrot.slane %v1231, 4
        %v1743 = vrot.slane %v1234, 5
        %v1744 = vor.u32 %v1742, %v1743
        %v1745 = vsel %vm1709, %v1740, %v1744
        %v1746 = vrot.slane %v1240, 4
        %v1747 = vrot.slane %v1243, 5
        %v1748 = vor.u32 %v1746, %v1747
        %v1749 = vsel %vm1709, %v1744, %v1748
        %v1750 = vrot.slane %v1249, 4
        %v1751 = vrot.slane %v1252, 5
        %v1752 = vor.u32 %v1750, %v1751
        %v1753 = vsel %vm1709, %v1748, %v1752
        %v1754 = vrot.slane %v1258, 4
        %v1755 = vrot.slane %v1261, 5
        %v1756 = vor.u32 %v1754, %v1755
        %v1757 = vsel %vm1709, %v1752, %v1756
        %v1758 = vrot.slane %v1267, 4
        %v1759 = vrot.slane %v1270, 5
        %v1760 = vor.u32 %v1758, %v1759
        %v1761 = vsel %vm1709, %v1756, %v1760
        %v1762 = vrot.slane %v1276, 4
        %v1763 = vrot.slane %v1279, 5
        %v1764 = vor.u32 %v1762, %v1763
        %v1765 = vsel %vm1709, %v1760, %v1764
        %v1766 = vrot.slane %v1285, 4
        %v1767 = vrot.slane %v1288, 5
        %v1768 = vor.u32 %v1766, %v1767
        %v1769 = vsel %vm1709, %v1764, %v1768
        %v1770 = vrot.slane %v1294, 4
        %v1771 = vrot.slane %v1297, 5
        %v1772 = vor.u32 %v1770, %v1771
        %v1773 = vsel %vm1709, %v1768, %v1772
        %v1774 = vrot.slane %v1303, 4
        %v1775 = vrot.slane %v1306, 5
        %v1776 = vor.u32 %v1774, %v1775
        %v1777 = vsel %vm1709, %v1772, %v1776
        %v1778 = vrot.slane %v1312, 4
        %v1779 = vrot.slane %v1315, 5
        %v1780 = vor.u32 %v1778, %v1779
        %v1781 = vsel %vm1709, %v1776, %v1780
        %v1782 = vrot.slane %v1321, 4
        %v1783 = vrot.slane %v1324, 5
        %v1784 = vor.u32 %v1782, %v1783
        %v1785 = vsel %vm1709, %v1780, %v1784
        %v1786 = vrot.slane %v1330, 4
        %v1787 = vrot.slane %v1333, 5
        %v1788 = vor.u32 %v1786, %v1787
        %v1789 = vsel %vm1709, %v1784, %v1788
        %v1790 = vrot.slane %v1339, 4
        %v1791 = vrot.slane %v1342, 5
        %v1792 = vor.u32 %v1790, %v1791
        %v1793 = vsel %vm1709, %v1788, %v1792
        %v1794 = vrot.slane %v1348, 4
        %v1795 = vrot.slane %v1351, 5
        %v1796 = vor.u32 %v1794, %v1795
        %v1797 = vsel %vm1709, %v1792, %v1796
        %v1798 = vrot.slane %v1357, 4
        %v1799 = vrot.slane %v1360, 5
        %v1800 = vor.u32 %v1798, %v1799
        %v1801 = vsel %vm1709, %v1796, %v1800
        %v1802 = vrot.slane %v1366, 4
        %v1803 = vrot.slane %v1369, 5
        %v1804 = vor.u32 %v1802, %v1803
        %v1805 = vsel %vm1709, %v1800, %v1804
        %v1806 = vrot.slane %v1375, 4
        %v1807 = vrot.slane %v1378, 5
        %v1808 = vor.u32 %v1806, %v1807
        %v1809 = vsel %vm1709, %v1804, %v1808
        %v1811 = vshrl.u32 %v1689, 16
        %v1813 = vrot.slane %v1811, 4
        %v1814 = vshll.u32 %v1689, 16
        %v1816 = vrot.slane %v1814, 5
        %v1817 = vor.u32 %v1813, %v1816
        %v1818 = vsel %vm1709, %v1808, %v1817
        %v1859 = vunpack.c.l.b16 %v1693
        %v1860 = vunpack.c.l.b16 %v1694
        %v1861 = vunpack.c.l.b16 %v1695
        %v1862 = vunpack.c.l.b16 %v1696
        %v1863 = vunpack.c.l.b16 %v1697
        %v1864 = vunpack.c.l.b16 %v1698
        %v1865 = vunpack.c.l.b16 %v1699
        %v1866 = vunpack.c.l.b16 %v1700
        %v1867 = vunpack.c.l.b16 %v1701
        %v1868 = vunpack.c.l.b16 %v1702
        %v1869 = vunpack.c.l.b16 %v1703
        %v1870 = vunpack.c.l.b16 %v1704
        %v1871 = vunpack.c.l.b16 %v1705
        %v1872 = vunpack.c.l.b16 %v1706
        %v1873 = vunpack.c.l.b16 %v1707
        %v1874 = vunpack.c.l.b16 %v1708
        %v1875 = vpack.c.b16 %v1860, %v1859
        %v1876 = vpack.c.b16 %v1862, %v1861
        %v1877 = vpack.c.b16 %v1864, %v1863
        %v1878 = vpack.c.b16 %v1866, %v1865
        %v1879 = vpack.c.b16 %v1868, %v1867
        %v1880 = vpack.c.b16 %v1870, %v1869
        %v1881 = vpack.c.b16 %v1872, %v1871
        %v1882 = vpack.c.b16 %v1874, %v1873
        %1891 = vmatprep.subr.bf16.mxu0 0
        %1892 = vmatpush1.bf16.msra.mxu0 %v1875
        %1893 = vmatprep.subr.bf16.mxu0 0
        %1894 = vmatpush1.bf16.msra.mxu0 %v1876
        %1895 = vmatprep.subr.bf16.mxu0 0
        %1896 = vmatpush1.bf16.msra.mxu0 %v1877
        %1897 = vmatprep.subr.bf16.mxu0 0
        %1898 = vmatpush1.bf16.msra.mxu0 %v1878
        %1899 = vmatprep.subr.bf16.mxu0 0
        %1900 = vmatpush1.bf16.msra.mxu0 %v1879
        %1901 = vmatprep.subr.bf16.mxu0 0
        %1902 = vmatpush1.bf16.msra.mxu0 %v1880
        %1903 = vmatprep.subr.bf16.mxu0 0
        %1904 = vmatpush1.bf16.msra.mxu0 %v1881
        %1905 = vmatprep.subr.bf16.mxu0 0
        %1906 = vmatpush1.bf16.msra.mxu0 %v1882
        %1907 = vmatprep.subr.bf16.mxu0 0
        %1908 = vmatpush1.bf16.msra.mxu0 0
        %1909 = vmatprep.subr.bf16.mxu0 0
        %1910 = vmatpush1.bf16.msra.mxu0 0
        %1911 = vmatprep.subr.bf16.mxu0 0
        %1912 = vmatpush1.bf16.msra.mxu0 0
        %1913 = vmatprep.subr.bf16.mxu0 0
        %1914 = vmatpush1.bf16.msra.mxu0 0
        %1915 = vmatprep.subr.bf16.mxu0 0
        %1916 = vmatpush1.bf16.msra.mxu0 0
        %1917 = vmatprep.subr.bf16.mxu0 0
        %1918 = vmatpush1.bf16.msra.mxu0 0
        %1919 = vmatprep.subr.bf16.mxu0 0
        %1920 = vmatpush1.bf16.msra.mxu0 0
        %1921 = vmatprep.subr.bf16.mxu0 0
        %1922 = vmatpush1.bf16.msra.mxu0 0
        %1923 = vmatprep.mubr.bf16.mxu0 0
        %1924 = vmatmul.mubr.bf16.gmra.mrb[0].mxu0 %v1721
        %v1925 = vpop.f32.mrb[0].mxu0
        %v1926 = vadd.f32 0.0, %v1925
        %v1927 = vpop.f32.mrb[0].mxu0
        %v1928 = vpop.f32.mrb[0].mxu0
        %v1929 = vadd.f32 0.0, %v1928
        %v1930 = vpop.f32.mrb[0].mxu0
        %1931 = vmatprep.mubr.bf16.mxu0 0
        %1932 = vmatmul.mubr.bf16.gmra.mrb[0].mxu0 %v1725
        %v1933 = vpop.f32.mrb[0].mxu0
        %v1934 = vadd.f32 0.0, %v1933
        %v1935 = vpop.f32.mrb[0].mxu0
        %v1936 = vpop.f32.mrb[0].mxu0
        %v1937 = vadd.f32 0.0, %v1936
        %v1938 = vpop.f32.mrb[0].mxu0
        %1939 = vmatprep.mubr.bf16.mxu0 0
        %1940 = vmatmul.mubr.bf16.gmra.mrb[0].mxu0 %v1729
        %v1941 = vpop.f32.mrb[0].mxu0
        %v1942 = vadd.f32 0.0, %v1941
        %v1943 = vpop.f32.mrb[0].mxu0
        %v1944 = vpop.f32.mrb[0].mxu0
        %v1945 = vadd.f32 0.0, %v1944
        %v1946 = vpop.f32.mrb[0].mxu0
        %1947 = vmatprep.mubr.bf16.mxu0 0
        %1948 = vmatmul.mubr.bf16.gmra.mrb[0].mxu0 %v1733
        %v1949 = vpop.f32.mrb[0].mxu0
        %v1950 = vadd.f32 0.0, %v1949
        %v1951 = vpop.f32.mrb[0].mxu0
        %v1952 = vpop.f32.mrb[0].mxu0
        %v1953 = vadd.f32 0.0, %v1952
        %v1954 = vpop.f32.mrb[0].mxu0
        %1955 = vmatprep.mubr.bf16.mxu0 0
        %1956 = vmatmul.mubr.bf16.gmra.mrb[0].mxu0 %v1737
        %v1957 = vpop.f32.mrb[0].mxu0
        %v1958 = vadd.f32 0.0, %v1957
        %v1959 = vpop.f32.mrb[0].mxu0
        %v1960 = vpop.f32.mrb[0].mxu0
        %v1961 = vadd.f32 0.0, %v1960
        %v1962 = vpop.f32.mrb[0].mxu0
        %1963 = vmatprep.mubr.bf16.mxu0 0
        %1964 = vmatmul.mubr.bf16.gmra.mrb[0].mxu0 %v1741
        %v1965 = vpop.f32.mrb[0].mxu0
        %v1966 = vadd.f32 0.0, %v1965
        %v1967 = vpop.f32.mrb[0].mxu0
        %v1968 = vpop.f32.mrb[0].mxu0
        %v1969 = vadd.f32 0.0, %v1968
        %v1970 = vpop.f32.mrb[0].mxu0
        %1971 = vmatprep.mubr.bf16.mxu0 0
        %1972 = vmatmul.mubr.bf16.gmra.mrb[0].mxu0 %v1745
        %v1973 = vpop.f32.mrb[0].mxu0
        %v1974 = vadd.f32 0.0, %v1973
        %v1975 = vpop.f32.mrb[0].mxu0
        %v1976 = vpop.f32.mrb[0].mxu0
        %v1977 = vadd.f32 0.0, %v1976
        %v1978 = vpop.f32.mrb[0].mxu0
        %1979 = vmatprep.mubr.bf16.mxu0 0
        %1980 = vmatmul.mubr.bf16.gmra.mrb[0].mxu0 %v1749
        %v1981 = vpop.f32.mrb[0].mxu0
        %v1982 = vadd.f32 0.0, %v1981
        %v1983 = vpop.f32.mrb[0].mxu0
        %v1984 = vpop.f32.mrb[0].mxu0
        %v1985 = vadd.f32 0.0, %v1984
        %v1986 = vpop.f32.mrb[0].mxu0
        %1987 = vmatprep.mubr.bf16.mxu0 0
        %1988 = vmatmul.mubr.bf16.gmra.mrb[0].mxu0 %v1753
        %v1989 = vpop.f32.mrb[0].mxu0
        %v1990 = vadd.f32 0.0, %v1989
        %v1991 = vpop.f32.mrb[0].mxu0
        %v1992 = vpop.f32.mrb[0].mxu0
        %v1993 = vadd.f32 0.0, %v1992
        %v1994 = vpop.f32.mrb[0].mxu0
        %1995 = vmatprep.mubr.bf16.mxu0 0
        %1996 = vmatmul.mubr.bf16.gmra.mrb[0].mxu0 %v1757
        %v1997 = vpop.f32.mrb[0].mxu0
        %v1998 = vadd.f32 0.0, %v1997
        %v1999 = vpop.f32.mrb[0].mxu0
        %v2000 = vpop.f32.mrb[0].mxu0
        %v2001 = vadd.f32 0.0, %v2000
        %v2002 = vpop.f32.mrb[0].mxu0
        %2003 = vmatprep.mubr.bf16.mxu0 0
        %2004 = vmatmul.mubr.bf16.gmra.mrb[0].mxu0 %v1761
        %v2005 = vpop.f32.mrb[0].mxu0
        %v2006 = vadd.f32 0.0, %v2005
        %v2007 = vpop.f32.mrb[0].mxu0
        %v2008 = vpop.f32.mrb[0].mxu0
        %v2009 = vadd.f32 0.0, %v2008
        %v2010 = vpop.f32.mrb[0].mxu0
        %2011 = vmatprep.mubr.bf16.mxu0 0
        %2012 = vmatmul.mubr.bf16.gmra.mrb[0].mxu0 %v1765
        %v2013 = vpop.f32.mrb[0].mxu0
        %v2014 = vadd.f32 0.0, %v2013
        %v2015 = vpop.f32.mrb[0].mxu0
        %v2016 = vpop.f32.mrb[0].mxu0
        %v2017 = vadd.f32 0.0, %v2016
        %v2018 = vpop.f32.mrb[0].mxu0
        %2019 = vmatprep.mubr.bf16.mxu0 0
        %2020 = vmatmul.mubr.bf16.gmra.mrb[0].mxu0 %v1769
        %v2021 = vpop.f32.mrb[0].mxu0
        %v2022 = vadd.f32 0.0, %v2021
        %v2023 = vpop.f32.mrb[0].mxu0
        %v2024 = vpop.f32.mrb[0].mxu0
        %v2025 = vadd.f32 0.0, %v2024
        %v2026 = vpop.f32.mrb[0].mxu0
        %2027 = vmatprep.mubr.bf16.mxu0 0
        %2028 = vmatmul.mubr.bf16.gmra.mrb[0].mxu0 %v1773
        %v2029 = vpop.f32.mrb[0].mxu0
        %v2030 = vadd.f32 0.0, %v2029
        %v2031 = vpop.f32.mrb[0].mxu0
        %v2032 = vpop.f32.mrb[0].mxu0
        %v2033 = vadd.f32 0.0, %v2032
        %v2034 = vpop.f32.mrb[0].mxu0
        %2035 = vmatprep.mubr.bf16.mxu0 0
        %2036 = vmatmul.mubr.bf16.gmra.mrb[0].mxu0 %v1777
        %v2037 = vpop.f32.mrb[0].mxu0
        %v2038 = vadd.f32 0.0, %v2037
        %v2039 = vpop.f32.mrb[0].mxu0
        %v2040 = vpop.f32.mrb[0].mxu0
        %v2041 = vadd.f32 0.0, %v2040
        %v2042 = vpop.f32.mrb[0].mxu0
        %2043 = vmatprep.mubr.bf16.mxu0 0
        %2044 = vmatmul.mubr.bf16.gmra.mrb[0].mxu0 %v1781
        %v2045 = vpop.f32.mrb[0].mxu0
        %v2046 = vadd.f32 0.0, %v2045
        %v2047 = vpop.f32.mrb[0].mxu0
        %v2048 = vpop.f32.mrb[0].mxu0
        %v2049 = vadd.f32 0.0, %v2048
        %v2050 = vpop.f32.mrb[0].mxu0
        %2051 = vmatprep.mubr.bf16.mxu0 0
        %2052 = vmatmul.mubr.bf16.gmra.mrb[0].mxu0 %v1785
        %v2053 = vpop.f32.mrb[0].mxu0
        %v2054 = vadd.f32 0.0, %v2053
        %v2055 = vpop.f32.mrb[0].mxu0
        %v2056 = vpop.f32.mrb[0].mxu0
        %v2057 = vadd.f32 0.0, %v2056
        %v2058 = vpop.f32.mrb[0].mxu0
        %2059 = vmatprep.mubr.bf16.mxu0 0
        %2060 = vmatmul.mubr.bf16.gmra.mrb[0].mxu0 %v1789
        %v2061 = vpop.f32.mrb[0].mxu0
        %v2062 = vadd.f32 0.0, %v2061
        %v2063 = vpop.f32.mrb[0].mxu0
        %v2064 = vpop.f32.mrb[0].mxu0
        %v2065 = vadd.f32 0.0, %v2064
        %v2066 = vpop.f32.mrb[0].mxu0
        %2067 = vmatprep.mubr.bf16.mxu0 0
        %2068 = vmatmul.mubr.bf16.gmra.mrb[0].mxu0 %v1793
        %v2069 = vpop.f32.mrb[0].mxu0
        %v2070 = vadd.f32 0.0, %v2069
        %v2071 = vpop.f32.mrb[0].mxu0
        %v2072 = vpop.f32.mrb[0].mxu0
        %v2073 = vadd.f32 0.0, %v2072
        %v2074 = vpop.f32.mrb[0].mxu0
        %2075 = vmatprep.mubr.bf16.mxu0 0
        %2076 = vmatmul.mubr.bf16.gmra.mrb[0].mxu0 %v1797
        %v2077 = vpop.f32.mrb[0].mxu0
        %v2078 = vadd.f32 0.0, %v2077
        %v2079 = vpop.f32.mrb[0].mxu0
        %v2080 = vpop.f32.mrb[0].mxu0
        %v2081 = vadd.f32 0.0, %v2080
        %v2082 = vpop.f32.mrb[0].mxu0
        %2083 = vmatprep.mubr.bf16.mxu0 0
        %2084 = vmatmul.mubr.bf16.gmra.mrb[0].mxu0 %v1801
        %v2085 = vpop.f32.mrb[0].mxu0
        %v2086 = vadd.f32 0.0, %v2085
        %v2087 = vpop.f32.mrb[0].mxu0
        %v2088 = vpop.f32.mrb[0].mxu0
        %v2089 = vadd.f32 0.0, %v2088
        %v2090 = vpop.f32.mrb[0].mxu0
        %2091 = vmatprep.mubr.bf16.mxu0 0
        %2092 = vmatmul.mubr.bf16.gmra.mrb[0].mxu0 %v1805
        %v2093 = vpop.f32.mrb[0].mxu0
        %v2094 = vadd.f32 0.0, %v2093
        %v2095 = vpop.f32.mrb[0].mxu0
        %v2096 = vpop.f32.mrb[0].mxu0
        %v2097 = vadd.f32 0.0, %v2096
        %v2098 = vpop.f32.mrb[0].mxu0
        %2099 = vmatprep.mubr.bf16.mxu0 0
        %2100 = vmatmul.mubr.bf16.gmra.mrb[0].mxu0 %v1809
        %v2101 = vpop.f32.mrb[0].mxu0
        %v2102 = vadd.f32 0.0, %v2101
        %v2103 = vpop.f32.mrb[0].mxu0
        %v2104 = vpop.f32.mrb[0].mxu0
        %v2105 = vadd.f32 0.0, %v2104
        %v2106 = vpop.f32.mrb[0].mxu0
        %2107 = vmatprep.mubr.bf16.mxu0 0
        %2108 = vmatmul.mubr.bf16.gmra.mrb[0].mxu0 %v1818
        %v2109 = vpop.f32.mrb[0].mxu0
        %v2110 = vadd.f32 0.0, %v2109
        %v2111 = vpop.f32.mrb[0].mxu0
        %v2112 = vpop.f32.mrb[0].mxu0
        %v2113 = vadd.f32 0.0, %v2112
        %v2114 = vpop.f32.mrb[0].mxu0
        %2115 = vdwg.mxu0
        %v2116 = vadd.f32 %v1499, %v1926
        %v2117 = vadd.f32 %v1502, %v1929
        %v2118 = vadd.f32 %v1507, %v1934
        %v2119 = vadd.f32 %v1510, %v1937
        %v2120 = vadd.f32 %v1515, %v1942
        %v2121 = vadd.f32 %v1518, %v1945
        %v2122 = vadd.f32 %v1523, %v1950
        %v2123 = vadd.f32 %v1526, %v1953
        %v2124 = vadd.f32 %v1531, %v1958
        %v2125 = vadd.f32 %v1534, %v1961
        %v2126 = vadd.f32 %v1539, %v1966
        %v2127 = vadd.f32 %v1542, %v1969
        %v2128 = vadd.f32 %v1547, %v1974
        %v2129 = vadd.f32 %v1550, %v1977
        %v2130 = vadd.f32 %v1555, %v1982
        %v2131 = vadd.f32 %v1558, %v1985
        %v2132 = vadd.f32 %v1563, %v1990
        %v2133 = vadd.f32 %v1566, %v1993
        %v2134 = vadd.f32 %v1571, %v1998
        %v2135 = vadd.f32 %v1574, %v2001
        %v2136 = vadd.f32 %v1579, %v2006
        %v2137 = vadd.f32 %v1582, %v2009
        %v2138 = vadd.f32 %v1587, %v2014
        %v2139 = vadd.f32 %v1590, %v2017
        %v2140 = vadd.f32 %v1595, %v2022
        %v2141 = vadd.f32 %v1598, %v2025
        %v2142 = vadd.f32 %v1603, %v2030
        %v2143 = vadd.f32 %v1606, %v2033
        %v2144 = vadd.f32 %v1611, %v2038
        %v2145 = vadd.f32 %v1614, %v2041
        %v2146 = vadd.f32 %v1619, %v2046
        %v2147 = vadd.f32 %v1622, %v2049
        %v2148 = vadd.f32 %v1627, %v2054
        %v2149 = vadd.f32 %v1630, %v2057
        %v2150 = vadd.f32 %v1635, %v2062
        %v2151 = vadd.f32 %v1638, %v2065
        %v2152 = vadd.f32 %v1643, %v2070
        %v2153 = vadd.f32 %v1646, %v2073
        %v2154 = vadd.f32 %v1651, %v2078
        %v2155 = vadd.f32 %v1654, %v2081
        %v2156 = vadd.f32 %v1659, %v2086
        %v2157 = vadd.f32 %v1662, %v2089
        %v2158 = vadd.f32 %v1667, %v2094
        %v2159 = vadd.f32 %v1670, %v2097
        %v2160 = vadd.f32 %v1675, %v2102
        %v2161 = vadd.f32 %v1678, %v2105
        %v2162 = vadd.f32 %v1683, %v2110
        %v2163 = vadd.f32 %v1686, %v2113
        %v2164 = vld [vmem:[#allocation3 + $0x8] sm:$0x80]
        %v2165 = vld [vmem:[#allocation3 + $0x10] sm:$0xff]
        %v2166 = vld [vmem:[#allocation3 + $0x18] sm:$0xff]
        %v2167 = vld [vmem:[#allocation3 + $0x20] sm:$0xff]
        %v2168 = vld [vmem:[#allocation3 + $0x28] sm:$0xff]
        %v2169 = vld [vmem:[#allocation3 + $0x30] sm:$0xff]
        %v2170 = vld [vmem:[#allocation3 + $0x38] sm:$0xff]
        %v2171 = vld [vmem:[#allocation3 + $0x40] sm:$0xff]
        %v2172 = vld [vmem:[#allocation3 + $0x48] sm:$0xff]
        %v2173 = vld [vmem:[#allocation3 + $0x50] sm:$0xff]
        %v2174 = vld [vmem:[#allocation3 + $0x58] sm:$0xff]
        %v2175 = vld [vmem:[#allocation3 + $0x60] sm:$0xff]
        %v2176 = vld [vmem:[#allocation3 + $0x68] sm:$0xff]
        %v2177 = vld [vmem:[#allocation3 + $0x70] sm:$0xff]
        %v2178 = vld [vmem:[#allocation3 + $0x78] sm:$0xff]
        %v2179 = vld [vmem:[#allocation3 + $0x80] sm:$0xff]
        %v2180 = vld [vmem:[#allocation3 + $0x88] sm:$0xff]
        %v2181 = vld [vmem:[#allocation3 + $0x90] sm:$0xff]
        %v2182 = vld [vmem:[#allocation3 + $0x98] sm:$0xff]
        %v2183 = vld [vmem:[#allocation3 + $0xa0] sm:$0xff]
        %v2184 = vld [vmem:[#allocation3 + $0xa8] sm:$0xff]
        %v2185 = vld [vmem:[#allocation3 + $0xb0] sm:$0xff]
        %v2186 = vld [vmem:[#allocation3 + $0xb8] sm:$0xff]
        %v2187 = vld [vmem:[#allocation3 + $0xc0] sm:$0xff]
        %v2188 = vld [vmem:[#allocation3 + $0xc8] sm:$0xff]
        %s2189 = sadd.s32 48, %s756
        %s2190 = smul.addr %s2189, 4
        %s2191 = scalar_lea.vmem [#allocation7], %s2190
        %v2192 = vld [vmem:[%s2191] sm:$0xf]
        %v2193 = vld [vmem:[%s2191 + $0x4] sm:$0xf]
        %v2194 = vld [vmem:[%s2191 + $0x8] sm:$0xf]
        %v2195 = vld [vmem:[%s2191 + $0xc] sm:$0xf]
        %v2196 = vld [vmem:[%s2191 + $0x10] sm:$0xf]
        %v2197 = vld [vmem:[%s2191 + $0x14] sm:$0xf]
        %v2198 = vld [vmem:[%s2191 + $0x18] sm:$0xf]
        %v2199 = vld [vmem:[%s2191 + $0x1c] sm:$0xf]
        %v2200 = vld [vmem:[%s2191 + $0x20] sm:$0xf]
        %v2201 = vld [vmem:[%s2191 + $0x24] sm:$0xf]
        %v2202 = vld [vmem:[%s2191 + $0x28] sm:$0xf]
        %v2203 = vld [vmem:[%s2191 + $0x2c] sm:$0xf]
        %v2204 = vld [vmem:[%s2191 + $0x30] sm:$0xf]
        %v2205 = vld [vmem:[%s2191 + $0x34] sm:$0xf]
        %v2206 = vld [vmem:[%s2191 + $0x38] sm:$0xf]
        %v2207 = vld [vmem:[%s2191 + $0x3c] sm:$0xf]
        %vm2208 = vsmask.f32 256
        %v2210 = vshrl.u32 %v2164, 16
        %v2212 = vrot.slane %v2210, 7
        %v2214 = vshrl.u32 %v2165, 16
        %v2216 = vrot.slane %v2214, 7
        %v2217 = vshll.u32 %v2165, 16
        %v2219 = vor.u32 %v2216, %v2217
        %v2220 = vsel %vm2208, %v2212, %v2219
        %v2222 = vshrl.u32 %v2166, 16
        %v2224 = vrot.slane %v2222, 7
        %v2225 = vshll.u32 %v2166, 16
        %v2227 = vor.u32 %v2224, %v2225
        %v2228 = vsel %vm2208, %v2216, %v2227
        %v2230 = vshrl.u32 %v2167, 16
        %v2232 = vrot.slane %v2230, 7
        %v2233 = vshll.u32 %v2167, 16
        %v2235 = vor.u32 %v2232, %v2233
        %v2236 = vsel %vm2208, %v2224, %v2235
        %v2238 = vshrl.u32 %v2168, 16
        %v2240 = vrot.slane %v2238, 7
        %v2241 = vshll.u32 %v2168, 16
        %v2243 = vor.u32 %v2240, %v2241
        %v2244 = vsel %vm2208, %v2232, %v2243
        %v2246 = vshrl.u32 %v2169, 16
        %v2248 = vrot.slane %v2246, 7
        %v2249 = vshll.u32 %v2169, 16
        %v2251 = vor.u32 %v2248, %v2249
        %v2252 = vsel %vm2208, %v2240, %v2251
        %v2254 = vshrl.u32 %v2170, 16
        %v2256 = vrot.slane %v2254, 7
        %v2257 = vshll.u32 %v2170, 16
        %v2259 = vor.u32 %v2256, %v2257
        %v2260 = vsel %vm2208, %v2248, %v2259
        %v2262 = vshrl.u32 %v2171, 16
        %v2264 = vrot.slane %v2262, 7
        %v2265 = vshll.u32 %v2171, 16
        %v2267 = vor.u32 %v2264, %v2265
        %v2268 = vsel %vm2208, %v2256, %v2267
        %v2270 = vshrl.u32 %v2172, 16
        %v2272 = vrot.slane %v2270, 7
        %v2273 = vshll.u32 %v2172, 16
        %v2275 = vor.u32 %v2272, %v2273
        %v2276 = vsel %vm2208, %v2264, %v2275
        %v2278 = vshrl.u32 %v2173, 16
        %v2280 = vrot.slane %v2278, 7
        %v2281 = vshll.u32 %v2173, 16
        %v2283 = vor.u32 %v2280, %v2281
        %v2284 = vsel %vm2208, %v2272, %v2283
        %v2286 = vshrl.u32 %v2174, 16
        %v2288 = vrot.slane %v2286, 7
        %v2289 = vshll.u32 %v2174, 16
        %v2291 = vor.u32 %v2288, %v2289
        %v2292 = vsel %vm2208, %v2280, %v2291
        %v2294 = vshrl.u32 %v2175, 16
        %v2296 = vrot.slane %v2294, 7
        %v2297 = vshll.u32 %v2175, 16
        %v2299 = vor.u32 %v2296, %v2297
        %v2300 = vsel %vm2208, %v2288, %v2299
        %v2302 = vshrl.u32 %v2176, 16
        %v2304 = vrot.slane %v2302, 7
        %v2305 = vshll.u32 %v2176, 16
        %v2307 = vor.u32 %v2304, %v2305
        %v2308 = vsel %vm2208, %v2296, %v2307
        %v2310 = vshrl.u32 %v2177, 16
        %v2312 = vrot.slane %v2310, 7
        %v2313 = vshll.u32 %v2177, 16
        %v2315 = vor.u32 %v2312, %v2313
        %v2316 = vsel %vm2208, %v2304, %v2315
        %v2318 = vshrl.u32 %v2178, 16
        %v2320 = vrot.slane %v2318, 7
        %v2321 = vshll.u32 %v2178, 16
        %v2323 = vor.u32 %v2320, %v2321
        %v2324 = vsel %vm2208, %v2312, %v2323
        %v2326 = vshrl.u32 %v2179, 16
        %v2328 = vrot.slane %v2326, 7
        %v2329 = vshll.u32 %v2179, 16
        %v2331 = vor.u32 %v2328, %v2329
        %v2332 = vsel %vm2208, %v2320, %v2331
        %v2334 = vshrl.u32 %v2180, 16
        %v2336 = vrot.slane %v2334, 7
        %v2337 = vshll.u32 %v2180, 16
        %v2339 = vor.u32 %v2336, %v2337
        %v2340 = vsel %vm2208, %v2328, %v2339
        %v2342 = vshrl.u32 %v2181, 16
        %v2344 = vrot.slane %v2342, 7
        %v2345 = vshll.u32 %v2181, 16
        %v2347 = vor.u32 %v2344, %v2345
        %v2348 = vsel %vm2208, %v2336, %v2347
        %v2350 = vshrl.u32 %v2182, 16
        %v2352 = vrot.slane %v2350, 7
        %v2353 = vshll.u32 %v2182, 16
        %v2355 = vor.u32 %v2352, %v2353
        %v2356 = vsel %vm2208, %v2344, %v2355
        %v2358 = vshrl.u32 %v2183, 16
        %v2360 = vrot.slane %v2358, 7
        %v2361 = vshll.u32 %v2183, 16
        %v2363 = vor.u32 %v2360, %v2361
        %v2364 = vsel %vm2208, %v2352, %v2363
        %v2366 = vshrl.u32 %v2184, 16
        %v2368 = vrot.slane %v2366, 7
        %v2369 = vshll.u32 %v2184, 16
        %v2371 = vor.u32 %v2368, %v2369
        %v2372 = vsel %vm2208, %v2360, %v2371
        %v2374 = vshrl.u32 %v2185, 16
        %v2376 = vrot.slane %v2374, 7
        %v2377 = vshll.u32 %v2185, 16
        %v2379 = vor.u32 %v2376, %v2377
        %v2380 = vsel %vm2208, %v2368, %v2379
        %v2382 = vshrl.u32 %v2186, 16
        %v2384 = vrot.slane %v2382, 7
        %v2385 = vshll.u32 %v2186, 16
        %v2387 = vor.u32 %v2384, %v2385
        %v2388 = vsel %vm2208, %v2376, %v2387
        %v2390 = vshrl.u32 %v2187, 16
        %v2392 = vrot.slane %v2390, 7
        %v2393 = vshll.u32 %v2187, 16
        %v2395 = vor.u32 %v2392, %v2393
        %v2396 = vsel %vm2208, %v2384, %v2395
        %v2398 = vshrl.u32 %v2188, 16
        %v2400 = vrot.slane %v2398, 7
        %v2401 = vshll.u32 %v2188, 16
        %v2403 = vor.u32 %v2400, %v2401
        %v2404 = vsel %vm2208, %v2392, %v2403
        %v2445 = vunpack.c.l.b16 %v2192
        %v2446 = vunpack.c.l.b16 %v2193
        %v2447 = vunpack.c.l.b16 %v2194
        %v2448 = vunpack.c.l.b16 %v2195
        %v2449 = vunpack.c.l.b16 %v2196
        %v2450 = vunpack.c.l.b16 %v2197
        %v2451 = vunpack.c.l.b16 %v2198
        %v2452 = vunpack.c.l.b16 %v2199
        %v2453 = vunpack.c.l.b16 %v2200
        %v2454 = vunpack.c.l.b16 %v2201
        %v2455 = vunpack.c.l.b16 %v2202
        %v2456 = vunpack.c.l.b16 %v2203
        %v2457 = vunpack.c.l.b16 %v2204
        %v2458 = vunpack.c.l.b16 %v2205
        %v2459 = vunpack.c.l.b16 %v2206
        %v2460 = vunpack.c.l.b16 %v2207
        %v2461 = vpack.c.b16 %v2446, %v2445
        %v2462 = vpack.c.b16 %v2448, %v2447
        %v2463 = vpack.c.b16 %v2450, %v2449
        %v2464 = vpack.c.b16 %v2452, %v2451
        %v2465 = vpack.c.b16 %v2454, %v2453
        %v2466 = vpack.c.b16 %v2456, %v2455
        %v2467 = vpack.c.b16 %v2458, %v2457
        %v2468 = vpack.c.b16 %v2460, %v2459
        %2477 = vmatprep.subr.bf16.mxu0 0
        %2478 = vmatpush1.bf16.msra.mxu0 %v2461
        %2479 = vmatprep.subr.bf16.mxu0 0
        %2480 = vmatpush1.bf16.msra.mxu0 %v2462
        %2481 = vmatprep.subr.bf16.mxu0 0
        %2482 = vmatpush1.bf16.msra.mxu0 %v2463
        %2483 = vmatprep.subr.bf16.mxu0 0
        %2484 = vmatpush1.bf16.msra.mxu0 %v2464
        %2485 = vmatprep.subr.bf16.mxu0 0
        %2486 = vmatpush1.bf16.msra.mxu0 %v2465
        %2487 = vmatprep.subr.bf16.mxu0 0
        %2488 = vmatpush1.bf16.msra.mxu0 %v2466
        %2489 = vmatprep.subr.bf16.mxu0 0
        %2490 = vmatpush1.bf16.msra.mxu0 %v2467
        %2491 = vmatprep.subr.bf16.mxu0 0
        %2492 = vmatpush1.bf16.msra.mxu0 %v2468
        %2493 = vmatprep.subr.bf16.mxu0 0
        %2494 = vmatpush1.bf16.msra.mxu0 0
        %2495 = vmatprep.subr.bf16.mxu0 0
        %2496 = vmatpush1.bf16.msra.mxu0 0
        %2497 = vmatprep.subr.bf16.mxu0 0
        %2498 = vmatpush1.bf16.msra.mxu0 0
        %2499 = vmatprep.subr.bf16.mxu0 0
        %2500 = vmatpush1.bf16.msra.mxu0 0
        %2501 = vmatprep.subr.bf16.mxu0 0
        %2502 = vmatpush1.bf16.msra.mxu0 0
        %2503 = vmatprep.subr.bf16.mxu0 0
        %2504 = vmatpush1.bf16.msra.mxu0 0
        %2505 = vmatprep.subr.bf16.mxu0 0
        %2506 = vmatpush1.bf16.msra.mxu0 0
        %2507 = vmatprep.subr.bf16.mxu0 0
        %2508 = vmatpush1.bf16.msra.mxu0 0
        %2509 = vmatprep.mubr.bf16.mxu0 0
        %2510 = vmatmul.mubr.bf16.gmra.mrb[0].mxu0 %v2220
        %v2511 = vpop.f32.mrb[0].mxu0
        %v2512 = vadd.f32 0.0, %v2511
        %v2513 = vpop.f32.mrb[0].mxu0
        %v2514 = vpop.f32.mrb[0].mxu0
        %v2515 = vadd.f32 0.0, %v2514
        %v2516 = vpop.f32.mrb[0].mxu0
        %2517 = vmatprep.mubr.bf16.mxu0 0
        %2518 = vmatmul.mubr.bf16.gmra.mrb[0].mxu0 %v2228
        %v2519 = vpop.f32.mrb[0].mxu0
        %v2520 = vadd.f32 0.0, %v2519
        %v2521 = vpop.f32.mrb[0].mxu0
        %v2522 = vpop.f32.mrb[0].mxu0
        %v2523 = vadd.f32 0.0, %v2522
        %v2524 = vpop.f32.mrb[0].mxu0
        %2525 = vmatprep.mubr.bf16.mxu0 0
        %2526 = vmatmul.mubr.bf16.gmra.mrb[0].mxu0 %v2236
        %v2527 = vpop.f32.mrb[0].mxu0
        %v2528 = vadd.f32 0.0, %v2527
        %v2529 = vpop.f32.mrb[0].mxu0
        %v2530 = vpop.f32.mrb[0].mxu0
        %v2531 = vadd.f32 0.0, %v2530
        %v2532 = vpop.f32.mrb[0].mxu0
        %2533 = vmatprep.mubr.bf16.mxu0 0
        %2534 = vmatmul.mubr.bf16.gmra.mrb[0].mxu0 %v2244
        %v2535 = vpop.f32.mrb[0].mxu0
        %v2536 = vadd.f32 0.0, %v2535
        %v2537 = vpop.f32.mrb[0].mxu0
        %v2538 = vpop.f32.mrb[0].mxu0
        %v2539 = vadd.f32 0.0, %v2538
        %v2540 = vpop.f32.mrb[0].mxu0
        %2541 = vmatprep.mubr.bf16.mxu0 0
        %2542 = vmatmul.mubr.bf16.gmra.mrb[0].mxu0 %v2252
        %v2543 = vpop.f32.mrb[0].mxu0
        %v2544 = vadd.f32 0.0, %v2543
        %v2545 = vpop.f32.mrb[0].mxu0
        %v2546 = vpop.f32.mrb[0].mxu0
        %v2547 = vadd.f32 0.0, %v2546
        %v2548 = vpop.f32.mrb[0].mxu0
        %2549 = vmatprep.mubr.bf16.mxu0 0
        %2550 = vmatmul.mubr.bf16.gmra.mrb[0].mxu0 %v2260
        %v2551 = vpop.f32.mrb[0].mxu0
        %v2552 = vadd.f32 0.0, %v2551
        %v2553 = vpop.f32.mrb[0].mxu0
        %v2554 = vpop.f32.mrb[0].mxu0
        %v2555 = vadd.f32 0.0, %v2554
        %v2556 = vpop.f32.mrb[0].mxu0
        %2557 = vmatprep.mubr.bf16.mxu0 0
        %2558 = vmatmul.mubr.bf16.gmra.mrb[0].mxu0 %v2268
        %v2559 = vpop.f32.mrb[0].mxu0
        %v2560 = vadd.f32 0.0, %v2559
        %v2561 = vpop.f32.mrb[0].mxu0
        %v2562 = vpop.f32.mrb[0].mxu0
        %v2563 = vadd.f32 0.0, %v2562
        %v2564 = vpop.f32.mrb[0].mxu0
        %2565 = vmatprep.mubr.bf16.mxu0 0
        %2566 = vmatmul.mubr.bf16.gmra.mrb[0].mxu0 %v2276
        %v2567 = vpop.f32.mrb[0].mxu0
        %v2568 = vadd.f32 0.0, %v2567
        %v2569 = vpop.f32.mrb[0].mxu0
        %v2570 = vpop.f32.mrb[0].mxu0
        %v2571 = vadd.f32 0.0, %v2570
        %v2572 = vpop.f32.mrb[0].mxu0
        %2573 = vmatprep.mubr.bf16.mxu0 0
        %2574 = vmatmul.mubr.bf16.gmra.mrb[0].mxu0 %v2284
        %v2575 = vpop.f32.mrb[0].mxu0
        %v2576 = vadd.f32 0.0, %v2575
        %v2577 = vpop.f32.mrb[0].mxu0
        %v2578 = vpop.f32.mrb[0].mxu0
        %v2579 = vadd.f32 0.0, %v2578
        %v2580 = vpop.f32.mrb[0].mxu0
        %2581 = vmatprep.mubr.bf16.mxu0 0
        %2582 = vmatmul.mubr.bf16.gmra.mrb[0].mxu0 %v2292
        %v2583 = vpop.f32.mrb[0].mxu0
        %v2584 = vadd.f32 0.0, %v2583
        %v2585 = vpop.f32.mrb[0].mxu0
        %v2586 = vpop.f32.mrb[0].mxu0
        %v2587 = vadd.f32 0.0, %v2586
        %v2588 = vpop.f32.mrb[0].mxu0
        %2589 = vmatprep.mubr.bf16.mxu0 0
        %2590 = vmatmul.mubr.bf16.gmra.mrb[0].mxu0 %v2300
        %v2591 = vpop.f32.mrb[0].mxu0
        %v2592 = vadd.f32 0.0, %v2591
        %v2593 = vpop.f32.mrb[0].mxu0
        %v2594 = vpop.f32.mrb[0].mxu0
        %v2595 = vadd.f32 0.0, %v2594
        %v2596 = vpop.f32.mrb[0].mxu0
        %2597 = vmatprep.mubr.bf16.mxu0 0
        %2598 = vmatmul.mubr.bf16.gmra.mrb[0].mxu0 %v2308
        %v2599 = vpop.f32.mrb[0].mxu0
        %v2600 = vadd.f32 0.0, %v2599
        %v2601 = vpop.f32.mrb[0].mxu0
        %v2602 = vpop.f32.mrb[0].mxu0
        %v2603 = vadd.f32 0.0, %v2602
        %v2604 = vpop.f32.mrb[0].mxu0
        %2605 = vmatprep.mubr.bf16.mxu0 0
        %2606 = vmatmul.mubr.bf16.gmra.mrb[0].mxu0 %v2316
        %v2607 = vpop.f32.mrb[0].mxu0
        %v2608 = vadd.f32 0.0, %v2607
        %v2609 = vpop.f32.mrb[0].mxu0
        %v2610 = vpop.f32.mrb[0].mxu0
        %v2611 = vadd.f32 0.0, %v2610
        %v2612 = vpop.f32.mrb[0].mxu0
        %2613 = vmatprep.mubr.bf16.mxu0 0
        %2614 = vmatmul.mubr.bf16.gmra.mrb[0].mxu0 %v2324
        %v2615 = vpop.f32.mrb[0].mxu0
        %v2616 = vadd.f32 0.0, %v2615
        %v2617 = vpop.f32.mrb[0].mxu0
        %v2618 = vpop.f32.mrb[0].mxu0
        %v2619 = vadd.f32 0.0, %v2618
        %v2620 = vpop.f32.mrb[0].mxu0
        %2621 = vmatprep.mubr.bf16.mxu0 0
        %2622 = vmatmul.mubr.bf16.gmra.mrb[0].mxu0 %v2332
        %v2623 = vpop.f32.mrb[0].mxu0
        %v2624 = vadd.f32 0.0, %v2623
        %v2625 = vpop.f32.mrb[0].mxu0
        %v2626 = vpop.f32.mrb[0].mxu0
        %v2627 = vadd.f32 0.0, %v2626
        %v2628 = vpop.f32.mrb[0].mxu0
        %2629 = vmatprep.mubr.bf16.mxu0 0
        %2630 = vmatmul.mubr.bf16.gmra.mrb[0].mxu0 %v2340
        %v2631 = vpop.f32.mrb[0].mxu0
        %v2632 = vadd.f32 0.0, %v2631
        %v2633 = vpop.f32.mrb[0].mxu0
        %v2634 = vpop.f32.mrb[0].mxu0
        %v2635 = vadd.f32 0.0, %v2634
        %v2636 = vpop.f32.mrb[0].mxu0
        %2637 = vmatprep.mubr.bf16.mxu0 0
        %2638 = vmatmul.mubr.bf16.gmra.mrb[0].mxu0 %v2348
        %v2639 = vpop.f32.mrb[0].mxu0
        %v2640 = vadd.f32 0.0, %v2639
        %v2641 = vpop.f32.mrb[0].mxu0
        %v2642 = vpop.f32.mrb[0].mxu0
        %v2643 = vadd.f32 0.0, %v2642
        %v2644 = vpop.f32.mrb[0].mxu0
        %2645 = vmatprep.mubr.bf16.mxu0 0
        %2646 = vmatmul.mubr.bf16.gmra.mrb[0].mxu0 %v2356
        %v2647 = vpop.f32.mrb[0].mxu0
        %v2648 = vadd.f32 0.0, %v2647
        %v2649 = vpop.f32.mrb[0].mxu0
        %v2650 = vpop.f32.mrb[0].mxu0
        %v2651 = vadd.f32 0.0, %v2650
        %v2652 = vpop.f32.mrb[0].mxu0
        %2653 = vmatprep.mubr.bf16.mxu0 0
        %2654 = vmatmul.mubr.bf16.gmra.mrb[0].mxu0 %v2364
        %v2655 = vpop.f32.mrb[0].mxu0
        %v2656 = vadd.f32 0.0, %v2655
        %v2657 = vpop.f32.mrb[0].mxu0
        %v2658 = vpop.f32.mrb[0].mxu0
        %v2659 = vadd.f32 0.0, %v2658
        %v2660 = vpop.f32.mrb[0].mxu0
        %2661 = vmatprep.mubr.bf16.mxu0 0
        %2662 = vmatmul.mubr.bf16.gmra.mrb[0].mxu0 %v2372
        %v2663 = vpop.f32.mrb[0].mxu0
        %v2664 = vadd.f32 0.0, %v2663
        %v2665 = vpop.f32.mrb[0].mxu0
        %v2666 = vpop.f32.mrb[0].mxu0
        %v2667 = vadd.f32 0.0, %v2666
        %v2668 = vpop.f32.mrb[0].mxu0
        %2669 = vmatprep.mubr.bf16.mxu0 0
        %2670 = vmatmul.mubr.bf16.gmra.mrb[0].mxu0 %v2380
        %v2671 = vpop.f32.mrb[0].mxu0
        %v2672 = vadd.f32 0.0, %v2671
        %v2673 = vpop.f32.mrb[0].mxu0
        %v2674 = vpop.f32.mrb[0].mxu0
        %v2675 = vadd.f32 0.0, %v2674
        %v2676 = vpop.f32.mrb[0].mxu0
        %2677 = vmatprep.mubr.bf16.mxu0 0
        %2678 = vmatmul.mubr.bf16.gmra.mrb[0].mxu0 %v2388
        %v2679 = vpop.f32.mrb[0].mxu0
        %v2680 = vadd.f32 0.0, %v2679
        %v2681 = vpop.f32.mrb[0].mxu0
        %v2682 = vpop.f32.mrb[0].mxu0
        %v2683 = vadd.f32 0.0, %v2682
        %v2684 = vpop.f32.mrb[0].mxu0
        %2685 = vmatprep.mubr.bf16.mxu0 0
        %2686 = vmatmul.mubr.bf16.gmra.mrb[0].mxu0 %v2396
        %v2687 = vpop.f32.mrb[0].mxu0
        %v2688 = vadd.f32 0.0, %v2687
        %v2689 = vpop.f32.mrb[0].mxu0
        %v2690 = vpop.f32.mrb[0].mxu0
        %v2691 = vadd.f32 0.0, %v2690
        %v2692 = vpop.f32.mrb[0].mxu0
        %2693 = vmatprep.mubr.bf16.mxu0 0
        %2694 = vmatmul.mubr.bf16.gmra.mrb[0].mxu0 %v2404
        %v2695 = vpop.f32.mrb[0].mxu0
        %v2696 = vadd.f32 0.0, %v2695
        %v2697 = vpop.f32.mrb[0].mxu0
        %v2698 = vpop.f32.mrb[0].mxu0
        %v2699 = vadd.f32 0.0, %v2698
        %v2700 = vpop.f32.mrb[0].mxu0
        %2701 = vdwg.mxu0
        %v2702 = vadd.f32 %v2116, %v2512
        %v2703 = vadd.f32 %v2117, %v2515
        %v2704 = vadd.f32 %v2118, %v2520
        %v2705 = vadd.f32 %v2119, %v2523
        %v2706 = vadd.f32 %v2120, %v2528
        %v2707 = vadd.f32 %v2121, %v2531
        %v2708 = vadd.f32 %v2122, %v2536
        %v2709 = vadd.f32 %v2123, %v2539
        %v2710 = vadd.f32 %v2124, %v2544
        %v2711 = vadd.f32 %v2125, %v2547
        %v2712 = vadd.f32 %v2126, %v2552
        %v2713 = vadd.f32 %v2127, %v2555
        %v2714 = vadd.f32 %v2128, %v2560
        %v2715 = vadd.f32 %v2129, %v2563
        %v2716 = vadd.f32 %v2130, %v2568
        %v2717 = vadd.f32 %v2131, %v2571
        %v2718 = vadd.f32 %v2132, %v2576
        %v2719 = vadd.f32 %v2133, %v2579
        %v2720 = vadd.f32 %v2134, %v2584
        %v2721 = vadd.f32 %v2135, %v2587
        %v2722 = vadd.f32 %v2136, %v2592
        %v2723 = vadd.f32 %v2137, %v2595
        %v2724 = vadd.f32 %v2138, %v2600
        %v2725 = vadd.f32 %v2139, %v2603
        %v2726 = vadd.f32 %v2140, %v2608
        %v2727 = vadd.f32 %v2141, %v2611
        %v2728 = vadd.f32 %v2142, %v2616
        %v2729 = vadd.f32 %v2143, %v2619
        %v2730 = vadd.f32 %v2144, %v2624
        %v2731 = vadd.f32 %v2145, %v2627
        %v2732 = vadd.f32 %v2146, %v2632
        %v2733 = vadd.f32 %v2147, %v2635
        %v2734 = vadd.f32 %v2148, %v2640
        %v2735 = vadd.f32 %v2149, %v2643
        %v2736 = vadd.f32 %v2150, %v2648
        %v2737 = vadd.f32 %v2151, %v2651
        %v2738 = vadd.f32 %v2152, %v2656
        %v2739 = vadd.f32 %v2153, %v2659
        %v2740 = vadd.f32 %v2154, %v2664
        %v2741 = vadd.f32 %v2155, %v2667
        %v2742 = vadd.f32 %v2156, %v2672
        %v2743 = vadd.f32 %v2157, %v2675
        %v2744 = vadd.f32 %v2158, %v2680
        %v2745 = vadd.f32 %v2159, %v2683
        %v2746 = vadd.f32 %v2160, %v2688
        %v2747 = vadd.f32 %v2161, %v2691
        %v2748 = vadd.f32 %v2162, %v2696
        %v2749 = vadd.f32 %v2163, %v2699
        %s2750 = sadd.s32 64, %s756
        %s2751 = smul.addr %s2750, 4
        %s2752 = scalar_lea.vmem [#allocation7], %s2751
        %v2753 = vld [vmem:[%s2752] sm:$0xf]
        %v2754 = vld [vmem:[%s2752 + $0x4] sm:$0xf]
        %v2755 = vld [vmem:[%s2752 + $0x8] sm:$0xf]
        %v2756 = vld [vmem:[%s2752 + $0xc] sm:$0xf]
        %v2757 = vld [vmem:[%s2752 + $0x10] sm:$0xf]
        %v2758 = vld [vmem:[%s2752 + $0x14] sm:$0xf]
        %v2759 = vld [vmem:[%s2752 + $0x18] sm:$0xf]
        %v2760 = vld [vmem:[%s2752 + $0x1c] sm:$0xf]
        %v2761 = vld [vmem:[%s2752 + $0x20] sm:$0xf]
        %v2762 = vld [vmem:[%s2752 + $0x24] sm:$0xf]
        %v2763 = vld [vmem:[%s2752 + $0x28] sm:$0xf]
        %v2764 = vld [vmem:[%s2752 + $0x2c] sm:$0xf]
        %v2765 = vld [vmem:[%s2752 + $0x30] sm:$0xf]
        %v2766 = vld [vmem:[%s2752 + $0x34] sm:$0xf]
        %v2767 = vld [vmem:[%s2752 + $0x38] sm:$0xf]
        %v2768 = vld [vmem:[%s2752 + $0x3c] sm:$0xf]
        %v2785 = vunpack.c.l.b16 %v2753
        %v2786 = vunpack.c.l.b16 %v2754
        %v2787 = vunpack.c.l.b16 %v2755
        %v2788 = vunpack.c.l.b16 %v2756
        %v2789 = vunpack.c.l.b16 %v2757
        %v2790 = vunpack.c.l.b16 %v2758
        %v2791 = vunpack.c.l.b16 %v2759
        %v2792 = vunpack.c.l.b16 %v2760
        %v2793 = vunpack.c.l.b16 %v2761
        %v2794 = vunpack.c.l.b16 %v2762
        %v2795 = vunpack.c.l.b16 %v2763
        %v2796 = vunpack.c.l.b16 %v2764
        %v2797 = vunpack.c.l.b16 %v2765
        %v2798 = vunpack.c.l.b16 %v2766
        %v2799 = vunpack.c.l.b16 %v2767
        %v2800 = vunpack.c.l.b16 %v2768
        %v2801 = vpack.c.b16 %v2786, %v2785
        %v2802 = vpack.c.b16 %v2788, %v2787
        %v2803 = vpack.c.b16 %v2790, %v2789
        %v2804 = vpack.c.b16 %v2792, %v2791
        %v2805 = vpack.c.b16 %v2794, %v2793
        %v2806 = vpack.c.b16 %v2796, %v2795
        %v2807 = vpack.c.b16 %v2798, %v2797
        %v2808 = vpack.c.b16 %v2800, %v2799
        %2817 = vmatprep.subr.bf16.mxu0 0
        %2818 = vmatpush1.bf16.msra.mxu0 %v2801
        %2819 = vmatprep.subr.bf16.mxu0 0
        %2820 = vmatpush1.bf16.msra.mxu0 %v2802
        %2821 = vmatprep.subr.bf16.mxu0 0
        %2822 = vmatpush1.bf16.msra.mxu0 %v2803
        %2823 = vmatprep.subr.bf16.mxu0 0
        %2824 = vmatpush1.bf16.msra.mxu0 %v2804
        %2825 = vmatprep.subr.bf16.mxu0 0
        %2826 = vmatpush1.bf16.msra.mxu0 %v2805
        %2827 = vmatprep.subr.bf16.mxu0 0
        %2828 = vmatpush1.bf16.msra.mxu0 %v2806
        %2829 = vmatprep.subr.bf16.mxu0 0
        %2830 = vmatpush1.bf16.msra.mxu0 %v2807
        %2831 = vmatprep.subr.bf16.mxu0 0
        %2832 = vmatpush1.bf16.msra.mxu0 %v2808
        %2833 = vmatprep.subr.bf16.mxu0 0
        %2834 = vmatpush1.bf16.msra.mxu0 0
        %2835 = vmatprep.subr.bf16.mxu0 0
        %2836 = vmatpush1.bf16.msra.mxu0 0
        %2837 = vmatprep.subr.bf16.mxu0 0
        %2838 = vmatpush1.bf16.msra.mxu0 0
        %2839 = vmatprep.subr.bf16.mxu0 0
        %2840 = vmatpush1.bf16.msra.mxu0 0
        %2841 = vmatprep.subr.bf16.mxu0 0
        %2842 = vmatpush1.bf16.msra.mxu0 0
        %2843 = vmatprep.subr.bf16.mxu0 0
        %2844 = vmatpush1.bf16.msra.mxu0 0
        %2845 = vmatprep.subr.bf16.mxu0 0
        %2846 = vmatpush1.bf16.msra.mxu0 0
        %2847 = vmatprep.subr.bf16.mxu0 0
        %2848 = vmatpush1.bf16.msra.mxu0 0
        %2849 = vmatprep.mubr.bf16.mxu0 0
        %2850 = vmatmul.mubr.bf16.gmra.mrb[0].mxu0 %v2165
        %v2851 = vpop.f32.mrb[0].mxu0
        %v2852 = vadd.f32 0.0, %v2851
        %v2853 = vpop.f32.mrb[0].mxu0
        %v2854 = vpop.f32.mrb[0].mxu0
        %v2855 = vadd.f32 0.0, %v2854
        %v2856 = vpop.f32.mrb[0].mxu0
        %2857 = vmatprep.mubr.bf16.mxu0 0
        %2858 = vmatmul.mubr.bf16.gmra.mrb[0].mxu0 %v2166
        %v2859 = vpop.f32.mrb[0].mxu0
        %v2860 = vadd.f32 0.0, %v2859
        %v2861 = vpop.f32.mrb[0].mxu0
        %v2862 = vpop.f32.mrb[0].mxu0
        %v2863 = vadd.f32 0.0, %v2862
        %v2864 = vpop.f32.mrb[0].mxu0
        %2865 = vmatprep.mubr.bf16.mxu0 0
        %2866 = vmatmul.mubr.bf16.gmra.mrb[0].mxu0 %v2167
        %v2867 = vpop.f32.mrb[0].mxu0
        %v2868 = vadd.f32 0.0, %v2867
        %v2869 = vpop.f32.mrb[0].mxu0
        %v2870 = vpop.f32.mrb[0].mxu0
        %v2871 = vadd.f32 0.0, %v2870
        %v2872 = vpop.f32.mrb[0].mxu0
        %2873 = vmatprep.mubr.bf16.mxu0 0
        %2874 = vmatmul.mubr.bf16.gmra.mrb[0].mxu0 %v2168
        %v2875 = vpop.f32.mrb[0].mxu0
        %v2876 = vadd.f32 0.0, %v2875
        %v2877 = vpop.f32.mrb[0].mxu0
        %v2878 = vpop.f32.mrb[0].mxu0
        %v2879 = vadd.f32 0.0, %v2878
        %v2880 = vpop.f32.mrb[0].mxu0
        %2881 = vmatprep.mubr.bf16.mxu0 0
        %2882 = vmatmul.mubr.bf16.gmra.mrb[0].mxu0 %v2169
        %v2883 = vpop.f32.mrb[0].mxu0
        %v2884 = vadd.f32 0.0, %v2883
        %v2885 = vpop.f32.mrb[0].mxu0
        %v2886 = vpop.f32.mrb[0].mxu0
        %v2887 = vadd.f32 0.0, %v2886
        %v2888 = vpop.f32.mrb[0].mxu0
        %2889 = vmatprep.mubr.bf16.mxu0 0
        %2890 = vmatmul.mubr.bf16.gmra.mrb[0].mxu0 %v2170
        %v2891 = vpop.f32.mrb[0].mxu0
        %v2892 = vadd.f32 0.0, %v2891
        %v2893 = vpop.f32.mrb[0].mxu0
        %v2894 = vpop.f32.mrb[0].mxu0
        %v2895 = vadd.f32 0.0, %v2894
        %v2896 = vpop.f32.mrb[0].mxu0
        %2897 = vmatprep.mubr.bf16.mxu0 0
        %2898 = vmatmul.mubr.bf16.gmra.mrb[0].mxu0 %v2171
        %v2899 = vpop.f32.mrb[0].mxu0
        %v2900 = vadd.f32 0.0, %v2899
        %v2901 = vpop.f32.mrb[0].mxu0
        %v2902 = vpop.f32.mrb[0].mxu0
        %v2903 = vadd.f32 0.0, %v2902
        %v2904 = vpop.f32.mrb[0].mxu0
        %2905 = vmatprep.mubr.bf16.mxu0 0
        %2906 = vmatmul.mubr.bf16.gmra.mrb[0].mxu0 %v2172
        %v2907 = vpop.f32.mrb[0].mxu0
        %v2908 = vadd.f32 0.0, %v2907
        %v2909 = vpop.f32.mrb[0].mxu0
        %v2910 = vpop.f32.mrb[0].mxu0
        %v2911 = vadd.f32 0.0, %v2910
        %v2912 = vpop.f32.mrb[0].mxu0
        %2913 = vmatprep.mubr.bf16.mxu0 0
        %2914 = vmatmul.mubr.bf16.gmra.mrb[0].mxu0 %v2173
        %v2915 = vpop.f32.mrb[0].mxu0
        %v2916 = vadd.f32 0.0, %v2915
        %v2917 = vpop.f32.mrb[0].mxu0
        %v2918 = vpop.f32.mrb[0].mxu0
        %v2919 = vadd.f32 0.0, %v2918
        %v2920 = vpop.f32.mrb[0].mxu0
        %2921 = vmatprep.mubr.bf16.mxu0 0
        %2922 = vmatmul.mubr.bf16.gmra.mrb[0].mxu0 %v2174
        %v2923 = vpop.f32.mrb[0].mxu0
        %v2924 = vadd.f32 0.0, %v2923
        %v2925 = vpop.f32.mrb[0].mxu0
        %v2926 = vpop.f32.mrb[0].mxu0
        %v2927 = vadd.f32 0.0, %v2926
        %v2928 = vpop.f32.mrb[0].mxu0
        %2929 = vmatprep.mubr.bf16.mxu0 0
        %2930 = vmatmul.mubr.bf16.gmra.mrb[0].mxu0 %v2175
        %v2931 = vpop.f32.mrb[0].mxu0
        %v2932 = vadd.f32 0.0, %v2931
        %v2933 = vpop.f32.mrb[0].mxu0
        %v2934 = vpop.f32.mrb[0].mxu0
        %v2935 = vadd.f32 0.0, %v2934
        %v2936 = vpop.f32.mrb[0].mxu0
        %2937 = vmatprep.mubr.bf16.mxu0 0
        %2938 = vmatmul.mubr.bf16.gmra.mrb[0].mxu0 %v2176
        %v2939 = vpop.f32.mrb[0].mxu0
        %v2940 = vadd.f32 0.0, %v2939
        %v2941 = vpop.f32.mrb[0].mxu0
        %v2942 = vpop.f32.mrb[0].mxu0
        %v2943 = vadd.f32 0.0, %v2942
        %v2944 = vpop.f32.mrb[0].mxu0
        %2945 = vmatprep.mubr.bf16.mxu0 0
        %2946 = vmatmul.mubr.bf16.gmra.mrb[0].mxu0 %v2177
        %v2947 = vpop.f32.mrb[0].mxu0
        %v2948 = vadd.f32 0.0, %v2947
        %v2949 = vpop.f32.mrb[0].mxu0
        %v2950 = vpop.f32.mrb[0].mxu0
        %v2951 = vadd.f32 0.0, %v2950
        %v2952 = vpop.f32.mrb[0].mxu0
        %2953 = vmatprep.mubr.bf16.mxu0 0
        %2954 = vmatmul.mubr.bf16.gmra.mrb[0].mxu0 %v2178
        %v2955 = vpop.f32.mrb[0].mxu0
        %v2956 = vadd.f32 0.0, %v2955
        %v2957 = vpop.f32.mrb[0].mxu0
        %v2958 = vpop.f32.mrb[0].mxu0
        %v2959 = vadd.f32 0.0, %v2958
        %v2960 = vpop.f32.mrb[0].mxu0
        %2961 = vmatprep.mubr.bf16.mxu0 0
        %2962 = vmatmul.mubr.bf16.gmra.mrb[0].mxu0 %v2179
        %v2963 = vpop.f32.mrb[0].mxu0
        %v2964 = vadd.f32 0.0, %v2963
        %v2965 = vpop.f32.mrb[0].mxu0
        %v2966 = vpop.f32.mrb[0].mxu0
        %v2967 = vadd.f32 0.0, %v2966
        %v2968 = vpop.f32.mrb[0].mxu0
        %2969 = vmatprep.mubr.bf16.mxu0 0
        %2970 = vmatmul.mubr.bf16.gmra.mrb[0].mxu0 %v2180
        %v2971 = vpop.f32.mrb[0].mxu0
        %v2972 = vadd.f32 0.0, %v2971
        %v2973 = vpop.f32.mrb[0].mxu0
        %v2974 = vpop.f32.mrb[0].mxu0
        %v2975 = vadd.f32 0.0, %v2974
        %v2976 = vpop.f32.mrb[0].mxu0
        %2977 = vmatprep.mubr.bf16.mxu0 0
        %2978 = vmatmul.mubr.bf16.gmra.mrb[0].mxu0 %v2181
        %v2979 = vpop.f32.mrb[0].mxu0
        %v2980 = vadd.f32 0.0, %v2979
        %v2981 = vpop.f32.mrb[0].mxu0
        %v2982 = vpop.f32.mrb[0].mxu0
        %v2983 = vadd.f32 0.0, %v2982
        %v2984 = vpop.f32.mrb[0].mxu0
        %2985 = vmatprep.mubr.bf16.mxu0 0
        %2986 = vmatmul.mubr.bf16.gmra.mrb[0].mxu0 %v2182
        %v2987 = vpop.f32.mrb[0].mxu0
        %v2988 = vadd.f32 0.0, %v2987
        %v2989 = vpop.f32.mrb[0].mxu0
        %v2990 = vpop.f32.mrb[0].mxu0
        %v2991 = vadd.f32 0.0, %v2990
        %v2992 = vpop.f32.mrb[0].mxu0
        %2993 = vmatprep.mubr.bf16.mxu0 0
        %2994 = vmatmul.mubr.bf16.gmra.mrb[0].mxu0 %v2183
        %v2995 = vpop.f32.mrb[0].mxu0
        %v2996 = vadd.f32 0.0, %v2995
        %v2997 = vpop.f32.mrb[0].mxu0
        %v2998 = vpop.f32.mrb[0].mxu0
        %v2999 = vadd.f32 0.0, %v2998
        %v3000 = vpop.f32.mrb[0].mxu0
        %3001 = vmatprep.mubr.bf16.mxu0 0
        %3002 = vmatmul.mubr.bf16.gmra.mrb[0].mxu0 %v2184
        %v3003 = vpop.f32.mrb[0].mxu0
        %v3004 = vadd.f32 0.0, %v3003
        %v3005 = vpop.f32.mrb[0].mxu0
        %v3006 = vpop.f32.mrb[0].mxu0
        %v3007 = vadd.f32 0.0, %v3006
        %v3008 = vpop.f32.mrb[0].mxu0
        %3009 = vmatprep.mubr.bf16.mxu0 0
        %3010 = vmatmul.mubr.bf16.gmra.mrb[0].mxu0 %v2185
        %v3011 = vpop.f32.mrb[0].mxu0
        %v3012 = vadd.f32 0.0, %v3011
        %v3013 = vpop.f32.mrb[0].mxu0
        %v3014 = vpop.f32.mrb[0].mxu0
        %v3015 = vadd.f32 0.0, %v3014
        %v3016 = vpop.f32.mrb[0].mxu0
        %3017 = vmatprep.mubr.bf16.mxu0 0
        %3018 = vmatmul.mubr.bf16.gmra.mrb[0].mxu0 %v2186
        %v3019 = vpop.f32.mrb[0].mxu0
        %v3020 = vadd.f32 0.0, %v3019
        %v3021 = vpop.f32.mrb[0].mxu0
        %v3022 = vpop.f32.mrb[0].mxu0
        %v3023 = vadd.f32 0.0, %v3022
        %v3024 = vpop.f32.mrb[0].mxu0
        %3025 = vmatprep.mubr.bf16.mxu0 0
        %3026 = vmatmul.mubr.bf16.gmra.mrb[0].mxu0 %v2187
        %v3027 = vpop.f32.mrb[0].mxu0
        %v3028 = vadd.f32 0.0, %v3027
        %v3029 = vpop.f32.mrb[0].mxu0
        %v3030 = vpop.f32.mrb[0].mxu0
        %v3031 = vadd.f32 0.0, %v3030
        %v3032 = vpop.f32.mrb[0].mxu0
        %3033 = vmatprep.mubr.bf16.mxu0 0
        %3034 = vmatmul.mubr.bf16.gmra.mrb[0].mxu0 %v2188
        %v3035 = vpop.f32.mrb[0].mxu0
        %v3036 = vadd.f32 0.0, %v3035
        %v3037 = vpop.f32.mrb[0].mxu0
        %v3038 = vpop.f32.mrb[0].mxu0
        %v3039 = vadd.f32 0.0, %v3038
        %v3040 = vpop.f32.mrb[0].mxu0
        %3041 = vdwg.mxu0
        %v3042 = vadd.f32 %v2702, %v2852
        %v3043 = vadd.f32 %v2703, %v2855
        %v3044 = vadd.f32 %v2704, %v2860
        %v3045 = vadd.f32 %v2705, %v2863
        %v3046 = vadd.f32 %v2706, %v2868
        %v3047 = vadd.f32 %v2707, %v2871
        %v3048 = vadd.f32 %v2708, %v2876
        %v3049 = vadd.f32 %v2709, %v2879
        %v3050 = vadd.f32 %v2710, %v2884
        %v3051 = vadd.f32 %v2711, %v2887
        %v3052 = vadd.f32 %v2712, %v2892
        %v3053 = vadd.f32 %v2713, %v2895
        %v3054 = vadd.f32 %v2714, %v2900
        %v3055 = vadd.f32 %v2715, %v2903
        %v3056 = vadd.f32 %v2716, %v2908
        %v3057 = vadd.f32 %v2717, %v2911
        %v3058 = vadd.f32 %v2718, %v2916
        %v3059 = vadd.f32 %v2719, %v2919
        %v3060 = vadd.f32 %v2720, %v2924
        %v3061 = vadd.f32 %v2721, %v2927
        %v3062 = vadd.f32 %v2722, %v2932
        %v3063 = vadd.f32 %v2723, %v2935
        %v3064 = vadd.f32 %v2724, %v2940
        %v3065 = vadd.f32 %v2725, %v2943
        %v3066 = vadd.f32 %v2726, %v2948
        %v3067 = vadd.f32 %v2727, %v2951
        %v3068 = vadd.f32 %v2728, %v2956
        %v3069 = vadd.f32 %v2729, %v2959
        %v3070 = vadd.f32 %v2730, %v2964
        %v3071 = vadd.f32 %v2731, %v2967
        %v3072 = vadd.f32 %v2732, %v2972
        %v3073 = vadd.f32 %v2733, %v2975
        %v3074 = vadd.f32 %v2734, %v2980
        %v3075 = vadd.f32 %v2735, %v2983
        %v3076 = vadd.f32 %v2736, %v2988
        %v3077 = vadd.f32 %v2737, %v2991
        %v3078 = vadd.f32 %v2738, %v2996
        %v3079 = vadd.f32 %v2739, %v2999
        %v3080 = vadd.f32 %v2740, %v3004
        %v3081 = vadd.f32 %v2741, %v3007
        %v3082 = vadd.f32 %v2742, %v3012
        %v3083 = vadd.f32 %v2743, %v3015
        %v3084 = vadd.f32 %v2744, %v3020
        %v3085 = vadd.f32 %v2745, %v3023
        %v3086 = vadd.f32 %v2746, %v3028
        %v3087 = vadd.f32 %v2747, %v3031
        %v3088 = vadd.f32 %v2748, %v3036
        %v3089 = vadd.f32 %v2749, %v3039
        %v3090 = vld [vmem:[#allocation3 + $0x10] sm:$0xff]
        %v3091 = vld [vmem:[#allocation3 + $0x18] sm:$0xff]
        %v3092 = vld [vmem:[#allocation3 + $0x20] sm:$0xff]
        %v3093 = vld [vmem:[#allocation3 + $0x28] sm:$0xff]
        %v3094 = vld [vmem:[#allocation3 + $0x30] sm:$0xff]
        %v3095 = vld [vmem:[#allocation3 + $0x38] sm:$0xff]
        %v3096 = vld [vmem:[#allocation3 + $0x40] sm:$0xff]
        %v3097 = vld [vmem:[#allocation3 + $0x48] sm:$0xff]
        %v3098 = vld [vmem:[#allocation3 + $0x50] sm:$0xff]
        %v3099 = vld [vmem:[#allocation3 + $0x58] sm:$0xff]
        %v3100 = vld [vmem:[#allocation3 + $0x60] sm:$0xff]
        %v3101 = vld [vmem:[#allocation3 + $0x68] sm:$0xff]
        %v3102 = vld [vmem:[#allocation3 + $0x70] sm:$0xff]
        %v3103 = vld [vmem:[#allocation3 + $0x78] sm:$0xff]
        %v3104 = vld [vmem:[#allocation3 + $0x80] sm:$0xff]
        %v3105 = vld [vmem:[#allocation3 + $0x88] sm:$0xff]
        %v3106 = vld [vmem:[#allocation3 + $0x90] sm:$0xff]
        %v3107 = vld [vmem:[#allocation3 + $0x98] sm:$0xff]
        %v3108 = vld [vmem:[#allocation3 + $0xa0] sm:$0xff]
        %v3109 = vld [vmem:[#allocation3 + $0xa8] sm:$0xff]
        %v3110 = vld [vmem:[#allocation3 + $0xb0] sm:$0xff]
        %v3111 = vld [vmem:[#allocation3 + $0xb8] sm:$0xff]
        %v3112 = vld [vmem:[#allocation3 + $0xc0] sm:$0xff]
        %v3113 = vld [vmem:[#allocation3 + $0xc8] sm:$0xff]
        %v3114 = vld [vmem:[#allocation3 + $0xd0] sm:$0x1]
        %s3115 = sadd.s32 80, %s756
        %s3116 = smul.addr %s3115, 4
        %s3117 = scalar_lea.vmem [#allocation7], %s3116
        %v3118 = vld [vmem:[%s3117] sm:$0xf]
        %v3119 = vld [vmem:[%s3117 + $0x4] sm:$0xf]
        %v3120 = vld [vmem:[%s3117 + $0x8] sm:$0xf]
        %v3121 = vld [vmem:[%s3117 + $0xc] sm:$0xf]
        %v3122 = vld [vmem:[%s3117 + $0x10] sm:$0xf]
        %v3123 = vld [vmem:[%s3117 + $0x14] sm:$0xf]
        %v3124 = vld [vmem:[%s3117 + $0x18] sm:$0xf]
        %v3125 = vld [vmem:[%s3117 + $0x1c] sm:$0xf]
        %v3126 = vld [vmem:[%s3117 + $0x20] sm:$0xf]
        %v3127 = vld [vmem:[%s3117 + $0x24] sm:$0xf]
        %v3128 = vld [vmem:[%s3117 + $0x28] sm:$0xf]
        %v3129 = vld [vmem:[%s3117 + $0x2c] sm:$0xf]
        %v3130 = vld [vmem:[%s3117 + $0x30] sm:$0xf]
        %v3131 = vld [vmem:[%s3117 + $0x34] sm:$0xf]
        %v3132 = vld [vmem:[%s3117 + $0x38] sm:$0xf]
        %v3133 = vld [vmem:[%s3117 + $0x3c] sm:$0xf]
        %vm3134 = vsmask.f32 7424
        %v3136 = vshrl.u32 %v3090, 16
        %v3138 = vshll.u32 %v3090, 16
        %v3140 = vrot.slane %v3138, 1
        %v3141 = vor.u32 %v3136, %v3140
        %v3143 = vshll.u32 %v3091, 16
        %v3145 = vrot.slane %v3143, 1
        %v3146 = vsel %vm3134, %v3141, %v3145
        %v3147 = vshrl.u32 %v3091, 16
        %v3149 = vor.u32 %v3147, %v3145
        %v3151 = vshll.u32 %v3092, 16
        %v3153 = vrot.slane %v3151, 1
        %v3154 = vsel %vm3134, %v3149, %v3153
        %v3155 = vshrl.u32 %v3092, 16
        %v3157 = vor.u32 %v3155, %v3153
        %v3159 = vshll.u32 %v3093, 16
        %v3161 = vrot.slane %v3159, 1
        %v3162 = vsel %vm3134, %v3157, %v3161
        %v3163 = vshrl.u32 %v3093, 16
        %v3165 = vor.u32 %v3163, %v3161
        %v3167 = vshll.u32 %v3094, 16
        %v3169 = vrot.slane %v3167, 1
        %v3170 = vsel %vm3134, %v3165, %v3169
        %v3171 = vshrl.u32 %v3094, 16
        %v3173 = vor.u32 %v3171, %v3169
        %v3175 = vshll.u32 %v3095, 16
        %v3177 = vrot.slane %v3175, 1
        %v3178 = vsel %vm3134, %v3173, %v3177
        %v3179 = vshrl.u32 %v3095, 16
        %v3181 = vor.u32 %v3179, %v3177
        %v3183 = vshll.u32 %v3096, 16
        %v3185 = vrot.slane %v3183, 1
        %v3186 = vsel %vm3134, %v3181, %v3185
        %v3187 = vshrl.u32 %v3096, 16
        %v3189 = vor.u32 %v3187, %v3185
        %v3191 = vshll.u32 %v3097, 16
        %v3193 = vrot.slane %v3191, 1
        %v3194 = vsel %vm3134, %v3189, %v3193
        %v3195 = vshrl.u32 %v3097, 16
        %v3197 = vor.u32 %v3195, %v3193
        %v3199 = vshll.u32 %v3098, 16
        %v3201 = vrot.slane %v3199, 1
        %v3202 = vsel %vm3134, %v3197, %v3201
        %v3203 = vshrl.u32 %v3098, 16
        %v3205 = vor.u32 %v3203, %v3201
        %v3207 = vshll.u32 %v3099, 16
        %v3209 = vrot.slane %v3207, 1
        %v3210 = vsel %vm3134, %v3205, %v3209
        %v3211 = vshrl.u32 %v3099, 16
        %v3213 = vor.u32 %v3211, %v3209
        %v3215 = vshll.u32 %v3100, 16
        %v3217 = vrot.slane %v3215, 1
        %v3218 = vsel %vm3134, %v3213, %v3217
        %v3219 = vshrl.u32 %v3100, 16
        %v3221 = vor.u32 %v3219, %v3217
        %v3223 = vshll.u32 %v3101, 16
        %v3225 = vrot.slane %v3223, 1
        %v3226 = vsel %vm3134, %v3221, %v3225
        %v3227 = vshrl.u32 %v3101, 16
        %v3229 = vor.u32 %v3227, %v3225
        %v3231 = vshll.u32 %v3102, 16
        %v3233 = vrot.slane %v3231, 1
        %v3234 = vsel %vm3134, %v3229, %v3233
        %v3235 = vshrl.u32 %v3102, 16
        %v3237 = vor.u32 %v3235, %v3233
        %v3239 = vshll.u32 %v3103, 16
        %v3241 = vrot.slane %v3239, 1
        %v3242 = vsel %vm3134, %v3237, %v3241
        %v3243 = vshrl.u32 %v3103, 16
        %v3245 = vor.u32 %v3243, %v3241
        %v3247 = vshll.u32 %v3104, 16
        %v3249 = vrot.slane %v3247, 1
        %v3250 = vsel %vm3134, %v3245, %v3249
        %v3251 = vshrl.u32 %v3104, 16
        %v3253 = vor.u32 %v3251, %v3249
        %v3255 = vshll.u32 %v3105, 16
        %v3257 = vrot.slane %v3255, 1
        %v3258 = vsel %vm3134, %v3253, %v3257
        %v3259 = vshrl.u32 %v3105, 16
        %v3261 = vor.u32 %v3259, %v3257
        %v3263 = vshll.u32 %v3106, 16
        %v3265 = vrot.slane %v3263, 1
        %v3266 = vsel %vm3134, %v3261, %v3265
        %v3267 = vshrl.u32 %v3106, 16
        %v3269 = vor.u32 %v3267, %v3265
        %v3271 = vshll.u32 %v3107, 16
        %v3273 = vrot.slane %v3271, 1
        %v3274 = vsel %vm3134, %v3269, %v3273
        %v3275 = vshrl.u32 %v3107, 16
        %v3277 = vor.u32 %v3275, %v3273
        %v3279 = vshll.u32 %v3108, 16
        %v3281 = vrot.slane %v3279, 1
        %v3282 = vsel %vm3134, %v3277, %v3281
        %v3283 = vshrl.u32 %v3108, 16
        %v3285 = vor.u32 %v3283, %v3281
        %v3287 = vshll.u32 %v3109, 16
        %v3289 = vrot.slane %v3287, 1
        %v3290 = vsel %vm3134, %v3285, %v3289
        %v3291 = vshrl.u32 %v3109, 16
        %v3293 = vor.u32 %v3291, %v3289
        %v3295 = vshll.u32 %v3110, 16
        %v3297 = vrot.slane %v3295, 1
        %v3298 = vsel %vm3134, %v3293, %v3297
        %v3299 = vshrl.u32 %v3110, 16
        %v3301 = vor.u32 %v3299, %v3297
        %v3303 = vshll.u32 %v3111, 16
        %v3305 = vrot.slane %v3303, 1
        %v3306 = vsel %vm3134, %v3301, %v3305
        %v3307 = vshrl.u32 %v3111, 16
        %v3309 = vor.u32 %v3307, %v3305
        %v3311 = vshll.u32 %v3112, 16
        %v3313 = vrot.slane %v3311, 1
        %v3314 = vsel %vm3134, %v3309, %v3313
        %v3315 = vshrl.u32 %v3112, 16
        %v3317 = vor.u32 %v3315, %v3313
        %v3319 = vshll.u32 %v3113, 16
        %v3321 = vrot.slane %v3319, 1
        %v3322 = vsel %vm3134, %v3317, %v3321
        %v3323 = vshrl.u32 %v3113, 16
        %v3325 = vor.u32 %v3323, %v3321
        %v3327 = vshll.u32 %v3114, 16
        %v3329 = vrot.slane %v3327, 1
        %v3330 = vsel %vm3134, %v3325, %v3329
        %v3371 = vunpack.c.l.b16 %v3118
        %v3372 = vunpack.c.l.b16 %v3119
        %v3373 = vunpack.c.l.b16 %v3120
        %v3374 = vunpack.c.l.b16 %v3121
        %v3375 = vunpack.c.l.b16 %v3122
        %v3376 = vunpack.c.l.b16 %v3123
        %v3377 = vunpack.c.l.b16 %v3124
        %v3378 = vunpack.c.l.b16 %v3125
        %v3379 = vunpack.c.l.b16 %v3126
        %v3380 = vunpack.c.l.b16 %v3127
        %v3381 = vunpack.c.l.b16 %v3128
        %v3382 = vunpack.c.l.b16 %v3129
        %v3383 = vunpack.c.l.b16 %v3130
        %v3384 = vunpack.c.l.b16 %v3131
        %v3385 = vunpack.c.l.b16 %v3132
        %v3386 = vunpack.c.l.b16 %v3133
        %v3387 = vpack.c.b16 %v3372, %v3371
        %v3388 = vpack.c.b16 %v3374, %v3373
        %v3389 = vpack.c.b16 %v3376, %v3375
        %v3390 = vpack.c.b16 %v3378, %v3377
        %v3391 = vpack.c.b16 %v3380, %v3379
        %v3392 = vpack.c.b16 %v3382, %v3381
        %v3393 = vpack.c.b16 %v3384, %v3383
        %v3394 = vpack.c.b16 %v3386, %v3385
        %3403 = vmatprep.subr.bf16.mxu0 0
        %3404 = vmatpush1.bf16.msra.mxu0 %v3387
        %3405 = vmatprep.subr.bf16.mxu0 0
        %3406 = vmatpush1.bf16.msra.mxu0 %v3388
        %3407 = vmatprep.subr.bf16.mxu0 0
        %3408 = vmatpush1.bf16.msra.mxu0 %v3389
        %3409 = vmatprep.subr.bf16.mxu0 0
        %3410 = vmatpush1.bf16.msra.mxu0 %v3390
        %3411 = vmatprep.subr.bf16.mxu0 0
        %3412 = vmatpush1.bf16.msra.mxu0 %v3391
        %3413 = vmatprep.subr.bf16.mxu0 0
        %3414 = vmatpush1.bf16.msra.mxu0 %v3392
        %3415 = vmatprep.subr.bf16.mxu0 0
        %3416 = vmatpush1.bf16.msra.mxu0 %v3393
        %3417 = vmatprep.subr.bf16.mxu0 0
        %3418 = vmatpush1.bf16.msra.mxu0 %v3394
        %3419 = vmatprep.subr.bf16.mxu0 0
        %3420 = vmatpush1.bf16.msra.mxu0 0
        %3421 = vmatprep.subr.bf16.mxu0 0
        %3422 = vmatpush1.bf16.msra.mxu0 0
        %3423 = vmatprep.subr.bf16.mxu0 0
        %3424 = vmatpush1.bf16.msra.mxu0 0
        %3425 = vmatprep.subr.bf16.mxu0 0
        %3426 = vmatpush1.bf16.msra.mxu0 0
        %3427 = vmatprep.subr.bf16.mxu0 0
        %3428 = vmatpush1.bf16.msra.mxu0 0
        %3429 = vmatprep.subr.bf16.mxu0 0
        %3430 = vmatpush1.bf16.msra.mxu0 0
        %3431 = vmatprep.subr.bf16.mxu0 0
        %3432 = vmatpush1.bf16.msra.mxu0 0
        %3433 = vmatprep.subr.bf16.mxu0 0
        %3434 = vmatpush1.bf16.msra.mxu0 0
        %3435 = vmatprep.mubr.bf16.mxu0 0
        %3436 = vmatmul.mubr.bf16.gmra.mrb[0].mxu0 %v3146
        %v3437 = vpop.f32.mrb[0].mxu0
        %v3438 = vadd.f32 0.0, %v3437
        %v3439 = vpop.f32.mrb[0].mxu0
        %v3440 = vpop.f32.mrb[0].mxu0
        %v3441 = vadd.f32 0.0, %v3440
        %v3442 = vpop.f32.mrb[0].mxu0
        %3443 = vmatprep.mubr.bf16.mxu0 0
        %3444 = vmatmul.mubr.bf16.gmra.mrb[0].mxu0 %v3154
        %v3445 = vpop.f32.mrb[0].mxu0
        %v3446 = vadd.f32 0.0, %v3445
        %v3447 = vpop.f32.mrb[0].mxu0
        %v3448 = vpop.f32.mrb[0].mxu0
        %v3449 = vadd.f32 0.0, %v3448
        %v3450 = vpop.f32.mrb[0].mxu0
        %3451 = vmatprep.mubr.bf16.mxu0 0
        %3452 = vmatmul.mubr.bf16.gmra.mrb[0].mxu0 %v3162
        %v3453 = vpop.f32.mrb[0].mxu0
        %v3454 = vadd.f32 0.0, %v3453
        %v3455 = vpop.f32.mrb[0].mxu0
        %v3456 = vpop.f32.mrb[0].mxu0
        %v3457 = vadd.f32 0.0, %v3456
        %v3458 = vpop.f32.mrb[0].mxu0
        %3459 = vmatprep.mubr.bf16.mxu0 0
        %3460 = vmatmul.mubr.bf16.gmra.mrb[0].mxu0 %v3170
        %v3461 = vpop.f32.mrb[0].mxu0
        %v3462 = vadd.f32 0.0, %v3461
        %v3463 = vpop.f32.mrb[0].mxu0
        %v3464 = vpop.f32.mrb[0].mxu0
        %v3465 = vadd.f32 0.0, %v3464
        %v3466 = vpop.f32.mrb[0].mxu0
        %3467 = vmatprep.mubr.bf16.mxu0 0
        %3468 = vmatmul.mubr.bf16.gmra.mrb[0].mxu0 %v3178
        %v3469 = vpop.f32.mrb[0].mxu0
        %v3470 = vadd.f32 0.0, %v3469
        %v3471 = vpop.f32.mrb[0].mxu0
        %v3472 = vpop.f32.mrb[0].mxu0
        %v3473 = vadd.f32 0.0, %v3472
        %v3474 = vpop.f32.mrb[0].mxu0
        %3475 = vmatprep.mubr.bf16.mxu0 0
        %3476 = vmatmul.mubr.bf16.gmra.mrb[0].mxu0 %v3186
        %v3477 = vpop.f32.mrb[0].mxu0
        %v3478 = vadd.f32 0.0, %v3477
        %v3479 = vpop.f32.mrb[0].mxu0
        %v3480 = vpop.f32.mrb[0].mxu0
        %v3481 = vadd.f32 0.0, %v3480
        %v3482 = vpop.f32.mrb[0].mxu0
        %3483 = vmatprep.mubr.bf16.mxu0 0
        %3484 = vmatmul.mubr.bf16.gmra.mrb[0].mxu0 %v3194
        %v3485 = vpop.f32.mrb[0].mxu0
        %v3486 = vadd.f32 0.0, %v3485
        %v3487 = vpop.f32.mrb[0].mxu0
        %v3488 = vpop.f32.mrb[0].mxu0
        %v3489 = vadd.f32 0.0, %v3488
        %v3490 = vpop.f32.mrb[0].mxu0
        %3491 = vmatprep.mubr.bf16.mxu0 0
        %3492 = vmatmul.mubr.bf16.gmra.mrb[0].mxu0 %v3202
        %v3493 = vpop.f32.mrb[0].mxu0
        %v3494 = vadd.f32 0.0, %v3493
        %v3495 = vpop.f32.mrb[0].mxu0
        %v3496 = vpop.f32.mrb[0].mxu0
        %v3497 = vadd.f32 0.0, %v3496
        %v3498 = vpop.f32.mrb[0].mxu0
        %3499 = vmatprep.mubr.bf16.mxu0 0
        %3500 = vmatmul.mubr.bf16.gmra.mrb[0].mxu0 %v3210
        %v3501 = vpop.f32.mrb[0].mxu0
        %v3502 = vadd.f32 0.0, %v3501
        %v3503 = vpop.f32.mrb[0].mxu0
        %v3504 = vpop.f32.mrb[0].mxu0
        %v3505 = vadd.f32 0.0, %v3504
        %v3506 = vpop.f32.mrb[0].mxu0
        %3507 = vmatprep.mubr.bf16.mxu0 0
        %3508 = vmatmul.mubr.bf16.gmra.mrb[0].mxu0 %v3218
        %v3509 = vpop.f32.mrb[0].mxu0
        %v3510 = vadd.f32 0.0, %v3509
        %v3511 = vpop.f32.mrb[0].mxu0
        %v3512 = vpop.f32.mrb[0].mxu0
        %v3513 = vadd.f32 0.0, %v3512
        %v3514 = vpop.f32.mrb[0].mxu0
        %3515 = vmatprep.mubr.bf16.mxu0 0
        %3516 = vmatmul.mubr.bf16.gmra.mrb[0].mxu0 %v3226
        %v3517 = vpop.f32.mrb[0].mxu0
        %v3518 = vadd.f32 0.0, %v3517
        %v3519 = vpop.f32.mrb[0].mxu0
        %v3520 = vpop.f32.mrb[0].mxu0
        %v3521 = vadd.f32 0.0, %v3520
        %v3522 = vpop.f32.mrb[0].mxu0
        %3523 = vmatprep.mubr.bf16.mxu0 0
        %3524 = vmatmul.mubr.bf16.gmra.mrb[0].mxu0 %v3234
        %v3525 = vpop.f32.mrb[0].mxu0
        %v3526 = vadd.f32 0.0, %v3525
        %v3527 = vpop.f32.mrb[0].mxu0
        %v3528 = vpop.f32.mrb[0].mxu0
        %v3529 = vadd.f32 0.0, %v3528
        %v3530 = vpop.f32.mrb[0].mxu0
        %3531 = vmatprep.mubr.bf16.mxu0 0
        %3532 = vmatmul.mubr.bf16.gmra.mrb[0].mxu0 %v3242
        %v3533 = vpop.f32.mrb[0].mxu0
        %v3534 = vadd.f32 0.0, %v3533
        %v3535 = vpop.f32.mrb[0].mxu0
        %v3536 = vpop.f32.mrb[0].mxu0
        %v3537 = vadd.f32 0.0, %v3536
        %v3538 = vpop.f32.mrb[0].mxu0
        %3539 = vmatprep.mubr.bf16.mxu0 0
        %3540 = vmatmul.mubr.bf16.gmra.mrb[0].mxu0 %v3250
        %v3541 = vpop.f32.mrb[0].mxu0
        %v3542 = vadd.f32 0.0, %v3541
        %v3543 = vpop.f32.mrb[0].mxu0
        %v3544 = vpop.f32.mrb[0].mxu0
        %v3545 = vadd.f32 0.0, %v3544
        %v3546 = vpop.f32.mrb[0].mxu0
        %3547 = vmatprep.mubr.bf16.mxu0 0
        %3548 = vmatmul.mubr.bf16.gmra.mrb[0].mxu0 %v3258
        %v3549 = vpop.f32.mrb[0].mxu0
        %v3550 = vadd.f32 0.0, %v3549
        %v3551 = vpop.f32.mrb[0].mxu0
        %v3552 = vpop.f32.mrb[0].mxu0
        %v3553 = vadd.f32 0.0, %v3552
        %v3554 = vpop.f32.mrb[0].mxu0
        %3555 = vmatprep.mubr.bf16.mxu0 0
        %3556 = vmatmul.mubr.bf16.gmra.mrb[0].mxu0 %v3266
        %v3557 = vpop.f32.mrb[0].mxu0
        %v3558 = vadd.f32 0.0, %v3557
        %v3559 = vpop.f32.mrb[0].mxu0
        %v3560 = vpop.f32.mrb[0].mxu0
        %v3561 = vadd.f32 0.0, %v3560
        %v3562 = vpop.f32.mrb[0].mxu0
        %3563 = vmatprep.mubr.bf16.mxu0 0
        %3564 = vmatmul.mubr.bf16.gmra.mrb[0].mxu0 %v3274
        %v3565 = vpop.f32.mrb[0].mxu0
        %v3566 = vadd.f32 0.0, %v3565
        %v3567 = vpop.f32.mrb[0].mxu0
        %v3568 = vpop.f32.mrb[0].mxu0
        %v3569 = vadd.f32 0.0, %v3568
        %v3570 = vpop.f32.mrb[0].mxu0
        %3571 = vmatprep.mubr.bf16.mxu0 0
        %3572 = vmatmul.mubr.bf16.gmra.mrb[0].mxu0 %v3282
        %v3573 = vpop.f32.mrb[0].mxu0
        %v3574 = vadd.f32 0.0, %v3573
        %v3575 = vpop.f32.mrb[0].mxu0
        %v3576 = vpop.f32.mrb[0].mxu0
        %v3577 = vadd.f32 0.0, %v3576
        %v3578 = vpop.f32.mrb[0].mxu0
        %3579 = vmatprep.mubr.bf16.mxu0 0
        %3580 = vmatmul.mubr.bf16.gmra.mrb[0].mxu0 %v3290
        %v3581 = vpop.f32.mrb[0].mxu0
        %v3582 = vadd.f32 0.0, %v3581
        %v3583 = vpop.f32.mrb[0].mxu0
        %v3584 = vpop.f32.mrb[0].mxu0
        %v3585 = vadd.f32 0.0, %v3584
        %v3586 = vpop.f32.mrb[0].mxu0
        %3587 = vmatprep.mubr.bf16.mxu0 0
        %3588 = vmatmul.mubr.bf16.gmra.mrb[0].mxu0 %v3298
        %v3589 = vpop.f32.mrb[0].mxu0
        %v3590 = vadd.f32 0.0, %v3589
        %v3591 = vpop.f32.mrb[0].mxu0
        %v3592 = vpop.f32.mrb[0].mxu0
        %v3593 = vadd.f32 0.0, %v3592
        %v3594 = vpop.f32.mrb[0].mxu0
        %3595 = vmatprep.mubr.bf16.mxu0 0
        %3596 = vmatmul.mubr.bf16.gmra.mrb[0].mxu0 %v3306
        %v3597 = vpop.f32.mrb[0].mxu0
        %v3598 = vadd.f32 0.0, %v3597
        %v3599 = vpop.f32.mrb[0].mxu0
        %v3600 = vpop.f32.mrb[0].mxu0
        %v3601 = vadd.f32 0.0, %v3600
        %v3602 = vpop.f32.mrb[0].mxu0
        %3603 = vmatprep.mubr.bf16.mxu0 0
        %3604 = vmatmul.mubr.bf16.gmra.mrb[0].mxu0 %v3314
        %v3605 = vpop.f32.mrb[0].mxu0
        %v3606 = vadd.f32 0.0, %v3605
        %v3607 = vpop.f32.mrb[0].mxu0
        %v3608 = vpop.f32.mrb[0].mxu0
        %v3609 = vadd.f32 0.0, %v3608
        %v3610 = vpop.f32.mrb[0].mxu0
        %3611 = vmatprep.mubr.bf16.mxu0 0
        %3612 = vmatmul.mubr.bf16.gmra.mrb[0].mxu0 %v3322
        %v3613 = vpop.f32.mrb[0].mxu0
        %v3614 = vadd.f32 0.0, %v3613
        %v3615 = vpop.f32.mrb[0].mxu0
        %v3616 = vpop.f32.mrb[0].mxu0
        %v3617 = vadd.f32 0.0, %v3616
        %v3618 = vpop.f32.mrb[0].mxu0
        %3619 = vmatprep.mubr.bf16.mxu0 0
        %3620 = vmatmul.mubr.bf16.gmra.mrb[0].mxu0 %v3330
        %v3621 = vpop.f32.mrb[0].mxu0
        %v3622 = vadd.f32 0.0, %v3621
        %v3623 = vpop.f32.mrb[0].mxu0
        %v3624 = vpop.f32.mrb[0].mxu0
        %v3625 = vadd.f32 0.0, %v3624
        %v3626 = vpop.f32.mrb[0].mxu0
        %3627 = vdwg.mxu0
        %v3628 = vadd.f32 %v3042, %v3438
        %v3629 = vadd.f32 %v3043, %v3441
        %v3630 = vadd.f32 %v3044, %v3446
        %v3631 = vadd.f32 %v3045, %v3449
        %v3632 = vadd.f32 %v3046, %v3454
        %v3633 = vadd.f32 %v3047, %v3457
        %v3634 = vadd.f32 %v3048, %v3462
        %v3635 = vadd.f32 %v3049, %v3465
        %v3636 = vadd.f32 %v3050, %v3470
        %v3637 = vadd.f32 %v3051, %v3473
        %v3638 = vadd.f32 %v3052, %v3478
        %v3639 = vadd.f32 %v3053, %v3481
        %v3640 = vadd.f32 %v3054, %v3486
        %v3641 = vadd.f32 %v3055, %v3489
        %v3642 = vadd.f32 %v3056, %v3494
        %v3643 = vadd.f32 %v3057, %v3497
        %v3644 = vadd.f32 %v3058, %v3502
        %v3645 = vadd.f32 %v3059, %v3505
        %v3646 = vadd.f32 %v3060, %v3510
        %v3647 = vadd.f32 %v3061, %v3513
        %v3648 = vadd.f32 %v3062, %v3518
        %v3649 = vadd.f32 %v3063, %v3521
        %v3650 = vadd.f32 %v3064, %v3526
        %v3651 = vadd.f32 %v3065, %v3529
        %v3652 = vadd.f32 %v3066, %v3534
        %v3653 = vadd.f32 %v3067, %v3537
        %v3654 = vadd.f32 %v3068, %v3542
        %v3655 = vadd.f32 %v3069, %v3545
        %v3656 = vadd.f32 %v3070, %v3550
        %v3657 = vadd.f32 %v3071, %v3553
        %v3658 = vadd.f32 %v3072, %v3558
        %v3659 = vadd.f32 %v3073, %v3561
        %v3660 = vadd.f32 %v3074, %v3566
        %v3661 = vadd.f32 %v3075, %v3569
        %v3662 = vadd.f32 %v3076, %v3574
        %v3663 = vadd.f32 %v3077, %v3577
        %v3664 = vadd.f32 %v3078, %v3582
        %v3665 = vadd.f32 %v3079, %v3585
        %v3666 = vadd.f32 %v3080, %v3590
        %v3667 = vadd.f32 %v3081, %v3593
        %v3668 = vadd.f32 %v3082, %v3598
        %v3669 = vadd.f32 %v3083, %v3601
        %v3670 = vadd.f32 %v3084, %v3606
        %v3671 = vadd.f32 %v3085, %v3609
        %v3672 = vadd.f32 %v3086, %v3614
        %v3673 = vadd.f32 %v3087, %v3617
        %v3674 = vadd.f32 %v3088, %v3622
        %v3675 = vadd.f32 %v3089, %v3625
        %v3676 = vld [vmem:[#allocation3 + $0x18] sm:$0xf8]
        %v3677 = vld [vmem:[#allocation3 + $0x20] sm:$0xff]
        %v3678 = vld [vmem:[#allocation3 + $0x28] sm:$0xff]
        %v3679 = vld [vmem:[#allocation3 + $0x30] sm:$0xff]
        %v3680 = vld [vmem:[#allocation3 + $0x38] sm:$0xff]
        %v3681 = vld [vmem:[#allocation3 + $0x40] sm:$0xff]
        %v3682 = vld [vmem:[#allocation3 + $0x48] sm:$0xff]
        %v3683 = vld [vmem:[#allocation3 + $0x50] sm:$0xff]
        %v3684 = vld [vmem:[#allocation3 + $0x58] sm:$0xff]
        %v3685 = vld [vmem:[#allocation3 + $0x60] sm:$0xff]
        %v3686 = vld [vmem:[#allocation3 + $0x68] sm:$0xff]
        %v3687 = vld [vmem:[#allocation3 + $0x70] sm:$0xff]
        %v3688 = vld [vmem:[#allocation3 + $0x78] sm:$0xff]
        %v3689 = vld [vmem:[#allocation3 + $0x80] sm:$0xff]
        %v3690 = vld [vmem:[#allocation3 + $0x88] sm:$0xff]
        %v3691 = vld [vmem:[#allocation3 + $0x90] sm:$0xff]
        %v3692 = vld [vmem:[#allocation3 + $0x98] sm:$0xff]
        %v3693 = vld [vmem:[#allocation3 + $0xa0] sm:$0xff]
        %v3694 = vld [vmem:[#allocation3 + $0xa8] sm:$0xff]
        %v3695 = vld [vmem:[#allocation3 + $0xb0] sm:$0xff]
        %v3696 = vld [vmem:[#allocation3 + $0xb8] sm:$0xff]
        %v3697 = vld [vmem:[#allocation3 + $0xc0] sm:$0xff]
        %v3698 = vld [vmem:[#allocation3 + $0xc8] sm:$0xff]
        %v3699 = vld [vmem:[#allocation3 + $0xd0] sm:$0xff]
        %v3700 = vld [vmem:[#allocation3 + $0xd8] sm:$0xf]
        %s3701 = sadd.s32 96, %s756
        %s3702 = smul.addr %s3701, 4
        %s3703 = scalar_lea.vmem [#allocation7], %s3702
        %v3704 = vld [vmem:[%s3703] sm:$0xf]
        %v3705 = vld [vmem:[%s3703 + $0x4] sm:$0xf]
        %v3706 = vld [vmem:[%s3703 + $0x8] sm:$0xf]
        %v3707 = vld [vmem:[%s3703 + $0xc] sm:$0xf]
        %v3708 = vld [vmem:[%s3703 + $0x10] sm:$0xf]
        %v3709 = vld [vmem:[%s3703 + $0x14] sm:$0xf]
        %v3710 = vld [vmem:[%s3703 + $0x18] sm:$0xf]
        %v3711 = vld [vmem:[%s3703 + $0x1c] sm:$0xf]
        %v3712 = vld [vmem:[%s3703 + $0x20] sm:$0xf]
        %v3713 = vld [vmem:[%s3703 + $0x24] sm:$0xf]
        %v3714 = vld [vmem:[%s3703 + $0x28] sm:$0xf]
        %v3715 = vld [vmem:[%s3703 + $0x2c] sm:$0xf]
        %v3716 = vld [vmem:[%s3703 + $0x30] sm:$0xf]
        %v3717 = vld [vmem:[%s3703 + $0x34] sm:$0xf]
        %v3718 = vld [vmem:[%s3703 + $0x38] sm:$0xf]
        %v3719 = vld [vmem:[%s3703 + $0x3c] sm:$0xf]
        %v3721 = vshrl.u32 %v3676, 16
        %v3723 = vrot.slane %v3721, 3
        %v3724 = vshll.u32 %v3676, 16
        %v3726 = vrot.slane %v3724, 4
        %v3727 = vor.u32 %v3723, %v3726
        %v3729 = vshrl.u32 %v3677, 16
        %v3731 = vrot.slane %v3729, 3
        %v3732 = vshll.u32 %v3677, 16
        %v3734 = vrot.slane %v3732, 4
        %v3735 = vor.u32 %v3731, %v3734
        %v3736 = vsel %vm1167, %v3727, %v3735
        %v3738 = vshrl.u32 %v3678, 16
        %v3740 = vrot.slane %v3738, 3
        %v3741 = vshll.u32 %v3678, 16
        %v3743 = vrot.slane %v3741, 4
        %v3744 = vor.u32 %v3740, %v3743
        %v3745 = vsel %vm1167, %v3735, %v3744
        %v3747 = vshrl.u32 %v3679, 16
        %v3749 = vrot.slane %v3747, 3
        %v3750 = vshll.u32 %v3679, 16
        %v3752 = vrot.slane %v3750, 4
        %v3753 = vor.u32 %v3749, %v3752
        %v3754 = vsel %vm1167, %v3744, %v3753
        %v3756 = vshrl.u32 %v3680, 16
        %v3758 = vrot.slane %v3756, 3
        %v3759 = vshll.u32 %v3680, 16
        %v3761 = vrot.slane %v3759, 4
        %v3762 = vor.u32 %v3758, %v3761
        %v3763 = vsel %vm1167, %v3753, %v3762
        %v3765 = vshrl.u32 %v3681, 16
        %v3767 = vrot.slane %v3765, 3
        %v3768 = vshll.u32 %v3681, 16
        %v3770 = vrot.slane %v3768, 4
        %v3771 = vor.u32 %v3767, %v3770
        %v3772 = vsel %vm1167, %v3762, %v3771
        %v3774 = vshrl.u32 %v3682, 16
        %v3776 = vrot.slane %v3774, 3
        %v3777 = vshll.u32 %v3682, 16
        %v3779 = vrot.slane %v3777, 4
        %v3780 = vor.u32 %v3776, %v3779
        %v3781 = vsel %vm1167, %v3771, %v3780
        %v3783 = vshrl.u32 %v3683, 16
        %v3785 = vrot.slane %v3783, 3
        %v3786 = vshll.u32 %v3683, 16
        %v3788 = vrot.slane %v3786, 4
        %v3789 = vor.u32 %v3785, %v3788
        %v3790 = vsel %vm1167, %v3780, %v3789
        %v3792 = vshrl.u32 %v3684, 16
        %v3794 = vrot.slane %v3792, 3
        %v3795 = vshll.u32 %v3684, 16
        %v3797 = vrot.slane %v3795, 4
        %v3798 = vor.u32 %v3794, %v3797
        %v3799 = vsel %vm1167, %v3789, %v3798
        %v3801 = vshrl.u32 %v3685, 16
        %v3803 = vrot.slane %v3801, 3
        %v3804 = vshll.u32 %v3685, 16
        %v3806 = vrot.slane %v3804, 4
        %v3807 = vor.u32 %v3803, %v3806
        %v3808 = vsel %vm1167, %v3798, %v3807
        %v3810 = vshrl.u32 %v3686, 16
        %v3812 = vrot.slane %v3810, 3
        %v3813 = vshll.u32 %v3686, 16
        %v3815 = vrot.slane %v3813, 4
        %v3816 = vor.u32 %v3812, %v3815
        %v3817 = vsel %vm1167, %v3807, %v3816
        %v3819 = vshrl.u32 %v3687, 16
        %v3821 = vrot.slane %v3819, 3
        %v3822 = vshll.u32 %v3687, 16
        %v3824 = vrot.slane %v3822, 4
        %v3825 = vor.u32 %v3821, %v3824
        %v3826 = vsel %vm1167, %v3816, %v3825
        %v3828 = vshrl.u32 %v3688, 16
        %v3830 = vrot.slane %v3828, 3
        %v3831 = vshll.u32 %v3688, 16
        %v3833 = vrot.slane %v3831, 4
        %v3834 = vor.u32 %v3830, %v3833
        %v3835 = vsel %vm1167, %v3825, %v3834
        %v3837 = vshrl.u32 %v3689, 16
        %v3839 = vrot.slane %v3837, 3
        %v3840 = vshll.u32 %v3689, 16
        %v3842 = vrot.slane %v3840, 4
        %v3843 = vor.u32 %v3839, %v3842
        %v3844 = vsel %vm1167, %v3834, %v3843
        %v3846 = vshrl.u32 %v3690, 16
        %v3848 = vrot.slane %v3846, 3
        %v3849 = vshll.u32 %v3690, 16
        %v3851 = vrot.slane %v3849, 4
        %v3852 = vor.u32 %v3848, %v3851
        %v3853 = vsel %vm1167, %v3843, %v3852
        %v3855 = vshrl.u32 %v3691, 16
        %v3857 = vrot.slane %v3855, 3
        %v3858 = vshll.u32 %v3691, 16
        %v3860 = vrot.slane %v3858, 4
        %v3861 = vor.u32 %v3857, %v3860
        %v3862 = vsel %vm1167, %v3852, %v3861
        %v3864 = vshrl.u32 %v3692, 16
        %v3866 = vrot.slane %v3864, 3
        %v3867 = vshll.u32 %v3692, 16
        %v3869 = vrot.slane %v3867, 4
        %v3870 = vor.u32 %v3866, %v3869
        %v3871 = vsel %vm1167, %v3861, %v3870
        %v3873 = vshrl.u32 %v3693, 16
        %v3875 = vrot.slane %v3873, 3
        %v3876 = vshll.u32 %v3693, 16
        %v3878 = vrot.slane %v3876, 4
        %v3879 = vor.u32 %v3875, %v3878
        %v3880 = vsel %vm1167, %v3870, %v3879
        %v3882 = vshrl.u32 %v3694, 16
        %v3884 = vrot.slane %v3882, 3
        %v3885 = vshll.u32 %v3694, 16
        %v3887 = vrot.slane %v3885, 4
        %v3888 = vor.u32 %v3884, %v3887
        %v3889 = vsel %vm1167, %v3879, %v3888
        %v3891 = vshrl.u32 %v3695, 16
        %v3893 = vrot.slane %v3891, 3
        %v3894 = vshll.u32 %v3695, 16
        %v3896 = vrot.slane %v3894, 4
        %v3897 = vor.u32 %v3893, %v3896
        %v3898 = vsel %vm1167, %v3888, %v3897
        %v3900 = vshrl.u32 %v3696, 16
        %v3902 = vrot.slane %v3900, 3
        %v3903 = vshll.u32 %v3696, 16
        %v3905 = vrot.slane %v3903, 4
        %v3906 = vor.u32 %v3902, %v3905
        %v3907 = vsel %vm1167, %v3897, %v3906
        %v3909 = vshrl.u32 %v3697, 16
        %v3911 = vrot.slane %v3909, 3
        %v3912 = vshll.u32 %v3697, 16
        %v3914 = vrot.slane %v3912, 4
        %v3915 = vor.u32 %v3911, %v3914
        %v3916 = vsel %vm1167, %v3906, %v3915
        %v3918 = vshrl.u32 %v3698, 16
        %v3920 = vrot.slane %v3918, 3
        %v3921 = vshll.u32 %v3698, 16
        %v3923 = vrot.slane %v3921, 4
        %v3924 = vor.u32 %v3920, %v3923
        %v3925 = vsel %vm1167, %v3915, %v3924
        %v3927 = vshrl.u32 %v3699, 16
        %v3929 = vrot.slane %v3927, 3
        %v3930 = vshll.u32 %v3699, 16
        %v3932 = vrot.slane %v3930, 4
        %v3933 = vor.u32 %v3929, %v3932
        %v3934 = vsel %vm1167, %v3924, %v3933
        %v3936 = vshrl.u32 %v3700, 16
        %v3938 = vrot.slane %v3936, 3
        %v3939 = vshll.u32 %v3700, 16
        %v3941 = vrot.slane %v3939, 4
        %v3942 = vor.u32 %v3938, %v3941
        %v3943 = vsel %vm1167, %v3933, %v3942
        %v3984 = vunpack.c.l.b16 %v3704
        %v3985 = vunpack.c.l.b16 %v3705
        %v3986 = vunpack.c.l.b16 %v3706
        %v3987 = vunpack.c.l.b16 %v3707
        %v3988 = vunpack.c.l.b16 %v3708
        %v3989 = vunpack.c.l.b16 %v3709
        %v3990 = vunpack.c.l.b16 %v3710
        %v3991 = vunpack.c.l.b16 %v3711
        %v3992 = vunpack.c.l.b16 %v3712
        %v3993 = vunpack.c.l.b16 %v3713
        %v3994 = vunpack.c.l.b16 %v3714
        %v3995 = vunpack.c.l.b16 %v3715
        %v3996 = vunpack.c.l.b16 %v3716
        %v3997 = vunpack.c.l.b16 %v3717
        %v3998 = vunpack.c.l.b16 %v3718
        %v3999 = vunpack.c.l.b16 %v3719
        %v4000 = vpack.c.b16 %v3985, %v3984
        %v4001 = vpack.c.b16 %v3987, %v3986
        %v4002 = vpack.c.b16 %v3989, %v3988
        %v4003 = vpack.c.b16 %v3991, %v3990
        %v4004 = vpack.c.b16 %v3993, %v3992
        %v4005 = vpack.c.b16 %v3995, %v3994
        %v4006 = vpack.c.b16 %v3997, %v3996
        %v4007 = vpack.c.b16 %v3999, %v3998
        %4016 = vmatprep.subr.bf16.mxu0 0
        %4017 = vmatpush1.bf16.msra.mxu0 %v4000
        %4018 = vmatprep.subr.bf16.mxu0 0
        %4019 = vmatpush1.bf16.msra.mxu0 %v4001
        %4020 = vmatprep.subr.bf16.mxu0 0
        %4021 = vmatpush1.bf16.msra.mxu0 %v4002
        %4022 = vmatprep.subr.bf16.mxu0 0
        %4023 = vmatpush1.bf16.msra.mxu0 %v4003
        %4024 = vmatprep.subr.bf16.mxu0 0
        %4025 = vmatpush1.bf16.msra.mxu0 %v4004
        %4026 = vmatprep.subr.bf16.mxu0 0
        %4027 = vmatpush1.bf16.msra.mxu0 %v4005
        %4028 = vmatprep.subr.bf16.mxu0 0
        %4029 = vmatpush1.bf16.msra.mxu0 %v4006
        %4030 = vmatprep.subr.bf16.mxu0 0
        %4031 = vmatpush1.bf16.msra.mxu0 %v4007
        %4032 = vmatprep.subr.bf16.mxu0 0
        %4033 = vmatpush1.bf16.msra.mxu0 0
        %4034 = vmatprep.subr.bf16.mxu0 0
        %4035 = vmatpush1.bf16.msra.mxu0 0
        %4036 = vmatprep.subr.bf16.mxu0 0
        %4037 = vmatpush1.bf16.msra.mxu0 0
        %4038 = vmatprep.subr.bf16.mxu0 0
        %4039 = vmatpush1.bf16.msra.mxu0 0
        %4040 = vmatprep.subr.bf16.mxu0 0
        %4041 = vmatpush1.bf16.msra.mxu0 0
        %4042 = vmatprep.subr.bf16.mxu0 0
        %4043 = vmatpush1.bf16.msra.mxu0 0
        %4044 = vmatprep.subr.bf16.mxu0 0
        %4045 = vmatpush1.bf16.msra.mxu0 0
        %4046 = vmatprep.subr.bf16.mxu0 0
        %4047 = vmatpush1.bf16.msra.mxu0 0
        %4048 = vmatprep.mubr.bf16.mxu0 0
        %4049 = vmatmul.mubr.bf16.gmra.mrb[0].mxu0 %v3736
        %v4050 = vpop.f32.mrb[0].mxu0
        %v4051 = vadd.f32 0.0, %v4050
        %v4052 = vpop.f32.mrb[0].mxu0
        %v4053 = vpop.f32.mrb[0].mxu0
        %v4054 = vadd.f32 0.0, %v4053
        %v4055 = vpop.f32.mrb[0].mxu0
        %4056 = vmatprep.mubr.bf16.mxu0 0
        %4057 = vmatmul.mubr.bf16.gmra.mrb[0].mxu0 %v3745
        %v4058 = vpop.f32.mrb[0].mxu0
        %v4059 = vadd.f32 0.0, %v4058
        %v4060 = vpop.f32.mrb[0].mxu0
        %v4061 = vpop.f32.mrb[0].mxu0
        %v4062 = vadd.f32 0.0, %v4061
        %v4063 = vpop.f32.mrb[0].mxu0
        %4064 = vmatprep.mubr.bf16.mxu0 0
        %4065 = vmatmul.mubr.bf16.gmra.mrb[0].mxu0 %v3754
        %v4066 = vpop.f32.mrb[0].mxu0
        %v4067 = vadd.f32 0.0, %v4066
        %v4068 = vpop.f32.mrb[0].mxu0
        %v4069 = vpop.f32.mrb[0].mxu0
        %v4070 = vadd.f32 0.0, %v4069
        %v4071 = vpop.f32.mrb[0].mxu0
        %4072 = vmatprep.mubr.bf16.mxu0 0
        %4073 = vmatmul.mubr.bf16.gmra.mrb[0].mxu0 %v3763
        %v4074 = vpop.f32.mrb[0].mxu0
        %v4075 = vadd.f32 0.0, %v4074
        %v4076 = vpop.f32.mrb[0].mxu0
        %v4077 = vpop.f32.mrb[0].mxu0
        %v4078 = vadd.f32 0.0, %v4077
        %v4079 = vpop.f32.mrb[0].mxu0
        %4080 = vmatprep.mubr.bf16.mxu0 0
        %4081 = vmatmul.mubr.bf16.gmra.mrb[0].mxu0 %v3772
        %v4082 = vpop.f32.mrb[0].mxu0
        %v4083 = vadd.f32 0.0, %v4082
        %v4084 = vpop.f32.mrb[0].mxu0
        %v4085 = vpop.f32.mrb[0].mxu0
        %v4086 = vadd.f32 0.0, %v4085
        %v4087 = vpop.f32.mrb[0].mxu0
        %4088 = vmatprep.mubr.bf16.mxu0 0
        %4089 = vmatmul.mubr.bf16.gmra.mrb[0].mxu0 %v3781
        %v4090 = vpop.f32.mrb[0].mxu0
        %v4091 = vadd.f32 0.0, %v4090
        %v4092 = vpop.f32.mrb[0].mxu0
        %v4093 = vpop.f32.mrb[0].mxu0
        %v4094 = vadd.f32 0.0, %v4093
        %v4095 = vpop.f32.mrb[0].mxu0
        %4096 = vmatprep.mubr.bf16.mxu0 0
        %4097 = vmatmul.mubr.bf16.gmra.mrb[0].mxu0 %v3790
        %v4098 = vpop.f32.mrb[0].mxu0
        %v4099 = vadd.f32 0.0, %v4098
        %v4100 = vpop.f32.mrb[0].mxu0
        %v4101 = vpop.f32.mrb[0].mxu0
        %v4102 = vadd.f32 0.0, %v4101
        %v4103 = vpop.f32.mrb[0].mxu0
        %4104 = vmatprep.mubr.bf16.mxu0 0
        %4105 = vmatmul.mubr.bf16.gmra.mrb[0].mxu0 %v3799
        %v4106 = vpop.f32.mrb[0].mxu0
        %v4107 = vadd.f32 0.0, %v4106
        %v4108 = vpop.f32.mrb[0].mxu0
        %v4109 = vpop.f32.mrb[0].mxu0
        %v4110 = vadd.f32 0.0, %v4109
        %v4111 = vpop.f32.mrb[0].mxu0
        %4112 = vmatprep.mubr.bf16.mxu0 0
        %4113 = vmatmul.mubr.bf16.gmra.mrb[0].mxu0 %v3808
        %v4114 = vpop.f32.mrb[0].mxu0
        %v4115 = vadd.f32 0.0, %v4114
        %v4116 = vpop.f32.mrb[0].mxu0
        %v4117 = vpop.f32.mrb[0].mxu0
        %v4118 = vadd.f32 0.0, %v4117
        %v4119 = vpop.f32.mrb[0].mxu0
        %4120 = vmatprep.mubr.bf16.mxu0 0
        %4121 = vmatmul.mubr.bf16.gmra.mrb[0].mxu0 %v3817
        %v4122 = vpop.f32.mrb[0].mxu0
        %v4123 = vadd.f32 0.0, %v4122
        %v4124 = vpop.f32.mrb[0].mxu0
        %v4125 = vpop.f32.mrb[0].mxu0
        %v4126 = vadd.f32 0.0, %v4125
        %v4127 = vpop.f32.mrb[0].mxu0
        %4128 = vmatprep.mubr.bf16.mxu0 0
        %4129 = vmatmul.mubr.bf16.gmra.mrb[0].mxu0 %v3826
        %v4130 = vpop.f32.mrb[0].mxu0
        %v4131 = vadd.f32 0.0, %v4130
        %v4132 = vpop.f32.mrb[0].mxu0
        %v4133 = vpop.f32.mrb[0].mxu0
        %v4134 = vadd.f32 0.0, %v4133
        %v4135 = vpop.f32.mrb[0].mxu0
        %4136 = vmatprep.mubr.bf16.mxu0 0
        %4137 = vmatmul.mubr.bf16.gmra.mrb[0].mxu0 %v3835
        %v4138 = vpop.f32.mrb[0].mxu0
        %v4139 = vadd.f32 0.0, %v4138
        %v4140 = vpop.f32.mrb[0].mxu0
        %v4141 = vpop.f32.mrb[0].mxu0
        %v4142 = vadd.f32 0.0, %v4141
        %v4143 = vpop.f32.mrb[0].mxu0
        %4144 = vmatprep.mubr.bf16.mxu0 0
        %4145 = vmatmul.mubr.bf16.gmra.mrb[0].mxu0 %v3844
        %v4146 = vpop.f32.mrb[0].mxu0
        %v4147 = vadd.f32 0.0, %v4146
        %v4148 = vpop.f32.mrb[0].mxu0
        %v4149 = vpop.f32.mrb[0].mxu0
        %v4150 = vadd.f32 0.0, %v4149
        %v4151 = vpop.f32.mrb[0].mxu0
        %4152 = vmatprep.mubr.bf16.mxu0 0
        %4153 = vmatmul.mubr.bf16.gmra.mrb[0].mxu0 %v3853
        %v4154 = vpop.f32.mrb[0].mxu0
        %v4155 = vadd.f32 0.0, %v4154
        %v4156 = vpop.f32.mrb[0].mxu0
        %v4157 = vpop.f32.mrb[0].mxu0
        %v4158 = vadd.f32 0.0, %v4157
        %v4159 = vpop.f32.mrb[0].mxu0
        %4160 = vmatprep.mubr.bf16.mxu0 0
        %4161 = vmatmul.mubr.bf16.gmra.mrb[0].mxu0 %v3862
        %v4162 = vpop.f32.mrb[0].mxu0
        %v4163 = vadd.f32 0.0, %v4162
        %v4164 = vpop.f32.mrb[0].mxu0
        %v4165 = vpop.f32.mrb[0].mxu0
        %v4166 = vadd.f32 0.0, %v4165
        %v4167 = vpop.f32.mrb[0].mxu0
        %4168 = vmatprep.mubr.bf16.mxu0 0
        %4169 = vmatmul.mubr.bf16.gmra.mrb[0].mxu0 %v3871
        %v4170 = vpop.f32.mrb[0].mxu0
        %v4171 = vadd.f32 0.0, %v4170
        %v4172 = vpop.f32.mrb[0].mxu0
        %v4173 = vpop.f32.mrb[0].mxu0
        %v4174 = vadd.f32 0.0, %v4173
        %v4175 = vpop.f32.mrb[0].mxu0
        %4176 = vmatprep.mubr.bf16.mxu0 0
        %4177 = vmatmul.mubr.bf16.gmra.mrb[0].mxu0 %v3880
        %v4178 = vpop.f32.mrb[0].mxu0
        %v4179 = vadd.f32 0.0, %v4178
        %v4180 = vpop.f32.mrb[0].mxu0
        %v4181 = vpop.f32.mrb[0].mxu0
        %v4182 = vadd.f32 0.0, %v4181
        %v4183 = vpop.f32.mrb[0].mxu0
        %4184 = vmatprep.mubr.bf16.mxu0 0
        %4185 = vmatmul.mubr.bf16.gmra.mrb[0].mxu0 %v3889
        %v4186 = vpop.f32.mrb[0].mxu0
        %v4187 = vadd.f32 0.0, %v4186
        %v4188 = vpop.f32.mrb[0].mxu0
        %v4189 = vpop.f32.mrb[0].mxu0
        %v4190 = vadd.f32 0.0, %v4189
        %v4191 = vpop.f32.mrb[0].mxu0
        %4192 = vmatprep.mubr.bf16.mxu0 0
        %4193 = vmatmul.mubr.bf16.gmra.mrb[0].mxu0 %v3898
        %v4194 = vpop.f32.mrb[0].mxu0
        %v4195 = vadd.f32 0.0, %v4194
        %v4196 = vpop.f32.mrb[0].mxu0
        %v4197 = vpop.f32.mrb[0].mxu0
        %v4198 = vadd.f32 0.0, %v4197
        %v4199 = vpop.f32.mrb[0].mxu0
        %4200 = vmatprep.mubr.bf16.mxu0 0
        %4201 = vmatmul.mubr.bf16.gmra.mrb[0].mxu0 %v3907
        %v4202 = vpop.f32.mrb[0].mxu0
        %v4203 = vadd.f32 0.0, %v4202
        %v4204 = vpop.f32.mrb[0].mxu0
        %v4205 = vpop.f32.mrb[0].mxu0
        %v4206 = vadd.f32 0.0, %v4205
        %v4207 = vpop.f32.mrb[0].mxu0
        %4208 = vmatprep.mubr.bf16.mxu0 0
        %4209 = vmatmul.mubr.bf16.gmra.mrb[0].mxu0 %v3916
        %v4210 = vpop.f32.mrb[0].mxu0
        %v4211 = vadd.f32 0.0, %v4210
        %v4212 = vpop.f32.mrb[0].mxu0
        %v4213 = vpop.f32.mrb[0].mxu0
        %v4214 = vadd.f32 0.0, %v4213
        %v4215 = vpop.f32.mrb[0].mxu0
        %4216 = vmatprep.mubr.bf16.mxu0 0
        %4217 = vmatmul.mubr.bf16.gmra.mrb[0].mxu0 %v3925
        %v4218 = vpop.f32.mrb[0].mxu0
        %v4219 = vadd.f32 0.0, %v4218
        %v4220 = vpop.f32.mrb[0].mxu0
        %v4221 = vpop.f32.mrb[0].mxu0
        %v4222 = vadd.f32 0.0, %v4221
        %v4223 = vpop.f32.mrb[0].mxu0
        %4224 = vmatprep.mubr.bf16.mxu0 0
        %4225 = vmatmul.mubr.bf16.gmra.mrb[0].mxu0 %v3934
        %v4226 = vpop.f32.mrb[0].mxu0
        %v4227 = vadd.f32 0.0, %v4226
        %v4228 = vpop.f32.mrb[0].mxu0
        %v4229 = vpop.f32.mrb[0].mxu0
        %v4230 = vadd.f32 0.0, %v4229
        %v4231 = vpop.f32.mrb[0].mxu0
        %4232 = vmatprep.mubr.bf16.mxu0 0
        %4233 = vmatmul.mubr.bf16.gmra.mrb[0].mxu0 %v3943
        %v4234 = vpop.f32.mrb[0].mxu0
        %v4235 = vadd.f32 0.0, %v4234
        %v4236 = vpop.f32.mrb[0].mxu0
        %v4237 = vpop.f32.mrb[0].mxu0
        %v4238 = vadd.f32 0.0, %v4237
        %v4239 = vpop.f32.mrb[0].mxu0
        %4240 = vdwg.mxu0
        %v4241 = vadd.f32 %v3628, %v4051
        %v4242 = vadd.f32 %v3629, %v4054
        %v4243 = vadd.f32 %v3630, %v4059
        %v4244 = vadd.f32 %v3631, %v4062
        %v4245 = vadd.f32 %v3632, %v4067
        %v4246 = vadd.f32 %v3633, %v4070
        %v4247 = vadd.f32 %v3634, %v4075
        %v4248 = vadd.f32 %v3635, %v4078
        %v4249 = vadd.f32 %v3636, %v4083
        %v4250 = vadd.f32 %v3637, %v4086
        %v4251 = vadd.f32 %v3638, %v4091
        %v4252 = vadd.f32 %v3639, %v4094
        %v4253 = vadd.f32 %v3640, %v4099
        %v4254 = vadd.f32 %v3641, %v4102
        %v4255 = vadd.f32 %v3642, %v4107
        %v4256 = vadd.f32 %v3643, %v4110
        %v4257 = vadd.f32 %v3644, %v4115
        %v4258 = vadd.f32 %v3645, %v4118
        %v4259 = vadd.f32 %v3646, %v4123
        %v4260 = vadd.f32 %v3647, %v4126
        %v4261 = vadd.f32 %v3648, %v4131
        %v4262 = vadd.f32 %v3649, %v4134
        %v4263 = vadd.f32 %v3650, %v4139
        %v4264 = vadd.f32 %v3651, %v4142
        %v4265 = vadd.f32 %v3652, %v4147
        %v4266 = vadd.f32 %v3653, %v4150
        %v4267 = vadd.f32 %v3654, %v4155
        %v4268 = vadd.f32 %v3655, %v4158
        %v4269 = vadd.f32 %v3656, %v4163
        %v4270 = vadd.f32 %v3657, %v4166
        %v4271 = vadd.f32 %v3658, %v4171
        %v4272 = vadd.f32 %v3659, %v4174
        %v4273 = vadd.f32 %v3660, %v4179
        %v4274 = vadd.f32 %v3661, %v4182
        %v4275 = vadd.f32 %v3662, %v4187
        %v4276 = vadd.f32 %v3663, %v4190
        %v4277 = vadd.f32 %v3664, %v4195
        %v4278 = vadd.f32 %v3665, %v4198
        %v4279 = vadd.f32 %v3666, %v4203
        %v4280 = vadd.f32 %v3667, %v4206
        %v4281 = vadd.f32 %v3668, %v4211
        %v4282 = vadd.f32 %v3669, %v4214
        %v4283 = vadd.f32 %v3670, %v4219
        %v4284 = vadd.f32 %v3671, %v4222
        %v4285 = vadd.f32 %v3672, %v4227
        %v4286 = vadd.f32 %v3673, %v4230
        %v4287 = vadd.f32 %v3674, %v4235
        %v4288 = vadd.f32 %v3675, %v4238
        %v4289 = vld [vmem:[#allocation3 + $0x18] sm:$0xf0]
        %s4290 = sadd.s32 112, %s756
        %s4291 = smul.addr %s4290, 4
        %s4292 = scalar_lea.vmem [#allocation7], %s4291
        %v4293 = vld [vmem:[%s4292] sm:$0xf]
        %v4294 = vld [vmem:[%s4292 + $0x4] sm:$0xf]
        %v4295 = vld [vmem:[%s4292 + $0x8] sm:$0xf]
        %v4296 = vld [vmem:[%s4292 + $0xc] sm:$0xf]
        %v4297 = vld [vmem:[%s4292 + $0x10] sm:$0xf]
        %v4298 = vld [vmem:[%s4292 + $0x14] sm:$0xf]
        %v4299 = vld [vmem:[%s4292 + $0x18] sm:$0xf]
        %v4300 = vld [vmem:[%s4292 + $0x1c] sm:$0xf]
        %v4301 = vld [vmem:[%s4292 + $0x20] sm:$0xf]
        %v4302 = vld [vmem:[%s4292 + $0x24] sm:$0xf]
        %v4303 = vld [vmem:[%s4292 + $0x28] sm:$0xf]
        %v4304 = vld [vmem:[%s4292 + $0x2c] sm:$0xf]
        %v4305 = vld [vmem:[%s4292 + $0x30] sm:$0xf]
        %v4306 = vld [vmem:[%s4292 + $0x34] sm:$0xf]
        %v4307 = vld [vmem:[%s4292 + $0x38] sm:$0xf]
        %v4308 = vld [vmem:[%s4292 + $0x3c] sm:$0xf]
        %v4334 = vrot.slane %v4289, 4
        %v4335 = vrot.slane %v3677, 4
        %v4336 = vsel %vm820, %v4334, %v4335
        %v4337 = vrot.slane %v3678, 4
        %v4338 = vsel %vm820, %v4335, %v4337
        %v4339 = vrot.slane %v3679, 4
        %v4340 = vsel %vm820, %v4337, %v4339
        %v4341 = vrot.slane %v3680, 4
        %v4342 = vsel %vm820, %v4339, %v4341
        %v4343 = vrot.slane %v3681, 4
        %v4344 = vsel %vm820, %v4341, %v4343
        %v4345 = vrot.slane %v3682, 4
        %v4346 = vsel %vm820, %v4343, %v4345
        %v4347 = vrot.slane %v3683, 4
        %v4348 = vsel %vm820, %v4345, %v4347
        %v4349 = vrot.slane %v3684, 4
        %v4350 = vsel %vm820, %v4347, %v4349
        %v4351 = vrot.slane %v3685, 4
        %v4352 = vsel %vm820, %v4349, %v4351
        %v4353 = vrot.slane %v3686, 4
        %v4354 = vsel %vm820, %v4351, %v4353
        %v4355 = vrot.slane %v3687, 4
        %v4356 = vsel %vm820, %v4353, %v4355
        %v4357 = vrot.slane %v3688, 4
        %v4358 = vsel %vm820, %v4355, %v4357
        %v4359 = vrot.slane %v3689, 4
        %v4360 = vsel %vm820, %v4357, %v4359
        %v4361 = vrot.slane %v3690, 4
        %v4362 = vsel %vm820, %v4359, %v4361
        %v4363 = vrot.slane %v3691, 4
        %v4364 = vsel %vm820, %v4361, %v4363
        %v4365 = vrot.slane %v3692, 4
        %v4366 = vsel %vm820, %v4363, %v4365
        %v4367 = vrot.slane %v3693, 4
        %v4368 = vsel %vm820, %v4365, %v4367
        %v4369 = vrot.slane %v3694, 4
        %v4370 = vsel %vm820, %v4367, %v4369
        %v4371 = vrot.slane %v3695, 4
        %v4372 = vsel %vm820, %v4369, %v4371
        %v4373 = vrot.slane %v3696, 4
        %v4374 = vsel %vm820, %v4371, %v4373
        %v4375 = vrot.slane %v3697, 4
        %v4376 = vsel %vm820, %v4373, %v4375
        %v4377 = vrot.slane %v3698, 4
        %v4378 = vsel %vm820, %v4375, %v4377
        %v4379 = vrot.slane %v3699, 4
        %v4380 = vsel %vm820, %v4377, %v4379
        %v4381 = vrot.slane %v3700, 4
        %v4382 = vsel %vm820, %v4379, %v4381
        %v4423 = vunpack.c.l.b16 %v4293
        %v4424 = vunpack.c.l.b16 %v4294
        %v4425 = vunpack.c.l.b16 %v4295
        %v4426 = vunpack.c.l.b16 %v4296
        %v4427 = vunpack.c.l.b16 %v4297
        %v4428 = vunpack.c.l.b16 %v4298
        %v4429 = vunpack.c.l.b16 %v4299
        %v4430 = vunpack.c.l.b16 %v4300
        %v4431 = vunpack.c.l.b16 %v4301
        %v4432 = vunpack.c.l.b16 %v4302
        %v4433 = vunpack.c.l.b16 %v4303
        %v4434 = vunpack.c.l.b16 %v4304
        %v4435 = vunpack.c.l.b16 %v4305
        %v4436 = vunpack.c.l.b16 %v4306
        %v4437 = vunpack.c.l.b16 %v4307
        %v4438 = vunpack.c.l.b16 %v4308
        %v4439 = vpack.c.b16 %v4424, %v4423
        %v4440 = vpack.c.b16 %v4426, %v4425
        %v4441 = vpack.c.b16 %v4428, %v4427
        %v4442 = vpack.c.b16 %v4430, %v4429
        %v4443 = vpack.c.b16 %v4432, %v4431
        %v4444 = vpack.c.b16 %v4434, %v4433
        %v4445 = vpack.c.b16 %v4436, %v4435
        %v4446 = vpack.c.b16 %v4438, %v4437
        %4455 = vmatprep.subr.bf16.mxu0 0
        %4456 = vmatpush1.bf16.msra.mxu0 %v4439
        %4457 = vmatprep.subr.bf16.mxu0 0
        %4458 = vmatpush1.bf16.msra.mxu0 %v4440
        %4459 = vmatprep.subr.bf16.mxu0 0
        %4460 = vmatpush1.bf16.msra.mxu0 %v4441
        %4461 = vmatprep.subr.bf16.mxu0 0
        %4462 = vmatpush1.bf16.msra.mxu0 %v4442
        %4463 = vmatprep.subr.bf16.mxu0 0
        %4464 = vmatpush1.bf16.msra.mxu0 %v4443
        %4465 = vmatprep.subr.bf16.mxu0 0
        %4466 = vmatpush1.bf16.msra.mxu0 %v4444
        %4467 = vmatprep.subr.bf16.mxu0 0
        %4468 = vmatpush1.bf16.msra.mxu0 %v4445
        %4469 = vmatprep.subr.bf16.mxu0 0
        %4470 = vmatpush1.bf16.msra.mxu0 %v4446
        %4471 = vmatprep.subr.bf16.mxu0 0
        %4472 = vmatpush1.bf16.msra.mxu0 0
        %4473 = vmatprep.subr.bf16.mxu0 0
        %4474 = vmatpush1.bf16.msra.mxu0 0
        %4475 = vmatprep.subr.bf16.mxu0 0
        %4476 = vmatpush1.bf16.msra.mxu0 0
        %4477 = vmatprep.subr.bf16.mxu0 0
        %4478 = vmatpush1.bf16.msra.mxu0 0
        %4479 = vmatprep.subr.bf16.mxu0 0
        %4480 = vmatpush1.bf16.msra.mxu0 0
        %4481 = vmatprep.subr.bf16.mxu0 0
        %4482 = vmatpush1.bf16.msra.mxu0 0
        %4483 = vmatprep.subr.bf16.mxu0 0
        %4484 = vmatpush1.bf16.msra.mxu0 0
        %4485 = vmatprep.subr.bf16.mxu0 0
        %4486 = vmatpush1.bf16.msra.mxu0 0
        %4487 = vmatprep.mubr.bf16.mxu0 0
        %4488 = vmatmul.mubr.bf16.gmra.mrb[0].mxu0 %v4336
        %v4489 = vpop.f32.mrb[0].mxu0
        %v4490 = vadd.f32 0.0, %v4489
        %v4491 = vpop.f32.mrb[0].mxu0
        %v4492 = vpop.f32.mrb[0].mxu0
        %v4493 = vadd.f32 0.0, %v4492
        %v4494 = vpop.f32.mrb[0].mxu0
        %4495 = vmatprep.mubr.bf16.mxu0 0
        %4496 = vmatmul.mubr.bf16.gmra.mrb[0].mxu0 %v4338
        %v4497 = vpop.f32.mrb[0].mxu0
        %v4498 = vadd.f32 0.0, %v4497
        %v4499 = vpop.f32.mrb[0].mxu0
        %v4500 = vpop.f32.mrb[0].mxu0
        %v4501 = vadd.f32 0.0, %v4500
        %v4502 = vpop.f32.mrb[0].mxu0
        %4503 = vmatprep.mubr.bf16.mxu0 0
        %4504 = vmatmul.mubr.bf16.gmra.mrb[0].mxu0 %v4340
        %v4505 = vpop.f32.mrb[0].mxu0
        %v4506 = vadd.f32 0.0, %v4505
        %v4507 = vpop.f32.mrb[0].mxu0
        %v4508 = vpop.f32.mrb[0].mxu0
        %v4509 = vadd.f32 0.0, %v4508
        %v4510 = vpop.f32.mrb[0].mxu0
        %4511 = vmatprep.mubr.bf16.mxu0 0
        %4512 = vmatmul.mubr.bf16.gmra.mrb[0].mxu0 %v4342
        %v4513 = vpop.f32.mrb[0].mxu0
        %v4514 = vadd.f32 0.0, %v4513
        %v4515 = vpop.f32.mrb[0].mxu0
        %v4516 = vpop.f32.mrb[0].mxu0
        %v4517 = vadd.f32 0.0, %v4516
        %v4518 = vpop.f32.mrb[0].mxu0
        %4519 = vmatprep.mubr.bf16.mxu0 0
        %4520 = vmatmul.mubr.bf16.gmra.mrb[0].mxu0 %v4344
        %v4521 = vpop.f32.mrb[0].mxu0
        %v4522 = vadd.f32 0.0, %v4521
        %v4523 = vpop.f32.mrb[0].mxu0
        %v4524 = vpop.f32.mrb[0].mxu0
        %v4525 = vadd.f32 0.0, %v4524
        %v4526 = vpop.f32.mrb[0].mxu0
        %4527 = vmatprep.mubr.bf16.mxu0 0
        %4528 = vmatmul.mubr.bf16.gmra.mrb[0].mxu0 %v4346
        %v4529 = vpop.f32.mrb[0].mxu0
        %v4530 = vadd.f32 0.0, %v4529
        %v4531 = vpop.f32.mrb[0].mxu0
        %v4532 = vpop.f32.mrb[0].mxu0
        %v4533 = vadd.f32 0.0, %v4532
        %v4534 = vpop.f32.mrb[0].mxu0
        %4535 = vmatprep.mubr.bf16.mxu0 0
        %4536 = vmatmul.mubr.bf16.gmra.mrb[0].mxu0 %v4348
        %v4537 = vpop.f32.mrb[0].mxu0
        %v4538 = vadd.f32 0.0, %v4537
        %v4539 = vpop.f32.mrb[0].mxu0
        %v4540 = vpop.f32.mrb[0].mxu0
        %v4541 = vadd.f32 0.0, %v4540
        %v4542 = vpop.f32.mrb[0].mxu0
        %4543 = vmatprep.mubr.bf16.mxu0 0
        %4544 = vmatmul.mubr.bf16.gmra.mrb[0].mxu0 %v4350
        %v4545 = vpop.f32.mrb[0].mxu0
        %v4546 = vadd.f32 0.0, %v4545
        %v4547 = vpop.f32.mrb[0].mxu0
        %v4548 = vpop.f32.mrb[0].mxu0
        %v4549 = vadd.f32 0.0, %v4548
        %v4550 = vpop.f32.mrb[0].mxu0
        %4551 = vmatprep.mubr.bf16.mxu0 0
        %4552 = vmatmul.mubr.bf16.gmra.mrb[0].mxu0 %v4352
        %v4553 = vpop.f32.mrb[0].mxu0
        %v4554 = vadd.f32 0.0, %v4553
        %v4555 = vpop.f32.mrb[0].mxu0
        %v4556 = vpop.f32.mrb[0].mxu0
        %v4557 = vadd.f32 0.0, %v4556
        %v4558 = vpop.f32.mrb[0].mxu0
        %4559 = vmatprep.mubr.bf16.mxu0 0
        %4560 = vmatmul.mubr.bf16.gmra.mrb[0].mxu0 %v4354
        %v4561 = vpop.f32.mrb[0].mxu0
        %v4562 = vadd.f32 0.0, %v4561
        %v4563 = vpop.f32.mrb[0].mxu0
        %v4564 = vpop.f32.mrb[0].mxu0
        %v4565 = vadd.f32 0.0, %v4564
        %v4566 = vpop.f32.mrb[0].mxu0
        %4567 = vmatprep.mubr.bf16.mxu0 0
        %4568 = vmatmul.mubr.bf16.gmra.mrb[0].mxu0 %v4356
        %v4569 = vpop.f32.mrb[0].mxu0
        %v4570 = vadd.f32 0.0, %v4569
        %v4571 = vpop.f32.mrb[0].mxu0
        %v4572 = vpop.f32.mrb[0].mxu0
        %v4573 = vadd.f32 0.0, %v4572
        %v4574 = vpop.f32.mrb[0].mxu0
        %4575 = vmatprep.mubr.bf16.mxu0 0
        %4576 = vmatmul.mubr.bf16.gmra.mrb[0].mxu0 %v4358
        %v4577 = vpop.f32.mrb[0].mxu0
        %v4578 = vadd.f32 0.0, %v4577
        %v4579 = vpop.f32.mrb[0].mxu0
        %v4580 = vpop.f32.mrb[0].mxu0
        %v4581 = vadd.f32 0.0, %v4580
        %v4582 = vpop.f32.mrb[0].mxu0
        %4583 = vmatprep.mubr.bf16.mxu0 0
        %4584 = vmatmul.mubr.bf16.gmra.mrb[0].mxu0 %v4360
        %v4585 = vpop.f32.mrb[0].mxu0
        %v4586 = vadd.f32 0.0, %v4585
        %v4587 = vpop.f32.mrb[0].mxu0
        %v4588 = vpop.f32.mrb[0].mxu0
        %v4589 = vadd.f32 0.0, %v4588
        %v4590 = vpop.f32.mrb[0].mxu0
        %4591 = vmatprep.mubr.bf16.mxu0 0
        %4592 = vmatmul.mubr.bf16.gmra.mrb[0].mxu0 %v4362
        %v4593 = vpop.f32.mrb[0].mxu0
        %v4594 = vadd.f32 0.0, %v4593
        %v4595 = vpop.f32.mrb[0].mxu0
        %v4596 = vpop.f32.mrb[0].mxu0
        %v4597 = vadd.f32 0.0, %v4596
        %v4598 = vpop.f32.mrb[0].mxu0
        %4599 = vmatprep.mubr.bf16.mxu0 0
        %4600 = vmatmul.mubr.bf16.gmra.mrb[0].mxu0 %v4364
        %v4601 = vpop.f32.mrb[0].mxu0
        %v4602 = vadd.f32 0.0, %v4601
        %v4603 = vpop.f32.mrb[0].mxu0
        %v4604 = vpop.f32.mrb[0].mxu0
        %v4605 = vadd.f32 0.0, %v4604
        %v4606 = vpop.f32.mrb[0].mxu0
        %4607 = vmatprep.mubr.bf16.mxu0 0
        %4608 = vmatmul.mubr.bf16.gmra.mrb[0].mxu0 %v4366
        %v4609 = vpop.f32.mrb[0].mxu0
        %v4610 = vadd.f32 0.0, %v4609
        %v4611 = vpop.f32.mrb[0].mxu0
        %v4612 = vpop.f32.mrb[0].mxu0
        %v4613 = vadd.f32 0.0, %v4612
        %v4614 = vpop.f32.mrb[0].mxu0
        %4615 = vmatprep.mubr.bf16.mxu0 0
        %4616 = vmatmul.mubr.bf16.gmra.mrb[0].mxu0 %v4368
        %v4617 = vpop.f32.mrb[0].mxu0
        %v4618 = vadd.f32 0.0, %v4617
        %v4619 = vpop.f32.mrb[0].mxu0
        %v4620 = vpop.f32.mrb[0].mxu0
        %v4621 = vadd.f32 0.0, %v4620
        %v4622 = vpop.f32.mrb[0].mxu0
        %4623 = vmatprep.mubr.bf16.mxu0 0
        %4624 = vmatmul.mubr.bf16.gmra.mrb[0].mxu0 %v4370
        %v4625 = vpop.f32.mrb[0].mxu0
        %v4626 = vadd.f32 0.0, %v4625
        %v4627 = vpop.f32.mrb[0].mxu0
        %v4628 = vpop.f32.mrb[0].mxu0
        %v4629 = vadd.f32 0.0, %v4628
        %v4630 = vpop.f32.mrb[0].mxu0
        %4631 = vmatprep.mubr.bf16.mxu0 0
        %4632 = vmatmul.mubr.bf16.gmra.mrb[0].mxu0 %v4372
        %v4633 = vpop.f32.mrb[0].mxu0
        %v4634 = vadd.f32 0.0, %v4633
        %v4635 = vpop.f32.mrb[0].mxu0
        %v4636 = vpop.f32.mrb[0].mxu0
        %v4637 = vadd.f32 0.0, %v4636
        %v4638 = vpop.f32.mrb[0].mxu0
        %4639 = vmatprep.mubr.bf16.mxu0 0
        %4640 = vmatmul.mubr.bf16.gmra.mrb[0].mxu0 %v4374
        %v4641 = vpop.f32.mrb[0].mxu0
        %v4642 = vadd.f32 0.0, %v4641
        %v4643 = vpop.f32.mrb[0].mxu0
        %v4644 = vpop.f32.mrb[0].mxu0
        %v4645 = vadd.f32 0.0, %v4644
        %v4646 = vpop.f32.mrb[0].mxu0
        %4647 = vmatprep.mubr.bf16.mxu0 0
        %4648 = vmatmul.mubr.bf16.gmra.mrb[0].mxu0 %v4376
        %v4649 = vpop.f32.mrb[0].mxu0
        %v4650 = vadd.f32 0.0, %v4649
        %v4651 = vpop.f32.mrb[0].mxu0
        %v4652 = vpop.f32.mrb[0].mxu0
        %v4653 = vadd.f32 0.0, %v4652
        %v4654 = vpop.f32.mrb[0].mxu0
        %4655 = vmatprep.mubr.bf16.mxu0 0
        %4656 = vmatmul.mubr.bf16.gmra.mrb[0].mxu0 %v4378
        %v4657 = vpop.f32.mrb[0].mxu0
        %v4658 = vadd.f32 0.0, %v4657
        %v4659 = vpop.f32.mrb[0].mxu0
        %v4660 = vpop.f32.mrb[0].mxu0
        %v4661 = vadd.f32 0.0, %v4660
        %v4662 = vpop.f32.mrb[0].mxu0
        %4663 = vmatprep.mubr.bf16.mxu0 0
        %4664 = vmatmul.mubr.bf16.gmra.mrb[0].mxu0 %v4380
        %v4665 = vpop.f32.mrb[0].mxu0
        %v4666 = vadd.f32 0.0, %v4665
        %v4667 = vpop.f32.mrb[0].mxu0
        %v4668 = vpop.f32.mrb[0].mxu0
        %v4669 = vadd.f32 0.0, %v4668
        %v4670 = vpop.f32.mrb[0].mxu0
        %4671 = vmatprep.mubr.bf16.mxu0 0
        %4672 = vmatmul.mubr.bf16.gmra.mrb[0].mxu0 %v4382
        %v4673 = vpop.f32.mrb[0].mxu0
        %v4674 = vadd.f32 0.0, %v4673
        %v4675 = vpop.f32.mrb[0].mxu0
        %v4676 = vpop.f32.mrb[0].mxu0
        %v4677 = vadd.f32 0.0, %v4676
        %v4678 = vpop.f32.mrb[0].mxu0
        %4679 = vdwg.mxu0
        %v4680 = vadd.f32 %v4241, %v4490
        %v4681 = vadd.f32 %v4242, %v4493
        %v4682 = vadd.f32 %v4243, %v4498
        %v4683 = vadd.f32 %v4244, %v4501
        %v4684 = vadd.f32 %v4245, %v4506
        %v4685 = vadd.f32 %v4246, %v4509
        %v4686 = vadd.f32 %v4247, %v4514
        %v4687 = vadd.f32 %v4248, %v4517
        %v4688 = vadd.f32 %v4249, %v4522
        %v4689 = vadd.f32 %v4250, %v4525
        %v4690 = vadd.f32 %v4251, %v4530
        %v4691 = vadd.f32 %v4252, %v4533
        %v4692 = vadd.f32 %v4253, %v4538
        %v4693 = vadd.f32 %v4254, %v4541
        %v4694 = vadd.f32 %v4255, %v4546
        %v4695 = vadd.f32 %v4256, %v4549
        %v4696 = vadd.f32 %v4257, %v4554
        %v4697 = vadd.f32 %v4258, %v4557
        %v4698 = vadd.f32 %v4259, %v4562
        %v4699 = vadd.f32 %v4260, %v4565
        %v4700 = vadd.f32 %v4261, %v4570
        %v4701 = vadd.f32 %v4262, %v4573
        %v4702 = vadd.f32 %v4263, %v4578
        %v4703 = vadd.f32 %v4264, %v4581
        %v4704 = vadd.f32 %v4265, %v4586
        %v4705 = vadd.f32 %v4266, %v4589
        %v4706 = vadd.f32 %v4267, %v4594
        %v4707 = vadd.f32 %v4268, %v4597
        %v4708 = vadd.f32 %v4269, %v4602
        %v4709 = vadd.f32 %v4270, %v4605
        %v4710 = vadd.f32 %v4271, %v4610
        %v4711 = vadd.f32 %v4272, %v4613
        %v4712 = vadd.f32 %v4273, %v4618
        %v4713 = vadd.f32 %v4274, %v4621
        %v4714 = vadd.f32 %v4275, %v4626
        %v4715 = vadd.f32 %v4276, %v4629
        %v4716 = vadd.f32 %v4277, %v4634
        %v4717 = vadd.f32 %v4278, %v4637
        %v4718 = vadd.f32 %v4279, %v4642
        %v4719 = vadd.f32 %v4280, %v4645
        %v4720 = vadd.f32 %v4281, %v4650
        %v4721 = vadd.f32 %v4282, %v4653
        %v4722 = vadd.f32 %v4283, %v4658
        %v4723 = vadd.f32 %v4284, %v4661
        %v4724 = vadd.f32 %v4285, %v4666
        %v4725 = vadd.f32 %v4286, %v4669
        %v4726 = vadd.f32 %v4287, %v4674
        %v4727 = vadd.f32 %v4288, %v4677
        %v4728 = vld [vmem:[#allocation3 + $0xd8] sm:$0x1f]
        %s4729 = sadd.s32 128, %s756
        %s4730 = smul.addr %s4729, 4
        %s4731 = scalar_lea.vmem [#allocation7], %s4730
        %v4732 = vld [vmem:[%s4731] sm:$0xf]
        %v4733 = vld [vmem:[%s4731 + $0x4] sm:$0xf]
        %v4734 = vld [vmem:[%s4731 + $0x8] sm:$0xf]
        %v4735 = vld [vmem:[%s4731 + $0xc] sm:$0xf]
        %v4736 = vld [vmem:[%s4731 + $0x10] sm:$0xf]
        %v4737 = vld [vmem:[%s4731 + $0x14] sm:$0xf]
        %v4738 = vld [vmem:[%s4731 + $0x18] sm:$0xf]
        %v4739 = vld [vmem:[%s4731 + $0x1c] sm:$0xf]
        %v4740 = vld [vmem:[%s4731 + $0x20] sm:$0xf]
        %v4741 = vld [vmem:[%s4731 + $0x24] sm:$0xf]
        %v4742 = vld [vmem:[%s4731 + $0x28] sm:$0xf]
        %v4743 = vld [vmem:[%s4731 + $0x2c] sm:$0xf]
        %v4744 = vld [vmem:[%s4731 + $0x30] sm:$0xf]
        %v4745 = vld [vmem:[%s4731 + $0x34] sm:$0xf]
        %v4746 = vld [vmem:[%s4731 + $0x38] sm:$0xf]
        %v4747 = vld [vmem:[%s4731 + $0x3c] sm:$0xf]
        %v4749 = vshrl.u32 %v4289, 16
        %v4751 = vrot.slane %v4749, 4
        %v4752 = vshll.u32 %v4289, 16
        %v4754 = vrot.slane %v4752, 5
        %v4755 = vor.u32 %v4751, %v4754
        %v4756 = vrot.slane %v3729, 4
        %v4757 = vrot.slane %v3732, 5
        %v4758 = vor.u32 %v4756, %v4757
        %v4759 = vsel %vm1709, %v4755, %v4758
        %v4760 = vrot.slane %v3738, 4
        %v4761 = vrot.slane %v3741, 5
        %v4762 = vor.u32 %v4760, %v4761
        %v4763 = vsel %vm1709, %v4758, %v4762
        %v4764 = vrot.slane %v3747, 4
        %v4765 = vrot.slane %v3750, 5
        %v4766 = vor.u32 %v4764, %v4765
        %v4767 = vsel %vm1709, %v4762, %v4766
        %v4768 = vrot.slane %v3756, 4
        %v4769 = vrot.slane %v3759, 5
        %v4770 = vor.u32 %v4768, %v4769
        %v4771 = vsel %vm1709, %v4766, %v4770
        %v4772 = vrot.slane %v3765, 4
        %v4773 = vrot.slane %v3768, 5
        %v4774 = vor.u32 %v4772, %v4773
        %v4775 = vsel %vm1709, %v4770, %v4774
        %v4776 = vrot.slane %v3774, 4
        %v4777 = vrot.slane %v3777, 5
        %v4778 = vor.u32 %v4776, %v4777
        %v4779 = vsel %vm1709, %v4774, %v4778
        %v4780 = vrot.slane %v3783, 4
        %v4781 = vrot.slane %v3786, 5
        %v4782 = vor.u32 %v4780, %v4781
        %v4783 = vsel %vm1709, %v4778, %v4782
        %v4784 = vrot.slane %v3792, 4
        %v4785 = vrot.slane %v3795, 5
        %v4786 = vor.u32 %v4784, %v4785
        %v4787 = vsel %vm1709, %v4782, %v4786
        %v4788 = vrot.slane %v3801, 4
        %v4789 = vrot.slane %v3804, 5
        %v4790 = vor.u32 %v4788, %v4789
        %v4791 = vsel %vm1709, %v4786, %v4790
        %v4792 = vrot.slane %v3810, 4
        %v4793 = vrot.slane %v3813, 5
        %v4794 = vor.u32 %v4792, %v4793
        %v4795 = vsel %vm1709, %v4790, %v4794
        %v4796 = vrot.slane %v3819, 4
        %v4797 = vrot.slane %v3822, 5
        %v4798 = vor.u32 %v4796, %v4797
        %v4799 = vsel %vm1709, %v4794, %v4798
        %v4800 = vrot.slane %v3828, 4
        %v4801 = vrot.slane %v3831, 5
        %v4802 = vor.u32 %v4800, %v4801
        %v4803 = vsel %vm1709, %v4798, %v4802
        %v4804 = vrot.slane %v3837, 4
        %v4805 = vrot.slane %v3840, 5
        %v4806 = vor.u32 %v4804, %v4805
        %v4807 = vsel %vm1709, %v4802, %v4806
        %v4808 = vrot.slane %v3846, 4
        %v4809 = vrot.slane %v3849, 5
        %v4810 = vor.u32 %v4808, %v4809
        %v4811 = vsel %vm1709, %v4806, %v4810
        %v4812 = vrot.slane %v3855, 4
        %v4813 = vrot.slane %v3858, 5
        %v4814 = vor.u32 %v4812, %v4813
        %v4815 = vsel %vm1709, %v4810, %v4814
        %v4816 = vrot.slane %v3864, 4
        %v4817 = vrot.slane %v3867, 5
        %v4818 = vor.u32 %v4816, %v4817
        %v4819 = vsel %vm1709, %v4814, %v4818
        %v4820 = vrot.slane %v3873, 4
        %v4821 = vrot.slane %v3876, 5
        %v4822 = vor.u32 %v4820, %v4821
        %v4823 = vsel %vm1709, %v4818, %v4822
        %v4824 = vrot.slane %v3882, 4
        %v4825 = vrot.slane %v3885, 5
        %v4826 = vor.u32 %v4824, %v4825
        %v4827 = vsel %vm1709, %v4822, %v4826
        %v4828 = vrot.slane %v3891, 4
        %v4829 = vrot.slane %v3894, 5
        %v4830 = vor.u32 %v4828, %v4829
        %v4831 = vsel %vm1709, %v4826, %v4830
        %v4832 = vrot.slane %v3900, 4
        %v4833 = vrot.slane %v3903, 5
        %v4834 = vor.u32 %v4832, %v4833
        %v4835 = vsel %vm1709, %v4830, %v4834
        %v4836 = vrot.slane %v3909, 4
        %v4837 = vrot.slane %v3912, 5
        %v4838 = vor.u32 %v4836, %v4837
        %v4839 = vsel %vm1709, %v4834, %v4838
        %v4840 = vrot.slane %v3918, 4
        %v4841 = vrot.slane %v3921, 5
        %v4842 = vor.u32 %v4840, %v4841
        %v4843 = vsel %vm1709, %v4838, %v4842
        %v4844 = vrot.slane %v3927, 4
        %v4845 = vrot.slane %v3930, 5
        %v4846 = vor.u32 %v4844, %v4845
        %v4847 = vsel %vm1709, %v4842, %v4846
        %v4849 = vshrl.u32 %v4728, 16
        %v4851 = vrot.slane %v4849, 4
        %v4852 = vshll.u32 %v4728, 16
        %v4854 = vrot.slane %v4852, 5
        %v4855 = vor.u32 %v4851, %v4854
        %v4856 = vsel %vm1709, %v4846, %v4855
        %v4897 = vunpack.c.l.b16 %v4732
        %v4898 = vunpack.c.l.b16 %v4733
        %v4899 = vunpack.c.l.b16 %v4734
        %v4900 = vunpack.c.l.b16 %v4735
        %v4901 = vunpack.c.l.b16 %v4736
        %v4902 = vunpack.c.l.b16 %v4737
        %v4903 = vunpack.c.l.b16 %v4738
        %v4904 = vunpack.c.l.b16 %v4739
        %v4905 = vunpack.c.l.b16 %v4740
        %v4906 = vunpack.c.l.b16 %v4741
        %v4907 = vunpack.c.l.b16 %v4742
        %v4908 = vunpack.c.l.b16 %v4743
        %v4909 = vunpack.c.l.b16 %v4744
        %v4910 = vunpack.c.l.b16 %v4745
        %v4911 = vunpack.c.l.b16 %v4746
        %v4912 = vunpack.c.l.b16 %v4747
        %v4913 = vpack.c.b16 %v4898, %v4897
        %v4914 = vpack.c.b16 %v4900, %v4899
        %v4915 = vpack.c.b16 %v4902, %v4901
        %v4916 = vpack.c.b16 %v4904, %v4903
        %v4917 = vpack.c.b16 %v4906, %v4905
        %v4918 = vpack.c.b16 %v4908, %v4907
        %v4919 = vpack.c.b16 %v4910, %v4909
        %v4920 = vpack.c.b16 %v4912, %v4911
        %4929 = vmatprep.subr.bf16.mxu0 0
        %4930 = vmatpush1.bf16.msra.mxu0 %v4913
        %4931 = vmatprep.subr.bf16.mxu0 0
        %4932 = vmatpush1.bf16.msra.mxu0 %v4914
        %4933 = vmatprep.subr.bf16.mxu0 0
        %4934 = vmatpush1.bf16.msra.mxu0 %v4915
        %4935 = vmatprep.subr.bf16.mxu0 0
        %4936 = vmatpush1.bf16.msra.mxu0 %v4916
        %4937 = vmatprep.subr.bf16.mxu0 0
        %4938 = vmatpush1.bf16.msra.mxu0 %v4917
        %4939 = vmatprep.subr.bf16.mxu0 0
        %4940 = vmatpush1.bf16.msra.mxu0 %v4918
        %4941 = vmatprep.subr.bf16.mxu0 0
        %4942 = vmatpush1.bf16.msra.mxu0 %v4919
        %4943 = vmatprep.subr.bf16.mxu0 0
        %4944 = vmatpush1.bf16.msra.mxu0 %v4920
        %4945 = vmatprep.subr.bf16.mxu0 0
        %4946 = vmatpush1.bf16.msra.mxu0 0
        %4947 = vmatprep.subr.bf16.mxu0 0
        %4948 = vmatpush1.bf16.msra.mxu0 0
        %4949 = vmatprep.subr.bf16.mxu0 0
        %4950 = vmatpush1.bf16.msra.mxu0 0
        %4951 = vmatprep.subr.bf16.mxu0 0
        %4952 = vmatpush1.bf16.msra.mxu0 0
        %4953 = vmatprep.subr.bf16.mxu0 0
        %4954 = vmatpush1.bf16.msra.mxu0 0
        %4955 = vmatprep.subr.bf16.mxu0 0
        %4956 = vmatpush1.bf16.msra.mxu0 0
        %4957 = vmatprep.subr.bf16.mxu0 0
        %4958 = vmatpush1.bf16.msra.mxu0 0
        %4959 = vmatprep.subr.bf16.mxu0 0
        %4960 = vmatpush1.bf16.msra.mxu0 0
        %4961 = vmatprep.mubr.bf16.mxu0 0
        %4962 = vmatmul.mubr.bf16.gmra.mrb[0].mxu0 %v4759
        %v4963 = vpop.f32.mrb[0].mxu0
        %v4964 = vadd.f32 0.0, %v4963
        %v4965 = vpop.f32.mrb[0].mxu0
        %v4966 = vpop.f32.mrb[0].mxu0
        %v4967 = vadd.f32 0.0, %v4966
        %v4968 = vpop.f32.mrb[0].mxu0
        %4969 = vmatprep.mubr.bf16.mxu0 0
        %4970 = vmatmul.mubr.bf16.gmra.mrb[0].mxu0 %v4763
        %v4971 = vpop.f32.mrb[0].mxu0
        %v4972 = vadd.f32 0.0, %v4971
        %v4973 = vpop.f32.mrb[0].mxu0
        %v4974 = vpop.f32.mrb[0].mxu0
        %v4975 = vadd.f32 0.0, %v4974
        %v4976 = vpop.f32.mrb[0].mxu0
        %4977 = vmatprep.mubr.bf16.mxu0 0
        %4978 = vmatmul.mubr.bf16.gmra.mrb[0].mxu0 %v4767
        %v4979 = vpop.f32.mrb[0].mxu0
        %v4980 = vadd.f32 0.0, %v4979
        %v4981 = vpop.f32.mrb[0].mxu0
        %v4982 = vpop.f32.mrb[0].mxu0
        %v4983 = vadd.f32 0.0, %v4982
        %v4984 = vpop.f32.mrb[0].mxu0
        %4985 = vmatprep.mubr.bf16.mxu0 0
        %4986 = vmatmul.mubr.bf16.gmra.mrb[0].mxu0 %v4771
        %v4987 = vpop.f32.mrb[0].mxu0
        %v4988 = vadd.f32 0.0, %v4987
        %v4989 = vpop.f32.mrb[0].mxu0
        %v4990 = vpop.f32.mrb[0].mxu0
        %v4991 = vadd.f32 0.0, %v4990
        %v4992 = vpop.f32.mrb[0].mxu0
        %4993 = vmatprep.mubr.bf16.mxu0 0
        %4994 = vmatmul.mubr.bf16.gmra.mrb[0].mxu0 %v4775
        %v4995 = vpop.f32.mrb[0].mxu0
        %v4996 = vadd.f32 0.0, %v4995
        %v4997 = vpop.f32.mrb[0].mxu0
        %v4998 = vpop.f32.mrb[0].mxu0
        %v4999 = vadd.f32 0.0, %v4998
        %v5000 = vpop.f32.mrb[0].mxu0
        %5001 = vmatprep.mubr.bf16.mxu0 0
        %5002 = vmatmul.mubr.bf16.gmra.mrb[0].mxu0 %v4779
        %v5003 = vpop.f32.mrb[0].mxu0
        %v5004 = vadd.f32 0.0, %v5003
        %v5005 = vpop.f32.mrb[0].mxu0
        %v5006 = vpop.f32.mrb[0].mxu0
        %v5007 = vadd.f32 0.0, %v5006
        %v5008 = vpop.f32.mrb[0].mxu0
        %5009 = vmatprep.mubr.bf16.mxu0 0
        %5010 = vmatmul.mubr.bf16.gmra.mrb[0].mxu0 %v4783
        %v5011 = vpop.f32.mrb[0].mxu0
        %v5012 = vadd.f32 0.0, %v5011
        %v5013 = vpop.f32.mrb[0].mxu0
        %v5014 = vpop.f32.mrb[0].mxu0
        %v5015 = vadd.f32 0.0, %v5014
        %v5016 = vpop.f32.mrb[0].mxu0
        %5017 = vmatprep.mubr.bf16.mxu0 0
        %5018 = vmatmul.mubr.bf16.gmra.mrb[0].mxu0 %v4787
        %v5019 = vpop.f32.mrb[0].mxu0
        %v5020 = vadd.f32 0.0, %v5019
        %v5021 = vpop.f32.mrb[0].mxu0
        %v5022 = vpop.f32.mrb[0].mxu0
        %v5023 = vadd.f32 0.0, %v5022
        %v5024 = vpop.f32.mrb[0].mxu0
        %5025 = vmatprep.mubr.bf16.mxu0 0
        %5026 = vmatmul.mubr.bf16.gmra.mrb[0].mxu0 %v4791
        %v5027 = vpop.f32.mrb[0].mxu0
        %v5028 = vadd.f32 0.0, %v5027
        %v5029 = vpop.f32.mrb[0].mxu0
        %v5030 = vpop.f32.mrb[0].mxu0
        %v5031 = vadd.f32 0.0, %v5030
        %v5032 = vpop.f32.mrb[0].mxu0
        %5033 = vmatprep.mubr.bf16.mxu0 0
        %5034 = vmatmul.mubr.bf16.gmra.mrb[0].mxu0 %v4795
        %v5035 = vpop.f32.mrb[0].mxu0
        %v5036 = vadd.f32 0.0, %v5035
        %v5037 = vpop.f32.mrb[0].mxu0
        %v5038 = vpop.f32.mrb[0].mxu0
        %v5039 = vadd.f32 0.0, %v5038
        %v5040 = vpop.f32.mrb[0].mxu0
        %5041 = vmatprep.mubr.bf16.mxu0 0
        %5042 = vmatmul.mubr.bf16.gmra.mrb[0].mxu0 %v4799
        %v5043 = vpop.f32.mrb[0].mxu0
        %v5044 = vadd.f32 0.0, %v5043
        %v5045 = vpop.f32.mrb[0].mxu0
        %v5046 = vpop.f32.mrb[0].mxu0
        %v5047 = vadd.f32 0.0, %v5046
        %v5048 = vpop.f32.mrb[0].mxu0
        %5049 = vmatprep.mubr.bf16.mxu0 0
        %5050 = vmatmul.mubr.bf16.gmra.mrb[0].mxu0 %v4803
        %v5051 = vpop.f32.mrb[0].mxu0
        %v5052 = vadd.f32 0.0, %v5051
        %v5053 = vpop.f32.mrb[0].mxu0
        %v5054 = vpop.f32.mrb[0].mxu0
        %v5055 = vadd.f32 0.0, %v5054
        %v5056 = vpop.f32.mrb[0].mxu0
        %5057 = vmatprep.mubr.bf16.mxu0 0
        %5058 = vmatmul.mubr.bf16.gmra.mrb[0].mxu0 %v4807
        %v5059 = vpop.f32.mrb[0].mxu0
        %v5060 = vadd.f32 0.0, %v5059
        %v5061 = vpop.f32.mrb[0].mxu0
        %v5062 = vpop.f32.mrb[0].mxu0
        %v5063 = vadd.f32 0.0, %v5062
        %v5064 = vpop.f32.mrb[0].mxu0
        %5065 = vmatprep.mubr.bf16.mxu0 0
        %5066 = vmatmul.mubr.bf16.gmra.mrb[0].mxu0 %v4811
        %v5067 = vpop.f32.mrb[0].mxu0
        %v5068 = vadd.f32 0.0, %v5067
        %v5069 = vpop.f32.mrb[0].mxu0
        %v5070 = vpop.f32.mrb[0].mxu0
        %v5071 = vadd.f32 0.0, %v5070
        %v5072 = vpop.f32.mrb[0].mxu0
        %5073 = vmatprep.mubr.bf16.mxu0 0
        %5074 = vmatmul.mubr.bf16.gmra.mrb[0].mxu0 %v4815
        %v5075 = vpop.f32.mrb[0].mxu0
        %v5076 = vadd.f32 0.0, %v5075
        %v5077 = vpop.f32.mrb[0].mxu0
        %v5078 = vpop.f32.mrb[0].mxu0
        %v5079 = vadd.f32 0.0, %v5078
        %v5080 = vpop.f32.mrb[0].mxu0
        %5081 = vmatprep.mubr.bf16.mxu0 0
        %5082 = vmatmul.mubr.bf16.gmra.mrb[0].mxu0 %v4819
        %v5083 = vpop.f32.mrb[0].mxu0
        %v5084 = vadd.f32 0.0, %v5083
        %v5085 = vpop.f32.mrb[0].mxu0
        %v5086 = vpop.f32.mrb[0].mxu0
        %v5087 = vadd.f32 0.0, %v5086
        %v5088 = vpop.f32.mrb[0].mxu0
        %5089 = vmatprep.mubr.bf16.mxu0 0
        %5090 = vmatmul.mubr.bf16.gmra.mrb[0].mxu0 %v4823
        %v5091 = vpop.f32.mrb[0].mxu0
        %v5092 = vadd.f32 0.0, %v5091
        %v5093 = vpop.f32.mrb[0].mxu0
        %v5094 = vpop.f32.mrb[0].mxu0
        %v5095 = vadd.f32 0.0, %v5094
        %v5096 = vpop.f32.mrb[0].mxu0
        %5097 = vmatprep.mubr.bf16.mxu0 0
        %5098 = vmatmul.mubr.bf16.gmra.mrb[0].mxu0 %v4827
        %v5099 = vpop.f32.mrb[0].mxu0
        %v5100 = vadd.f32 0.0, %v5099
        %v5101 = vpop.f32.mrb[0].mxu0
        %v5102 = vpop.f32.mrb[0].mxu0
        %v5103 = vadd.f32 0.0, %v5102
        %v5104 = vpop.f32.mrb[0].mxu0
        %5105 = vmatprep.mubr.bf16.mxu0 0
        %5106 = vmatmul.mubr.bf16.gmra.mrb[0].mxu0 %v4831
        %v5107 = vpop.f32.mrb[0].mxu0
        %v5108 = vadd.f32 0.0, %v5107
        %v5109 = vpop.f32.mrb[0].mxu0
        %v5110 = vpop.f32.mrb[0].mxu0
        %v5111 = vadd.f32 0.0, %v5110
        %v5112 = vpop.f32.mrb[0].mxu0
        %5113 = vmatprep.mubr.bf16.mxu0 0
        %5114 = vmatmul.mubr.bf16.gmra.mrb[0].mxu0 %v4835
        %v5115 = vpop.f32.mrb[0].mxu0
        %v5116 = vadd.f32 0.0, %v5115
        %v5117 = vpop.f32.mrb[0].mxu0
        %v5118 = vpop.f32.mrb[0].mxu0
        %v5119 = vadd.f32 0.0, %v5118
        %v5120 = vpop.f32.mrb[0].mxu0
        %5121 = vmatprep.mubr.bf16.mxu0 0
        %5122 = vmatmul.mubr.bf16.gmra.mrb[0].mxu0 %v4839
        %v5123 = vpop.f32.mrb[0].mxu0
        %v5124 = vadd.f32 0.0, %v5123
        %v5125 = vpop.f32.mrb[0].mxu0
        %v5126 = vpop.f32.mrb[0].mxu0
        %v5127 = vadd.f32 0.0, %v5126
        %v5128 = vpop.f32.mrb[0].mxu0
        %5129 = vmatprep.mubr.bf16.mxu0 0
        %5130 = vmatmul.mubr.bf16.gmra.mrb[0].mxu0 %v4843
        %v5131 = vpop.f32.mrb[0].mxu0
        %v5132 = vadd.f32 0.0, %v5131
        %v5133 = vpop.f32.mrb[0].mxu0
        %v5134 = vpop.f32.mrb[0].mxu0
        %v5135 = vadd.f32 0.0, %v5134
        %v5136 = vpop.f32.mrb[0].mxu0
        %5137 = vmatprep.mubr.bf16.mxu0 0
        %5138 = vmatmul.mubr.bf16.gmra.mrb[0].mxu0 %v4847
        %v5139 = vpop.f32.mrb[0].mxu0
        %v5140 = vadd.f32 0.0, %v5139
        %v5141 = vpop.f32.mrb[0].mxu0
        %v5142 = vpop.f32.mrb[0].mxu0
        %v5143 = vadd.f32 0.0, %v5142
        %v5144 = vpop.f32.mrb[0].mxu0
        %5145 = vmatprep.mubr.bf16.mxu0 0
        %5146 = vmatmul.mubr.bf16.gmra.mrb[0].mxu0 %v4856
        %v5147 = vpop.f32.mrb[0].mxu0
        %v5148 = vadd.f32 0.0, %v5147
        %v5149 = vpop.f32.mrb[0].mxu0
        %v5150 = vpop.f32.mrb[0].mxu0
        %v5151 = vadd.f32 0.0, %v5150
        %v5152 = vpop.f32.mrb[0].mxu0
        %5153 = vdwg.mxu0
        %v5154 = vadd.f32 %v4680, %v4964
        %v5155 = vadd.f32 %v4681, %v4967
        %v5156 = vadd.f32 %v4682, %v4972
        %v5157 = vadd.f32 %v4683, %v4975
        %v5158 = vadd.f32 %v4684, %v4980
        %v5159 = vadd.f32 %v4685, %v4983
        %v5160 = vadd.f32 %v4686, %v4988
        %v5161 = vadd.f32 %v4687, %v4991
        %v5162 = vadd.f32 %v4688, %v4996
        %v5163 = vadd.f32 %v4689, %v4999
        %v5164 = vadd.f32 %v4690, %v5004
        %v5165 = vadd.f32 %v4691, %v5007
        %v5166 = vadd.f32 %v4692, %v5012
        %v5167 = vadd.f32 %v4693, %v5015
        %v5168 = vadd.f32 %v4694, %v5020
        %v5169 = vadd.f32 %v4695, %v5023
        %v5170 = vadd.f32 %v4696, %v5028
        %v5171 = vadd.f32 %v4697, %v5031
        %v5172 = vadd.f32 %v4698, %v5036
        %v5173 = vadd.f32 %v4699, %v5039
        %v5174 = vadd.f32 %v4700, %v5044
        %v5175 = vadd.f32 %v4701, %v5047
        %v5176 = vadd.f32 %v4702, %v5052
        %v5177 = vadd.f32 %v4703, %v5055
        %v5178 = vadd.f32 %v4704, %v5060
        %v5179 = vadd.f32 %v4705, %v5063
        %v5180 = vadd.f32 %v4706, %v5068
        %v5181 = vadd.f32 %v4707, %v5071
        %v5182 = vadd.f32 %v4708, %v5076
        %v5183 = vadd.f32 %v4709, %v5079
        %v5184 = vadd.f32 %v4710, %v5084
        %v5185 = vadd.f32 %v4711, %v5087
        %v5186 = vadd.f32 %v4712, %v5092
        %v5187 = vadd.f32 %v4713, %v5095
        %v5188 = vadd.f32 %v4714, %v5100
        %v5189 = vadd.f32 %v4715, %v5103
        %v5190 = vadd.f32 %v4716, %v5108
        %v5191 = vadd.f32 %v4717, %v5111
        %v5192 = vadd.f32 %v4718, %v5116
        %v5193 = vadd.f32 %v4719, %v5119
        %v5194 = vadd.f32 %v4720, %v5124
        %v5195 = vadd.f32 %v4721, %v5127
        %v5196 = vadd.f32 %v4722, %v5132
        %v5197 = vadd.f32 %v4723, %v5135
        %v5198 = vadd.f32 %v4724, %v5140
        %v5199 = vadd.f32 %v4725, %v5143
        %v5200 = vadd.f32 %v4726, %v5148
        %v5201 = vadd.f32 %v4727, %v5151
        %s5202 = scalar_lea.vmem %s2, %s28
        %v5203 = vld [vmem:[%s5202] sm:$0x1]
        %v5205 = vlaneseq
        %v5206 = vshrl.u32 %v5205, 7
        %v5207 = vsub.s32 0, %v5206
        %v5208 = vrot.slane %v5203, %v5207
        %v5210 = vadd.f32 %v5154, %v5208
        %v5211 = vadd.f32 %v5155, %v5208
        %v5212 = vadd.f32 %v5156, %v5208
        %v5213 = vadd.f32 %v5157, %v5208
        %v5214 = vadd.f32 %v5158, %v5208
        %v5215 = vadd.f32 %v5159, %v5208
        %v5216 = vadd.f32 %v5160, %v5208
        %v5217 = vadd.f32 %v5161, %v5208
        %v5218 = vadd.f32 %v5162, %v5208
        %v5219 = vadd.f32 %v5163, %v5208
        %v5220 = vadd.f32 %v5164, %v5208
        %v5221 = vadd.f32 %v5165, %v5208
        %v5222 = vadd.f32 %v5166, %v5208
        %v5223 = vadd.f32 %v5167, %v5208
        %v5224 = vadd.f32 %v5168, %v5208
        %v5225 = vadd.f32 %v5169, %v5208
        %v5226 = vadd.f32 %v5170, %v5208
        %v5227 = vadd.f32 %v5171, %v5208
        %v5228 = vadd.f32 %v5172, %v5208
        %v5229 = vadd.f32 %v5173, %v5208
        %v5230 = vadd.f32 %v5174, %v5208
        %v5231 = vadd.f32 %v5175, %v5208
        %v5232 = vadd.f32 %v5176, %v5208
        %v5233 = vadd.f32 %v5177, %v5208
        %v5234 = vadd.f32 %v5178, %v5208
        %v5235 = vadd.f32 %v5179, %v5208
        %v5236 = vadd.f32 %v5180, %v5208
        %v5237 = vadd.f32 %v5181, %v5208
        %v5238 = vadd.f32 %v5182, %v5208
        %v5239 = vadd.f32 %v5183, %v5208
        %v5240 = vadd.f32 %v5184, %v5208
        %v5241 = vadd.f32 %v5185, %v5208
        %v5242 = vadd.f32 %v5186, %v5208
        %v5243 = vadd.f32 %v5187, %v5208
        %v5244 = vadd.f32 %v5188, %v5208
        %v5245 = vadd.f32 %v5189, %v5208
        %v5246 = vadd.f32 %v5190, %v5208
        %v5247 = vadd.f32 %v5191, %v5208
        %v5248 = vadd.f32 %v5192, %v5208
        %v5249 = vadd.f32 %v5193, %v5208
        %v5250 = vadd.f32 %v5194, %v5208
        %v5251 = vadd.f32 %v5195, %v5208
        %v5252 = vadd.f32 %v5196, %v5208
        %v5253 = vadd.f32 %v5197, %v5208
        %v5254 = vadd.f32 %v5198, %v5208
        %v5255 = vadd.f32 %v5199, %v5208
        %v5256 = vadd.f32 %v5200, %v5208
        %v5257 = vadd.f32 %v5201, %v5208
        %v5258 = vmax.f32 %v5210, 0.0
        %v5259 = vmax.f32 %v5211, 0.0
        %v5260 = vmax.f32 %v5212, 0.0
        %v5261 = vmax.f32 %v5213, 0.0
        %v5262 = vmax.f32 %v5214, 0.0
        %v5263 = vmax.f32 %v5215, 0.0
        %v5264 = vmax.f32 %v5216, 0.0
        %v5265 = vmax.f32 %v5217, 0.0
        %v5266 = vmax.f32 %v5218, 0.0
        %v5267 = vmax.f32 %v5219, 0.0
        %v5268 = vmax.f32 %v5220, 0.0
        %v5269 = vmax.f32 %v5221, 0.0
        %v5270 = vmax.f32 %v5222, 0.0
        %v5271 = vmax.f32 %v5223, 0.0
        %v5272 = vmax.f32 %v5224, 0.0
        %v5273 = vmax.f32 %v5225, 0.0
        %v5274 = vmax.f32 %v5226, 0.0
        %v5275 = vmax.f32 %v5227, 0.0
        %v5276 = vmax.f32 %v5228, 0.0
        %v5277 = vmax.f32 %v5229, 0.0
        %v5278 = vmax.f32 %v5230, 0.0
        %v5279 = vmax.f32 %v5231, 0.0
        %v5280 = vmax.f32 %v5232, 0.0
        %v5281 = vmax.f32 %v5233, 0.0
        %v5282 = vmax.f32 %v5234, 0.0
        %v5283 = vmax.f32 %v5235, 0.0
        %v5284 = vmax.f32 %v5236, 0.0
        %v5285 = vmax.f32 %v5237, 0.0
        %v5286 = vmax.f32 %v5238, 0.0
        %v5287 = vmax.f32 %v5239, 0.0
        %v5288 = vmax.f32 %v5240, 0.0
        %v5289 = vmax.f32 %v5241, 0.0
        %v5290 = vmax.f32 %v5242, 0.0
        %v5291 = vmax.f32 %v5243, 0.0
        %v5292 = vmax.f32 %v5244, 0.0
        %v5293 = vmax.f32 %v5245, 0.0
        %v5294 = vmax.f32 %v5246, 0.0
        %v5295 = vmax.f32 %v5247, 0.0
        %v5296 = vmax.f32 %v5248, 0.0
        %v5297 = vmax.f32 %v5249, 0.0
        %v5298 = vmax.f32 %v5250, 0.0
        %v5299 = vmax.f32 %v5251, 0.0
        %v5300 = vmax.f32 %v5252, 0.0
        %v5301 = vmax.f32 %v5253, 0.0
        %v5302 = vmax.f32 %v5254, 0.0
        %v5303 = vmax.f32 %v5255, 0.0
        %v5304 = vmax.f32 %v5256, 0.0
        %v5305 = vmax.f32 %v5257, 0.0
        %v5306 = vsel %vm289, %v5258, 0.0
        %v5307 = vsel %vm290, %v5259, 0.0
        %v5308 = vsel %vm291, %v5260, 0.0
        %v5309 = vsel %vm289, %v5261, 0.0
        %v5310 = vsel %vm290, %v5262, 0.0
        %v5311 = vsel %vm291, %v5263, 0.0
        %v5312 = vsel %vm289, %v5264, 0.0
        %v5313 = vsel %vm290, %v5265, 0.0
        %v5314 = vsel %vm291, %v5266, 0.0
        %v5315 = vsel %vm289, %v5267, 0.0
        %v5316 = vsel %vm290, %v5268, 0.0
        %v5317 = vsel %vm291, %v5269, 0.0
        %v5318 = vsel %vm289, %v5270, 0.0
        %v5319 = vsel %vm290, %v5271, 0.0
        %v5320 = vsel %vm291, %v5272, 0.0
        %v5321 = vsel %vm289, %v5273, 0.0
        %v5322 = vsel %vm290, %v5274, 0.0
        %v5323 = vsel %vm291, %v5275, 0.0
        %v5324 = vsel %vm289, %v5276, 0.0
        %v5325 = vsel %vm290, %v5277, 0.0
        %v5326 = vsel %vm291, %v5278, 0.0
        %v5327 = vsel %vm289, %v5279, 0.0
        %v5328 = vsel %vm290, %v5280, 0.0
        %v5329 = vsel %vm291, %v5281, 0.0
        %v5330 = vsel %vm289, %v5282, 0.0
        %v5331 = vsel %vm290, %v5283, 0.0
        %v5332 = vsel %vm291, %v5284, 0.0
        %v5333 = vsel %vm289, %v5285, 0.0
        %v5334 = vsel %vm290, %v5286, 0.0
        %v5335 = vsel %vm291, %v5287, 0.0
        %v5336 = vsel %vm289, %v5288, 0.0
        %v5337 = vsel %vm290, %v5289, 0.0
        %v5338 = vsel %vm291, %v5290, 0.0
        %v5339 = vsel %vm289, %v5291, 0.0
        %v5340 = vsel %vm290, %v5292, 0.0
        %v5341 = vsel %vm291, %v5293, 0.0
        %v5342 = vsel %vm289, %v5294, 0.0
        %v5343 = vsel %vm290, %v5295, 0.0
        %v5344 = vsel %vm291, %v5296, 0.0
        %v5345 = vsel %vm289, %v5297, 0.0
        %v5346 = vsel %vm290, %v5298, 0.0
        %v5347 = vsel %vm291, %v5299, 0.0
        %v5348 = vsel %vm289, %v5300, 0.0
        %v5349 = vsel %vm290, %v5301, 0.0
        %v5350 = vsel %vm291, %v5302, 0.0
        %v5351 = vsel %vm289, %v5303, 0.0
        %v5352 = vsel %vm290, %v5304, 0.0
        %v5353 = vsel %vm291, %v5305, 0.0
        %v5354 = vpack.c.bf16 %v5307, %v5306
        %v5355 = vpack.c.bf16 %v5308, %v5308
        %v5356 = vpack.c.bf16 %v5310, %v5309
        %v5357 = vpack.c.bf16 %v5311, %v5311
        %v5358 = vpack.c.bf16 %v5313, %v5312
        %v5359 = vpack.c.bf16 %v5314, %v5314
        %v5360 = vpack.c.bf16 %v5316, %v5315
        %v5361 = vpack.c.bf16 %v5317, %v5317
        %v5362 = vpack.c.bf16 %v5319, %v5318
        %v5363 = vpack.c.bf16 %v5320, %v5320
        %v5364 = vpack.c.bf16 %v5322, %v5321
        %v5365 = vpack.c.bf16 %v5323, %v5323
        %v5366 = vpack.c.bf16 %v5325, %v5324
        %v5367 = vpack.c.bf16 %v5326, %v5326
        %v5368 = vpack.c.bf16 %v5328, %v5327
        %v5369 = vpack.c.bf16 %v5329, %v5329
        %v5370 = vpack.c.bf16 %v5331, %v5330
        %v5371 = vpack.c.bf16 %v5332, %v5332
        %v5372 = vpack.c.bf16 %v5334, %v5333
        %v5373 = vpack.c.bf16 %v5335, %v5335
        %v5374 = vpack.c.bf16 %v5337, %v5336
        %v5375 = vpack.c.bf16 %v5338, %v5338
        %v5376 = vpack.c.bf16 %v5340, %v5339
        %v5377 = vpack.c.bf16 %v5341, %v5341
        %v5378 = vpack.c.bf16 %v5343, %v5342
        %v5379 = vpack.c.bf16 %v5344, %v5344
        %v5380 = vpack.c.bf16 %v5346, %v5345
        %v5381 = vpack.c.bf16 %v5347, %v5347
        %v5382 = vpack.c.bf16 %v5349, %v5348
        %v5383 = vpack.c.bf16 %v5350, %v5350
        %v5384 = vpack.c.bf16 %v5352, %v5351
        %v5385 = vpack.c.bf16 %v5353, %v5353
        %v5418 = vunpack.c.l.b16 %v5354
        %v5419 = vunpack.c.h.b16 %v5354
        %v5420 = vunpack.c.l.b16 %v5355
        %v5421 = vunpack.c.l.b16 %v5356
        %v5422 = vunpack.c.h.b16 %v5356
        %v5423 = vunpack.c.l.b16 %v5357
        %v5424 = vunpack.c.l.b16 %v5358
        %v5425 = vunpack.c.h.b16 %v5358
        %v5426 = vunpack.c.l.b16 %v5359
        %v5427 = vunpack.c.l.b16 %v5360
        %v5428 = vunpack.c.h.b16 %v5360
        %v5429 = vunpack.c.l.b16 %v5361
        %v5430 = vunpack.c.l.b16 %v5362
        %v5431 = vunpack.c.h.b16 %v5362
        %v5432 = vunpack.c.l.b16 %v5363
        %v5433 = vunpack.c.l.b16 %v5364
        %v5434 = vunpack.c.h.b16 %v5364
        %v5435 = vunpack.c.l.b16 %v5365
        %v5436 = vunpack.c.l.b16 %v5366
        %v5437 = vunpack.c.h.b16 %v5366
        %v5438 = vunpack.c.l.b16 %v5367
        %v5439 = vunpack.c.l.b16 %v5368
        %v5440 = vunpack.c.h.b16 %v5368
        %v5441 = vunpack.c.l.b16 %v5369
        %v5442 = vunpack.c.l.b16 %v5370
        %v5443 = vunpack.c.h.b16 %v5370
        %v5444 = vunpack.c.l.b16 %v5371
        %v5445 = vunpack.c.l.b16 %v5372
        %v5446 = vunpack.c.h.b16 %v5372
        %v5447 = vunpack.c.l.b16 %v5373
        %v5448 = vunpack.c.l.b16 %v5374
        %v5449 = vunpack.c.h.b16 %v5374
        %v5450 = vunpack.c.l.b16 %v5375
        %v5451 = vunpack.c.l.b16 %v5376
        %v5452 = vunpack.c.h.b16 %v5376
        %v5453 = vunpack.c.l.b16 %v5377
        %v5454 = vunpack.c.l.b16 %v5378
        %v5455 = vunpack.c.h.b16 %v5378
        %v5456 = vunpack.c.l.b16 %v5379
        %v5457 = vunpack.c.l.b16 %v5380
        %v5458 = vunpack.c.h.b16 %v5380
        %v5459 = vunpack.c.l.b16 %v5381
        %v5460 = vunpack.c.l.b16 %v5382
        %v5461 = vunpack.c.h.b16 %v5382
        %v5462 = vunpack.c.l.b16 %v5383
        %v5463 = vunpack.c.l.b16 %v5384
        %v5464 = vunpack.c.h.b16 %v5384
        %v5465 = vunpack.c.l.b16 %v5385
        %v5466 = vpack.c.b16 %v5419, %v5418
        %v5467 = vpack.c.b16 %v5421, %v5420
        %v5468 = vpack.c.b16 %v5423, %v5422
        %v5469 = vpack.c.b16 %v5425, %v5424
        %v5470 = vpack.c.b16 %v5427, %v5426
        %v5471 = vpack.c.b16 %v5429, %v5428
        %v5472 = vpack.c.b16 %v5431, %v5430
        %v5473 = vpack.c.b16 %v5433, %v5432
        %v5474 = vpack.c.b16 %v5435, %v5434
        %v5475 = vpack.c.b16 %v5437, %v5436
        %v5476 = vpack.c.b16 %v5439, %v5438
        %v5477 = vpack.c.b16 %v5441, %v5440
        %v5478 = vpack.c.b16 %v5443, %v5442
        %v5479 = vpack.c.b16 %v5445, %v5444
        %v5480 = vpack.c.b16 %v5447, %v5446
        %v5481 = vpack.c.b16 %v5449, %v5448
        %v5482 = vpack.c.b16 %v5451, %v5450
        %v5483 = vpack.c.b16 %v5453, %v5452
        %v5484 = vpack.c.b16 %v5455, %v5454
        %v5485 = vpack.c.b16 %v5457, %v5456
        %v5486 = vpack.c.b16 %v5459, %v5458
        %v5487 = vpack.c.b16 %v5461, %v5460
        %v5488 = vpack.c.b16 %v5463, %v5462
        %v5489 = vpack.c.b16 %v5465, %v5464
        %5514 = vst [vmem:[#allocation3 + $0x10] sm:$0xff] %v5466
        %5515 = vst [vmem:[#allocation3 + $0x18] sm:$0xff] %v5467
        %5516 = vst [vmem:[#allocation3 + $0x20] sm:$0xff] %v5468
        %5517 = vst [vmem:[#allocation3 + $0x28] sm:$0xff] %v5469
        %5518 = vst [vmem:[#allocation3 + $0x30] sm:$0xff] %v5470
        %5519 = vst [vmem:[#allocation3 + $0x38] sm:$0xff] %v5471
        %5520 = vst [vmem:[#allocation3 + $0x40] sm:$0xff] %v5472
        %5521 = vst [vmem:[#allocation3 + $0x48] sm:$0xff] %v5473
        %5522 = vst [vmem:[#allocation3 + $0x50] sm:$0xff] %v5474
        %5523 = vst [vmem:[#allocation3 + $0x58] sm:$0xff] %v5475
        %5524 = vst [vmem:[#allocation3 + $0x60] sm:$0xff] %v5476
        %5525 = vst [vmem:[#allocation3 + $0x68] sm:$0xff] %v5477
        %5526 = vst [vmem:[#allocation3 + $0x70] sm:$0xff] %v5478
        %5527 = vst [vmem:[#allocation3 + $0x78] sm:$0xff] %v5479
        %5528 = vst [vmem:[#allocation3 + $0x80] sm:$0xff] %v5480
        %5529 = vst [vmem:[#allocation3 + $0x88] sm:$0xff] %v5481
        %5530 = vst [vmem:[#allocation3 + $0x90] sm:$0xff] %v5482
        %5531 = vst [vmem:[#allocation3 + $0x98] sm:$0xff] %v5483
        %5532 = vst [vmem:[#allocation3 + $0xa0] sm:$0xff] %v5484
        %5533 = vst [vmem:[#allocation3 + $0xa8] sm:$0xff] %v5485
        %5534 = vst [vmem:[#allocation3 + $0xb0] sm:$0xff] %v5486
        %5535 = vst [vmem:[#allocation3 + $0xb8] sm:$0xff] %v5487
        %5536 = vst [vmem:[#allocation3 + $0xc0] sm:$0xff] %v5488
        %5537 = vst [vmem:[#allocation3 + $0xc8] sm:$0xff] %v5489
        %v5538 = vld [vmem:[#allocation3] sm:$0xf8]
        %v5539 = vld [vmem:[#allocation3 + $0x8] sm:$0xff]
        %v5540 = vld [vmem:[#allocation3 + $0x10] sm:$0xff]
        %v5541 = vld [vmem:[#allocation3 + $0x18] sm:$0xff]
        %v5542 = vld [vmem:[#allocation3 + $0x20] sm:$0xff]
        %v5543 = vld [vmem:[#allocation3 + $0x28] sm:$0xff]
        %v5544 = vld [vmem:[#allocation3 + $0x30] sm:$0xff]
        %v5545 = vld [vmem:[#allocation3 + $0x38] sm:$0xff]
        %v5546 = vld [vmem:[#allocation3 + $0x40] sm:$0xff]
        %v5547 = vld [vmem:[#allocation3 + $0x48] sm:$0xff]
        %v5548 = vld [vmem:[#allocation3 + $0x50] sm:$0xff]
        %v5549 = vld [vmem:[#allocation3 + $0x58] sm:$0xff]
        %v5550 = vld [vmem:[#allocation3 + $0x60] sm:$0xff]
        %v5551 = vld [vmem:[#allocation3 + $0x68] sm:$0xff]
        %v5552 = vld [vmem:[#allocation3 + $0x70] sm:$0xff]
        %v5553 = vld [vmem:[#allocation3 + $0x78] sm:$0xff]
        %v5554 = vld [vmem:[#allocation3 + $0x80] sm:$0xff]
        %v5555 = vld [vmem:[#allocation3 + $0x88] sm:$0xff]
        %v5556 = vld [vmem:[#allocation3 + $0x90] sm:$0xff]
        %v5557 = vld [vmem:[#allocation3 + $0x98] sm:$0xff]
        %v5558 = vld [vmem:[#allocation3 + $0xa0] sm:$0xff]
        %v5559 = vld [vmem:[#allocation3 + $0xa8] sm:$0xff]
        %v5560 = vld [vmem:[#allocation3 + $0xb0] sm:$0xff]
        %v5561 = vld [vmem:[#allocation3 + $0xb8] sm:$0xff]
        %v5562 = vld [vmem:[#allocation3 + $0xc0] sm:$0xf]
        %s5563 = smul.addr %s756, 4
        %s5564 = scalar_lea.vmem [#allocation9], %s5563
        %v5565 = vld [vmem:[%s5564] sm:$0xf]
        %v5566 = vld [vmem:[%s5564 + $0x4] sm:$0xf]
        %v5567 = vld [vmem:[%s5564 + $0x8] sm:$0xf]
        %v5568 = vld [vmem:[%s5564 + $0xc] sm:$0xf]
        %v5569 = vld [vmem:[%s5564 + $0x10] sm:$0xf]
        %v5570 = vld [vmem:[%s5564 + $0x14] sm:$0xf]
        %v5571 = vld [vmem:[%s5564 + $0x18] sm:$0xf]
        %v5572 = vld [vmem:[%s5564 + $0x1c] sm:$0xf]
        %v5573 = vld [vmem:[%s5564 + $0x20] sm:$0xf]
        %v5574 = vld [vmem:[%s5564 + $0x24] sm:$0xf]
        %v5575 = vld [vmem:[%s5564 + $0x28] sm:$0xf]
        %v5576 = vld [vmem:[%s5564 + $0x2c] sm:$0xf]
        %v5577 = vld [vmem:[%s5564 + $0x30] sm:$0xf]
        %v5578 = vld [vmem:[%s5564 + $0x34] sm:$0xf]
        %v5579 = vld [vmem:[%s5564 + $0x38] sm:$0xf]
        %v5580 = vld [vmem:[%s5564 + $0x3c] sm:$0xf]
        %v5581 = vld [vmem:[#allocation3] sm:$0xf0]
        %s5582 = smul.addr %s776, 4
        %s5583 = scalar_lea.vmem [#allocation9], %s5582
        %v5584 = vld [vmem:[%s5583] sm:$0xf]
        %v5585 = vld [vmem:[%s5583 + $0x4] sm:$0xf]
        %v5586 = vld [vmem:[%s5583 + $0x8] sm:$0xf]
        %v5587 = vld [vmem:[%s5583 + $0xc] sm:$0xf]
        %v5588 = vld [vmem:[%s5583 + $0x10] sm:$0xf]
        %v5589 = vld [vmem:[%s5583 + $0x14] sm:$0xf]
        %v5590 = vld [vmem:[%s5583 + $0x18] sm:$0xf]
        %v5591 = vld [vmem:[%s5583 + $0x1c] sm:$0xf]
        %v5592 = vld [vmem:[%s5583 + $0x20] sm:$0xf]
        %v5593 = vld [vmem:[%s5583 + $0x24] sm:$0xf]
        %v5594 = vld [vmem:[%s5583 + $0x28] sm:$0xf]
        %v5595 = vld [vmem:[%s5583 + $0x2c] sm:$0xf]
        %v5596 = vld [vmem:[%s5583 + $0x30] sm:$0xf]
        %v5597 = vld [vmem:[%s5583 + $0x34] sm:$0xf]
        %v5598 = vld [vmem:[%s5583 + $0x38] sm:$0xf]
        %v5599 = vld [vmem:[%s5583 + $0x3c] sm:$0xf]
        %v5625 = vrot.slane %v5581, 4
        %v5626 = vrot.slane %v5539, 4
        %v5627 = vsel %vm820, %v5625, %v5626
        %v5628 = vrot.slane %v5540, 4
        %v5629 = vsel %vm820, %v5626, %v5628
        %v5630 = vrot.slane %v5541, 4
        %v5631 = vsel %vm820, %v5628, %v5630
        %v5632 = vrot.slane %v5542, 4
        %v5633 = vsel %vm820, %v5630, %v5632
        %v5634 = vrot.slane %v5543, 4
        %v5635 = vsel %vm820, %v5632, %v5634
        %v5636 = vrot.slane %v5544, 4
        %v5637 = vsel %vm820, %v5634, %v5636
        %v5638 = vrot.slane %v5545, 4
        %v5639 = vsel %vm820, %v5636, %v5638
        %v5640 = vrot.slane %v5546, 4
        %v5641 = vsel %vm820, %v5638, %v5640
        %v5642 = vrot.slane %v5547, 4
        %v5643 = vsel %vm820, %v5640, %v5642
        %v5644 = vrot.slane %v5548, 4
        %v5645 = vsel %vm820, %v5642, %v5644
        %v5646 = vrot.slane %v5549, 4
        %v5647 = vsel %vm820, %v5644, %v5646
        %v5648 = vrot.slane %v5550, 4
        %v5649 = vsel %vm820, %v5646, %v5648
        %v5650 = vrot.slane %v5551, 4
        %v5651 = vsel %vm820, %v5648, %v5650
        %v5652 = vrot.slane %v5552, 4
        %v5653 = vsel %vm820, %v5650, %v5652
        %v5654 = vrot.slane %v5553, 4
        %v5655 = vsel %vm820, %v5652, %v5654
        %v5656 = vrot.slane %v5554, 4
        %v5657 = vsel %vm820, %v5654, %v5656
        %v5658 = vrot.slane %v5555, 4
        %v5659 = vsel %vm820, %v5656, %v5658
        %v5660 = vrot.slane %v5556, 4
        %v5661 = vsel %vm820, %v5658, %v5660
        %v5662 = vrot.slane %v5557, 4
        %v5663 = vsel %vm820, %v5660, %v5662
        %v5664 = vrot.slane %v5558, 4
        %v5665 = vsel %vm820, %v5662, %v5664
        %v5666 = vrot.slane %v5559, 4
        %v5667 = vsel %vm820, %v5664, %v5666
        %v5668 = vrot.slane %v5560, 4
        %v5669 = vsel %vm820, %v5666, %v5668
        %v5670 = vrot.slane %v5561, 4
        %v5671 = vsel %vm820, %v5668, %v5670
        %v5672 = vrot.slane %v5562, 4
        %v5673 = vsel %vm820, %v5670, %v5672
        %v5714 = vunpack.c.l.b16 %v5584
        %v5715 = vunpack.c.l.b16 %v5585
        %v5716 = vunpack.c.l.b16 %v5586
        %v5717 = vunpack.c.l.b16 %v5587
        %v5718 = vunpack.c.l.b16 %v5588
        %v5719 = vunpack.c.l.b16 %v5589
        %v5720 = vunpack.c.l.b16 %v5590
        %v5721 = vunpack.c.l.b16 %v5591
        %v5722 = vunpack.c.l.b16 %v5592
        %v5723 = vunpack.c.l.b16 %v5593
        %v5724 = vunpack.c.l.b16 %v5594
        %v5725 = vunpack.c.l.b16 %v5595
        %v5726 = vunpack.c.l.b16 %v5596
        %v5727 = vunpack.c.l.b16 %v5597
        %v5728 = vunpack.c.l.b16 %v5598
        %v5729 = vunpack.c.l.b16 %v5599
        %v5730 = vpack.c.b16 %v5715, %v5714
        %v5731 = vpack.c.b16 %v5717, %v5716
        %v5732 = vpack.c.b16 %v5719, %v5718
        %v5733 = vpack.c.b16 %v5721, %v5720
        %v5734 = vpack.c.b16 %v5723, %v5722
        %v5735 = vpack.c.b16 %v5725, %v5724
        %v5736 = vpack.c.b16 %v5727, %v5726
        %v5737 = vpack.c.b16 %v5729, %v5728
        %5746 = vmatprep.subr.bf16.mxu0 0
        %5747 = vmatpush1.bf16.msra.mxu0 %v5730
        %5748 = vmatprep.subr.bf16.mxu0 0
        %5749 = vmatpush1.bf16.msra.mxu0 %v5731
        %5750 = vmatprep.subr.bf16.mxu0 0
        %5751 = vmatpush1.bf16.msra.mxu0 %v5732
        %5752 = vmatprep.subr.bf16.mxu0 0
        %5753 = vmatpush1.bf16.msra.mxu0 %v5733
        %5754 = vmatprep.subr.bf16.mxu0 0
        %5755 = vmatpush1.bf16.msra.mxu0 %v5734
        %5756 = vmatprep.subr.bf16.mxu0 0
        %5757 = vmatpush1.bf16.msra.mxu0 %v5735
        %5758 = vmatprep.subr.bf16.mxu0 0
        %5759 = vmatpush1.bf16.msra.mxu0 %v5736
        %5760 = vmatprep.subr.bf16.mxu0 0
        %5761 = vmatpush1.bf16.msra.mxu0 %v5737
        %5762 = vmatprep.subr.bf16.mxu0 0
        %5763 = vmatpush1.bf16.msra.mxu0 0
        %5764 = vmatprep.subr.bf16.mxu0 0
        %5765 = vmatpush1.bf16.msra.mxu0 0
        %5766 = vmatprep.subr.bf16.mxu0 0
        %5767 = vmatpush1.bf16.msra.mxu0 0
        %5768 = vmatprep.subr.bf16.mxu0 0
        %5769 = vmatpush1.bf16.msra.mxu0 0
        %5770 = vmatprep.subr.bf16.mxu0 0
        %5771 = vmatpush1.bf16.msra.mxu0 0
        %5772 = vmatprep.subr.bf16.mxu0 0
        %5773 = vmatpush1.bf16.msra.mxu0 0
        %5774 = vmatprep.subr.bf16.mxu0 0
        %5775 = vmatpush1.bf16.msra.mxu0 0
        %5776 = vmatprep.subr.bf16.mxu0 0
        %5777 = vmatpush1.bf16.msra.mxu0 0
        %5778 = vmatprep.mubr.bf16.mxu0 0
        %5779 = vmatmul.mubr.bf16.gmra.mrb[0].mxu0 %v5627
        %v5780 = vpop.f32.mrb[0].mxu0
        %v5781 = vadd.f32 0.0, %v5780
        %v5782 = vpop.f32.mrb[0].mxu0
        %v5783 = vpop.f32.mrb[0].mxu0
        %v5784 = vadd.f32 0.0, %v5783
        %v5785 = vpop.f32.mrb[0].mxu0
        %5786 = vmatprep.mubr.bf16.mxu0 0
        %5787 = vmatmul.mubr.bf16.gmra.mrb[0].mxu0 %v5629
        %v5788 = vpop.f32.mrb[0].mxu0
        %v5789 = vadd.f32 0.0, %v5788
        %v5790 = vpop.f32.mrb[0].mxu0
        %v5791 = vpop.f32.mrb[0].mxu0
        %v5792 = vadd.f32 0.0, %v5791
        %v5793 = vpop.f32.mrb[0].mxu0
        %5794 = vmatprep.mubr.bf16.mxu0 0
        %5795 = vmatmul.mubr.bf16.gmra.mrb[0].mxu0 %v5631
        %v5796 = vpop.f32.mrb[0].mxu0
        %v5797 = vadd.f32 0.0, %v5796
        %v5798 = vpop.f32.mrb[0].mxu0
        %v5799 = vpop.f32.mrb[0].mxu0
        %v5800 = vadd.f32 0.0, %v5799
        %v5801 = vpop.f32.mrb[0].mxu0
        %5802 = vmatprep.mubr.bf16.mxu0 0
        %5803 = vmatmul.mubr.bf16.gmra.mrb[0].mxu0 %v5633
        %v5804 = vpop.f32.mrb[0].mxu0
        %v5805 = vadd.f32 0.0, %v5804
        %v5806 = vpop.f32.mrb[0].mxu0
        %v5807 = vpop.f32.mrb[0].mxu0
        %v5808 = vadd.f32 0.0, %v5807
        %v5809 = vpop.f32.mrb[0].mxu0
        %5810 = vmatprep.mubr.bf16.mxu0 0
        %5811 = vmatmul.mubr.bf16.gmra.mrb[0].mxu0 %v5635
        %v5812 = vpop.f32.mrb[0].mxu0
        %v5813 = vadd.f32 0.0, %v5812
        %v5814 = vpop.f32.mrb[0].mxu0
        %v5815 = vpop.f32.mrb[0].mxu0
        %v5816 = vadd.f32 0.0, %v5815
        %v5817 = vpop.f32.mrb[0].mxu0
        %5818 = vmatprep.mubr.bf16.mxu0 0
        %5819 = vmatmul.mubr.bf16.gmra.mrb[0].mxu0 %v5637
        %v5820 = vpop.f32.mrb[0].mxu0
        %v5821 = vadd.f32 0.0, %v5820
        %v5822 = vpop.f32.mrb[0].mxu0
        %v5823 = vpop.f32.mrb[0].mxu0
        %v5824 = vadd.f32 0.0, %v5823
        %v5825 = vpop.f32.mrb[0].mxu0
        %5826 = vmatprep.mubr.bf16.mxu0 0
        %5827 = vmatmul.mubr.bf16.gmra.mrb[0].mxu0 %v5639
        %v5828 = vpop.f32.mrb[0].mxu0
        %v5829 = vadd.f32 0.0, %v5828
        %v5830 = vpop.f32.mrb[0].mxu0
        %v5831 = vpop.f32.mrb[0].mxu0
        %v5832 = vadd.f32 0.0, %v5831
        %v5833 = vpop.f32.mrb[0].mxu0
        %5834 = vmatprep.mubr.bf16.mxu0 0
        %5835 = vmatmul.mubr.bf16.gmra.mrb[0].mxu0 %v5641
        %v5836 = vpop.f32.mrb[0].mxu0
        %v5837 = vadd.f32 0.0, %v5836
        %v5838 = vpop.f32.mrb[0].mxu0
        %v5839 = vpop.f32.mrb[0].mxu0
        %v5840 = vadd.f32 0.0, %v5839
        %v5841 = vpop.f32.mrb[0].mxu0
        %5842 = vmatprep.mubr.bf16.mxu0 0
        %5843 = vmatmul.mubr.bf16.gmra.mrb[0].mxu0 %v5643
        %v5844 = vpop.f32.mrb[0].mxu0
        %v5845 = vadd.f32 0.0, %v5844
        %v5846 = vpop.f32.mrb[0].mxu0
        %v5847 = vpop.f32.mrb[0].mxu0
        %v5848 = vadd.f32 0.0, %v5847
        %v5849 = vpop.f32.mrb[0].mxu0
        %5850 = vmatprep.mubr.bf16.mxu0 0
        %5851 = vmatmul.mubr.bf16.gmra.mrb[0].mxu0 %v5645
        %v5852 = vpop.f32.mrb[0].mxu0
        %v5853 = vadd.f32 0.0, %v5852
        %v5854 = vpop.f32.mrb[0].mxu0
        %v5855 = vpop.f32.mrb[0].mxu0
        %v5856 = vadd.f32 0.0, %v5855
        %v5857 = vpop.f32.mrb[0].mxu0
        %5858 = vmatprep.mubr.bf16.mxu0 0
        %5859 = vmatmul.mubr.bf16.gmra.mrb[0].mxu0 %v5647
        %v5860 = vpop.f32.mrb[0].mxu0
        %v5861 = vadd.f32 0.0, %v5860
        %v5862 = vpop.f32.mrb[0].mxu0
        %v5863 = vpop.f32.mrb[0].mxu0
        %v5864 = vadd.f32 0.0, %v5863
        %v5865 = vpop.f32.mrb[0].mxu0
        %5866 = vmatprep.mubr.bf16.mxu0 0
        %5867 = vmatmul.mubr.bf16.gmra.mrb[0].mxu0 %v5649
        %v5868 = vpop.f32.mrb[0].mxu0
        %v5869 = vadd.f32 0.0, %v5868
        %v5870 = vpop.f32.mrb[0].mxu0
        %v5871 = vpop.f32.mrb[0].mxu0
        %v5872 = vadd.f32 0.0, %v5871
        %v5873 = vpop.f32.mrb[0].mxu0
        %5874 = vmatprep.mubr.bf16.mxu0 0
        %5875 = vmatmul.mubr.bf16.gmra.mrb[0].mxu0 %v5651
        %v5876 = vpop.f32.mrb[0].mxu0
        %v5877 = vadd.f32 0.0, %v5876
        %v5878 = vpop.f32.mrb[0].mxu0
        %v5879 = vpop.f32.mrb[0].mxu0
        %v5880 = vadd.f32 0.0, %v5879
        %v5881 = vpop.f32.mrb[0].mxu0
        %5882 = vmatprep.mubr.bf16.mxu0 0
        %5883 = vmatmul.mubr.bf16.gmra.mrb[0].mxu0 %v5653
        %v5884 = vpop.f32.mrb[0].mxu0
        %v5885 = vadd.f32 0.0, %v5884
        %v5886 = vpop.f32.mrb[0].mxu0
        %v5887 = vpop.f32.mrb[0].mxu0
        %v5888 = vadd.f32 0.0, %v5887
        %v5889 = vpop.f32.mrb[0].mxu0
        %5890 = vmatprep.mubr.bf16.mxu0 0
        %5891 = vmatmul.mubr.bf16.gmra.mrb[0].mxu0 %v5655
        %v5892 = vpop.f32.mrb[0].mxu0
        %v5893 = vadd.f32 0.0, %v5892
        %v5894 = vpop.f32.mrb[0].mxu0
        %v5895 = vpop.f32.mrb[0].mxu0
        %v5896 = vadd.f32 0.0, %v5895
        %v5897 = vpop.f32.mrb[0].mxu0
        %5898 = vmatprep.mubr.bf16.mxu0 0
        %5899 = vmatmul.mubr.bf16.gmra.mrb[0].mxu0 %v5657
        %v5900 = vpop.f32.mrb[0].mxu0
        %v5901 = vadd.f32 0.0, %v5900
        %v5902 = vpop.f32.mrb[0].mxu0
        %v5903 = vpop.f32.mrb[0].mxu0
        %v5904 = vadd.f32 0.0, %v5903
        %v5905 = vpop.f32.mrb[0].mxu0
        %5906 = vmatprep.mubr.bf16.mxu0 0
        %5907 = vmatmul.mubr.bf16.gmra.mrb[0].mxu0 %v5659
        %v5908 = vpop.f32.mrb[0].mxu0
        %v5909 = vadd.f32 0.0, %v5908
        %v5910 = vpop.f32.mrb[0].mxu0
        %v5911 = vpop.f32.mrb[0].mxu0
        %v5912 = vadd.f32 0.0, %v5911
        %v5913 = vpop.f32.mrb[0].mxu0
        %5914 = vmatprep.mubr.bf16.mxu0 0
        %5915 = vmatmul.mubr.bf16.gmra.mrb[0].mxu0 %v5661
        %v5916 = vpop.f32.mrb[0].mxu0
        %v5917 = vadd.f32 0.0, %v5916
        %v5918 = vpop.f32.mrb[0].mxu0
        %v5919 = vpop.f32.mrb[0].mxu0
        %v5920 = vadd.f32 0.0, %v5919
        %v5921 = vpop.f32.mrb[0].mxu0
        %5922 = vmatprep.mubr.bf16.mxu0 0
        %5923 = vmatmul.mubr.bf16.gmra.mrb[0].mxu0 %v5663
        %v5924 = vpop.f32.mrb[0].mxu0
        %v5925 = vadd.f32 0.0, %v5924
        %v5926 = vpop.f32.mrb[0].mxu0
        %v5927 = vpop.f32.mrb[0].mxu0
        %v5928 = vadd.f32 0.0, %v5927
        %v5929 = vpop.f32.mrb[0].mxu0
        %5930 = vmatprep.mubr.bf16.mxu0 0
        %5931 = vmatmul.mubr.bf16.gmra.mrb[0].mxu0 %v5665
        %v5932 = vpop.f32.mrb[0].mxu0
        %v5933 = vadd.f32 0.0, %v5932
        %v5934 = vpop.f32.mrb[0].mxu0
        %v5935 = vpop.f32.mrb[0].mxu0
        %v5936 = vadd.f32 0.0, %v5935
        %v5937 = vpop.f32.mrb[0].mxu0
        %5938 = vmatprep.mubr.bf16.mxu0 0
        %5939 = vmatmul.mubr.bf16.gmra.mrb[0].mxu0 %v5667
        %v5940 = vpop.f32.mrb[0].mxu0
        %v5941 = vadd.f32 0.0, %v5940
        %v5942 = vpop.f32.mrb[0].mxu0
        %v5943 = vpop.f32.mrb[0].mxu0
        %v5944 = vadd.f32 0.0, %v5943
        %v5945 = vpop.f32.mrb[0].mxu0
        %5946 = vmatprep.mubr.bf16.mxu0 0
        %5947 = vmatmul.mubr.bf16.gmra.mrb[0].mxu0 %v5669
        %v5948 = vpop.f32.mrb[0].mxu0
        %v5949 = vadd.f32 0.0, %v5948
        %v5950 = vpop.f32.mrb[0].mxu0
        %v5951 = vpop.f32.mrb[0].mxu0
        %v5952 = vadd.f32 0.0, %v5951
        %v5953 = vpop.f32.mrb[0].mxu0
        %5954 = vmatprep.mubr.bf16.mxu0 0
        %5955 = vmatmul.mubr.bf16.gmra.mrb[0].mxu0 %v5671
        %v5956 = vpop.f32.mrb[0].mxu0
        %v5957 = vadd.f32 0.0, %v5956
        %v5958 = vpop.f32.mrb[0].mxu0
        %v5959 = vpop.f32.mrb[0].mxu0
        %v5960 = vadd.f32 0.0, %v5959
        %v5961 = vpop.f32.mrb[0].mxu0
        %5962 = vmatprep.mubr.bf16.mxu0 0
        %5963 = vmatmul.mubr.bf16.gmra.mrb[0].mxu0 %v5673
        %v5964 = vpop.f32.mrb[0].mxu0
        %v5965 = vadd.f32 0.0, %v5964
        %v5966 = vpop.f32.mrb[0].mxu0
        %v5967 = vpop.f32.mrb[0].mxu0
        %v5968 = vadd.f32 0.0, %v5967
        %v5969 = vpop.f32.mrb[0].mxu0
        %5970 = vdwg.mxu0
        %v5972 = vshrl.u32 %v5538, 16
        %v5974 = vrot.slane %v5972, 3
        %v5975 = vshll.u32 %v5538, 16
        %v5977 = vrot.slane %v5975, 4
        %v5978 = vor.u32 %v5974, %v5977
        %v5980 = vshrl.u32 %v5539, 16
        %v5982 = vrot.slane %v5980, 3
        %v5983 = vshll.u32 %v5539, 16
        %v5985 = vrot.slane %v5983, 4
        %v5986 = vor.u32 %v5982, %v5985
        %v5987 = vsel %vm1167, %v5978, %v5986
        %v5989 = vshrl.u32 %v5540, 16
        %v5991 = vrot.slane %v5989, 3
        %v5992 = vshll.u32 %v5540, 16
        %v5994 = vrot.slane %v5992, 4
        %v5995 = vor.u32 %v5991, %v5994
        %v5996 = vsel %vm1167, %v5986, %v5995
        %v5998 = vshrl.u32 %v5541, 16
        %v6000 = vrot.slane %v5998, 3
        %v6001 = vshll.u32 %v5541, 16
        %v6003 = vrot.slane %v6001, 4
        %v6004 = vor.u32 %v6000, %v6003
        %v6005 = vsel %vm1167, %v5995, %v6004
        %v6007 = vshrl.u32 %v5542, 16
        %v6009 = vrot.slane %v6007, 3
        %v6010 = vshll.u32 %v5542, 16
        %v6012 = vrot.slane %v6010, 4
        %v6013 = vor.u32 %v6009, %v6012
        %v6014 = vsel %vm1167, %v6004, %v6013
        %v6016 = vshrl.u32 %v5543, 16
        %v6018 = vrot.slane %v6016, 3
        %v6019 = vshll.u32 %v5543, 16
        %v6021 = vrot.slane %v6019, 4
        %v6022 = vor.u32 %v6018, %v6021
        %v6023 = vsel %vm1167, %v6013, %v6022
        %v6025 = vshrl.u32 %v5544, 16
        %v6027 = vrot.slane %v6025, 3
        %v6028 = vshll.u32 %v5544, 16
        %v6030 = vrot.slane %v6028, 4
        %v6031 = vor.u32 %v6027, %v6030
        %v6032 = vsel %vm1167, %v6022, %v6031
        %v6034 = vshrl.u32 %v5545, 16
        %v6036 = vrot.slane %v6034, 3
        %v6037 = vshll.u32 %v5545, 16
        %v6039 = vrot.slane %v6037, 4
        %v6040 = vor.u32 %v6036, %v6039
        %v6041 = vsel %vm1167, %v6031, %v6040
        %v6043 = vshrl.u32 %v5546, 16
        %v6045 = vrot.slane %v6043, 3
        %v6046 = vshll.u32 %v5546, 16
        %v6048 = vrot.slane %v6046, 4
        %v6049 = vor.u32 %v6045, %v6048
        %v6050 = vsel %vm1167, %v6040, %v6049
        %v6052 = vshrl.u32 %v5547, 16
        %v6054 = vrot.slane %v6052, 3
        %v6055 = vshll.u32 %v5547, 16
        %v6057 = vrot.slane %v6055, 4
        %v6058 = vor.u32 %v6054, %v6057
        %v6059 = vsel %vm1167, %v6049, %v6058
        %v6061 = vshrl.u32 %v5548, 16
        %v6063 = vrot.slane %v6061, 3
        %v6064 = vshll.u32 %v5548, 16
        %v6066 = vrot.slane %v6064, 4
        %v6067 = vor.u32 %v6063, %v6066
        %v6068 = vsel %vm1167, %v6058, %v6067
        %v6070 = vshrl.u32 %v5549, 16
        %v6072 = vrot.slane %v6070, 3
        %v6073 = vshll.u32 %v5549, 16
        %v6075 = vrot.slane %v6073, 4
        %v6076 = vor.u32 %v6072, %v6075
        %v6077 = vsel %vm1167, %v6067, %v6076
        %v6079 = vshrl.u32 %v5550, 16
        %v6081 = vrot.slane %v6079, 3
        %v6082 = vshll.u32 %v5550, 16
        %v6084 = vrot.slane %v6082, 4
        %v6085 = vor.u32 %v6081, %v6084
        %v6086 = vsel %vm1167, %v6076, %v6085
        %v6088 = vshrl.u32 %v5551, 16
        %v6090 = vrot.slane %v6088, 3
        %v6091 = vshll.u32 %v5551, 16
        %v6093 = vrot.slane %v6091, 4
        %v6094 = vor.u32 %v6090, %v6093
        %v6095 = vsel %vm1167, %v6085, %v6094
        %v6097 = vshrl.u32 %v5552, 16
        %v6099 = vrot.slane %v6097, 3
        %v6100 = vshll.u32 %v5552, 16
        %v6102 = vrot.slane %v6100, 4
        %v6103 = vor.u32 %v6099, %v6102
        %v6104 = vsel %vm1167, %v6094, %v6103
        %v6106 = vshrl.u32 %v5553, 16
        %v6108 = vrot.slane %v6106, 3
        %v6109 = vshll.u32 %v5553, 16
        %v6111 = vrot.slane %v6109, 4
        %v6112 = vor.u32 %v6108, %v6111
        %v6113 = vsel %vm1167, %v6103, %v6112
        %v6115 = vshrl.u32 %v5554, 16
        %v6117 = vrot.slane %v6115, 3
        %v6118 = vshll.u32 %v5554, 16
        %v6120 = vrot.slane %v6118, 4
        %v6121 = vor.u32 %v6117, %v6120
        %v6122 = vsel %vm1167, %v6112, %v6121
        %v6124 = vshrl.u32 %v5555, 16
        %v6126 = vrot.slane %v6124, 3
        %v6127 = vshll.u32 %v5555, 16
        %v6129 = vrot.slane %v6127, 4
        %v6130 = vor.u32 %v6126, %v6129
        %v6131 = vsel %vm1167, %v6121, %v6130
        %v6133 = vshrl.u32 %v5556, 16
        %v6135 = vrot.slane %v6133, 3
        %v6136 = vshll.u32 %v5556, 16
        %v6138 = vrot.slane %v6136, 4
        %v6139 = vor.u32 %v6135, %v6138
        %v6140 = vsel %vm1167, %v6130, %v6139
        %v6142 = vshrl.u32 %v5557, 16
        %v6144 = vrot.slane %v6142, 3
        %v6145 = vshll.u32 %v5557, 16
        %v6147 = vrot.slane %v6145, 4
        %v6148 = vor.u32 %v6144, %v6147
        %v6149 = vsel %vm1167, %v6139, %v6148
        %v6151 = vshrl.u32 %v5558, 16
        %v6153 = vrot.slane %v6151, 3
        %v6154 = vshll.u32 %v5558, 16
        %v6156 = vrot.slane %v6154, 4
        %v6157 = vor.u32 %v6153, %v6156
        %v6158 = vsel %vm1167, %v6148, %v6157
        %v6160 = vshrl.u32 %v5559, 16
        %v6162 = vrot.slane %v6160, 3
        %v6163 = vshll.u32 %v5559, 16
        %v6165 = vrot.slane %v6163, 4
        %v6166 = vor.u32 %v6162, %v6165
        %v6167 = vsel %vm1167, %v6157, %v6166
        %v6169 = vshrl.u32 %v5560, 16
        %v6171 = vrot.slane %v6169, 3
        %v6172 = vshll.u32 %v5560, 16
        %v6174 = vrot.slane %v6172, 4
        %v6175 = vor.u32 %v6171, %v6174
        %v6176 = vsel %vm1167, %v6166, %v6175
        %v6178 = vshrl.u32 %v5561, 16
        %v6180 = vrot.slane %v6178, 3
        %v6181 = vshll.u32 %v5561, 16
        %v6183 = vrot.slane %v6181, 4
        %v6184 = vor.u32 %v6180, %v6183
        %v6185 = vsel %vm1167, %v6175, %v6184
        %v6187 = vshrl.u32 %v5562, 16
        %v6189 = vrot.slane %v6187, 3
        %v6190 = vshll.u32 %v5562, 16
        %v6192 = vrot.slane %v6190, 4
        %v6193 = vor.u32 %v6189, %v6192
        %v6194 = vsel %vm1167, %v6184, %v6193
        %v6235 = vunpack.c.l.b16 %v5565
        %v6236 = vunpack.c.l.b16 %v5566
        %v6237 = vunpack.c.l.b16 %v5567
        %v6238 = vunpack.c.l.b16 %v5568
        %v6239 = vunpack.c.l.b16 %v5569
        %v6240 = vunpack.c.l.b16 %v5570
        %v6241 = vunpack.c.l.b16 %v5571
        %v6242 = vunpack.c.l.b16 %v5572
        %v6243 = vunpack.c.l.b16 %v5573
        %v6244 = vunpack.c.l.b16 %v5574
        %v6245 = vunpack.c.l.b16 %v5575
        %v6246 = vunpack.c.l.b16 %v5576
        %v6247 = vunpack.c.l.b16 %v5577
        %v6248 = vunpack.c.l.b16 %v5578
        %v6249 = vunpack.c.l.b16 %v5579
        %v6250 = vunpack.c.l.b16 %v5580
        %v6251 = vpack.c.b16 %v6236, %v6235
        %v6252 = vpack.c.b16 %v6238, %v6237
        %v6253 = vpack.c.b16 %v6240, %v6239
        %v6254 = vpack.c.b16 %v6242, %v6241
        %v6255 = vpack.c.b16 %v6244, %v6243
        %v6256 = vpack.c.b16 %v6246, %v6245
        %v6257 = vpack.c.b16 %v6248, %v6247
        %v6258 = vpack.c.b16 %v6250, %v6249
        %6267 = vmatprep.subr.bf16.mxu0 0
        %6268 = vmatpush1.bf16.msra.mxu0 %v6251
        %6269 = vmatprep.subr.bf16.mxu0 0
        %6270 = vmatpush1.bf16.msra.mxu0 %v6252
        %6271 = vmatprep.subr.bf16.mxu0 0
        %6272 = vmatpush1.bf16.msra.mxu0 %v6253
        %6273 = vmatprep.subr.bf16.mxu0 0
        %6274 = vmatpush1.bf16.msra.mxu0 %v6254
        %6275 = vmatprep.subr.bf16.mxu0 0
        %6276 = vmatpush1.bf16.msra.mxu0 %v6255
        %6277 = vmatprep.subr.bf16.mxu0 0
        %6278 = vmatpush1.bf16.msra.mxu0 %v6256
        %6279 = vmatprep.subr.bf16.mxu0 0
        %6280 = vmatpush1.bf16.msra.mxu0 %v6257
        %6281 = vmatprep.subr.bf16.mxu0 0
        %6282 = vmatpush1.bf16.msra.mxu0 %v6258
        %6283 = vmatprep.subr.bf16.mxu0 0
        %6284 = vmatpush1.bf16.msra.mxu0 0
        %6285 = vmatprep.subr.bf16.mxu0 0
        %6286 = vmatpush1.bf16.msra.mxu0 0
        %6287 = vmatprep.subr.bf16.mxu0 0
        %6288 = vmatpush1.bf16.msra.mxu0 0
        %6289 = vmatprep.subr.bf16.mxu0 0
        %6290 = vmatpush1.bf16.msra.mxu0 0
        %6291 = vmatprep.subr.bf16.mxu0 0
        %6292 = vmatpush1.bf16.msra.mxu0 0
        %6293 = vmatprep.subr.bf16.mxu0 0
        %6294 = vmatpush1.bf16.msra.mxu0 0
        %6295 = vmatprep.subr.bf16.mxu0 0
        %6296 = vmatpush1.bf16.msra.mxu0 0
        %6297 = vmatprep.subr.bf16.mxu0 0
        %6298 = vmatpush1.bf16.msra.mxu0 0
        %6299 = vmatprep.mubr.bf16.mxu0 0
        %6300 = vmatmul.mubr.bf16.gmra.mrb[0].mxu0 %v5987
        %v6301 = vpop.f32.mrb[0].mxu0
        %v6302 = vadd.f32 %v5781, %v6301
        %v6303 = vpop.f32.mrb[0].mxu0
        %v6304 = vpop.f32.mrb[0].mxu0
        %v6305 = vadd.f32 %v5784, %v6304
        %v6306 = vpop.f32.mrb[0].mxu0
        %6307 = vmatprep.mubr.bf16.mxu0 0
        %6308 = vmatmul.mubr.bf16.gmra.mrb[0].mxu0 %v5996
        %v6309 = vpop.f32.mrb[0].mxu0
        %v6310 = vadd.f32 %v5789, %v6309
        %v6311 = vpop.f32.mrb[0].mxu0
        %v6312 = vpop.f32.mrb[0].mxu0
        %v6313 = vadd.f32 %v5792, %v6312
        %v6314 = vpop.f32.mrb[0].mxu0
        %6315 = vmatprep.mubr.bf16.mxu0 0
        %6316 = vmatmul.mubr.bf16.gmra.mrb[0].mxu0 %v6005
        %v6317 = vpop.f32.mrb[0].mxu0
        %v6318 = vadd.f32 %v5797, %v6317
        %v6319 = vpop.f32.mrb[0].mxu0
        %v6320 = vpop.f32.mrb[0].mxu0
        %v6321 = vadd.f32 %v5800, %v6320
        %v6322 = vpop.f32.mrb[0].mxu0
        %6323 = vmatprep.mubr.bf16.mxu0 0
        %6324 = vmatmul.mubr.bf16.gmra.mrb[0].mxu0 %v6014
        %v6325 = vpop.f32.mrb[0].mxu0
        %v6326 = vadd.f32 %v5805, %v6325
        %v6327 = vpop.f32.mrb[0].mxu0
        %v6328 = vpop.f32.mrb[0].mxu0
        %v6329 = vadd.f32 %v5808, %v6328
        %v6330 = vpop.f32.mrb[0].mxu0
        %6331 = vmatprep.mubr.bf16.mxu0 0
        %6332 = vmatmul.mubr.bf16.gmra.mrb[0].mxu0 %v6023
        %v6333 = vpop.f32.mrb[0].mxu0
        %v6334 = vadd.f32 %v5813, %v6333
        %v6335 = vpop.f32.mrb[0].mxu0
        %v6336 = vpop.f32.mrb[0].mxu0
        %v6337 = vadd.f32 %v5816, %v6336
        %v6338 = vpop.f32.mrb[0].mxu0
        %6339 = vmatprep.mubr.bf16.mxu0 0
        %6340 = vmatmul.mubr.bf16.gmra.mrb[0].mxu0 %v6032
        %v6341 = vpop.f32.mrb[0].mxu0
        %v6342 = vadd.f32 %v5821, %v6341
        %v6343 = vpop.f32.mrb[0].mxu0
        %v6344 = vpop.f32.mrb[0].mxu0
        %v6345 = vadd.f32 %v5824, %v6344
        %v6346 = vpop.f32.mrb[0].mxu0
        %6347 = vmatprep.mubr.bf16.mxu0 0
        %6348 = vmatmul.mubr.bf16.gmra.mrb[0].mxu0 %v6041
        %v6349 = vpop.f32.mrb[0].mxu0
        %v6350 = vadd.f32 %v5829, %v6349
        %v6351 = vpop.f32.mrb[0].mxu0
        %v6352 = vpop.f32.mrb[0].mxu0
        %v6353 = vadd.f32 %v5832, %v6352
        %v6354 = vpop.f32.mrb[0].mxu0
        %6355 = vmatprep.mubr.bf16.mxu0 0
        %6356 = vmatmul.mubr.bf16.gmra.mrb[0].mxu0 %v6050
        %v6357 = vpop.f32.mrb[0].mxu0
        %v6358 = vadd.f32 %v5837, %v6357
        %v6359 = vpop.f32.mrb[0].mxu0
        %v6360 = vpop.f32.mrb[0].mxu0
        %v6361 = vadd.f32 %v5840, %v6360
        %v6362 = vpop.f32.mrb[0].mxu0
        %6363 = vmatprep.mubr.bf16.mxu0 0
        %6364 = vmatmul.mubr.bf16.gmra.mrb[0].mxu0 %v6059
        %v6365 = vpop.f32.mrb[0].mxu0
        %v6366 = vadd.f32 %v5845, %v6365
        %v6367 = vpop.f32.mrb[0].mxu0
        %v6368 = vpop.f32.mrb[0].mxu0
        %v6369 = vadd.f32 %v5848, %v6368
        %v6370 = vpop.f32.mrb[0].mxu0
        %6371 = vmatprep.mubr.bf16.mxu0 0
        %6372 = vmatmul.mubr.bf16.gmra.mrb[0].mxu0 %v6068
        %v6373 = vpop.f32.mrb[0].mxu0
        %v6374 = vadd.f32 %v5853, %v6373
        %v6375 = vpop.f32.mrb[0].mxu0
        %v6376 = vpop.f32.mrb[0].mxu0
        %v6377 = vadd.f32 %v5856, %v6376
        %v6378 = vpop.f32.mrb[0].mxu0
        %6379 = vmatprep.mubr.bf16.mxu0 0
        %6380 = vmatmul.mubr.bf16.gmra.mrb[0].mxu0 %v6077
        %v6381 = vpop.f32.mrb[0].mxu0
        %v6382 = vadd.f32 %v5861, %v6381
        %v6383 = vpop.f32.mrb[0].mxu0
        %v6384 = vpop.f32.mrb[0].mxu0
        %v6385 = vadd.f32 %v5864, %v6384
        %v6386 = vpop.f32.mrb[0].mxu0
        %6387 = vmatprep.mubr.bf16.mxu0 0
        %6388 = vmatmul.mubr.bf16.gmra.mrb[0].mxu0 %v6086
        %v6389 = vpop.f32.mrb[0].mxu0
        %v6390 = vadd.f32 %v5869, %v6389
        %v6391 = vpop.f32.mrb[0].mxu0
        %v6392 = vpop.f32.mrb[0].mxu0
        %v6393 = vadd.f32 %v5872, %v6392
        %v6394 = vpop.f32.mrb[0].mxu0
        %6395 = vmatprep.mubr.bf16.mxu0 0
        %6396 = vmatmul.mubr.bf16.gmra.mrb[0].mxu0 %v6095
        %v6397 = vpop.f32.mrb[0].mxu0
        %v6398 = vadd.f32 %v5877, %v6397
        %v6399 = vpop.f32.mrb[0].mxu0
        %v6400 = vpop.f32.mrb[0].mxu0
        %v6401 = vadd.f32 %v5880, %v6400
        %v6402 = vpop.f32.mrb[0].mxu0
        %6403 = vmatprep.mubr.bf16.mxu0 0
        %6404 = vmatmul.mubr.bf16.gmra.mrb[0].mxu0 %v6104
        %v6405 = vpop.f32.mrb[0].mxu0
        %v6406 = vadd.f32 %v5885, %v6405
        %v6407 = vpop.f32.mrb[0].mxu0
        %v6408 = vpop.f32.mrb[0].mxu0
        %v6409 = vadd.f32 %v5888, %v6408
        %v6410 = vpop.f32.mrb[0].mxu0
        %6411 = vmatprep.mubr.bf16.mxu0 0
        %6412 = vmatmul.mubr.bf16.gmra.mrb[0].mxu0 %v6113
        %v6413 = vpop.f32.mrb[0].mxu0
        %v6414 = vadd.f32 %v5893, %v6413
        %v6415 = vpop.f32.mrb[0].mxu0
        %v6416 = vpop.f32.mrb[0].mxu0
        %v6417 = vadd.f32 %v5896, %v6416
        %v6418 = vpop.f32.mrb[0].mxu0
        %6419 = vmatprep.mubr.bf16.mxu0 0
        %6420 = vmatmul.mubr.bf16.gmra.mrb[0].mxu0 %v6122
        %v6421 = vpop.f32.mrb[0].mxu0
        %v6422 = vadd.f32 %v5901, %v6421
        %v6423 = vpop.f32.mrb[0].mxu0
        %v6424 = vpop.f32.mrb[0].mxu0
        %v6425 = vadd.f32 %v5904, %v6424
        %v6426 = vpop.f32.mrb[0].mxu0
        %6427 = vmatprep.mubr.bf16.mxu0 0
        %6428 = vmatmul.mubr.bf16.gmra.mrb[0].mxu0 %v6131
        %v6429 = vpop.f32.mrb[0].mxu0
        %v6430 = vadd.f32 %v5909, %v6429
        %v6431 = vpop.f32.mrb[0].mxu0
        %v6432 = vpop.f32.mrb[0].mxu0
        %v6433 = vadd.f32 %v5912, %v6432
        %v6434 = vpop.f32.mrb[0].mxu0
        %6435 = vmatprep.mubr.bf16.mxu0 0
        %6436 = vmatmul.mubr.bf16.gmra.mrb[0].mxu0 %v6140
        %v6437 = vpop.f32.mrb[0].mxu0
        %v6438 = vadd.f32 %v5917, %v6437
        %v6439 = vpop.f32.mrb[0].mxu0
        %v6440 = vpop.f32.mrb[0].mxu0
        %v6441 = vadd.f32 %v5920, %v6440
        %v6442 = vpop.f32.mrb[0].mxu0
        %6443 = vmatprep.mubr.bf16.mxu0 0
        %6444 = vmatmul.mubr.bf16.gmra.mrb[0].mxu0 %v6149
        %v6445 = vpop.f32.mrb[0].mxu0
        %v6446 = vadd.f32 %v5925, %v6445
        %v6447 = vpop.f32.mrb[0].mxu0
        %v6448 = vpop.f32.mrb[0].mxu0
        %v6449 = vadd.f32 %v5928, %v6448
        %v6450 = vpop.f32.mrb[0].mxu0
        %6451 = vmatprep.mubr.bf16.mxu0 0
        %6452 = vmatmul.mubr.bf16.gmra.mrb[0].mxu0 %v6158
        %v6453 = vpop.f32.mrb[0].mxu0
        %v6454 = vadd.f32 %v5933, %v6453
        %v6455 = vpop.f32.mrb[0].mxu0
        %v6456 = vpop.f32.mrb[0].mxu0
        %v6457 = vadd.f32 %v5936, %v6456
        %v6458 = vpop.f32.mrb[0].mxu0
        %6459 = vmatprep.mubr.bf16.mxu0 0
        %6460 = vmatmul.mubr.bf16.gmra.mrb[0].mxu0 %v6167
        %v6461 = vpop.f32.mrb[0].mxu0
        %v6462 = vadd.f32 %v5941, %v6461
        %v6463 = vpop.f32.mrb[0].mxu0
        %v6464 = vpop.f32.mrb[0].mxu0
        %v6465 = vadd.f32 %v5944, %v6464
        %v6466 = vpop.f32.mrb[0].mxu0
        %6467 = vmatprep.mubr.bf16.mxu0 0
        %6468 = vmatmul.mubr.bf16.gmra.mrb[0].mxu0 %v6176
        %v6469 = vpop.f32.mrb[0].mxu0
        %v6470 = vadd.f32 %v5949, %v6469
        %v6471 = vpop.f32.mrb[0].mxu0
        %v6472 = vpop.f32.mrb[0].mxu0
        %v6473 = vadd.f32 %v5952, %v6472
        %v6474 = vpop.f32.mrb[0].mxu0
        %6475 = vmatprep.mubr.bf16.mxu0 0
        %6476 = vmatmul.mubr.bf16.gmra.mrb[0].mxu0 %v6185
        %v6477 = vpop.f32.mrb[0].mxu0
        %v6478 = vadd.f32 %v5957, %v6477
        %v6479 = vpop.f32.mrb[0].mxu0
        %v6480 = vpop.f32.mrb[0].mxu0
        %v6481 = vadd.f32 %v5960, %v6480
        %v6482 = vpop.f32.mrb[0].mxu0
        %6483 = vmatprep.mubr.bf16.mxu0 0
        %6484 = vmatmul.mubr.bf16.gmra.mrb[0].mxu0 %v6194
        %v6485 = vpop.f32.mrb[0].mxu0
        %v6486 = vadd.f32 %v5965, %v6485
        %v6487 = vpop.f32.mrb[0].mxu0
        %v6488 = vpop.f32.mrb[0].mxu0
        %v6489 = vadd.f32 %v5968, %v6488
        %v6490 = vpop.f32.mrb[0].mxu0
        %6491 = vdwg.mxu0
        %v6492 = vld [vmem:[#allocation3 + $0xc0] sm:$0x1f]
        %s6493 = smul.addr %s1690, 4
        %s6494 = scalar_lea.vmem [#allocation9], %s6493
        %v6495 = vld [vmem:[%s6494] sm:$0xf]
        %v6496 = vld [vmem:[%s6494 + $0x4] sm:$0xf]
        %v6497 = vld [vmem:[%s6494 + $0x8] sm:$0xf]
        %v6498 = vld [vmem:[%s6494 + $0xc] sm:$0xf]
        %v6499 = vld [vmem:[%s6494 + $0x10] sm:$0xf]
        %v6500 = vld [vmem:[%s6494 + $0x14] sm:$0xf]
        %v6501 = vld [vmem:[%s6494 + $0x18] sm:$0xf]
        %v6502 = vld [vmem:[%s6494 + $0x1c] sm:$0xf]
        %v6503 = vld [vmem:[%s6494 + $0x20] sm:$0xf]
        %v6504 = vld [vmem:[%s6494 + $0x24] sm:$0xf]
        %v6505 = vld [vmem:[%s6494 + $0x28] sm:$0xf]
        %v6506 = vld [vmem:[%s6494 + $0x2c] sm:$0xf]
        %v6507 = vld [vmem:[%s6494 + $0x30] sm:$0xf]
        %v6508 = vld [vmem:[%s6494 + $0x34] sm:$0xf]
        %v6509 = vld [vmem:[%s6494 + $0x38] sm:$0xf]
        %v6510 = vld [vmem:[%s6494 + $0x3c] sm:$0xf]
        %v6512 = vshrl.u32 %v5581, 16
        %v6514 = vrot.slane %v6512, 4
        %v6515 = vshll.u32 %v5581, 16
        %v6517 = vrot.slane %v6515, 5
        %v6518 = vor.u32 %v6514, %v6517
        %v6519 = vrot.slane %v5980, 4
        %v6520 = vrot.slane %v5983, 5
        %v6521 = vor.u32 %v6519, %v6520
        %v6522 = vsel %vm1709, %v6518, %v6521
        %v6523 = vrot.slane %v5989, 4
        %v6524 = vrot.slane %v5992, 5
        %v6525 = vor.u32 %v6523, %v6524
        %v6526 = vsel %vm1709, %v6521, %v6525
        %v6527 = vrot.slane %v5998, 4
        %v6528 = vrot.slane %v6001, 5
        %v6529 = vor.u32 %v6527, %v6528
        %v6530 = vsel %vm1709, %v6525, %v6529
        %v6531 = vrot.slane %v6007, 4
        %v6532 = vrot.slane %v6010, 5
        %v6533 = vor.u32 %v6531, %v6532
        %v6534 = vsel %vm1709, %v6529, %v6533
        %v6535 = vrot.slane %v6016, 4
        %v6536 = vrot.slane %v6019, 5
        %v6537 = vor.u32 %v6535, %v6536
        %v6538 = vsel %vm1709, %v6533, %v6537
        %v6539 = vrot.slane %v6025, 4
        %v6540 = vrot.slane %v6028, 5
        %v6541 = vor.u32 %v6539, %v6540
        %v6542 = vsel %vm1709, %v6537, %v6541
        %v6543 = vrot.slane %v6034, 4
        %v6544 = vrot.slane %v6037, 5
        %v6545 = vor.u32 %v6543, %v6544
        %v6546 = vsel %vm1709, %v6541, %v6545
        %v6547 = vrot.slane %v6043, 4
        %v6548 = vrot.slane %v6046, 5
        %v6549 = vor.u32 %v6547, %v6548
        %v6550 = vsel %vm1709, %v6545, %v6549
        %v6551 = vrot.slane %v6052, 4
        %v6552 = vrot.slane %v6055, 5
        %v6553 = vor.u32 %v6551, %v6552
        %v6554 = vsel %vm1709, %v6549, %v6553
        %v6555 = vrot.slane %v6061, 4
        %v6556 = vrot.slane %v6064, 5
        %v6557 = vor.u32 %v6555, %v6556
        %v6558 = vsel %vm1709, %v6553, %v6557
        %v6559 = vrot.slane %v6070, 4
        %v6560 = vrot.slane %v6073, 5
        %v6561 = vor.u32 %v6559, %v6560
        %v6562 = vsel %vm1709, %v6557, %v6561
        %v6563 = vrot.slane %v6079, 4
        %v6564 = vrot.slane %v6082, 5
        %v6565 = vor.u32 %v6563, %v6564
        %v6566 = vsel %vm1709, %v6561, %v6565
        %v6567 = vrot.slane %v6088, 4
        %v6568 = vrot.slane %v6091, 5
        %v6569 = vor.u32 %v6567, %v6568
        %v6570 = vsel %vm1709, %v6565, %v6569
        %v6571 = vrot.slane %v6097, 4
        %v6572 = vrot.slane %v6100, 5
        %v6573 = vor.u32 %v6571, %v6572
        %v6574 = vsel %vm1709, %v6569, %v6573
        %v6575 = vrot.slane %v6106, 4
        %v6576 = vrot.slane %v6109, 5
        %v6577 = vor.u32 %v6575, %v6576
        %v6578 = vsel %vm1709, %v6573, %v6577
        %v6579 = vrot.slane %v6115, 4
        %v6580 = vrot.slane %v6118, 5
        %v6581 = vor.u32 %v6579, %v6580
        %v6582 = vsel %vm1709, %v6577, %v6581
        %v6583 = vrot.slane %v6124, 4
        %v6584 = vrot.slane %v6127, 5
        %v6585 = vor.u32 %v6583, %v6584
        %v6586 = vsel %vm1709, %v6581, %v6585
        %v6587 = vrot.slane %v6133, 4
        %v6588 = vrot.slane %v6136, 5
        %v6589 = vor.u32 %v6587, %v6588
        %v6590 = vsel %vm1709, %v6585, %v6589
        %v6591 = vrot.slane %v6142, 4
        %v6592 = vrot.slane %v6145, 5
        %v6593 = vor.u32 %v6591, %v6592
        %v6594 = vsel %vm1709, %v6589, %v6593
        %v6595 = vrot.slane %v6151, 4
        %v6596 = vrot.slane %v6154, 5
        %v6597 = vor.u32 %v6595, %v6596
        %v6598 = vsel %vm1709, %v6593, %v6597
        %v6599 = vrot.slane %v6160, 4
        %v6600 = vrot.slane %v6163, 5
        %v6601 = vor.u32 %v6599, %v6600
        %v6602 = vsel %vm1709, %v6597, %v6601
        %v6603 = vrot.slane %v6169, 4
        %v6604 = vrot.slane %v6172, 5
        %v6605 = vor.u32 %v6603, %v6604
        %v6606 = vsel %vm1709, %v6601, %v6605
        %v6607 = vrot.slane %v6178, 4
        %v6608 = vrot.slane %v6181, 5
        %v6609 = vor.u32 %v6607, %v6608
        %v6610 = vsel %vm1709, %v6605, %v6609
        %v6612 = vshrl.u32 %v6492, 16
        %v6614 = vrot.slane %v6612, 4
        %v6615 = vshll.u32 %v6492, 16
        %v6617 = vrot.slane %v6615, 5
        %v6618 = vor.u32 %v6614, %v6617
        %v6619 = vsel %vm1709, %v6609, %v6618
        %v6660 = vunpack.c.l.b16 %v6495
        %v6661 = vunpack.c.l.b16 %v6496
        %v6662 = vunpack.c.l.b16 %v6497
        %v6663 = vunpack.c.l.b16 %v6498
        %v6664 = vunpack.c.l.b16 %v6499
        %v6665 = vunpack.c.l.b16 %v6500
        %v6666 = vunpack.c.l.b16 %v6501
        %v6667 = vunpack.c.l.b16 %v6502
        %v6668 = vunpack.c.l.b16 %v6503
        %v6669 = vunpack.c.l.b16 %v6504
        %v6670 = vunpack.c.l.b16 %v6505
        %v6671 = vunpack.c.l.b16 %v6506
        %v6672 = vunpack.c.l.b16 %v6507
        %v6673 = vunpack.c.l.b16 %v6508
        %v6674 = vunpack.c.l.b16 %v6509
        %v6675 = vunpack.c.l.b16 %v6510
        %v6676 = vpack.c.b16 %v6661, %v6660
        %v6677 = vpack.c.b16 %v6663, %v6662
        %v6678 = vpack.c.b16 %v6665, %v6664
        %v6679 = vpack.c.b16 %v6667, %v6666
        %v6680 = vpack.c.b16 %v6669, %v6668
        %v6681 = vpack.c.b16 %v6671, %v6670
        %v6682 = vpack.c.b16 %v6673, %v6672
        %v6683 = vpack.c.b16 %v6675, %v6674
        %6692 = vmatprep.subr.bf16.mxu0 0
        %6693 = vmatpush1.bf16.msra.mxu0 %v6676
        %6694 = vmatprep.subr.bf16.mxu0 0
        %6695 = vmatpush1.bf16.msra.mxu0 %v6677
        %6696 = vmatprep.subr.bf16.mxu0 0
        %6697 = vmatpush1.bf16.msra.mxu0 %v6678
        %6698 = vmatprep.subr.bf16.mxu0 0
        %6699 = vmatpush1.bf16.msra.mxu0 %v6679
        %6700 = vmatprep.subr.bf16.mxu0 0
        %6701 = vmatpush1.bf16.msra.mxu0 %v6680
        %6702 = vmatprep.subr.bf16.mxu0 0
        %6703 = vmatpush1.bf16.msra.mxu0 %v6681
        %6704 = vmatprep.subr.bf16.mxu0 0
        %6705 = vmatpush1.bf16.msra.mxu0 %v6682
        %6706 = vmatprep.subr.bf16.mxu0 0
        %6707 = vmatpush1.bf16.msra.mxu0 %v6683
        %6708 = vmatprep.subr.bf16.mxu0 0
        %6709 = vmatpush1.bf16.msra.mxu0 0
        %6710 = vmatprep.subr.bf16.mxu0 0
        %6711 = vmatpush1.bf16.msra.mxu0 0
        %6712 = vmatprep.subr.bf16.mxu0 0
        %6713 = vmatpush1.bf16.msra.mxu0 0
        %6714 = vmatprep.subr.bf16.mxu0 0
        %6715 = vmatpush1.bf16.msra.mxu0 0
        %6716 = vmatprep.subr.bf16.mxu0 0
        %6717 = vmatpush1.bf16.msra.mxu0 0
        %6718 = vmatprep.subr.bf16.mxu0 0
        %6719 = vmatpush1.bf16.msra.mxu0 0
        %6720 = vmatprep.subr.bf16.mxu0 0
        %6721 = vmatpush1.bf16.msra.mxu0 0
        %6722 = vmatprep.subr.bf16.mxu0 0
        %6723 = vmatpush1.bf16.msra.mxu0 0
        %6724 = vmatprep.mubr.bf16.mxu0 0
        %6725 = vmatmul.mubr.bf16.gmra.mrb[0].mxu0 %v6522
        %v6726 = vpop.f32.mrb[0].mxu0
        %v6727 = vadd.f32 0.0, %v6726
        %v6728 = vpop.f32.mrb[0].mxu0
        %v6729 = vpop.f32.mrb[0].mxu0
        %v6730 = vadd.f32 0.0, %v6729
        %v6731 = vpop.f32.mrb[0].mxu0
        %6732 = vmatprep.mubr.bf16.mxu0 0
        %6733 = vmatmul.mubr.bf16.gmra.mrb[0].mxu0 %v6526
        %v6734 = vpop.f32.mrb[0].mxu0
        %v6735 = vadd.f32 0.0, %v6734
        %v6736 = vpop.f32.mrb[0].mxu0
        %v6737 = vpop.f32.mrb[0].mxu0
        %v6738 = vadd.f32 0.0, %v6737
        %v6739 = vpop.f32.mrb[0].mxu0
        %6740 = vmatprep.mubr.bf16.mxu0 0
        %6741 = vmatmul.mubr.bf16.gmra.mrb[0].mxu0 %v6530
        %v6742 = vpop.f32.mrb[0].mxu0
        %v6743 = vadd.f32 0.0, %v6742
        %v6744 = vpop.f32.mrb[0].mxu0
        %v6745 = vpop.f32.mrb[0].mxu0
        %v6746 = vadd.f32 0.0, %v6745
        %v6747 = vpop.f32.mrb[0].mxu0
        %6748 = vmatprep.mubr.bf16.mxu0 0
        %6749 = vmatmul.mubr.bf16.gmra.mrb[0].mxu0 %v6534
        %v6750 = vpop.f32.mrb[0].mxu0
        %v6751 = vadd.f32 0.0, %v6750
        %v6752 = vpop.f32.mrb[0].mxu0
        %v6753 = vpop.f32.mrb[0].mxu0
        %v6754 = vadd.f32 0.0, %v6753
        %v6755 = vpop.f32.mrb[0].mxu0
        %6756 = vmatprep.mubr.bf16.mxu0 0
        %6757 = vmatmul.mubr.bf16.gmra.mrb[0].mxu0 %v6538
        %v6758 = vpop.f32.mrb[0].mxu0
        %v6759 = vadd.f32 0.0, %v6758
        %v6760 = vpop.f32.mrb[0].mxu0
        %v6761 = vpop.f32.mrb[0].mxu0
        %v6762 = vadd.f32 0.0, %v6761
        %v6763 = vpop.f32.mrb[0].mxu0
        %6764 = vmatprep.mubr.bf16.mxu0 0
        %6765 = vmatmul.mubr.bf16.gmra.mrb[0].mxu0 %v6542
        %v6766 = vpop.f32.mrb[0].mxu0
        %v6767 = vadd.f32 0.0, %v6766
        %v6768 = vpop.f32.mrb[0].mxu0
        %v6769 = vpop.f32.mrb[0].mxu0
        %v6770 = vadd.f32 0.0, %v6769
        %v6771 = vpop.f32.mrb[0].mxu0
        %6772 = vmatprep.mubr.bf16.mxu0 0
        %6773 = vmatmul.mubr.bf16.gmra.mrb[0].mxu0 %v6546
        %v6774 = vpop.f32.mrb[0].mxu0
        %v6775 = vadd.f32 0.0, %v6774
        %v6776 = vpop.f32.mrb[0].mxu0
        %v6777 = vpop.f32.mrb[0].mxu0
        %v6778 = vadd.f32 0.0, %v6777
        %v6779 = vpop.f32.mrb[0].mxu0
        %6780 = vmatprep.mubr.bf16.mxu0 0
        %6781 = vmatmul.mubr.bf16.gmra.mrb[0].mxu0 %v6550
        %v6782 = vpop.f32.mrb[0].mxu0
        %v6783 = vadd.f32 0.0, %v6782
        %v6784 = vpop.f32.mrb[0].mxu0
        %v6785 = vpop.f32.mrb[0].mxu0
        %v6786 = vadd.f32 0.0, %v6785
        %v6787 = vpop.f32.mrb[0].mxu0
        %6788 = vmatprep.mubr.bf16.mxu0 0
        %6789 = vmatmul.mubr.bf16.gmra.mrb[0].mxu0 %v6554
        %v6790 = vpop.f32.mrb[0].mxu0
        %v6791 = vadd.f32 0.0, %v6790
        %v6792 = vpop.f32.mrb[0].mxu0
        %v6793 = vpop.f32.mrb[0].mxu0
        %v6794 = vadd.f32 0.0, %v6793
        %v6795 = vpop.f32.mrb[0].mxu0
        %6796 = vmatprep.mubr.bf16.mxu0 0
        %6797 = vmatmul.mubr.bf16.gmra.mrb[0].mxu0 %v6558
        %v6798 = vpop.f32.mrb[0].mxu0
        %v6799 = vadd.f32 0.0, %v6798
        %v6800 = vpop.f32.mrb[0].mxu0
        %v6801 = vpop.f32.mrb[0].mxu0
        %v6802 = vadd.f32 0.0, %v6801
        %v6803 = vpop.f32.mrb[0].mxu0
        %6804 = vmatprep.mubr.bf16.mxu0 0
        %6805 = vmatmul.mubr.bf16.gmra.mrb[0].mxu0 %v6562
        %v6806 = vpop.f32.mrb[0].mxu0
        %v6807 = vadd.f32 0.0, %v6806
        %v6808 = vpop.f32.mrb[0].mxu0
        %v6809 = vpop.f32.mrb[0].mxu0
        %v6810 = vadd.f32 0.0, %v6809
        %v6811 = vpop.f32.mrb[0].mxu0
        %6812 = vmatprep.mubr.bf16.mxu0 0
        %6813 = vmatmul.mubr.bf16.gmra.mrb[0].mxu0 %v6566
        %v6814 = vpop.f32.mrb[0].mxu0
        %v6815 = vadd.f32 0.0, %v6814
        %v6816 = vpop.f32.mrb[0].mxu0
        %v6817 = vpop.f32.mrb[0].mxu0
        %v6818 = vadd.f32 0.0, %v6817
        %v6819 = vpop.f32.mrb[0].mxu0
        %6820 = vmatprep.mubr.bf16.mxu0 0
        %6821 = vmatmul.mubr.bf16.gmra.mrb[0].mxu0 %v6570
        %v6822 = vpop.f32.mrb[0].mxu0
        %v6823 = vadd.f32 0.0, %v6822
        %v6824 = vpop.f32.mrb[0].mxu0
        %v6825 = vpop.f32.mrb[0].mxu0
        %v6826 = vadd.f32 0.0, %v6825
        %v6827 = vpop.f32.mrb[0].mxu0
        %6828 = vmatprep.mubr.bf16.mxu0 0
        %6829 = vmatmul.mubr.bf16.gmra.mrb[0].mxu0 %v6574
        %v6830 = vpop.f32.mrb[0].mxu0
        %v6831 = vadd.f32 0.0, %v6830
        %v6832 = vpop.f32.mrb[0].mxu0
        %v6833 = vpop.f32.mrb[0].mxu0
        %v6834 = vadd.f32 0.0, %v6833
        %v6835 = vpop.f32.mrb[0].mxu0
        %6836 = vmatprep.mubr.bf16.mxu0 0
        %6837 = vmatmul.mubr.bf16.gmra.mrb[0].mxu0 %v6578
        %v6838 = vpop.f32.mrb[0].mxu0
        %v6839 = vadd.f32 0.0, %v6838
        %v6840 = vpop.f32.mrb[0].mxu0
        %v6841 = vpop.f32.mrb[0].mxu0
        %v6842 = vadd.f32 0.0, %v6841
        %v6843 = vpop.f32.mrb[0].mxu0
        %6844 = vmatprep.mubr.bf16.mxu0 0
        %6845 = vmatmul.mubr.bf16.gmra.mrb[0].mxu0 %v6582
        %v6846 = vpop.f32.mrb[0].mxu0
        %v6847 = vadd.f32 0.0, %v6846
        %v6848 = vpop.f32.mrb[0].mxu0
        %v6849 = vpop.f32.mrb[0].mxu0
        %v6850 = vadd.f32 0.0, %v6849
        %v6851 = vpop.f32.mrb[0].mxu0
        %6852 = vmatprep.mubr.bf16.mxu0 0
        %6853 = vmatmul.mubr.bf16.gmra.mrb[0].mxu0 %v6586
        %v6854 = vpop.f32.mrb[0].mxu0
        %v6855 = vadd.f32 0.0, %v6854
        %v6856 = vpop.f32.mrb[0].mxu0
        %v6857 = vpop.f32.mrb[0].mxu0
        %v6858 = vadd.f32 0.0, %v6857
        %v6859 = vpop.f32.mrb[0].mxu0
        %6860 = vmatprep.mubr.bf16.mxu0 0
        %6861 = vmatmul.mubr.bf16.gmra.mrb[0].mxu0 %v6590
        %v6862 = vpop.f32.mrb[0].mxu0
        %v6863 = vadd.f32 0.0, %v6862
        %v6864 = vpop.f32.mrb[0].mxu0
        %v6865 = vpop.f32.mrb[0].mxu0
        %v6866 = vadd.f32 0.0, %v6865
        %v6867 = vpop.f32.mrb[0].mxu0
        %6868 = vmatprep.mubr.bf16.mxu0 0
        %6869 = vmatmul.mubr.bf16.gmra.mrb[0].mxu0 %v6594
        %v6870 = vpop.f32.mrb[0].mxu0
        %v6871 = vadd.f32 0.0, %v6870
        %v6872 = vpop.f32.mrb[0].mxu0
        %v6873 = vpop.f32.mrb[0].mxu0
        %v6874 = vadd.f32 0.0, %v6873
        %v6875 = vpop.f32.mrb[0].mxu0
        %6876 = vmatprep.mubr.bf16.mxu0 0
        %6877 = vmatmul.mubr.bf16.gmra.mrb[0].mxu0 %v6598
        %v6878 = vpop.f32.mrb[0].mxu0
        %v6879 = vadd.f32 0.0, %v6878
        %v6880 = vpop.f32.mrb[0].mxu0
        %v6881 = vpop.f32.mrb[0].mxu0
        %v6882 = vadd.f32 0.0, %v6881
        %v6883 = vpop.f32.mrb[0].mxu0
        %6884 = vmatprep.mubr.bf16.mxu0 0
        %6885 = vmatmul.mubr.bf16.gmra.mrb[0].mxu0 %v6602
        %v6886 = vpop.f32.mrb[0].mxu0
        %v6887 = vadd.f32 0.0, %v6886
        %v6888 = vpop.f32.mrb[0].mxu0
        %v6889 = vpop.f32.mrb[0].mxu0
        %v6890 = vadd.f32 0.0, %v6889
        %v6891 = vpop.f32.mrb[0].mxu0
        %6892 = vmatprep.mubr.bf16.mxu0 0
        %6893 = vmatmul.mubr.bf16.gmra.mrb[0].mxu0 %v6606
        %v6894 = vpop.f32.mrb[0].mxu0
        %v6895 = vadd.f32 0.0, %v6894
        %v6896 = vpop.f32.mrb[0].mxu0
        %v6897 = vpop.f32.mrb[0].mxu0
        %v6898 = vadd.f32 0.0, %v6897
        %v6899 = vpop.f32.mrb[0].mxu0
        %6900 = vmatprep.mubr.bf16.mxu0 0
        %6901 = vmatmul.mubr.bf16.gmra.mrb[0].mxu0 %v6610
        %v6902 = vpop.f32.mrb[0].mxu0
        %v6903 = vadd.f32 0.0, %v6902
        %v6904 = vpop.f32.mrb[0].mxu0
        %v6905 = vpop.f32.mrb[0].mxu0
        %v6906 = vadd.f32 0.0, %v6905
        %v6907 = vpop.f32.mrb[0].mxu0
        %6908 = vmatprep.mubr.bf16.mxu0 0
        %6909 = vmatmul.mubr.bf16.gmra.mrb[0].mxu0 %v6619
        %v6910 = vpop.f32.mrb[0].mxu0
        %v6911 = vadd.f32 0.0, %v6910
        %v6912 = vpop.f32.mrb[0].mxu0
        %v6913 = vpop.f32.mrb[0].mxu0
        %v6914 = vadd.f32 0.0, %v6913
        %v6915 = vpop.f32.mrb[0].mxu0
        %6916 = vdwg.mxu0
        %v6917 = vadd.f32 %v6302, %v6727
        %v6918 = vadd.f32 %v6305, %v6730
        %v6919 = vadd.f32 %v6310, %v6735
        %v6920 = vadd.f32 %v6313, %v6738
        %v6921 = vadd.f32 %v6318, %v6743
        %v6922 = vadd.f32 %v6321, %v6746
        %v6923 = vadd.f32 %v6326, %v6751
        %v6924 = vadd.f32 %v6329, %v6754
        %v6925 = vadd.f32 %v6334, %v6759
        %v6926 = vadd.f32 %v6337, %v6762
        %v6927 = vadd.f32 %v6342, %v6767
        %v6928 = vadd.f32 %v6345, %v6770
        %v6929 = vadd.f32 %v6350, %v6775
        %v6930 = vadd.f32 %v6353, %v6778
        %v6931 = vadd.f32 %v6358, %v6783
        %v6932 = vadd.f32 %v6361, %v6786
        %v6933 = vadd.f32 %v6366, %v6791
        %v6934 = vadd.f32 %v6369, %v6794
        %v6935 = vadd.f32 %v6374, %v6799
        %v6936 = vadd.f32 %v6377, %v6802
        %v6937 = vadd.f32 %v6382, %v6807
        %v6938 = vadd.f32 %v6385, %v6810
        %v6939 = vadd.f32 %v6390, %v6815
        %v6940 = vadd.f32 %v6393, %v6818
        %v6941 = vadd.f32 %v6398, %v6823
        %v6942 = vadd.f32 %v6401, %v6826
        %v6943 = vadd.f32 %v6406, %v6831
        %v6944 = vadd.f32 %v6409, %v6834
        %v6945 = vadd.f32 %v6414, %v6839
        %v6946 = vadd.f32 %v6417, %v6842
        %v6947 = vadd.f32 %v6422, %v6847
        %v6948 = vadd.f32 %v6425, %v6850
        %v6949 = vadd.f32 %v6430, %v6855
        %v6950 = vadd.f32 %v6433, %v6858
        %v6951 = vadd.f32 %v6438, %v6863
        %v6952 = vadd.f32 %v6441, %v6866
        %v6953 = vadd.f32 %v6446, %v6871
        %v6954 = vadd.f32 %v6449, %v6874
        %v6955 = vadd.f32 %v6454, %v6879
        %v6956 = vadd.f32 %v6457, %v6882
        %v6957 = vadd.f32 %v6462, %v6887
        %v6958 = vadd.f32 %v6465, %v6890
        %v6959 = vadd.f32 %v6470, %v6895
        %v6960 = vadd.f32 %v6473, %v6898
        %v6961 = vadd.f32 %v6478, %v6903
        %v6962 = vadd.f32 %v6481, %v6906
        %v6963 = vadd.f32 %v6486, %v6911
        %v6964 = vadd.f32 %v6489, %v6914
        %v6965 = vld [vmem:[#allocation3 + $0x8] sm:$0x80]
        %v6966 = vld [vmem:[#allocation3 + $0x10] sm:$0xff]
        %v6967 = vld [vmem:[#allocation3 + $0x18] sm:$0xff]
        %v6968 = vld [vmem:[#allocation3 + $0x20] sm:$0xff]
        %v6969 = vld [vmem:[#allocation3 + $0x28] sm:$0xff]
        %v6970 = vld [vmem:[#allocation3 + $0x30] sm:$0xff]
        %v6971 = vld [vmem:[#allocation3 + $0x38] sm:$0xff]
        %v6972 = vld [vmem:[#allocation3 + $0x40] sm:$0xff]
        %v6973 = vld [vmem:[#allocation3 + $0x48] sm:$0xff]
        %v6974 = vld [vmem:[#allocation3 + $0x50] sm:$0xff]
        %v6975 = vld [vmem:[#allocation3 + $0x58] sm:$0xff]
        %v6976 = vld [vmem:[#allocation3 + $0x60] sm:$0xff]
        %v6977 = vld [vmem:[#allocation3 + $0x68] sm:$0xff]
        %v6978 = vld [vmem:[#allocation3 + $0x70] sm:$0xff]
        %v6979 = vld [vmem:[#allocation3 + $0x78] sm:$0xff]
        %v6980 = vld [vmem:[#allocation3 + $0x80] sm:$0xff]
        %v6981 = vld [vmem:[#allocation3 + $0x88] sm:$0xff]
        %v6982 = vld [vmem:[#allocation3 + $0x90] sm:$0xff]
        %v6983 = vld [vmem:[#allocation3 + $0x98] sm:$0xff]
        %v6984 = vld [vmem:[#allocation3 + $0xa0] sm:$0xff]
        %v6985 = vld [vmem:[#allocation3 + $0xa8] sm:$0xff]
        %v6986 = vld [vmem:[#allocation3 + $0xb0] sm:$0xff]
        %v6987 = vld [vmem:[#allocation3 + $0xb8] sm:$0xff]
        %v6988 = vld [vmem:[#allocation3 + $0xc0] sm:$0xff]
        %v6989 = vld [vmem:[#allocation3 + $0xc8] sm:$0xff]
        %s6990 = smul.addr %s2189, 4
        %s6991 = scalar_lea.vmem [#allocation9], %s6990
        %v6992 = vld [vmem:[%s6991] sm:$0xf]
        %v6993 = vld [vmem:[%s6991 + $0x4] sm:$0xf]
        %v6994 = vld [vmem:[%s6991 + $0x8] sm:$0xf]
        %v6995 = vld [vmem:[%s6991 + $0xc] sm:$0xf]
        %v6996 = vld [vmem:[%s6991 + $0x10] sm:$0xf]
        %v6997 = vld [vmem:[%s6991 + $0x14] sm:$0xf]
        %v6998 = vld [vmem:[%s6991 + $0x18] sm:$0xf]
        %v6999 = vld [vmem:[%s6991 + $0x1c] sm:$0xf]
        %v7000 = vld [vmem:[%s6991 + $0x20] sm:$0xf]
        %v7001 = vld [vmem:[%s6991 + $0x24] sm:$0xf]
        %v7002 = vld [vmem:[%s6991 + $0x28] sm:$0xf]
        %v7003 = vld [vmem:[%s6991 + $0x2c] sm:$0xf]
        %v7004 = vld [vmem:[%s6991 + $0x30] sm:$0xf]
        %v7005 = vld [vmem:[%s6991 + $0x34] sm:$0xf]
        %v7006 = vld [vmem:[%s6991 + $0x38] sm:$0xf]
        %v7007 = vld [vmem:[%s6991 + $0x3c] sm:$0xf]
        %v7009 = vshrl.u32 %v6965, 16
        %v7011 = vrot.slane %v7009, 7
        %v7013 = vshrl.u32 %v6966, 16
        %v7015 = vrot.slane %v7013, 7
        %v7016 = vshll.u32 %v6966, 16
        %v7018 = vor.u32 %v7015, %v7016
        %v7019 = vsel %vm2208, %v7011, %v7018
        %v7021 = vshrl.u32 %v6967, 16
        %v7023 = vrot.slane %v7021, 7
        %v7024 = vshll.u32 %v6967, 16
        %v7026 = vor.u32 %v7023, %v7024
        %v7027 = vsel %vm2208, %v7015, %v7026
        %v7029 = vshrl.u32 %v6968, 16
        %v7031 = vrot.slane %v7029, 7
        %v7032 = vshll.u32 %v6968, 16
        %v7034 = vor.u32 %v7031, %v7032
        %v7035 = vsel %vm2208, %v7023, %v7034
        %v7037 = vshrl.u32 %v6969, 16
        %v7039 = vrot.slane %v7037, 7
        %v7040 = vshll.u32 %v6969, 16
        %v7042 = vor.u32 %v7039, %v7040
        %v7043 = vsel %vm2208, %v7031, %v7042
        %v7045 = vshrl.u32 %v6970, 16
        %v7047 = vrot.slane %v7045, 7
        %v7048 = vshll.u32 %v6970, 16
        %v7050 = vor.u32 %v7047, %v7048
        %v7051 = vsel %vm2208, %v7039, %v7050
        %v7053 = vshrl.u32 %v6971, 16
        %v7055 = vrot.slane %v7053, 7
        %v7056 = vshll.u32 %v6971, 16
        %v7058 = vor.u32 %v7055, %v7056
        %v7059 = vsel %vm2208, %v7047, %v7058
        %v7061 = vshrl.u32 %v6972, 16
        %v7063 = vrot.slane %v7061, 7
        %v7064 = vshll.u32 %v6972, 16
        %v7066 = vor.u32 %v7063, %v7064
        %v7067 = vsel %vm2208, %v7055, %v7066
        %v7069 = vshrl.u32 %v6973, 16
        %v7071 = vrot.slane %v7069, 7
        %v7072 = vshll.u32 %v6973, 16
        %v7074 = vor.u32 %v7071, %v7072
        %v7075 = vsel %vm2208, %v7063, %v7074
        %v7077 = vshrl.u32 %v6974, 16
        %v7079 = vrot.slane %v7077, 7
        %v7080 = vshll.u32 %v6974, 16
        %v7082 = vor.u32 %v7079, %v7080
        %v7083 = vsel %vm2208, %v7071, %v7082
        %v7085 = vshrl.u32 %v6975, 16
        %v7087 = vrot.slane %v7085, 7
        %v7088 = vshll.u32 %v6975, 16
        %v7090 = vor.u32 %v7087, %v7088
        %v7091 = vsel %vm2208, %v7079, %v7090
        %v7093 = vshrl.u32 %v6976, 16
        %v7095 = vrot.slane %v7093, 7
        %v7096 = vshll.u32 %v6976, 16
        %v7098 = vor.u32 %v7095, %v7096
        %v7099 = vsel %vm2208, %v7087, %v7098
        %v7101 = vshrl.u32 %v6977, 16
        %v7103 = vrot.slane %v7101, 7
        %v7104 = vshll.u32 %v6977, 16
        %v7106 = vor.u32 %v7103, %v7104
        %v7107 = vsel %vm2208, %v7095, %v7106
        %v7109 = vshrl.u32 %v6978, 16
        %v7111 = vrot.slane %v7109, 7
        %v7112 = vshll.u32 %v6978, 16
        %v7114 = vor.u32 %v7111, %v7112
        %v7115 = vsel %vm2208, %v7103, %v7114
        %v7117 = vshrl.u32 %v6979, 16
        %v7119 = vrot.slane %v7117, 7
        %v7120 = vshll.u32 %v6979, 16
        %v7122 = vor.u32 %v7119, %v7120
        %v7123 = vsel %vm2208, %v7111, %v7122
        %v7125 = vshrl.u32 %v6980, 16
        %v7127 = vrot.slane %v7125, 7
        %v7128 = vshll.u32 %v6980, 16
        %v7130 = vor.u32 %v7127, %v7128
        %v7131 = vsel %vm2208, %v7119, %v7130
        %v7133 = vshrl.u32 %v6981, 16
        %v7135 = vrot.slane %v7133, 7
        %v7136 = vshll.u32 %v6981, 16
        %v7138 = vor.u32 %v7135, %v7136
        %v7139 = vsel %vm2208, %v7127, %v7138
        %v7141 = vshrl.u32 %v6982, 16
        %v7143 = vrot.slane %v7141, 7
        %v7144 = vshll.u32 %v6982, 16
        %v7146 = vor.u32 %v7143, %v7144
        %v7147 = vsel %vm2208, %v7135, %v7146
        %v7149 = vshrl.u32 %v6983, 16
        %v7151 = vrot.slane %v7149, 7
        %v7152 = vshll.u32 %v6983, 16
        %v7154 = vor.u32 %v7151, %v7152
        %v7155 = vsel %vm2208, %v7143, %v7154
        %v7157 = vshrl.u32 %v6984, 16
        %v7159 = vrot.slane %v7157, 7
        %v7160 = vshll.u32 %v6984, 16
        %v7162 = vor.u32 %v7159, %v7160
        %v7163 = vsel %vm2208, %v7151, %v7162
        %v7165 = vshrl.u32 %v6985, 16
        %v7167 = vrot.slane %v7165, 7
        %v7168 = vshll.u32 %v6985, 16
        %v7170 = vor.u32 %v7167, %v7168
        %v7171 = vsel %vm2208, %v7159, %v7170
        %v7173 = vshrl.u32 %v6986, 16
        %v7175 = vrot.slane %v7173, 7
        %v7176 = vshll.u32 %v6986, 16
        %v7178 = vor.u32 %v7175, %v7176
        %v7179 = vsel %vm2208, %v7167, %v7178
        %v7181 = vshrl.u32 %v6987, 16
        %v7183 = vrot.slane %v7181, 7
        %v7184 = vshll.u32 %v6987, 16
        %v7186 = vor.u32 %v7183, %v7184
        %v7187 = vsel %vm2208, %v7175, %v7186
        %v7189 = vshrl.u32 %v6988, 16
        %v7191 = vrot.slane %v7189, 7
        %v7192 = vshll.u32 %v6988, 16
        %v7194 = vor.u32 %v7191, %v7192
        %v7195 = vsel %vm2208, %v7183, %v7194
        %v7197 = vshrl.u32 %v6989, 16
        %v7199 = vrot.slane %v7197, 7
        %v7200 = vshll.u32 %v6989, 16
        %v7202 = vor.u32 %v7199, %v7200
        %v7203 = vsel %vm2208, %v7191, %v7202
        %v7244 = vunpack.c.l.b16 %v6992
        %v7245 = vunpack.c.l.b16 %v6993
        %v7246 = vunpack.c.l.b16 %v6994
        %v7247 = vunpack.c.l.b16 %v6995
        %v7248 = vunpack.c.l.b16 %v6996
        %v7249 = vunpack.c.l.b16 %v6997
        %v7250 = vunpack.c.l.b16 %v6998
        %v7251 = vunpack.c.l.b16 %v6999
        %v7252 = vunpack.c.l.b16 %v7000
        %v7253 = vunpack.c.l.b16 %v7001
        %v7254 = vunpack.c.l.b16 %v7002
        %v7255 = vunpack.c.l.b16 %v7003
        %v7256 = vunpack.c.l.b16 %v7004
        %v7257 = vunpack.c.l.b16 %v7005
        %v7258 = vunpack.c.l.b16 %v7006
        %v7259 = vunpack.c.l.b16 %v7007
        %v7260 = vpack.c.b16 %v7245, %v7244
        %v7261 = vpack.c.b16 %v7247, %v7246
        %v7262 = vpack.c.b16 %v7249, %v7248
        %v7263 = vpack.c.b16 %v7251, %v7250
        %v7264 = vpack.c.b16 %v7253, %v7252
        %v7265 = vpack.c.b16 %v7255, %v7254
        %v7266 = vpack.c.b16 %v7257, %v7256
        %v7267 = vpack.c.b16 %v7259, %v7258
        %7276 = vmatprep.subr.bf16.mxu0 0
        %7277 = vmatpush1.bf16.msra.mxu0 %v7260
        %7278 = vmatprep.subr.bf16.mxu0 0
        %7279 = vmatpush1.bf16.msra.mxu0 %v7261
        %7280 = vmatprep.subr.bf16.mxu0 0
        %7281 = vmatpush1.bf16.msra.mxu0 %v7262
        %7282 = vmatprep.subr.bf16.mxu0 0
        %7283 = vmatpush1.bf16.msra.mxu0 %v7263
        %7284 = vmatprep.subr.bf16.mxu0 0
        %7285 = vmatpush1.bf16.msra.mxu0 %v7264
        %7286 = vmatprep.subr.bf16.mxu0 0
        %7287 = vmatpush1.bf16.msra.mxu0 %v7265
        %7288 = vmatprep.subr.bf16.mxu0 0
        %7289 = vmatpush1.bf16.msra.mxu0 %v7266
        %7290 = vmatprep.subr.bf16.mxu0 0
        %7291 = vmatpush1.bf16.msra.mxu0 %v7267
        %7292 = vmatprep.subr.bf16.mxu0 0
        %7293 = vmatpush1.bf16.msra.mxu0 0
        %7294 = vmatprep.subr.bf16.mxu0 0
        %7295 = vmatpush1.bf16.msra.mxu0 0
        %7296 = vmatprep.subr.bf16.mxu0 0
        %7297 = vmatpush1.bf16.msra.mxu0 0
        %7298 = vmatprep.subr.bf16.mxu0 0
        %7299 = vmatpush1.bf16.msra.mxu0 0
        %7300 = vmatprep.subr.bf16.mxu0 0
        %7301 = vmatpush1.bf16.msra.mxu0 0
        %7302 = vmatprep.subr.bf16.mxu0 0
        %7303 = vmatpush1.bf16.msra.mxu0 0
        %7304 = vmatprep.subr.bf16.mxu0 0
        %7305 = vmatpush1.bf16.msra.mxu0 0
        %7306 = vmatprep.subr.bf16.mxu0 0
        %7307 = vmatpush1.bf16.msra.mxu0 0
        %7308 = vmatprep.mubr.bf16.mxu0 0
        %7309 = vmatmul.mubr.bf16.gmra.mrb[0].mxu0 %v7019
        %v7310 = vpop.f32.mrb[0].mxu0
        %v7311 = vadd.f32 0.0, %v7310
        %v7312 = vpop.f32.mrb[0].mxu0
        %v7313 = vpop.f32.mrb[0].mxu0
        %v7314 = vadd.f32 0.0, %v7313
        %v7315 = vpop.f32.mrb[0].mxu0
        %7316 = vmatprep.mubr.bf16.mxu0 0
        %7317 = vmatmul.mubr.bf16.gmra.mrb[0].mxu0 %v7027
        %v7318 = vpop.f32.mrb[0].mxu0
        %v7319 = vadd.f32 0.0, %v7318
        %v7320 = vpop.f32.mrb[0].mxu0
        %v7321 = vpop.f32.mrb[0].mxu0
        %v7322 = vadd.f32 0.0, %v7321
        %v7323 = vpop.f32.mrb[0].mxu0
        %7324 = vmatprep.mubr.bf16.mxu0 0
        %7325 = vmatmul.mubr.bf16.gmra.mrb[0].mxu0 %v7035
        %v7326 = vpop.f32.mrb[0].mxu0
        %v7327 = vadd.f32 0.0, %v7326
        %v7328 = vpop.f32.mrb[0].mxu0
        %v7329 = vpop.f32.mrb[0].mxu0
        %v7330 = vadd.f32 0.0, %v7329
        %v7331 = vpop.f32.mrb[0].mxu0
        %7332 = vmatprep.mubr.bf16.mxu0 0
        %7333 = vmatmul.mubr.bf16.gmra.mrb[0].mxu0 %v7043
        %v7334 = vpop.f32.mrb[0].mxu0
        %v7335 = vadd.f32 0.0, %v7334
        %v7336 = vpop.f32.mrb[0].mxu0
        %v7337 = vpop.f32.mrb[0].mxu0
        %v7338 = vadd.f32 0.0, %v7337
        %v7339 = vpop.f32.mrb[0].mxu0
        %7340 = vmatprep.mubr.bf16.mxu0 0
        %7341 = vmatmul.mubr.bf16.gmra.mrb[0].mxu0 %v7051
        %v7342 = vpop.f32.mrb[0].mxu0
        %v7343 = vadd.f32 0.0, %v7342
        %v7344 = vpop.f32.mrb[0].mxu0
        %v7345 = vpop.f32.mrb[0].mxu0
        %v7346 = vadd.f32 0.0, %v7345
        %v7347 = vpop.f32.mrb[0].mxu0
        %7348 = vmatprep.mubr.bf16.mxu0 0
        %7349 = vmatmul.mubr.bf16.gmra.mrb[0].mxu0 %v7059
        %v7350 = vpop.f32.mrb[0].mxu0
        %v7351 = vadd.f32 0.0, %v7350
        %v7352 = vpop.f32.mrb[0].mxu0
        %v7353 = vpop.f32.mrb[0].mxu0
        %v7354 = vadd.f32 0.0, %v7353
        %v7355 = vpop.f32.mrb[0].mxu0
        %7356 = vmatprep.mubr.bf16.mxu0 0
        %7357 = vmatmul.mubr.bf16.gmra.mrb[0].mxu0 %v7067
        %v7358 = vpop.f32.mrb[0].mxu0
        %v7359 = vadd.f32 0.0, %v7358
        %v7360 = vpop.f32.mrb[0].mxu0
        %v7361 = vpop.f32.mrb[0].mxu0
        %v7362 = vadd.f32 0.0, %v7361
        %v7363 = vpop.f32.mrb[0].mxu0
        %7364 = vmatprep.mubr.bf16.mxu0 0
        %7365 = vmatmul.mubr.bf16.gmra.mrb[0].mxu0 %v7075
        %v7366 = vpop.f32.mrb[0].mxu0
        %v7367 = vadd.f32 0.0, %v7366
        %v7368 = vpop.f32.mrb[0].mxu0
        %v7369 = vpop.f32.mrb[0].mxu0
        %v7370 = vadd.f32 0.0, %v7369
        %v7371 = vpop.f32.mrb[0].mxu0
        %7372 = vmatprep.mubr.bf16.mxu0 0
        %7373 = vmatmul.mubr.bf16.gmra.mrb[0].mxu0 %v7083
        %v7374 = vpop.f32.mrb[0].mxu0
        %v7375 = vadd.f32 0.0, %v7374
        %v7376 = vpop.f32.mrb[0].mxu0
        %v7377 = vpop.f32.mrb[0].mxu0
        %v7378 = vadd.f32 0.0, %v7377
        %v7379 = vpop.f32.mrb[0].mxu0
        %7380 = vmatprep.mubr.bf16.mxu0 0
        %7381 = vmatmul.mubr.bf16.gmra.mrb[0].mxu0 %v7091
        %v7382 = vpop.f32.mrb[0].mxu0
        %v7383 = vadd.f32 0.0, %v7382
        %v7384 = vpop.f32.mrb[0].mxu0
        %v7385 = vpop.f32.mrb[0].mxu0
        %v7386 = vadd.f32 0.0, %v7385
        %v7387 = vpop.f32.mrb[0].mxu0
        %7388 = vmatprep.mubr.bf16.mxu0 0
        %7389 = vmatmul.mubr.bf16.gmra.mrb[0].mxu0 %v7099
        %v7390 = vpop.f32.mrb[0].mxu0
        %v7391 = vadd.f32 0.0, %v7390
        %v7392 = vpop.f32.mrb[0].mxu0
        %v7393 = vpop.f32.mrb[0].mxu0
        %v7394 = vadd.f32 0.0, %v7393
        %v7395 = vpop.f32.mrb[0].mxu0
        %7396 = vmatprep.mubr.bf16.mxu0 0
        %7397 = vmatmul.mubr.bf16.gmra.mrb[0].mxu0 %v7107
        %v7398 = vpop.f32.mrb[0].mxu0
        %v7399 = vadd.f32 0.0, %v7398
        %v7400 = vpop.f32.mrb[0].mxu0
        %v7401 = vpop.f32.mrb[0].mxu0
        %v7402 = vadd.f32 0.0, %v7401
        %v7403 = vpop.f32.mrb[0].mxu0
        %7404 = vmatprep.mubr.bf16.mxu0 0
        %7405 = vmatmul.mubr.bf16.gmra.mrb[0].mxu0 %v7115
        %v7406 = vpop.f32.mrb[0].mxu0
        %v7407 = vadd.f32 0.0, %v7406
        %v7408 = vpop.f32.mrb[0].mxu0
        %v7409 = vpop.f32.mrb[0].mxu0
        %v7410 = vadd.f32 0.0, %v7409
        %v7411 = vpop.f32.mrb[0].mxu0
        %7412 = vmatprep.mubr.bf16.mxu0 0
        %7413 = vmatmul.mubr.bf16.gmra.mrb[0].mxu0 %v7123
        %v7414 = vpop.f32.mrb[0].mxu0
        %v7415 = vadd.f32 0.0, %v7414
        %v7416 = vpop.f32.mrb[0].mxu0
        %v7417 = vpop.f32.mrb[0].mxu0
        %v7418 = vadd.f32 0.0, %v7417
        %v7419 = vpop.f32.mrb[0].mxu0
        %7420 = vmatprep.mubr.bf16.mxu0 0
        %7421 = vmatmul.mubr.bf16.gmra.mrb[0].mxu0 %v7131
        %v7422 = vpop.f32.mrb[0].mxu0
        %v7423 = vadd.f32 0.0, %v7422
        %v7424 = vpop.f32.mrb[0].mxu0
        %v7425 = vpop.f32.mrb[0].mxu0
        %v7426 = vadd.f32 0.0, %v7425
        %v7427 = vpop.f32.mrb[0].mxu0
        %7428 = vmatprep.mubr.bf16.mxu0 0
        %7429 = vmatmul.mubr.bf16.gmra.mrb[0].mxu0 %v7139
        %v7430 = vpop.f32.mrb[0].mxu0
        %v7431 = vadd.f32 0.0, %v7430
        %v7432 = vpop.f32.mrb[0].mxu0
        %v7433 = vpop.f32.mrb[0].mxu0
        %v7434 = vadd.f32 0.0, %v7433
        %v7435 = vpop.f32.mrb[0].mxu0
        %7436 = vmatprep.mubr.bf16.mxu0 0
        %7437 = vmatmul.mubr.bf16.gmra.mrb[0].mxu0 %v7147
        %v7438 = vpop.f32.mrb[0].mxu0
        %v7439 = vadd.f32 0.0, %v7438
        %v7440 = vpop.f32.mrb[0].mxu0
        %v7441 = vpop.f32.mrb[0].mxu0
        %v7442 = vadd.f32 0.0, %v7441
        %v7443 = vpop.f32.mrb[0].mxu0
        %7444 = vmatprep.mubr.bf16.mxu0 0
        %7445 = vmatmul.mubr.bf16.gmra.mrb[0].mxu0 %v7155
        %v7446 = vpop.f32.mrb[0].mxu0
        %v7447 = vadd.f32 0.0, %v7446
        %v7448 = vpop.f32.mrb[0].mxu0
        %v7449 = vpop.f32.mrb[0].mxu0
        %v7450 = vadd.f32 0.0, %v7449
        %v7451 = vpop.f32.mrb[0].mxu0
        %7452 = vmatprep.mubr.bf16.mxu0 0
        %7453 = vmatmul.mubr.bf16.gmra.mrb[0].mxu0 %v7163
        %v7454 = vpop.f32.mrb[0].mxu0
        %v7455 = vadd.f32 0.0, %v7454
        %v7456 = vpop.f32.mrb[0].mxu0
        %v7457 = vpop.f32.mrb[0].mxu0
        %v7458 = vadd.f32 0.0, %v7457
        %v7459 = vpop.f32.mrb[0].mxu0
        %7460 = vmatprep.mubr.bf16.mxu0 0
        %7461 = vmatmul.mubr.bf16.gmra.mrb[0].mxu0 %v7171
        %v7462 = vpop.f32.mrb[0].mxu0
        %v7463 = vadd.f32 0.0, %v7462
        %v7464 = vpop.f32.mrb[0].mxu0
        %v7465 = vpop.f32.mrb[0].mxu0
        %v7466 = vadd.f32 0.0, %v7465
        %v7467 = vpop.f32.mrb[0].mxu0
        %7468 = vmatprep.mubr.bf16.mxu0 0
        %7469 = vmatmul.mubr.bf16.gmra.mrb[0].mxu0 %v7179
        %v7470 = vpop.f32.mrb[0].mxu0
        %v7471 = vadd.f32 0.0, %v7470
        %v7472 = vpop.f32.mrb[0].mxu0
        %v7473 = vpop.f32.mrb[0].mxu0
        %v7474 = vadd.f32 0.0, %v7473
        %v7475 = vpop.f32.mrb[0].mxu0
        %7476 = vmatprep.mubr.bf16.mxu0 0
        %7477 = vmatmul.mubr.bf16.gmra.mrb[0].mxu0 %v7187
        %v7478 = vpop.f32.mrb[0].mxu0
        %v7479 = vadd.f32 0.0, %v7478
        %v7480 = vpop.f32.mrb[0].mxu0
        %v7481 = vpop.f32.mrb[0].mxu0
        %v7482 = vadd.f32 0.0, %v7481
        %v7483 = vpop.f32.mrb[0].mxu0
        %7484 = vmatprep.mubr.bf16.mxu0 0
        %7485 = vmatmul.mubr.bf16.gmra.mrb[0].mxu0 %v7195
        %v7486 = vpop.f32.mrb[0].mxu0
        %v7487 = vadd.f32 0.0, %v7486
        %v7488 = vpop.f32.mrb[0].mxu0
        %v7489 = vpop.f32.mrb[0].mxu0
        %v7490 = vadd.f32 0.0, %v7489
        %v7491 = vpop.f32.mrb[0].mxu0
        %7492 = vmatprep.mubr.bf16.mxu0 0
        %7493 = vmatmul.mubr.bf16.gmra.mrb[0].mxu0 %v7203
        %v7494 = vpop.f32.mrb[0].mxu0
        %v7495 = vadd.f32 0.0, %v7494
        %v7496 = vpop.f32.mrb[0].mxu0
        %v7497 = vpop.f32.mrb[0].mxu0
        %v7498 = vadd.f32 0.0, %v7497
        %v7499 = vpop.f32.mrb[0].mxu0
        %7500 = vdwg.mxu0
        %v7501 = vadd.f32 %v6917, %v7311
        %v7502 = vadd.f32 %v6918, %v7314
        %v7503 = vadd.f32 %v6919, %v7319
        %v7504 = vadd.f32 %v6920, %v7322
        %v7505 = vadd.f32 %v6921, %v7327
        %v7506 = vadd.f32 %v6922, %v7330
        %v7507 = vadd.f32 %v6923, %v7335
        %v7508 = vadd.f32 %v6924, %v7338
        %v7509 = vadd.f32 %v6925, %v7343
        %v7510 = vadd.f32 %v6926, %v7346
        %v7511 = vadd.f32 %v6927, %v7351
        %v7512 = vadd.f32 %v6928, %v7354
        %v7513 = vadd.f32 %v6929, %v7359
        %v7514 = vadd.f32 %v6930, %v7362
        %v7515 = vadd.f32 %v6931, %v7367
        %v7516 = vadd.f32 %v6932, %v7370
        %v7517 = vadd.f32 %v6933, %v7375
        %v7518 = vadd.f32 %v6934, %v7378
        %v7519 = vadd.f32 %v6935, %v7383
        %v7520 = vadd.f32 %v6936, %v7386
        %v7521 = vadd.f32 %v6937, %v7391
        %v7522 = vadd.f32 %v6938, %v7394
        %v7523 = vadd.f32 %v6939, %v7399
        %v7524 = vadd.f32 %v6940, %v7402
        %v7525 = vadd.f32 %v6941, %v7407
        %v7526 = vadd.f32 %v6942, %v7410
        %v7527 = vadd.f32 %v6943, %v7415
        %v7528 = vadd.f32 %v6944, %v7418
        %v7529 = vadd.f32 %v6945, %v7423
        %v7530 = vadd.f32 %v6946, %v7426
        %v7531 = vadd.f32 %v6947, %v7431
        %v7532 = vadd.f32 %v6948, %v7434
        %v7533 = vadd.f32 %v6949, %v7439
        %v7534 = vadd.f32 %v6950, %v7442
        %v7535 = vadd.f32 %v6951, %v7447
        %v7536 = vadd.f32 %v6952, %v7450
        %v7537 = vadd.f32 %v6953, %v7455
        %v7538 = vadd.f32 %v6954, %v7458
        %v7539 = vadd.f32 %v6955, %v7463
        %v7540 = vadd.f32 %v6956, %v7466
        %v7541 = vadd.f32 %v6957, %v7471
        %v7542 = vadd.f32 %v6958, %v7474
        %v7543 = vadd.f32 %v6959, %v7479
        %v7544 = vadd.f32 %v6960, %v7482
        %v7545 = vadd.f32 %v6961, %v7487
        %v7546 = vadd.f32 %v6962, %v7490
        %v7547 = vadd.f32 %v6963, %v7495
        %v7548 = vadd.f32 %v6964, %v7498
        %s7549 = smul.addr %s2750, 4
        %s7550 = scalar_lea.vmem [#allocation9], %s7549
        %v7551 = vld [vmem:[%s7550] sm:$0xf]
        %v7552 = vld [vmem:[%s7550 + $0x4] sm:$0xf]
        %v7553 = vld [vmem:[%s7550 + $0x8] sm:$0xf]
        %v7554 = vld [vmem:[%s7550 + $0xc] sm:$0xf]
        %v7555 = vld [vmem:[%s7550 + $0x10] sm:$0xf]
        %v7556 = vld [vmem:[%s7550 + $0x14] sm:$0xf]
        %v7557 = vld [vmem:[%s7550 + $0x18] sm:$0xf]
        %v7558 = vld [vmem:[%s7550 + $0x1c] sm:$0xf]
        %v7559 = vld [vmem:[%s7550 + $0x20] sm:$0xf]
        %v7560 = vld [vmem:[%s7550 + $0x24] sm:$0xf]
        %v7561 = vld [vmem:[%s7550 + $0x28] sm:$0xf]
        %v7562 = vld [vmem:[%s7550 + $0x2c] sm:$0xf]
        %v7563 = vld [vmem:[%s7550 + $0x30] sm:$0xf]
        %v7564 = vld [vmem:[%s7550 + $0x34] sm:$0xf]
        %v7565 = vld [vmem:[%s7550 + $0x38] sm:$0xf]
        %v7566 = vld [vmem:[%s7550 + $0x3c] sm:$0xf]
        %v7583 = vunpack.c.l.b16 %v7551
        %v7584 = vunpack.c.l.b16 %v7552
        %v7585 = vunpack.c.l.b16 %v7553
        %v7586 = vunpack.c.l.b16 %v7554
        %v7587 = vunpack.c.l.b16 %v7555
        %v7588 = vunpack.c.l.b16 %v7556
        %v7589 = vunpack.c.l.b16 %v7557
        %v7590 = vunpack.c.l.b16 %v7558
        %v7591 = vunpack.c.l.b16 %v7559
        %v7592 = vunpack.c.l.b16 %v7560
        %v7593 = vunpack.c.l.b16 %v7561
        %v7594 = vunpack.c.l.b16 %v7562
        %v7595 = vunpack.c.l.b16 %v7563
        %v7596 = vunpack.c.l.b16 %v7564
        %v7597 = vunpack.c.l.b16 %v7565
        %v7598 = vunpack.c.l.b16 %v7566
        %v7599 = vpack.c.b16 %v7584, %v7583
        %v7600 = vpack.c.b16 %v7586, %v7585
        %v7601 = vpack.c.b16 %v7588, %v7587
        %v7602 = vpack.c.b16 %v7590, %v7589
        %v7603 = vpack.c.b16 %v7592, %v7591
        %v7604 = vpack.c.b16 %v7594, %v7593
        %v7605 = vpack.c.b16 %v7596, %v7595
        %v7606 = vpack.c.b16 %v7598, %v7597
        %7615 = vmatprep.subr.bf16.mxu0 0
        %7616 = vmatpush1.bf16.msra.mxu0 %v7599
        %7617 = vmatprep.subr.bf16.mxu0 0
        %7618 = vmatpush1.bf16.msra.mxu0 %v7600
        %7619 = vmatprep.subr.bf16.mxu0 0
        %7620 = vmatpush1.bf16.msra.mxu0 %v7601
        %7621 = vmatprep.subr.bf16.mxu0 0
        %7622 = vmatpush1.bf16.msra.mxu0 %v7602
        %7623 = vmatprep.subr.bf16.mxu0 0
        %7624 = vmatpush1.bf16.msra.mxu0 %v7603
        %7625 = vmatprep.subr.bf16.mxu0 0
        %7626 = vmatpush1.bf16.msra.mxu0 %v7604
        %7627 = vmatprep.subr.bf16.mxu0 0
        %7628 = vmatpush1.bf16.msra.mxu0 %v7605
        %7629 = vmatprep.subr.bf16.mxu0 0
        %7630 = vmatpush1.bf16.msra.mxu0 %v7606
        %7631 = vmatprep.subr.bf16.mxu0 0
        %7632 = vmatpush1.bf16.msra.mxu0 0
        %7633 = vmatprep.subr.bf16.mxu0 0
        %7634 = vmatpush1.bf16.msra.mxu0 0
        %7635 = vmatprep.subr.bf16.mxu0 0
        %7636 = vmatpush1.bf16.msra.mxu0 0
        %7637 = vmatprep.subr.bf16.mxu0 0
        %7638 = vmatpush1.bf16.msra.mxu0 0
        %7639 = vmatprep.subr.bf16.mxu0 0
        %7640 = vmatpush1.bf16.msra.mxu0 0
        %7641 = vmatprep.subr.bf16.mxu0 0
        %7642 = vmatpush1.bf16.msra.mxu0 0
        %7643 = vmatprep.subr.bf16.mxu0 0
        %7644 = vmatpush1.bf16.msra.mxu0 0
        %7645 = vmatprep.subr.bf16.mxu0 0
        %7646 = vmatpush1.bf16.msra.mxu0 0
        %7647 = vmatprep.mubr.bf16.mxu0 0
        %7648 = vmatmul.mubr.bf16.gmra.mrb[0].mxu0 %v6966
        %v7649 = vpop.f32.mrb[0].mxu0
        %v7650 = vadd.f32 0.0, %v7649
        %v7651 = vpop.f32.mrb[0].mxu0
        %v7652 = vpop.f32.mrb[0].mxu0
        %v7653 = vadd.f32 0.0, %v7652
        %v7654 = vpop.f32.mrb[0].mxu0
        %7655 = vmatprep.mubr.bf16.mxu0 0
        %7656 = vmatmul.mubr.bf16.gmra.mrb[0].mxu0 %v6967
        %v7657 = vpop.f32.mrb[0].mxu0
        %v7658 = vadd.f32 0.0, %v7657
        %v7659 = vpop.f32.mrb[0].mxu0
        %v7660 = vpop.f32.mrb[0].mxu0
        %v7661 = vadd.f32 0.0, %v7660
        %v7662 = vpop.f32.mrb[0].mxu0
        %7663 = vmatprep.mubr.bf16.mxu0 0
        %7664 = vmatmul.mubr.bf16.gmra.mrb[0].mxu0 %v6968
        %v7665 = vpop.f32.mrb[0].mxu0
        %v7666 = vadd.f32 0.0, %v7665
        %v7667 = vpop.f32.mrb[0].mxu0
        %v7668 = vpop.f32.mrb[0].mxu0
        %v7669 = vadd.f32 0.0, %v7668
        %v7670 = vpop.f32.mrb[0].mxu0
        %7671 = vmatprep.mubr.bf16.mxu0 0
        %7672 = vmatmul.mubr.bf16.gmra.mrb[0].mxu0 %v6969
        %v7673 = vpop.f32.mrb[0].mxu0
        %v7674 = vadd.f32 0.0, %v7673
        %v7675 = vpop.f32.mrb[0].mxu0
        %v7676 = vpop.f32.mrb[0].mxu0
        %v7677 = vadd.f32 0.0, %v7676
        %v7678 = vpop.f32.mrb[0].mxu0
        %7679 = vmatprep.mubr.bf16.mxu0 0
        %7680 = vmatmul.mubr.bf16.gmra.mrb[0].mxu0 %v6970
        %v7681 = vpop.f32.mrb[0].mxu0
        %v7682 = vadd.f32 0.0, %v7681
        %v7683 = vpop.f32.mrb[0].mxu0
        %v7684 = vpop.f32.mrb[0].mxu0
        %v7685 = vadd.f32 0.0, %v7684
        %v7686 = vpop.f32.mrb[0].mxu0
        %7687 = vmatprep.mubr.bf16.mxu0 0
        %7688 = vmatmul.mubr.bf16.gmra.mrb[0].mxu0 %v6971
        %v7689 = vpop.f32.mrb[0].mxu0
        %v7690 = vadd.f32 0.0, %v7689
        %v7691 = vpop.f32.mrb[0].mxu0
        %v7692 = vpop.f32.mrb[0].mxu0
        %v7693 = vadd.f32 0.0, %v7692
        %v7694 = vpop.f32.mrb[0].mxu0
        %7695 = vmatprep.mubr.bf16.mxu0 0
        %7696 = vmatmul.mubr.bf16.gmra.mrb[0].mxu0 %v6972
        %v7697 = vpop.f32.mrb[0].mxu0
        %v7698 = vadd.f32 0.0, %v7697
        %v7699 = vpop.f32.mrb[0].mxu0
        %v7700 = vpop.f32.mrb[0].mxu0
        %v7701 = vadd.f32 0.0, %v7700
        %v7702 = vpop.f32.mrb[0].mxu0
        %7703 = vmatprep.mubr.bf16.mxu0 0
        %7704 = vmatmul.mubr.bf16.gmra.mrb[0].mxu0 %v6973
        %v7705 = vpop.f32.mrb[0].mxu0
        %v7706 = vadd.f32 0.0, %v7705
        %v7707 = vpop.f32.mrb[0].mxu0
        %v7708 = vpop.f32.mrb[0].mxu0
        %v7709 = vadd.f32 0.0, %v7708
        %v7710 = vpop.f32.mrb[0].mxu0
        %7711 = vmatprep.mubr.bf16.mxu0 0
        %7712 = vmatmul.mubr.bf16.gmra.mrb[0].mxu0 %v6974
        %v7713 = vpop.f32.mrb[0].mxu0
        %v7714 = vadd.f32 0.0, %v7713
        %v7715 = vpop.f32.mrb[0].mxu0
        %v7716 = vpop.f32.mrb[0].mxu0
        %v7717 = vadd.f32 0.0, %v7716
        %v7718 = vpop.f32.mrb[0].mxu0
        %7719 = vmatprep.mubr.bf16.mxu0 0
        %7720 = vmatmul.mubr.bf16.gmra.mrb[0].mxu0 %v6975
        %v7721 = vpop.f32.mrb[0].mxu0
        %v7722 = vadd.f32 0.0, %v7721
        %v7723 = vpop.f32.mrb[0].mxu0
        %v7724 = vpop.f32.mrb[0].mxu0
        %v7725 = vadd.f32 0.0, %v7724
        %v7726 = vpop.f32.mrb[0].mxu0
        %7727 = vmatprep.mubr.bf16.mxu0 0
        %7728 = vmatmul.mubr.bf16.gmra.mrb[0].mxu0 %v6976
        %v7729 = vpop.f32.mrb[0].mxu0
        %v7730 = vadd.f32 0.0, %v7729
        %v7731 = vpop.f32.mrb[0].mxu0
        %v7732 = vpop.f32.mrb[0].mxu0
        %v7733 = vadd.f32 0.0, %v7732
        %v7734 = vpop.f32.mrb[0].mxu0
        %7735 = vmatprep.mubr.bf16.mxu0 0
        %7736 = vmatmul.mubr.bf16.gmra.mrb[0].mxu0 %v6977
        %v7737 = vpop.f32.mrb[0].mxu0
        %v7738 = vadd.f32 0.0, %v7737
        %v7739 = vpop.f32.mrb[0].mxu0
        %v7740 = vpop.f32.mrb[0].mxu0
        %v7741 = vadd.f32 0.0, %v7740
        %v7742 = vpop.f32.mrb[0].mxu0
        %7743 = vmatprep.mubr.bf16.mxu0 0
        %7744 = vmatmul.mubr.bf16.gmra.mrb[0].mxu0 %v6978
        %v7745 = vpop.f32.mrb[0].mxu0
        %v7746 = vadd.f32 0.0, %v7745
        %v7747 = vpop.f32.mrb[0].mxu0
        %v7748 = vpop.f32.mrb[0].mxu0
        %v7749 = vadd.f32 0.0, %v7748
        %v7750 = vpop.f32.mrb[0].mxu0
        %7751 = vmatprep.mubr.bf16.mxu0 0
        %7752 = vmatmul.mubr.bf16.gmra.mrb[0].mxu0 %v6979
        %v7753 = vpop.f32.mrb[0].mxu0
        %v7754 = vadd.f32 0.0, %v7753
        %v7755 = vpop.f32.mrb[0].mxu0
        %v7756 = vpop.f32.mrb[0].mxu0
        %v7757 = vadd.f32 0.0, %v7756
        %v7758 = vpop.f32.mrb[0].mxu0
        %7759 = vmatprep.mubr.bf16.mxu0 0
        %7760 = vmatmul.mubr.bf16.gmra.mrb[0].mxu0 %v6980
        %v7761 = vpop.f32.mrb[0].mxu0
        %v7762 = vadd.f32 0.0, %v7761
        %v7763 = vpop.f32.mrb[0].mxu0
        %v7764 = vpop.f32.mrb[0].mxu0
        %v7765 = vadd.f32 0.0, %v7764
        %v7766 = vpop.f32.mrb[0].mxu0
        %7767 = vmatprep.mubr.bf16.mxu0 0
        %7768 = vmatmul.mubr.bf16.gmra.mrb[0].mxu0 %v6981
        %v7769 = vpop.f32.mrb[0].mxu0
        %v7770 = vadd.f32 0.0, %v7769
        %v7771 = vpop.f32.mrb[0].mxu0
        %v7772 = vpop.f32.mrb[0].mxu0
        %v7773 = vadd.f32 0.0, %v7772
        %v7774 = vpop.f32.mrb[0].mxu0
        %7775 = vmatprep.mubr.bf16.mxu0 0
        %7776 = vmatmul.mubr.bf16.gmra.mrb[0].mxu0 %v6982
        %v7777 = vpop.f32.mrb[0].mxu0
        %v7778 = vadd.f32 0.0, %v7777
        %v7779 = vpop.f32.mrb[0].mxu0
        %v7780 = vpop.f32.mrb[0].mxu0
        %v7781 = vadd.f32 0.0, %v7780
        %v7782 = vpop.f32.mrb[0].mxu0
        %7783 = vmatprep.mubr.bf16.mxu0 0
        %7784 = vmatmul.mubr.bf16.gmra.mrb[0].mxu0 %v6983
        %v7785 = vpop.f32.mrb[0].mxu0
        %v7786 = vadd.f32 0.0, %v7785
        %v7787 = vpop.f32.mrb[0].mxu0
        %v7788 = vpop.f32.mrb[0].mxu0
        %v7789 = vadd.f32 0.0, %v7788
        %v7790 = vpop.f32.mrb[0].mxu0
        %7791 = vmatprep.mubr.bf16.mxu0 0
        %7792 = vmatmul.mubr.bf16.gmra.mrb[0].mxu0 %v6984
        %v7793 = vpop.f32.mrb[0].mxu0
        %v7794 = vadd.f32 0.0, %v7793
        %v7795 = vpop.f32.mrb[0].mxu0
        %v7796 = vpop.f32.mrb[0].mxu0
        %v7797 = vadd.f32 0.0, %v7796
        %v7798 = vpop.f32.mrb[0].mxu0
        %7799 = vmatprep.mubr.bf16.mxu0 0
        %7800 = vmatmul.mubr.bf16.gmra.mrb[0].mxu0 %v6985
        %v7801 = vpop.f32.mrb[0].mxu0
        %v7802 = vadd.f32 0.0, %v7801
        %v7803 = vpop.f32.mrb[0].mxu0
        %v7804 = vpop.f32.mrb[0].mxu0
        %v7805 = vadd.f32 0.0, %v7804
        %v7806 = vpop.f32.mrb[0].mxu0
        %7807 = vmatprep.mubr.bf16.mxu0 0
        %7808 = vmatmul.mubr.bf16.gmra.mrb[0].mxu0 %v6986
        %v7809 = vpop.f32.mrb[0].mxu0
        %v7810 = vadd.f32 0.0, %v7809
        %v7811 = vpop.f32.mrb[0].mxu0
        %v7812 = vpop.f32.mrb[0].mxu0
        %v7813 = vadd.f32 0.0, %v7812
        %v7814 = vpop.f32.mrb[0].mxu0
        %7815 = vmatprep.mubr.bf16.mxu0 0
        %7816 = vmatmul.mubr.bf16.gmra.mrb[0].mxu0 %v6987
        %v7817 = vpop.f32.mrb[0].mxu0
        %v7818 = vadd.f32 0.0, %v7817
        %v7819 = vpop.f32.mrb[0].mxu0
        %v7820 = vpop.f32.mrb[0].mxu0
        %v7821 = vadd.f32 0.0, %v7820
        %v7822 = vpop.f32.mrb[0].mxu0
        %7823 = vmatprep.mubr.bf16.mxu0 0
        %7824 = vmatmul.mubr.bf16.gmra.mrb[0].mxu0 %v6988
        %v7825 = vpop.f32.mrb[0].mxu0
        %v7826 = vadd.f32 0.0, %v7825
        %v7827 = vpop.f32.mrb[0].mxu0
        %v7828 = vpop.f32.mrb[0].mxu0
        %v7829 = vadd.f32 0.0, %v7828
        %v7830 = vpop.f32.mrb[0].mxu0
        %7831 = vmatprep.mubr.bf16.mxu0 0
        %7832 = vmatmul.mubr.bf16.gmra.mrb[0].mxu0 %v6989
        %v7833 = vpop.f32.mrb[0].mxu0
        %v7834 = vadd.f32 0.0, %v7833
        %v7835 = vpop.f32.mrb[0].mxu0
        %v7836 = vpop.f32.mrb[0].mxu0
        %v7837 = vadd.f32 0.0, %v7836
        %v7838 = vpop.f32.mrb[0].mxu0
        %7839 = vdwg.mxu0
        %v7840 = vadd.f32 %v7501, %v7650
        %v7841 = vadd.f32 %v7502, %v7653
        %v7842 = vadd.f32 %v7503, %v7658
        %v7843 = vadd.f32 %v7504, %v7661
        %v7844 = vadd.f32 %v7505, %v7666
        %v7845 = vadd.f32 %v7506, %v7669
        %v7846 = vadd.f32 %v7507, %v7674
        %v7847 = vadd.f32 %v7508, %v7677
        %v7848 = vadd.f32 %v7509, %v7682
        %v7849 = vadd.f32 %v7510, %v7685
        %v7850 = vadd.f32 %v7511, %v7690
        %v7851 = vadd.f32 %v7512, %v7693
        %v7852 = vadd.f32 %v7513, %v7698
        %v7853 = vadd.f32 %v7514, %v7701
        %v7854 = vadd.f32 %v7515, %v7706
        %v7855 = vadd.f32 %v7516, %v7709
        %v7856 = vadd.f32 %v7517, %v7714
        %v7857 = vadd.f32 %v7518, %v7717
        %v7858 = vadd.f32 %v7519, %v7722
        %v7859 = vadd.f32 %v7520, %v7725
        %v7860 = vadd.f32 %v7521, %v7730
        %v7861 = vadd.f32 %v7522, %v7733
        %v7862 = vadd.f32 %v7523, %v7738
        %v7863 = vadd.f32 %v7524, %v7741
        %v7864 = vadd.f32 %v7525, %v7746
        %v7865 = vadd.f32 %v7526, %v7749
        %v7866 = vadd.f32 %v7527, %v7754
        %v7867 = vadd.f32 %v7528, %v7757
        %v7868 = vadd.f32 %v7529, %v7762
        %v7869 = vadd.f32 %v7530, %v7765
        %v7870 = vadd.f32 %v7531, %v7770
        %v7871 = vadd.f32 %v7532, %v7773
        %v7872 = vadd.f32 %v7533, %v7778
        %v7873 = vadd.f32 %v7534, %v7781
        %v7874 = vadd.f32 %v7535, %v7786
        %v7875 = vadd.f32 %v7536, %v7789
        %v7876 = vadd.f32 %v7537, %v7794
        %v7877 = vadd.f32 %v7538, %v7797
        %v7878 = vadd.f32 %v7539, %v7802
        %v7879 = vadd.f32 %v7540, %v7805
        %v7880 = vadd.f32 %v7541, %v7810
        %v7881 = vadd.f32 %v7542, %v7813
        %v7882 = vadd.f32 %v7543, %v7818
        %v7883 = vadd.f32 %v7544, %v7821
        %v7884 = vadd.f32 %v7545, %v7826
        %v7885 = vadd.f32 %v7546, %v7829
        %v7886 = vadd.f32 %v7547, %v7834
        %v7887 = vadd.f32 %v7548, %v7837
        %v7888 = vld [vmem:[#allocation3 + $0x10] sm:$0xff]
        %v7889 = vld [vmem:[#allocation3 + $0x18] sm:$0xff]
        %v7890 = vld [vmem:[#allocation3 + $0x20] sm:$0xff]
        %v7891 = vld [vmem:[#allocation3 + $0x28] sm:$0xff]
        %v7892 = vld [vmem:[#allocation3 + $0x30] sm:$0xff]
        %v7893 = vld [vmem:[#allocation3 + $0x38] sm:$0xff]
        %v7894 = vld [vmem:[#allocation3 + $0x40] sm:$0xff]
        %v7895 = vld [vmem:[#allocation3 + $0x48] sm:$0xff]
        %v7896 = vld [vmem:[#allocation3 + $0x50] sm:$0xff]
        %v7897 = vld [vmem:[#allocation3 + $0x58] sm:$0xff]
        %v7898 = vld [vmem:[#allocation3 + $0x60] sm:$0xff]
        %v7899 = vld [vmem:[#allocation3 + $0x68] sm:$0xff]
        %v7900 = vld [vmem:[#allocation3 + $0x70] sm:$0xff]
        %v7901 = vld [vmem:[#allocation3 + $0x78] sm:$0xff]
        %v7902 = vld [vmem:[#allocation3 + $0x80] sm:$0xff]
        %v7903 = vld [vmem:[#allocation3 + $0x88] sm:$0xff]
        %v7904 = vld [vmem:[#allocation3 + $0x90] sm:$0xff]
        %v7905 = vld [vmem:[#allocation3 + $0x98] sm:$0xff]
        %v7906 = vld [vmem:[#allocation3 + $0xa0] sm:$0xff]
        %v7907 = vld [vmem:[#allocation3 + $0xa8] sm:$0xff]
        %v7908 = vld [vmem:[#allocation3 + $0xb0] sm:$0xff]
        %v7909 = vld [vmem:[#allocation3 + $0xb8] sm:$0xff]
        %v7910 = vld [vmem:[#allocation3 + $0xc0] sm:$0xff]
        %v7911 = vld [vmem:[#allocation3 + $0xc8] sm:$0xff]
        %v7912 = vld [vmem:[#allocation3 + $0xd0] sm:$0x1]
        %s7913 = smul.addr %s3115, 4
        %s7914 = scalar_lea.vmem [#allocation9], %s7913
        %v7915 = vld [vmem:[%s7914] sm:$0xf]
        %v7916 = vld [vmem:[%s7914 + $0x4] sm:$0xf]
        %v7917 = vld [vmem:[%s7914 + $0x8] sm:$0xf]
        %v7918 = vld [vmem:[%s7914 + $0xc] sm:$0xf]
        %v7919 = vld [vmem:[%s7914 + $0x10] sm:$0xf]
        %v7920 = vld [vmem:[%s7914 + $0x14] sm:$0xf]
        %v7921 = vld [vmem:[%s7914 + $0x18] sm:$0xf]
        %v7922 = vld [vmem:[%s7914 + $0x1c] sm:$0xf]
        %v7923 = vld [vmem:[%s7914 + $0x20] sm:$0xf]
        %v7924 = vld [vmem:[%s7914 + $0x24] sm:$0xf]
        %v7925 = vld [vmem:[%s7914 + $0x28] sm:$0xf]
        %v7926 = vld [vmem:[%s7914 + $0x2c] sm:$0xf]
        %v7927 = vld [vmem:[%s7914 + $0x30] sm:$0xf]
        %v7928 = vld [vmem:[%s7914 + $0x34] sm:$0xf]
        %v7929 = vld [vmem:[%s7914 + $0x38] sm:$0xf]
        %v7930 = vld [vmem:[%s7914 + $0x3c] sm:$0xf]
        %v7932 = vshrl.u32 %v7888, 16
        %v7934 = vshll.u32 %v7888, 16
        %v7936 = vrot.slane %v7934, 1
        %v7937 = vor.u32 %v7932, %v7936
        %v7939 = vshll.u32 %v7889, 16
        %v7941 = vrot.slane %v7939, 1
        %v7942 = vsel %vm3134, %v7937, %v7941
        %v7943 = vshrl.u32 %v7889, 16
        %v7945 = vor.u32 %v7943, %v7941
        %v7947 = vshll.u32 %v7890, 16
        %v7949 = vrot.slane %v7947, 1
        %v7950 = vsel %vm3134, %v7945, %v7949
        %v7951 = vshrl.u32 %v7890, 16
        %v7953 = vor.u32 %v7951, %v7949
        %v7955 = vshll.u32 %v7891, 16
        %v7957 = vrot.slane %v7955, 1
        %v7958 = vsel %vm3134, %v7953, %v7957
        %v7959 = vshrl.u32 %v7891, 16
        %v7961 = vor.u32 %v7959, %v7957
        %v7963 = vshll.u32 %v7892, 16
        %v7965 = vrot.slane %v7963, 1
        %v7966 = vsel %vm3134, %v7961, %v7965
        %v7967 = vshrl.u32 %v7892, 16
        %v7969 = vor.u32 %v7967, %v7965
        %v7971 = vshll.u32 %v7893, 16
        %v7973 = vrot.slane %v7971, 1
        %v7974 = vsel %vm3134, %v7969, %v7973
        %v7975 = vshrl.u32 %v7893, 16
        %v7977 = vor.u32 %v7975, %v7973
        %v7979 = vshll.u32 %v7894, 16
        %v7981 = vrot.slane %v7979, 1
        %v7982 = vsel %vm3134, %v7977, %v7981
        %v7983 = vshrl.u32 %v7894, 16
        %v7985 = vor.u32 %v7983, %v7981
        %v7987 = vshll.u32 %v7895, 16
        %v7989 = vrot.slane %v7987, 1
        %v7990 = vsel %vm3134, %v7985, %v7989
        %v7991 = vshrl.u32 %v7895, 16
        %v7993 = vor.u32 %v7991, %v7989
        %v7995 = vshll.u32 %v7896, 16
        %v7997 = vrot.slane %v7995, 1
        %v7998 = vsel %vm3134, %v7993, %v7997
        %v7999 = vshrl.u32 %v7896, 16
        %v8001 = vor.u32 %v7999, %v7997
        %v8003 = vshll.u32 %v7897, 16
        %v8005 = vrot.slane %v8003, 1
        %v8006 = vsel %vm3134, %v8001, %v8005
        %v8007 = vshrl.u32 %v7897, 16
        %v8009 = vor.u32 %v8007, %v8005
        %v8011 = vshll.u32 %v7898, 16
        %v8013 = vrot.slane %v8011, 1
        %v8014 = vsel %vm3134, %v8009, %v8013
        %v8015 = vshrl.u32 %v7898, 16
        %v8017 = vor.u32 %v8015, %v8013
        %v8019 = vshll.u32 %v7899, 16
        %v8021 = vrot.slane %v8019, 1
        %v8022 = vsel %vm3134, %v8017, %v8021
        %v8023 = vshrl.u32 %v7899, 16
        %v8025 = vor.u32 %v8023, %v8021
        %v8027 = vshll.u32 %v7900, 16
        %v8029 = vrot.slane %v8027, 1
        %v8030 = vsel %vm3134, %v8025, %v8029
        %v8031 = vshrl.u32 %v7900, 16
        %v8033 = vor.u32 %v8031, %v8029
        %v8035 = vshll.u32 %v7901, 16
        %v8037 = vrot.slane %v8035, 1
        %v8038 = vsel %vm3134, %v8033, %v8037
        %v8039 = vshrl.u32 %v7901, 16
        %v8041 = vor.u32 %v8039, %v8037
        %v8043 = vshll.u32 %v7902, 16
        %v8045 = vrot.slane %v8043, 1
        %v8046 = vsel %vm3134, %v8041, %v8045
        %v8047 = vshrl.u32 %v7902, 16
        %v8049 = vor.u32 %v8047, %v8045
        %v8051 = vshll.u32 %v7903, 16
        %v8053 = vrot.slane %v8051, 1
        %v8054 = vsel %vm3134, %v8049, %v8053
        %v8055 = vshrl.u32 %v7903, 16
        %v8057 = vor.u32 %v8055, %v8053
        %v8059 = vshll.u32 %v7904, 16
        %v8061 = vrot.slane %v8059, 1
        %v8062 = vsel %vm3134, %v8057, %v8061
        %v8063 = vshrl.u32 %v7904, 16
        %v8065 = vor.u32 %v8063, %v8061
        %v8067 = vshll.u32 %v7905, 16
        %v8069 = vrot.slane %v8067, 1
        %v8070 = vsel %vm3134, %v8065, %v8069
        %v8071 = vshrl.u32 %v7905, 16
        %v8073 = vor.u32 %v8071, %v8069
        %v8075 = vshll.u32 %v7906, 16
        %v8077 = vrot.slane %v8075, 1
        %v8078 = vsel %vm3134, %v8073, %v8077
        %v8079 = vshrl.u32 %v7906, 16
        %v8081 = vor.u32 %v8079, %v8077
        %v8083 = vshll.u32 %v7907, 16
        %v8085 = vrot.slane %v8083, 1
        %v8086 = vsel %vm3134, %v8081, %v8085
        %v8087 = vshrl.u32 %v7907, 16
        %v8089 = vor.u32 %v8087, %v8085
        %v8091 = vshll.u32 %v7908, 16
        %v8093 = vrot.slane %v8091, 1
        %v8094 = vsel %vm3134, %v8089, %v8093
        %v8095 = vshrl.u32 %v7908, 16
        %v8097 = vor.u32 %v8095, %v8093
        %v8099 = vshll.u32 %v7909, 16
        %v8101 = vrot.slane %v8099, 1
        %v8102 = vsel %vm3134, %v8097, %v8101
        %v8103 = vshrl.u32 %v7909, 16
        %v8105 = vor.u32 %v8103, %v8101
        %v8107 = vshll.u32 %v7910, 16
        %v8109 = vrot.slane %v8107, 1
        %v8110 = vsel %vm3134, %v8105, %v8109
        %v8111 = vshrl.u32 %v7910, 16
        %v8113 = vor.u32 %v8111, %v8109
        %v8115 = vshll.u32 %v7911, 16
        %v8117 = vrot.slane %v8115, 1
        %v8118 = vsel %vm3134, %v8113, %v8117
        %v8119 = vshrl.u32 %v7911, 16
        %v8121 = vor.u32 %v8119, %v8117
        %v8123 = vshll.u32 %v7912, 16
        %v8125 = vrot.slane %v8123, 1
        %v8126 = vsel %vm3134, %v8121, %v8125
        %v8167 = vunpack.c.l.b16 %v7915
        %v8168 = vunpack.c.l.b16 %v7916
        %v8169 = vunpack.c.l.b16 %v7917
        %v8170 = vunpack.c.l.b16 %v7918
        %v8171 = vunpack.c.l.b16 %v7919
        %v8172 = vunpack.c.l.b16 %v7920
        %v8173 = vunpack.c.l.b16 %v7921
        %v8174 = vunpack.c.l.b16 %v7922
        %v8175 = vunpack.c.l.b16 %v7923
        %v8176 = vunpack.c.l.b16 %v7924
        %v8177 = vunpack.c.l.b16 %v7925
        %v8178 = vunpack.c.l.b16 %v7926
        %v8179 = vunpack.c.l.b16 %v7927
        %v8180 = vunpack.c.l.b16 %v7928
        %v8181 = vunpack.c.l.b16 %v7929
        %v8182 = vunpack.c.l.b16 %v7930
        %v8183 = vpack.c.b16 %v8168, %v8167
        %v8184 = vpack.c.b16 %v8170, %v8169
        %v8185 = vpack.c.b16 %v8172, %v8171
        %v8186 = vpack.c.b16 %v8174, %v8173
        %v8187 = vpack.c.b16 %v8176, %v8175
        %v8188 = vpack.c.b16 %v8178, %v8177
        %v8189 = vpack.c.b16 %v8180, %v8179
        %v8190 = vpack.c.b16 %v8182, %v8181
        %8199 = vmatprep.subr.bf16.mxu0 0
        %8200 = vmatpush1.bf16.msra.mxu0 %v8183
        %8201 = vmatprep.subr.bf16.mxu0 0
        %8202 = vmatpush1.bf16.msra.mxu0 %v8184
        %8203 = vmatprep.subr.bf16.mxu0 0
        %8204 = vmatpush1.bf16.msra.mxu0 %v8185
        %8205 = vmatprep.subr.bf16.mxu0 0
        %8206 = vmatpush1.bf16.msra.mxu0 %v8186
        %8207 = vmatprep.subr.bf16.mxu0 0
        %8208 = vmatpush1.bf16.msra.mxu0 %v8187
        %8209 = vmatprep.subr.bf16.mxu0 0
        %8210 = vmatpush1.bf16.msra.mxu0 %v8188
        %8211 = vmatprep.subr.bf16.mxu0 0
        %8212 = vmatpush1.bf16.msra.mxu0 %v8189
        %8213 = vmatprep.subr.bf16.mxu0 0
        %8214 = vmatpush1.bf16.msra.mxu0 %v8190
        %8215 = vmatprep.subr.bf16.mxu0 0
        %8216 = vmatpush1.bf16.msra.mxu0 0
        %8217 = vmatprep.subr.bf16.mxu0 0
        %8218 = vmatpush1.bf16.msra.mxu0 0
        %8219 = vmatprep.subr.bf16.mxu0 0
        %8220 = vmatpush1.bf16.msra.mxu0 0
        %8221 = vmatprep.subr.bf16.mxu0 0
        %8222 = vmatpush1.bf16.msra.mxu0 0
        %8223 = vmatprep.subr.bf16.mxu0 0
        %8224 = vmatpush1.bf16.msra.mxu0 0
        %8225 = vmatprep.subr.bf16.mxu0 0
        %8226 = vmatpush1.bf16.msra.mxu0 0
        %8227 = vmatprep.subr.bf16.mxu0 0
        %8228 = vmatpush1.bf16.msra.mxu0 0
        %8229 = vmatprep.subr.bf16.mxu0 0
        %8230 = vmatpush1.bf16.msra.mxu0 0
        %8231 = vmatprep.mubr.bf16.mxu0 0
        %8232 = vmatmul.mubr.bf16.gmra.mrb[0].mxu0 %v7942
        %v8233 = vpop.f32.mrb[0].mxu0
        %v8234 = vadd.f32 0.0, %v8233
        %v8235 = vpop.f32.mrb[0].mxu0
        %v8236 = vpop.f32.mrb[0].mxu0
        %v8237 = vadd.f32 0.0, %v8236
        %v8238 = vpop.f32.mrb[0].mxu0
        %8239 = vmatprep.mubr.bf16.mxu0 0
        %8240 = vmatmul.mubr.bf16.gmra.mrb[0].mxu0 %v7950
        %v8241 = vpop.f32.mrb[0].mxu0
        %v8242 = vadd.f32 0.0, %v8241
        %v8243 = vpop.f32.mrb[0].mxu0
        %v8244 = vpop.f32.mrb[0].mxu0
        %v8245 = vadd.f32 0.0, %v8244
        %v8246 = vpop.f32.mrb[0].mxu0
        %8247 = vmatprep.mubr.bf16.mxu0 0
        %8248 = vmatmul.mubr.bf16.gmra.mrb[0].mxu0 %v7958
        %v8249 = vpop.f32.mrb[0].mxu0
        %v8250 = vadd.f32 0.0, %v8249
        %v8251 = vpop.f32.mrb[0].mxu0
        %v8252 = vpop.f32.mrb[0].mxu0
        %v8253 = vadd.f32 0.0, %v8252
        %v8254 = vpop.f32.mrb[0].mxu0
        %8255 = vmatprep.mubr.bf16.mxu0 0
        %8256 = vmatmul.mubr.bf16.gmra.mrb[0].mxu0 %v7966
        %v8257 = vpop.f32.mrb[0].mxu0
        %v8258 = vadd.f32 0.0, %v8257
        %v8259 = vpop.f32.mrb[0].mxu0
        %v8260 = vpop.f32.mrb[0].mxu0
        %v8261 = vadd.f32 0.0, %v8260
        %v8262 = vpop.f32.mrb[0].mxu0
        %8263 = vmatprep.mubr.bf16.mxu0 0
        %8264 = vmatmul.mubr.bf16.gmra.mrb[0].mxu0 %v7974
        %v8265 = vpop.f32.mrb[0].mxu0
        %v8266 = vadd.f32 0.0, %v8265
        %v8267 = vpop.f32.mrb[0].mxu0
        %v8268 = vpop.f32.mrb[0].mxu0
        %v8269 = vadd.f32 0.0, %v8268
        %v8270 = vpop.f32.mrb[0].mxu0
        %8271 = vmatprep.mubr.bf16.mxu0 0
        %8272 = vmatmul.mubr.bf16.gmra.mrb[0].mxu0 %v7982
        %v8273 = vpop.f32.mrb[0].mxu0
        %v8274 = vadd.f32 0.0, %v8273
        %v8275 = vpop.f32.mrb[0].mxu0
        %v8276 = vpop.f32.mrb[0].mxu0
        %v8277 = vadd.f32 0.0, %v8276
        %v8278 = vpop.f32.mrb[0].mxu0
        %8279 = vmatprep.mubr.bf16.mxu0 0
        %8280 = vmatmul.mubr.bf16.gmra.mrb[0].mxu0 %v7990
        %v8281 = vpop.f32.mrb[0].mxu0
        %v8282 = vadd.f32 0.0, %v8281
        %v8283 = vpop.f32.mrb[0].mxu0
        %v8284 = vpop.f32.mrb[0].mxu0
        %v8285 = vadd.f32 0.0, %v8284
        %v8286 = vpop.f32.mrb[0].mxu0
        %8287 = vmatprep.mubr.bf16.mxu0 0
        %8288 = vmatmul.mubr.bf16.gmra.mrb[0].mxu0 %v7998
        %v8289 = vpop.f32.mrb[0].mxu0
        %v8290 = vadd.f32 0.0, %v8289
        %v8291 = vpop.f32.mrb[0].mxu0
        %v8292 = vpop.f32.mrb[0].mxu0
        %v8293 = vadd.f32 0.0, %v8292
        %v8294 = vpop.f32.mrb[0].mxu0
        %8295 = vmatprep.mubr.bf16.mxu0 0
        %8296 = vmatmul.mubr.bf16.gmra.mrb[0].mxu0 %v8006
        %v8297 = vpop.f32.mrb[0].mxu0
        %v8298 = vadd.f32 0.0, %v8297
        %v8299 = vpop.f32.mrb[0].mxu0
        %v8300 = vpop.f32.mrb[0].mxu0
        %v8301 = vadd.f32 0.0, %v8300
        %v8302 = vpop.f32.mrb[0].mxu0
        %8303 = vmatprep.mubr.bf16.mxu0 0
        %8304 = vmatmul.mubr.bf16.gmra.mrb[0].mxu0 %v8014
        %v8305 = vpop.f32.mrb[0].mxu0
        %v8306 = vadd.f32 0.0, %v8305
        %v8307 = vpop.f32.mrb[0].mxu0
        %v8308 = vpop.f32.mrb[0].mxu0
        %v8309 = vadd.f32 0.0, %v8308
        %v8310 = vpop.f32.mrb[0].mxu0
        %8311 = vmatprep.mubr.bf16.mxu0 0
        %8312 = vmatmul.mubr.bf16.gmra.mrb[0].mxu0 %v8022
        %v8313 = vpop.f32.mrb[0].mxu0
        %v8314 = vadd.f32 0.0, %v8313
        %v8315 = vpop.f32.mrb[0].mxu0
        %v8316 = vpop.f32.mrb[0].mxu0
        %v8317 = vadd.f32 0.0, %v8316
        %v8318 = vpop.f32.mrb[0].mxu0
        %8319 = vmatprep.mubr.bf16.mxu0 0
        %8320 = vmatmul.mubr.bf16.gmra.mrb[0].mxu0 %v8030
        %v8321 = vpop.f32.mrb[0].mxu0
        %v8322 = vadd.f32 0.0, %v8321
        %v8323 = vpop.f32.mrb[0].mxu0
        %v8324 = vpop.f32.mrb[0].mxu0
        %v8325 = vadd.f32 0.0, %v8324
        %v8326 = vpop.f32.mrb[0].mxu0
        %8327 = vmatprep.mubr.bf16.mxu0 0
        %8328 = vmatmul.mubr.bf16.gmra.mrb[0].mxu0 %v8038
        %v8329 = vpop.f32.mrb[0].mxu0
        %v8330 = vadd.f32 0.0, %v8329
        %v8331 = vpop.f32.mrb[0].mxu0
        %v8332 = vpop.f32.mrb[0].mxu0
        %v8333 = vadd.f32 0.0, %v8332
        %v8334 = vpop.f32.mrb[0].mxu0
        %8335 = vmatprep.mubr.bf16.mxu0 0
        %8336 = vmatmul.mubr.bf16.gmra.mrb[0].mxu0 %v8046
        %v8337 = vpop.f32.mrb[0].mxu0
        %v8338 = vadd.f32 0.0, %v8337
        %v8339 = vpop.f32.mrb[0].mxu0
        %v8340 = vpop.f32.mrb[0].mxu0
        %v8341 = vadd.f32 0.0, %v8340
        %v8342 = vpop.f32.mrb[0].mxu0
        %8343 = vmatprep.mubr.bf16.mxu0 0
        %8344 = vmatmul.mubr.bf16.gmra.mrb[0].mxu0 %v8054
        %v8345 = vpop.f32.mrb[0].mxu0
        %v8346 = vadd.f32 0.0, %v8345
        %v8347 = vpop.f32.mrb[0].mxu0
        %v8348 = vpop.f32.mrb[0].mxu0
        %v8349 = vadd.f32 0.0, %v8348
        %v8350 = vpop.f32.mrb[0].mxu0
        %8351 = vmatprep.mubr.bf16.mxu0 0
        %8352 = vmatmul.mubr.bf16.gmra.mrb[0].mxu0 %v8062
        %v8353 = vpop.f32.mrb[0].mxu0
        %v8354 = vadd.f32 0.0, %v8353
        %v8355 = vpop.f32.mrb[0].mxu0
        %v8356 = vpop.f32.mrb[0].mxu0
        %v8357 = vadd.f32 0.0, %v8356
        %v8358 = vpop.f32.mrb[0].mxu0
        %8359 = vmatprep.mubr.bf16.mxu0 0
        %8360 = vmatmul.mubr.bf16.gmra.mrb[0].mxu0 %v8070
        %v8361 = vpop.f32.mrb[0].mxu0
        %v8362 = vadd.f32 0.0, %v8361
        %v8363 = vpop.f32.mrb[0].mxu0
        %v8364 = vpop.f32.mrb[0].mxu0
        %v8365 = vadd.f32 0.0, %v8364
        %v8366 = vpop.f32.mrb[0].mxu0
        %8367 = vmatprep.mubr.bf16.mxu0 0
        %8368 = vmatmul.mubr.bf16.gmra.mrb[0].mxu0 %v8078
        %v8369 = vpop.f32.mrb[0].mxu0
        %v8370 = vadd.f32 0.0, %v8369
        %v8371 = vpop.f32.mrb[0].mxu0
        %v8372 = vpop.f32.mrb[0].mxu0
        %v8373 = vadd.f32 0.0, %v8372
        %v8374 = vpop.f32.mrb[0].mxu0
        %8375 = vmatprep.mubr.bf16.mxu0 0
        %8376 = vmatmul.mubr.bf16.gmra.mrb[0].mxu0 %v8086
        %v8377 = vpop.f32.mrb[0].mxu0
        %v8378 = vadd.f32 0.0, %v8377
        %v8379 = vpop.f32.mrb[0].mxu0
        %v8380 = vpop.f32.mrb[0].mxu0
        %v8381 = vadd.f32 0.0, %v8380
        %v8382 = vpop.f32.mrb[0].mxu0
        %8383 = vmatprep.mubr.bf16.mxu0 0
        %8384 = vmatmul.mubr.bf16.gmra.mrb[0].mxu0 %v8094
        %v8385 = vpop.f32.mrb[0].mxu0
        %v8386 = vadd.f32 0.0, %v8385
        %v8387 = vpop.f32.mrb[0].mxu0
        %v8388 = vpop.f32.mrb[0].mxu0
        %v8389 = vadd.f32 0.0, %v8388
        %v8390 = vpop.f32.mrb[0].mxu0
        %8391 = vmatprep.mubr.bf16.mxu0 0
        %8392 = vmatmul.mubr.bf16.gmra.mrb[0].mxu0 %v8102
        %v8393 = vpop.f32.mrb[0].mxu0
        %v8394 = vadd.f32 0.0, %v8393
        %v8395 = vpop.f32.mrb[0].mxu0
        %v8396 = vpop.f32.mrb[0].mxu0
        %v8397 = vadd.f32 0.0, %v8396
        %v8398 = vpop.f32.mrb[0].mxu0
        %8399 = vmatprep.mubr.bf16.mxu0 0
        %8400 = vmatmul.mubr.bf16.gmra.mrb[0].mxu0 %v8110
        %v8401 = vpop.f32.mrb[0].mxu0
        %v8402 = vadd.f32 0.0, %v8401
        %v8403 = vpop.f32.mrb[0].mxu0
        %v8404 = vpop.f32.mrb[0].mxu0
        %v8405 = vadd.f32 0.0, %v8404
        %v8406 = vpop.f32.mrb[0].mxu0
        %8407 = vmatprep.mubr.bf16.mxu0 0
        %8408 = vmatmul.mubr.bf16.gmra.mrb[0].mxu0 %v8118
        %v8409 = vpop.f32.mrb[0].mxu0
        %v8410 = vadd.f32 0.0, %v8409
        %v8411 = vpop.f32.mrb[0].mxu0
        %v8412 = vpop.f32.mrb[0].mxu0
        %v8413 = vadd.f32 0.0, %v8412
        %v8414 = vpop.f32.mrb[0].mxu0
        %8415 = vmatprep.mubr.bf16.mxu0 0
        %8416 = vmatmul.mubr.bf16.gmra.mrb[0].mxu0 %v8126
        %v8417 = vpop.f32.mrb[0].mxu0
        %v8418 = vadd.f32 0.0, %v8417
        %v8419 = vpop.f32.mrb[0].mxu0
        %v8420 = vpop.f32.mrb[0].mxu0
        %v8421 = vadd.f32 0.0, %v8420
        %v8422 = vpop.f32.mrb[0].mxu0
        %8423 = vdwg.mxu0
        %v8424 = vadd.f32 %v7840, %v8234
        %v8425 = vadd.f32 %v7841, %v8237
        %v8426 = vadd.f32 %v7842, %v8242
        %v8427 = vadd.f32 %v7843, %v8245
        %v8428 = vadd.f32 %v7844, %v8250
        %v8429 = vadd.f32 %v7845, %v8253
        %v8430 = vadd.f32 %v7846, %v8258
        %v8431 = vadd.f32 %v7847, %v8261
        %v8432 = vadd.f32 %v7848, %v8266
        %v8433 = vadd.f32 %v7849, %v8269
        %v8434 = vadd.f32 %v7850, %v8274
        %v8435 = vadd.f32 %v7851, %v8277
        %v8436 = vadd.f32 %v7852, %v8282
        %v8437 = vadd.f32 %v7853, %v8285
        %v8438 = vadd.f32 %v7854, %v8290
        %v8439 = vadd.f32 %v7855, %v8293
        %v8440 = vadd.f32 %v7856, %v8298
        %v8441 = vadd.f32 %v7857, %v8301
        %v8442 = vadd.f32 %v7858, %v8306
        %v8443 = vadd.f32 %v7859, %v8309
        %v8444 = vadd.f32 %v7860, %v8314
        %v8445 = vadd.f32 %v7861, %v8317
        %v8446 = vadd.f32 %v7862, %v8322
        %v8447 = vadd.f32 %v7863, %v8325
        %v8448 = vadd.f32 %v7864, %v8330
        %v8449 = vadd.f32 %v7865, %v8333
        %v8450 = vadd.f32 %v7866, %v8338
        %v8451 = vadd.f32 %v7867, %v8341
        %v8452 = vadd.f32 %v7868, %v8346
        %v8453 = vadd.f32 %v7869, %v8349
        %v8454 = vadd.f32 %v7870, %v8354
        %v8455 = vadd.f32 %v7871, %v8357
        %v8456 = vadd.f32 %v7872, %v8362
        %v8457 = vadd.f32 %v7873, %v8365
        %v8458 = vadd.f32 %v7874, %v8370
        %v8459 = vadd.f32 %v7875, %v8373
        %v8460 = vadd.f32 %v7876, %v8378
        %v8461 = vadd.f32 %v7877, %v8381
        %v8462 = vadd.f32 %v7878, %v8386
        %v8463 = vadd.f32 %v7879, %v8389
        %v8464 = vadd.f32 %v7880, %v8394
        %v8465 = vadd.f32 %v7881, %v8397
        %v8466 = vadd.f32 %v7882, %v8402
        %v8467 = vadd.f32 %v7883, %v8405
        %v8468 = vadd.f32 %v7884, %v8410
        %v8469 = vadd.f32 %v7885, %v8413
        %v8470 = vadd.f32 %v7886, %v8418
        %v8471 = vadd.f32 %v7887, %v8421
        %v8472 = vld [vmem:[#allocation3 + $0x18] sm:$0xf8]
        %v8473 = vld [vmem:[#allocation3 + $0x20] sm:$0xff]
        %v8474 = vld [vmem:[#allocation3 + $0x28] sm:$0xff]
        %v8475 = vld [vmem:[#allocation3 + $0x30] sm:$0xff]
        %v8476 = vld [vmem:[#allocation3 + $0x38] sm:$0xff]
        %v8477 = vld [vmem:[#allocation3 + $0x40] sm:$0xff]
        %v8478 = vld [vmem:[#allocation3 + $0x48] sm:$0xff]
        %v8479 = vld [vmem:[#allocation3 + $0x50] sm:$0xff]
        %v8480 = vld [vmem:[#allocation3 + $0x58] sm:$0xff]
        %v8481 = vld [vmem:[#allocation3 + $0x60] sm:$0xff]
        %v8482 = vld [vmem:[#allocation3 + $0x68] sm:$0xff]
        %v8483 = vld [vmem:[#allocation3 + $0x70] sm:$0xff]
        %v8484 = vld [vmem:[#allocation3 + $0x78] sm:$0xff]
        %v8485 = vld [vmem:[#allocation3 + $0x80] sm:$0xff]
        %v8486 = vld [vmem:[#allocation3 + $0x88] sm:$0xff]
        %v8487 = vld [vmem:[#allocation3 + $0x90] sm:$0xff]
        %v8488 = vld [vmem:[#allocation3 + $0x98] sm:$0xff]
        %v8489 = vld [vmem:[#allocation3 + $0xa0] sm:$0xff]
        %v8490 = vld [vmem:[#allocation3 + $0xa8] sm:$0xff]
        %v8491 = vld [vmem:[#allocation3 + $0xb0] sm:$0xff]
        %v8492 = vld [vmem:[#allocation3 + $0xb8] sm:$0xff]
        %v8493 = vld [vmem:[#allocation3 + $0xc0] sm:$0xff]
        %v8494 = vld [vmem:[#allocation3 + $0xc8] sm:$0xff]
        %v8495 = vld [vmem:[#allocation3 + $0xd0] sm:$0xff]
        %v8496 = vld [vmem:[#allocation3 + $0xd8] sm:$0xf]
        %s8497 = smul.addr %s3701, 4
        %s8498 = scalar_lea.vmem [#allocation9], %s8497
        %v8499 = vld [vmem:[%s8498] sm:$0xf]
        %v8500 = vld [vmem:[%s8498 + $0x4] sm:$0xf]
        %v8501 = vld [vmem:[%s8498 + $0x8] sm:$0xf]
        %v8502 = vld [vmem:[%s8498 + $0xc] sm:$0xf]
        %v8503 = vld [vmem:[%s8498 + $0x10] sm:$0xf]
        %v8504 = vld [vmem:[%s8498 + $0x14] sm:$0xf]
        %v8505 = vld [vmem:[%s8498 + $0x18] sm:$0xf]
        %v8506 = vld [vmem:[%s8498 + $0x1c] sm:$0xf]
        %v8507 = vld [vmem:[%s8498 + $0x20] sm:$0xf]
        %v8508 = vld [vmem:[%s8498 + $0x24] sm:$0xf]
        %v8509 = vld [vmem:[%s8498 + $0x28] sm:$0xf]
        %v8510 = vld [vmem:[%s8498 + $0x2c] sm:$0xf]
        %v8511 = vld [vmem:[%s8498 + $0x30] sm:$0xf]
        %v8512 = vld [vmem:[%s8498 + $0x34] sm:$0xf]
        %v8513 = vld [vmem:[%s8498 + $0x38] sm:$0xf]
        %v8514 = vld [vmem:[%s8498 + $0x3c] sm:$0xf]
        %v8516 = vshrl.u32 %v8472, 16
        %v8518 = vrot.slane %v8516, 3
        %v8519 = vshll.u32 %v8472, 16
        %v8521 = vrot.slane %v8519, 4
        %v8522 = vor.u32 %v8518, %v8521
        %v8524 = vshrl.u32 %v8473, 16
        %v8526 = vrot.slane %v8524, 3
        %v8527 = vshll.u32 %v8473, 16
        %v8529 = vrot.slane %v8527, 4
        %v8530 = vor.u32 %v8526, %v8529
        %v8531 = vsel %vm1167, %v8522, %v8530
        %v8533 = vshrl.u32 %v8474, 16
        %v8535 = vrot.slane %v8533, 3
        %v8536 = vshll.u32 %v8474, 16
        %v8538 = vrot.slane %v8536, 4
        %v8539 = vor.u32 %v8535, %v8538
        %v8540 = vsel %vm1167, %v8530, %v8539
        %v8542 = vshrl.u32 %v8475, 16
        %v8544 = vrot.slane %v8542, 3
        %v8545 = vshll.u32 %v8475, 16
        %v8547 = vrot.slane %v8545, 4
        %v8548 = vor.u32 %v8544, %v8547
        %v8549 = vsel %vm1167, %v8539, %v8548
        %v8551 = vshrl.u32 %v8476, 16
        %v8553 = vrot.slane %v8551, 3
        %v8554 = vshll.u32 %v8476, 16
        %v8556 = vrot.slane %v8554, 4
        %v8557 = vor.u32 %v8553, %v8556
        %v8558 = vsel %vm1167, %v8548, %v8557
        %v8560 = vshrl.u32 %v8477, 16
        %v8562 = vrot.slane %v8560, 3
        %v8563 = vshll.u32 %v8477, 16
        %v8565 = vrot.slane %v8563, 4
        %v8566 = vor.u32 %v8562, %v8565
        %v8567 = vsel %vm1167, %v8557, %v8566
        %v8569 = vshrl.u32 %v8478, 16
        %v8571 = vrot.slane %v8569, 3
        %v8572 = vshll.u32 %v8478, 16
        %v8574 = vrot.slane %v8572, 4
        %v8575 = vor.u32 %v8571, %v8574
        %v8576 = vsel %vm1167, %v8566, %v8575
        %v8578 = vshrl.u32 %v8479, 16
        %v8580 = vrot.slane %v8578, 3
        %v8581 = vshll.u32 %v8479, 16
        %v8583 = vrot.slane %v8581, 4
        %v8584 = vor.u32 %v8580, %v8583
        %v8585 = vsel %vm1167, %v8575, %v8584
        %v8587 = vshrl.u32 %v8480, 16
        %v8589 = vrot.slane %v8587, 3
        %v8590 = vshll.u32 %v8480, 16
        %v8592 = vrot.slane %v8590, 4
        %v8593 = vor.u32 %v8589, %v8592
        %v8594 = vsel %vm1167, %v8584, %v8593
        %v8596 = vshrl.u32 %v8481, 16
        %v8598 = vrot.slane %v8596, 3
        %v8599 = vshll.u32 %v8481, 16
        %v8601 = vrot.slane %v8599, 4
        %v8602 = vor.u32 %v8598, %v8601
        %v8603 = vsel %vm1167, %v8593, %v8602
        %v8605 = vshrl.u32 %v8482, 16
        %v8607 = vrot.slane %v8605, 3
        %v8608 = vshll.u32 %v8482, 16
        %v8610 = vrot.slane %v8608, 4
        %v8611 = vor.u32 %v8607, %v8610
        %v8612 = vsel %vm1167, %v8602, %v8611
        %v8614 = vshrl.u32 %v8483, 16
        %v8616 = vrot.slane %v8614, 3
        %v8617 = vshll.u32 %v8483, 16
        %v8619 = vrot.slane %v8617, 4
        %v8620 = vor.u32 %v8616, %v8619
        %v8621 = vsel %vm1167, %v8611, %v8620
        %v8623 = vshrl.u32 %v8484, 16
        %v8625 = vrot.slane %v8623, 3
        %v8626 = vshll.u32 %v8484, 16
        %v8628 = vrot.slane %v8626, 4
        %v8629 = vor.u32 %v8625, %v8628
        %v8630 = vsel %vm1167, %v8620, %v8629
        %v8632 = vshrl.u32 %v8485, 16
        %v8634 = vrot.slane %v8632, 3
        %v8635 = vshll.u32 %v8485, 16
        %v8637 = vrot.slane %v8635, 4
        %v8638 = vor.u32 %v8634, %v8637
        %v8639 = vsel %vm1167, %v8629, %v8638
        %v8641 = vshrl.u32 %v8486, 16
        %v8643 = vrot.slane %v8641, 3
        %v8644 = vshll.u32 %v8486, 16
        %v8646 = vrot.slane %v8644, 4
        %v8647 = vor.u32 %v8643, %v8646
        %v8648 = vsel %vm1167, %v8638, %v8647
        %v8650 = vshrl.u32 %v8487, 16
        %v8652 = vrot.slane %v8650, 3
        %v8653 = vshll.u32 %v8487, 16
        %v8655 = vrot.slane %v8653, 4
        %v8656 = vor.u32 %v8652, %v8655
        %v8657 = vsel %vm1167, %v8647, %v8656
        %v8659 = vshrl.u32 %v8488, 16
        %v8661 = vrot.slane %v8659, 3
        %v8662 = vshll.u32 %v8488, 16
        %v8664 = vrot.slane %v8662, 4
        %v8665 = vor.u32 %v8661, %v8664
        %v8666 = vsel %vm1167, %v8656, %v8665
        %v8668 = vshrl.u32 %v8489, 16
        %v8670 = vrot.slane %v8668, 3
        %v8671 = vshll.u32 %v8489, 16
        %v8673 = vrot.slane %v8671, 4
        %v8674 = vor.u32 %v8670, %v8673
        %v8675 = vsel %vm1167, %v8665, %v8674
        %v8677 = vshrl.u32 %v8490, 16
        %v8679 = vrot.slane %v8677, 3
        %v8680 = vshll.u32 %v8490, 16
        %v8682 = vrot.slane %v8680, 4
        %v8683 = vor.u32 %v8679, %v8682
        %v8684 = vsel %vm1167, %v8674, %v8683
        %v8686 = vshrl.u32 %v8491, 16
        %v8688 = vrot.slane %v8686, 3
        %v8689 = vshll.u32 %v8491, 16
        %v8691 = vrot.slane %v8689, 4
        %v8692 = vor.u32 %v8688, %v8691
        %v8693 = vsel %vm1167, %v8683, %v8692
        %v8695 = vshrl.u32 %v8492, 16
        %v8697 = vrot.slane %v8695, 3
        %v8698 = vshll.u32 %v8492, 16
        %v8700 = vrot.slane %v8698, 4
        %v8701 = vor.u32 %v8697, %v8700
        %v8702 = vsel %vm1167, %v8692, %v8701
        %v8704 = vshrl.u32 %v8493, 16
        %v8706 = vrot.slane %v8704, 3
        %v8707 = vshll.u32 %v8493, 16
        %v8709 = vrot.slane %v8707, 4
        %v8710 = vor.u32 %v8706, %v8709
        %v8711 = vsel %vm1167, %v8701, %v8710
        %v8713 = vshrl.u32 %v8494, 16
        %v8715 = vrot.slane %v8713, 3
        %v8716 = vshll.u32 %v8494, 16
        %v8718 = vrot.slane %v8716, 4
        %v8719 = vor.u32 %v8715, %v8718
        %v8720 = vsel %vm1167, %v8710, %v8719
        %v8722 = vshrl.u32 %v8495, 16
        %v8724 = vrot.slane %v8722, 3
        %v8725 = vshll.u32 %v8495, 16
        %v8727 = vrot.slane %v8725, 4
        %v8728 = vor.u32 %v8724, %v8727
        %v8729 = vsel %vm1167, %v8719, %v8728
        %v8731 = vshrl.u32 %v8496, 16
        %v8733 = vrot.slane %v8731, 3
        %v8734 = vshll.u32 %v8496, 16
        %v8736 = vrot.slane %v8734, 4
        %v8737 = vor.u32 %v8733, %v8736
        %v8738 = vsel %vm1167, %v8728, %v8737
        %v8779 = vunpack.c.l.b16 %v8499
        %v8780 = vunpack.c.l.b16 %v8500
        %v8781 = vunpack.c.l.b16 %v8501
        %v8782 = vunpack.c.l.b16 %v8502
        %v8783 = vunpack.c.l.b16 %v8503
        %v8784 = vunpack.c.l.b16 %v8504
        %v8785 = vunpack.c.l.b16 %v8505
        %v8786 = vunpack.c.l.b16 %v8506
        %v8787 = vunpack.c.l.b16 %v8507
        %v8788 = vunpack.c.l.b16 %v8508
        %v8789 = vunpack.c.l.b16 %v8509
        %v8790 = vunpack.c.l.b16 %v8510
        %v8791 = vunpack.c.l.b16 %v8511
        %v8792 = vunpack.c.l.b16 %v8512
        %v8793 = vunpack.c.l.b16 %v8513
        %v8794 = vunpack.c.l.b16 %v8514
        %v8795 = vpack.c.b16 %v8780, %v8779
        %v8796 = vpack.c.b16 %v8782, %v8781
        %v8797 = vpack.c.b16 %v8784, %v8783
        %v8798 = vpack.c.b16 %v8786, %v8785
        %v8799 = vpack.c.b16 %v8788, %v8787
        %v8800 = vpack.c.b16 %v8790, %v8789
        %v8801 = vpack.c.b16 %v8792, %v8791
        %v8802 = vpack.c.b16 %v8794, %v8793
        %8811 = vmatprep.subr.bf16.mxu0 0
        %8812 = vmatpush1.bf16.msra.mxu0 %v8795
        %8813 = vmatprep.subr.bf16.mxu0 0
        %8814 = vmatpush1.bf16.msra.mxu0 %v8796
        %8815 = vmatprep.subr.bf16.mxu0 0
        %8816 = vmatpush1.bf16.msra.mxu0 %v8797
        %8817 = vmatprep.subr.bf16.mxu0 0
        %8818 = vmatpush1.bf16.msra.mxu0 %v8798
        %8819 = vmatprep.subr.bf16.mxu0 0
        %8820 = vmatpush1.bf16.msra.mxu0 %v8799
        %8821 = vmatprep.subr.bf16.mxu0 0
        %8822 = vmatpush1.bf16.msra.mxu0 %v8800
        %8823 = vmatprep.subr.bf16.mxu0 0
        %8824 = vmatpush1.bf16.msra.mxu0 %v8801
        %8825 = vmatprep.subr.bf16.mxu0 0
        %8826 = vmatpush1.bf16.msra.mxu0 %v8802
        %8827 = vmatprep.subr.bf16.mxu0 0
        %8828 = vmatpush1.bf16.msra.mxu0 0
        %8829 = vmatprep.subr.bf16.mxu0 0
        %8830 = vmatpush1.bf16.msra.mxu0 0
        %8831 = vmatprep.subr.bf16.mxu0 0
        %8832 = vmatpush1.bf16.msra.mxu0 0
        %8833 = vmatprep.subr.bf16.mxu0 0
        %8834 = vmatpush1.bf16.msra.mxu0 0
        %8835 = vmatprep.subr.bf16.mxu0 0
        %8836 = vmatpush1.bf16.msra.mxu0 0
        %8837 = vmatprep.subr.bf16.mxu0 0
        %8838 = vmatpush1.bf16.msra.mxu0 0
        %8839 = vmatprep.subr.bf16.mxu0 0
        %8840 = vmatpush1.bf16.msra.mxu0 0
        %8841 = vmatprep.subr.bf16.mxu0 0
        %8842 = vmatpush1.bf16.msra.mxu0 0
        %8843 = vmatprep.mubr.bf16.mxu0 0
        %8844 = vmatmul.mubr.bf16.gmra.mrb[0].mxu0 %v8531
        %v8845 = vpop.f32.mrb[0].mxu0
        %v8846 = vadd.f32 0.0, %v8845
        %v8847 = vpop.f32.mrb[0].mxu0
        %v8848 = vpop.f32.mrb[0].mxu0
        %v8849 = vadd.f32 0.0, %v8848
        %v8850 = vpop.f32.mrb[0].mxu0
        %8851 = vmatprep.mubr.bf16.mxu0 0
        %8852 = vmatmul.mubr.bf16.gmra.mrb[0].mxu0 %v8540
        %v8853 = vpop.f32.mrb[0].mxu0
        %v8854 = vadd.f32 0.0, %v8853
        %v8855 = vpop.f32.mrb[0].mxu0
        %v8856 = vpop.f32.mrb[0].mxu0
        %v8857 = vadd.f32 0.0, %v8856
        %v8858 = vpop.f32.mrb[0].mxu0
        %8859 = vmatprep.mubr.bf16.mxu0 0
        %8860 = vmatmul.mubr.bf16.gmra.mrb[0].mxu0 %v8549
        %v8861 = vpop.f32.mrb[0].mxu0
        %v8862 = vadd.f32 0.0, %v8861
        %v8863 = vpop.f32.mrb[0].mxu0
        %v8864 = vpop.f32.mrb[0].mxu0
        %v8865 = vadd.f32 0.0, %v8864
        %v8866 = vpop.f32.mrb[0].mxu0
        %8867 = vmatprep.mubr.bf16.mxu0 0
        %8868 = vmatmul.mubr.bf16.gmra.mrb[0].mxu0 %v8558
        %v8869 = vpop.f32.mrb[0].mxu0
        %v8870 = vadd.f32 0.0, %v8869
        %v8871 = vpop.f32.mrb[0].mxu0
        %v8872 = vpop.f32.mrb[0].mxu0
        %v8873 = vadd.f32 0.0, %v8872
        %v8874 = vpop.f32.mrb[0].mxu0
        %8875 = vmatprep.mubr.bf16.mxu0 0
        %8876 = vmatmul.mubr.bf16.gmra.mrb[0].mxu0 %v8567
        %v8877 = vpop.f32.mrb[0].mxu0
        %v8878 = vadd.f32 0.0, %v8877
        %v8879 = vpop.f32.mrb[0].mxu0
        %v8880 = vpop.f32.mrb[0].mxu0
        %v8881 = vadd.f32 0.0, %v8880
        %v8882 = vpop.f32.mrb[0].mxu0
        %8883 = vmatprep.mubr.bf16.mxu0 0
        %8884 = vmatmul.mubr.bf16.gmra.mrb[0].mxu0 %v8576
        %v8885 = vpop.f32.mrb[0].mxu0
        %v8886 = vadd.f32 0.0, %v8885
        %v8887 = vpop.f32.mrb[0].mxu0
        %v8888 = vpop.f32.mrb[0].mxu0
        %v8889 = vadd.f32 0.0, %v8888
        %v8890 = vpop.f32.mrb[0].mxu0
        %8891 = vmatprep.mubr.bf16.mxu0 0
        %8892 = vmatmul.mubr.bf16.gmra.mrb[0].mxu0 %v8585
        %v8893 = vpop.f32.mrb[0].mxu0
        %v8894 = vadd.f32 0.0, %v8893
        %v8895 = vpop.f32.mrb[0].mxu0
        %v8896 = vpop.f32.mrb[0].mxu0
        %v8897 = vadd.f32 0.0, %v8896
        %v8898 = vpop.f32.mrb[0].mxu0
        %8899 = vmatprep.mubr.bf16.mxu0 0
        %8900 = vmatmul.mubr.bf16.gmra.mrb[0].mxu0 %v8594
        %v8901 = vpop.f32.mrb[0].mxu0
        %v8902 = vadd.f32 0.0, %v8901
        %v8903 = vpop.f32.mrb[0].mxu0
        %v8904 = vpop.f32.mrb[0].mxu0
        %v8905 = vadd.f32 0.0, %v8904
        %v8906 = vpop.f32.mrb[0].mxu0
        %8907 = vmatprep.mubr.bf16.mxu0 0
        %8908 = vmatmul.mubr.bf16.gmra.mrb[0].mxu0 %v8603
        %v8909 = vpop.f32.mrb[0].mxu0
        %v8910 = vadd.f32 0.0, %v8909
        %v8911 = vpop.f32.mrb[0].mxu0
        %v8912 = vpop.f32.mrb[0].mxu0
        %v8913 = vadd.f32 0.0, %v8912
        %v8914 = vpop.f32.mrb[0].mxu0
        %8915 = vmatprep.mubr.bf16.mxu0 0
        %8916 = vmatmul.mubr.bf16.gmra.mrb[0].mxu0 %v8612
        %v8917 = vpop.f32.mrb[0].mxu0
        %v8918 = vadd.f32 0.0, %v8917
        %v8919 = vpop.f32.mrb[0].mxu0
        %v8920 = vpop.f32.mrb[0].mxu0
        %v8921 = vadd.f32 0.0, %v8920
        %v8922 = vpop.f32.mrb[0].mxu0
        %8923 = vmatprep.mubr.bf16.mxu0 0
        %8924 = vmatmul.mubr.bf16.gmra.mrb[0].mxu0 %v8621
        %v8925 = vpop.f32.mrb[0].mxu0
        %v8926 = vadd.f32 0.0, %v8925
        %v8927 = vpop.f32.mrb[0].mxu0
        %v8928 = vpop.f32.mrb[0].mxu0
        %v8929 = vadd.f32 0.0, %v8928
        %v8930 = vpop.f32.mrb[0].mxu0
        %8931 = vmatprep.mubr.bf16.mxu0 0
        %8932 = vmatmul.mubr.bf16.gmra.mrb[0].mxu0 %v8630
        %v8933 = vpop.f32.mrb[0].mxu0
        %v8934 = vadd.f32 0.0, %v8933
        %v8935 = vpop.f32.mrb[0].mxu0
        %v8936 = vpop.f32.mrb[0].mxu0
        %v8937 = vadd.f32 0.0, %v8936
        %v8938 = vpop.f32.mrb[0].mxu0
        %8939 = vmatprep.mubr.bf16.mxu0 0
        %8940 = vmatmul.mubr.bf16.gmra.mrb[0].mxu0 %v8639
        %v8941 = vpop.f32.mrb[0].mxu0
        %v8942 = vadd.f32 0.0, %v8941
        %v8943 = vpop.f32.mrb[0].mxu0
        %v8944 = vpop.f32.mrb[0].mxu0
        %v8945 = vadd.f32 0.0, %v8944
        %v8946 = vpop.f32.mrb[0].mxu0
        %8947 = vmatprep.mubr.bf16.mxu0 0
        %8948 = vmatmul.mubr.bf16.gmra.mrb[0].mxu0 %v8648
        %v8949 = vpop.f32.mrb[0].mxu0
        %v8950 = vadd.f32 0.0, %v8949
        %v8951 = vpop.f32.mrb[0].mxu0
        %v8952 = vpop.f32.mrb[0].mxu0
        %v8953 = vadd.f32 0.0, %v8952
        %v8954 = vpop.f32.mrb[0].mxu0
        %8955 = vmatprep.mubr.bf16.mxu0 0
        %8956 = vmatmul.mubr.bf16.gmra.mrb[0].mxu0 %v8657
        %v8957 = vpop.f32.mrb[0].mxu0
        %v8958 = vadd.f32 0.0, %v8957
        %v8959 = vpop.f32.mrb[0].mxu0
        %v8960 = vpop.f32.mrb[0].mxu0
        %v8961 = vadd.f32 0.0, %v8960
        %v8962 = vpop.f32.mrb[0].mxu0
        %8963 = vmatprep.mubr.bf16.mxu0 0
        %8964 = vmatmul.mubr.bf16.gmra.mrb[0].mxu0 %v8666
        %v8965 = vpop.f32.mrb[0].mxu0
        %v8966 = vadd.f32 0.0, %v8965
        %v8967 = vpop.f32.mrb[0].mxu0
        %v8968 = vpop.f32.mrb[0].mxu0
        %v8969 = vadd.f32 0.0, %v8968
        %v8970 = vpop.f32.mrb[0].mxu0
        %8971 = vmatprep.mubr.bf16.mxu0 0
        %8972 = vmatmul.mubr.bf16.gmra.mrb[0].mxu0 %v8675
        %v8973 = vpop.f32.mrb[0].mxu0
        %v8974 = vadd.f32 0.0, %v8973
        %v8975 = vpop.f32.mrb[0].mxu0
        %v8976 = vpop.f32.mrb[0].mxu0
        %v8977 = vadd.f32 0.0, %v8976
        %v8978 = vpop.f32.mrb[0].mxu0
        %8979 = vmatprep.mubr.bf16.mxu0 0
        %8980 = vmatmul.mubr.bf16.gmra.mrb[0].mxu0 %v8684
        %v8981 = vpop.f32.mrb[0].mxu0
        %v8982 = vadd.f32 0.0, %v8981
        %v8983 = vpop.f32.mrb[0].mxu0
        %v8984 = vpop.f32.mrb[0].mxu0
        %v8985 = vadd.f32 0.0, %v8984
        %v8986 = vpop.f32.mrb[0].mxu0
        %8987 = vmatprep.mubr.bf16.mxu0 0
        %8988 = vmatmul.mubr.bf16.gmra.mrb[0].mxu0 %v8693
        %v8989 = vpop.f32.mrb[0].mxu0
        %v8990 = vadd.f32 0.0, %v8989
        %v8991 = vpop.f32.mrb[0].mxu0
        %v8992 = vpop.f32.mrb[0].mxu0
        %v8993 = vadd.f32 0.0, %v8992
        %v8994 = vpop.f32.mrb[0].mxu0
        %8995 = vmatprep.mubr.bf16.mxu0 0
        %8996 = vmatmul.mubr.bf16.gmra.mrb[0].mxu0 %v8702
        %v8997 = vpop.f32.mrb[0].mxu0
        %v8998 = vadd.f32 0.0, %v8997
        %v8999 = vpop.f32.mrb[0].mxu0
        %v9000 = vpop.f32.mrb[0].mxu0
        %v9001 = vadd.f32 0.0, %v9000
        %v9002 = vpop.f32.mrb[0].mxu0
        %9003 = vmatprep.mubr.bf16.mxu0 0
        %9004 = vmatmul.mubr.bf16.gmra.mrb[0].mxu0 %v8711
        %v9005 = vpop.f32.mrb[0].mxu0
        %v9006 = vadd.f32 0.0, %v9005
        %v9007 = vpop.f32.mrb[0].mxu0
        %v9008 = vpop.f32.mrb[0].mxu0
        %v9009 = vadd.f32 0.0, %v9008
        %v9010 = vpop.f32.mrb[0].mxu0
        %9011 = vmatprep.mubr.bf16.mxu0 0
        %9012 = vmatmul.mubr.bf16.gmra.mrb[0].mxu0 %v8720
        %v9013 = vpop.f32.mrb[0].mxu0
        %v9014 = vadd.f32 0.0, %v9013
        %v9015 = vpop.f32.mrb[0].mxu0
        %v9016 = vpop.f32.mrb[0].mxu0
        %v9017 = vadd.f32 0.0, %v9016
        %v9018 = vpop.f32.mrb[0].mxu0
        %9019 = vmatprep.mubr.bf16.mxu0 0
        %9020 = vmatmul.mubr.bf16.gmra.mrb[0].mxu0 %v8729
        %v9021 = vpop.f32.mrb[0].mxu0
        %v9022 = vadd.f32 0.0, %v9021
        %v9023 = vpop.f32.mrb[0].mxu0
        %v9024 = vpop.f32.mrb[0].mxu0
        %v9025 = vadd.f32 0.0, %v9024
        %v9026 = vpop.f32.mrb[0].mxu0
        %9027 = vmatprep.mubr.bf16.mxu0 0
        %9028 = vmatmul.mubr.bf16.gmra.mrb[0].mxu0 %v8738
        %v9029 = vpop.f32.mrb[0].mxu0
        %v9030 = vadd.f32 0.0, %v9029
        %v9031 = vpop.f32.mrb[0].mxu0
        %v9032 = vpop.f32.mrb[0].mxu0
        %v9033 = vadd.f32 0.0, %v9032
        %v9034 = vpop.f32.mrb[0].mxu0
        %9035 = vdwg.mxu0
        %v9036 = vadd.f32 %v8424, %v8846
        %v9037 = vadd.f32 %v8425, %v8849
        %v9038 = vadd.f32 %v8426, %v8854
        %v9039 = vadd.f32 %v8427, %v8857
        %v9040 = vadd.f32 %v8428, %v8862
        %v9041 = vadd.f32 %v8429, %v8865
        %v9042 = vadd.f32 %v8430, %v8870
        %v9043 = vadd.f32 %v8431, %v8873
        %v9044 = vadd.f32 %v8432, %v8878
        %v9045 = vadd.f32 %v8433, %v8881
        %v9046 = vadd.f32 %v8434, %v8886
        %v9047 = vadd.f32 %v8435, %v8889
        %v9048 = vadd.f32 %v8436, %v8894
        %v9049 = vadd.f32 %v8437, %v8897
        %v9050 = vadd.f32 %v8438, %v8902
        %v9051 = vadd.f32 %v8439, %v8905
        %v9052 = vadd.f32 %v8440, %v8910
        %v9053 = vadd.f32 %v8441, %v8913
        %v9054 = vadd.f32 %v8442, %v8918
        %v9055 = vadd.f32 %v8443, %v8921
        %v9056 = vadd.f32 %v8444, %v8926
        %v9057 = vadd.f32 %v8445, %v8929
        %v9058 = vadd.f32 %v8446, %v8934
        %v9059 = vadd.f32 %v8447, %v8937
        %v9060 = vadd.f32 %v8448, %v8942
        %v9061 = vadd.f32 %v8449, %v8945
        %v9062 = vadd.f32 %v8450, %v8950
        %v9063 = vadd.f32 %v8451, %v8953
        %v9064 = vadd.f32 %v8452, %v8958
        %v9065 = vadd.f32 %v8453, %v8961
        %v9066 = vadd.f32 %v8454, %v8966
        %v9067 = vadd.f32 %v8455, %v8969
        %v9068 = vadd.f32 %v8456, %v8974
        %v9069 = vadd.f32 %v8457, %v8977
        %v9070 = vadd.f32 %v8458, %v8982
        %v9071 = vadd.f32 %v8459, %v8985
        %v9072 = vadd.f32 %v8460, %v8990
        %v9073 = vadd.f32 %v8461, %v8993
        %v9074 = vadd.f32 %v8462, %v8998
        %v9075 = vadd.f32 %v8463, %v9001
        %v9076 = vadd.f32 %v8464, %v9006
        %v9077 = vadd.f32 %v8465, %v9009
        %v9078 = vadd.f32 %v8466, %v9014
        %v9079 = vadd.f32 %v8467, %v9017
        %v9080 = vadd.f32 %v8468, %v9022
        %v9081 = vadd.f32 %v8469, %v9025
        %v9082 = vadd.f32 %v8470, %v9030
        %v9083 = vadd.f32 %v8471, %v9033
        %v9084 = vld [vmem:[#allocation3 + $0x18] sm:$0xf0]
        %s9085 = smul.addr %s4290, 4
        %s9086 = scalar_lea.vmem [#allocation9], %s9085
        %v9087 = vld [vmem:[%s9086] sm:$0xf]
        %v9088 = vld [vmem:[%s9086 + $0x4] sm:$0xf]
        %v9089 = vld [vmem:[%s9086 + $0x8] sm:$0xf]
        %v9090 = vld [vmem:[%s9086 + $0xc] sm:$0xf]
        %v9091 = vld [vmem:[%s9086 + $0x10] sm:$0xf]
        %v9092 = vld [vmem:[%s9086 + $0x14] sm:$0xf]
        %v9093 = vld [vmem:[%s9086 + $0x18] sm:$0xf]
        %v9094 = vld [vmem:[%s9086 + $0x1c] sm:$0xf]
        %v9095 = vld [vmem:[%s9086 + $0x20] sm:$0xf]
        %v9096 = vld [vmem:[%s9086 + $0x24] sm:$0xf]
        %v9097 = vld [vmem:[%s9086 + $0x28] sm:$0xf]
        %v9098 = vld [vmem:[%s9086 + $0x2c] sm:$0xf]
        %v9099 = vld [vmem:[%s9086 + $0x30] sm:$0xf]
        %v9100 = vld [vmem:[%s9086 + $0x34] sm:$0xf]
        %v9101 = vld [vmem:[%s9086 + $0x38] sm:$0xf]
        %v9102 = vld [vmem:[%s9086 + $0x3c] sm:$0xf]
        %v9128 = vrot.slane %v9084, 4
        %v9129 = vrot.slane %v8473, 4
        %v9130 = vsel %vm820, %v9128, %v9129
        %v9131 = vrot.slane %v8474, 4
        %v9132 = vsel %vm820, %v9129, %v9131
        %v9133 = vrot.slane %v8475, 4
        %v9134 = vsel %vm820, %v9131, %v9133
        %v9135 = vrot.slane %v8476, 4
        %v9136 = vsel %vm820, %v9133, %v9135
        %v9137 = vrot.slane %v8477, 4
        %v9138 = vsel %vm820, %v9135, %v9137
        %v9139 = vrot.slane %v8478, 4
        %v9140 = vsel %vm820, %v9137, %v9139
        %v9141 = vrot.slane %v8479, 4
        %v9142 = vsel %vm820, %v9139, %v9141
        %v9143 = vrot.slane %v8480, 4
        %v9144 = vsel %vm820, %v9141, %v9143
        %v9145 = vrot.slane %v8481, 4
        %v9146 = vsel %vm820, %v9143, %v9145
        %v9147 = vrot.slane %v8482, 4
        %v9148 = vsel %vm820, %v9145, %v9147
        %v9149 = vrot.slane %v8483, 4
        %v9150 = vsel %vm820, %v9147, %v9149
        %v9151 = vrot.slane %v8484, 4
        %v9152 = vsel %vm820, %v9149, %v9151
        %v9153 = vrot.slane %v8485, 4
        %v9154 = vsel %vm820, %v9151, %v9153
        %v9155 = vrot.slane %v8486, 4
        %v9156 = vsel %vm820, %v9153, %v9155
        %v9157 = vrot.slane %v8487, 4
        %v9158 = vsel %vm820, %v9155, %v9157
        %v9159 = vrot.slane %v8488, 4
        %v9160 = vsel %vm820, %v9157, %v9159
        %v9161 = vrot.slane %v8489, 4
        %v9162 = vsel %vm820, %v9159, %v9161
        %v9163 = vrot.slane %v8490, 4
        %v9164 = vsel %vm820, %v9161, %v9163
        %v9165 = vrot.slane %v8491, 4
        %v9166 = vsel %vm820, %v9163, %v9165
        %v9167 = vrot.slane %v8492, 4
        %v9168 = vsel %vm820, %v9165, %v9167
        %v9169 = vrot.slane %v8493, 4
        %v9170 = vsel %vm820, %v9167, %v9169
        %v9171 = vrot.slane %v8494, 4
        %v9172 = vsel %vm820, %v9169, %v9171
        %v9173 = vrot.slane %v8495, 4
        %v9174 = vsel %vm820, %v9171, %v9173
        %v9175 = vrot.slane %v8496, 4
        %v9176 = vsel %vm820, %v9173, %v9175
        %v9217 = vunpack.c.l.b16 %v9087
        %v9218 = vunpack.c.l.b16 %v9088
        %v9219 = vunpack.c.l.b16 %v9089
        %v9220 = vunpack.c.l.b16 %v9090
        %v9221 = vunpack.c.l.b16 %v9091
        %v9222 = vunpack.c.l.b16 %v9092
        %v9223 = vunpack.c.l.b16 %v9093
        %v9224 = vunpack.c.l.b16 %v9094
        %v9225 = vunpack.c.l.b16 %v9095
        %v9226 = vunpack.c.l.b16 %v9096
        %v9227 = vunpack.c.l.b16 %v9097
        %v9228 = vunpack.c.l.b16 %v9098
        %v9229 = vunpack.c.l.b16 %v9099
        %v9230 = vunpack.c.l.b16 %v9100
        %v9231 = vunpack.c.l.b16 %v9101
        %v9232 = vunpack.c.l.b16 %v9102
        %v9233 = vpack.c.b16 %v9218, %v9217
        %v9234 = vpack.c.b16 %v9220, %v9219
        %v9235 = vpack.c.b16 %v9222, %v9221
        %v9236 = vpack.c.b16 %v9224, %v9223
        %v9237 = vpack.c.b16 %v9226, %v9225
        %v9238 = vpack.c.b16 %v9228, %v9227
        %v9239 = vpack.c.b16 %v9230, %v9229
        %v9240 = vpack.c.b16 %v9232, %v9231
        %9249 = vmatprep.subr.bf16.mxu0 0
        %9250 = vmatpush1.bf16.msra.mxu0 %v9233
        %9251 = vmatprep.subr.bf16.mxu0 0
        %9252 = vmatpush1.bf16.msra.mxu0 %v9234
        %9253 = vmatprep.subr.bf16.mxu0 0
        %9254 = vmatpush1.bf16.msra.mxu0 %v9235
        %9255 = vmatprep.subr.bf16.mxu0 0
        %9256 = vmatpush1.bf16.msra.mxu0 %v9236
        %9257 = vmatprep.subr.bf16.mxu0 0
        %9258 = vmatpush1.bf16.msra.mxu0 %v9237
        %9259 = vmatprep.subr.bf16.mxu0 0
        %9260 = vmatpush1.bf16.msra.mxu0 %v9238
        %9261 = vmatprep.subr.bf16.mxu0 0
        %9262 = vmatpush1.bf16.msra.mxu0 %v9239
        %9263 = vmatprep.subr.bf16.mxu0 0
        %9264 = vmatpush1.bf16.msra.mxu0 %v9240
        %9265 = vmatprep.subr.bf16.mxu0 0
        %9266 = vmatpush1.bf16.msra.mxu0 0
        %9267 = vmatprep.subr.bf16.mxu0 0
        %9268 = vmatpush1.bf16.msra.mxu0 0
        %9269 = vmatprep.subr.bf16.mxu0 0
        %9270 = vmatpush1.bf16.msra.mxu0 0
        %9271 = vmatprep.subr.bf16.mxu0 0
        %9272 = vmatpush1.bf16.msra.mxu0 0
        %9273 = vmatprep.subr.bf16.mxu0 0
        %9274 = vmatpush1.bf16.msra.mxu0 0
        %9275 = vmatprep.subr.bf16.mxu0 0
        %9276 = vmatpush1.bf16.msra.mxu0 0
        %9277 = vmatprep.subr.bf16.mxu0 0
        %9278 = vmatpush1.bf16.msra.mxu0 0
        %9279 = vmatprep.subr.bf16.mxu0 0
        %9280 = vmatpush1.bf16.msra.mxu0 0
        %9281 = vmatprep.mubr.bf16.mxu0 0
        %9282 = vmatmul.mubr.bf16.gmra.mrb[0].mxu0 %v9130
        %v9283 = vpop.f32.mrb[0].mxu0
        %v9284 = vadd.f32 0.0, %v9283
        %v9285 = vpop.f32.mrb[0].mxu0
        %v9286 = vpop.f32.mrb[0].mxu0
        %v9287 = vadd.f32 0.0, %v9286
        %v9288 = vpop.f32.mrb[0].mxu0
        %9289 = vmatprep.mubr.bf16.mxu0 0
        %9290 = vmatmul.mubr.bf16.gmra.mrb[0].mxu0 %v9132
        %v9291 = vpop.f32.mrb[0].mxu0
        %v9292 = vadd.f32 0.0, %v9291
        %v9293 = vpop.f32.mrb[0].mxu0
        %v9294 = vpop.f32.mrb[0].mxu0
        %v9295 = vadd.f32 0.0, %v9294
        %v9296 = vpop.f32.mrb[0].mxu0
        %9297 = vmatprep.mubr.bf16.mxu0 0
        %9298 = vmatmul.mubr.bf16.gmra.mrb[0].mxu0 %v9134
        %v9299 = vpop.f32.mrb[0].mxu0
        %v9300 = vadd.f32 0.0, %v9299
        %v9301 = vpop.f32.mrb[0].mxu0
        %v9302 = vpop.f32.mrb[0].mxu0
        %v9303 = vadd.f32 0.0, %v9302
        %v9304 = vpop.f32.mrb[0].mxu0
        %9305 = vmatprep.mubr.bf16.mxu0 0
        %9306 = vmatmul.mubr.bf16.gmra.mrb[0].mxu0 %v9136
        %v9307 = vpop.f32.mrb[0].mxu0
        %v9308 = vadd.f32 0.0, %v9307
        %v9309 = vpop.f32.mrb[0].mxu0
        %v9310 = vpop.f32.mrb[0].mxu0
        %v9311 = vadd.f32 0.0, %v9310
        %v9312 = vpop.f32.mrb[0].mxu0
        %9313 = vmatprep.mubr.bf16.mxu0 0
        %9314 = vmatmul.mubr.bf16.gmra.mrb[0].mxu0 %v9138
        %v9315 = vpop.f32.mrb[0].mxu0
        %v9316 = vadd.f32 0.0, %v9315
        %v9317 = vpop.f32.mrb[0].mxu0
        %v9318 = vpop.f32.mrb[0].mxu0
        %v9319 = vadd.f32 0.0, %v9318
        %v9320 = vpop.f32.mrb[0].mxu0
        %9321 = vmatprep.mubr.bf16.mxu0 0
        %9322 = vmatmul.mubr.bf16.gmra.mrb[0].mxu0 %v9140
        %v9323 = vpop.f32.mrb[0].mxu0
        %v9324 = vadd.f32 0.0, %v9323
        %v9325 = vpop.f32.mrb[0].mxu0
        %v9326 = vpop.f32.mrb[0].mxu0
        %v9327 = vadd.f32 0.0, %v9326
        %v9328 = vpop.f32.mrb[0].mxu0
        %9329 = vmatprep.mubr.bf16.mxu0 0
        %9330 = vmatmul.mubr.bf16.gmra.mrb[0].mxu0 %v9142
        %v9331 = vpop.f32.mrb[0].mxu0
        %v9332 = vadd.f32 0.0, %v9331
        %v9333 = vpop.f32.mrb[0].mxu0
        %v9334 = vpop.f32.mrb[0].mxu0
        %v9335 = vadd.f32 0.0, %v9334
        %v9336 = vpop.f32.mrb[0].mxu0
        %9337 = vmatprep.mubr.bf16.mxu0 0
        %9338 = vmatmul.mubr.bf16.gmra.mrb[0].mxu0 %v9144
        %v9339 = vpop.f32.mrb[0].mxu0
        %v9340 = vadd.f32 0.0, %v9339
        %v9341 = vpop.f32.mrb[0].mxu0
        %v9342 = vpop.f32.mrb[0].mxu0
        %v9343 = vadd.f32 0.0, %v9342
        %v9344 = vpop.f32.mrb[0].mxu0
        %9345 = vmatprep.mubr.bf16.mxu0 0
        %9346 = vmatmul.mubr.bf16.gmra.mrb[0].mxu0 %v9146
        %v9347 = vpop.f32.mrb[0].mxu0
        %v9348 = vadd.f32 0.0, %v9347
        %v9349 = vpop.f32.mrb[0].mxu0
        %v9350 = vpop.f32.mrb[0].mxu0
        %v9351 = vadd.f32 0.0, %v9350
        %v9352 = vpop.f32.mrb[0].mxu0
        %9353 = vmatprep.mubr.bf16.mxu0 0
        %9354 = vmatmul.mubr.bf16.gmra.mrb[0].mxu0 %v9148
        %v9355 = vpop.f32.mrb[0].mxu0
        %v9356 = vadd.f32 0.0, %v9355
        %v9357 = vpop.f32.mrb[0].mxu0
        %v9358 = vpop.f32.mrb[0].mxu0
        %v9359 = vadd.f32 0.0, %v9358
        %v9360 = vpop.f32.mrb[0].mxu0
        %9361 = vmatprep.mubr.bf16.mxu0 0
        %9362 = vmatmul.mubr.bf16.gmra.mrb[0].mxu0 %v9150
        %v9363 = vpop.f32.mrb[0].mxu0
        %v9364 = vadd.f32 0.0, %v9363
        %v9365 = vpop.f32.mrb[0].mxu0
        %v9366 = vpop.f32.mrb[0].mxu0
        %v9367 = vadd.f32 0.0, %v9366
        %v9368 = vpop.f32.mrb[0].mxu0
        %9369 = vmatprep.mubr.bf16.mxu0 0
        %9370 = vmatmul.mubr.bf16.gmra.mrb[0].mxu0 %v9152
        %v9371 = vpop.f32.mrb[0].mxu0
        %v9372 = vadd.f32 0.0, %v9371
        %v9373 = vpop.f32.mrb[0].mxu0
        %v9374 = vpop.f32.mrb[0].mxu0
        %v9375 = vadd.f32 0.0, %v9374
        %v9376 = vpop.f32.mrb[0].mxu0
        %9377 = vmatprep.mubr.bf16.mxu0 0
        %9378 = vmatmul.mubr.bf16.gmra.mrb[0].mxu0 %v9154
        %v9379 = vpop.f32.mrb[0].mxu0
        %v9380 = vadd.f32 0.0, %v9379
        %v9381 = vpop.f32.mrb[0].mxu0
        %v9382 = vpop.f32.mrb[0].mxu0
        %v9383 = vadd.f32 0.0, %v9382
        %v9384 = vpop.f32.mrb[0].mxu0
        %9385 = vmatprep.mubr.bf16.mxu0 0
        %9386 = vmatmul.mubr.bf16.gmra.mrb[0].mxu0 %v9156
        %v9387 = vpop.f32.mrb[0].mxu0
        %v9388 = vadd.f32 0.0, %v9387
        %v9389 = vpop.f32.mrb[0].mxu0
        %v9390 = vpop.f32.mrb[0].mxu0
        %v9391 = vadd.f32 0.0, %v9390
        %v9392 = vpop.f32.mrb[0].mxu0
        %9393 = vmatprep.mubr.bf16.mxu0 0
        %9394 = vmatmul.mubr.bf16.gmra.mrb[0].mxu0 %v9158
        %v9395 = vpop.f32.mrb[0].mxu0
        %v9396 = vadd.f32 0.0, %v9395
        %v9397 = vpop.f32.mrb[0].mxu0
        %v9398 = vpop.f32.mrb[0].mxu0
        %v9399 = vadd.f32 0.0, %v9398
        %v9400 = vpop.f32.mrb[0].mxu0
        %9401 = vmatprep.mubr.bf16.mxu0 0
        %9402 = vmatmul.mubr.bf16.gmra.mrb[0].mxu0 %v9160
        %v9403 = vpop.f32.mrb[0].mxu0
        %v9404 = vadd.f32 0.0, %v9403
        %v9405 = vpop.f32.mrb[0].mxu0
        %v9406 = vpop.f32.mrb[0].mxu0
        %v9407 = vadd.f32 0.0, %v9406
        %v9408 = vpop.f32.mrb[0].mxu0
        %9409 = vmatprep.mubr.bf16.mxu0 0
        %9410 = vmatmul.mubr.bf16.gmra.mrb[0].mxu0 %v9162
        %v9411 = vpop.f32.mrb[0].mxu0
        %v9412 = vadd.f32 0.0, %v9411
        %v9413 = vpop.f32.mrb[0].mxu0
        %v9414 = vpop.f32.mrb[0].mxu0
        %v9415 = vadd.f32 0.0, %v9414
        %v9416 = vpop.f32.mrb[0].mxu0
        %9417 = vmatprep.mubr.bf16.mxu0 0
        %9418 = vmatmul.mubr.bf16.gmra.mrb[0].mxu0 %v9164
        %v9419 = vpop.f32.mrb[0].mxu0
        %v9420 = vadd.f32 0.0, %v9419
        %v9421 = vpop.f32.mrb[0].mxu0
        %v9422 = vpop.f32.mrb[0].mxu0
        %v9423 = vadd.f32 0.0, %v9422
        %v9424 = vpop.f32.mrb[0].mxu0
        %9425 = vmatprep.mubr.bf16.mxu0 0
        %9426 = vmatmul.mubr.bf16.gmra.mrb[0].mxu0 %v9166
        %v9427 = vpop.f32.mrb[0].mxu0
        %v9428 = vadd.f32 0.0, %v9427
        %v9429 = vpop.f32.mrb[0].mxu0
        %v9430 = vpop.f32.mrb[0].mxu0
        %v9431 = vadd.f32 0.0, %v9430
        %v9432 = vpop.f32.mrb[0].mxu0
        %9433 = vmatprep.mubr.bf16.mxu0 0
        %9434 = vmatmul.mubr.bf16.gmra.mrb[0].mxu0 %v9168
        %v9435 = vpop.f32.mrb[0].mxu0
        %v9436 = vadd.f32 0.0, %v9435
        %v9437 = vpop.f32.mrb[0].mxu0
        %v9438 = vpop.f32.mrb[0].mxu0
        %v9439 = vadd.f32 0.0, %v9438
        %v9440 = vpop.f32.mrb[0].mxu0
        %9441 = vmatprep.mubr.bf16.mxu0 0
        %9442 = vmatmul.mubr.bf16.gmra.mrb[0].mxu0 %v9170
        %v9443 = vpop.f32.mrb[0].mxu0
        %v9444 = vadd.f32 0.0, %v9443
        %v9445 = vpop.f32.mrb[0].mxu0
        %v9446 = vpop.f32.mrb[0].mxu0
        %v9447 = vadd.f32 0.0, %v9446
        %v9448 = vpop.f32.mrb[0].mxu0
        %9449 = vmatprep.mubr.bf16.mxu0 0
        %9450 = vmatmul.mubr.bf16.gmra.mrb[0].mxu0 %v9172
        %v9451 = vpop.f32.mrb[0].mxu0
        %v9452 = vadd.f32 0.0, %v9451
        %v9453 = vpop.f32.mrb[0].mxu0
        %v9454 = vpop.f32.mrb[0].mxu0
        %v9455 = vadd.f32 0.0, %v9454
        %v9456 = vpop.f32.mrb[0].mxu0
        %9457 = vmatprep.mubr.bf16.mxu0 0
        %9458 = vmatmul.mubr.bf16.gmra.mrb[0].mxu0 %v9174
        %v9459 = vpop.f32.mrb[0].mxu0
        %v9460 = vadd.f32 0.0, %v9459
        %v9461 = vpop.f32.mrb[0].mxu0
        %v9462 = vpop.f32.mrb[0].mxu0
        %v9463 = vadd.f32 0.0, %v9462
        %v9464 = vpop.f32.mrb[0].mxu0
        %9465 = vmatprep.mubr.bf16.mxu0 0
        %9466 = vmatmul.mubr.bf16.gmra.mrb[0].mxu0 %v9176
        %v9467 = vpop.f32.mrb[0].mxu0
        %v9468 = vadd.f32 0.0, %v9467
        %v9469 = vpop.f32.mrb[0].mxu0
        %v9470 = vpop.f32.mrb[0].mxu0
        %v9471 = vadd.f32 0.0, %v9470
        %v9472 = vpop.f32.mrb[0].mxu0
        %9473 = vdwg.mxu0
        %v9474 = vadd.f32 %v9036, %v9284
        %v9475 = vadd.f32 %v9037, %v9287
        %v9476 = vadd.f32 %v9038, %v9292
        %v9477 = vadd.f32 %v9039, %v9295
        %v9478 = vadd.f32 %v9040, %v9300
        %v9479 = vadd.f32 %v9041, %v9303
        %v9480 = vadd.f32 %v9042, %v9308
        %v9481 = vadd.f32 %v9043, %v9311
        %v9482 = vadd.f32 %v9044, %v9316
        %v9483 = vadd.f32 %v9045, %v9319
        %v9484 = vadd.f32 %v9046, %v9324
        %v9485 = vadd.f32 %v9047, %v9327
        %v9486 = vadd.f32 %v9048, %v9332
        %v9487 = vadd.f32 %v9049, %v9335
        %v9488 = vadd.f32 %v9050, %v9340
        %v9489 = vadd.f32 %v9051, %v9343
        %v9490 = vadd.f32 %v9052, %v9348
        %v9491 = vadd.f32 %v9053, %v9351
        %v9492 = vadd.f32 %v9054, %v9356
        %v9493 = vadd.f32 %v9055, %v9359
        %v9494 = vadd.f32 %v9056, %v9364
        %v9495 = vadd.f32 %v9057, %v9367
        %v9496 = vadd.f32 %v9058, %v9372
        %v9497 = vadd.f32 %v9059, %v9375
        %v9498 = vadd.f32 %v9060, %v9380
        %v9499 = vadd.f32 %v9061, %v9383
        %v9500 = vadd.f32 %v9062, %v9388
        %v9501 = vadd.f32 %v9063, %v9391
        %v9502 = vadd.f32 %v9064, %v9396
        %v9503 = vadd.f32 %v9065, %v9399
        %v9504 = vadd.f32 %v9066, %v9404
        %v9505 = vadd.f32 %v9067, %v9407
        %v9506 = vadd.f32 %v9068, %v9412
        %v9507 = vadd.f32 %v9069, %v9415
        %v9508 = vadd.f32 %v9070, %v9420
        %v9509 = vadd.f32 %v9071, %v9423
        %v9510 = vadd.f32 %v9072, %v9428
        %v9511 = vadd.f32 %v9073, %v9431
        %v9512 = vadd.f32 %v9074, %v9436
        %v9513 = vadd.f32 %v9075, %v9439
        %v9514 = vadd.f32 %v9076, %v9444
        %v9515 = vadd.f32 %v9077, %v9447
        %v9516 = vadd.f32 %v9078, %v9452
        %v9517 = vadd.f32 %v9079, %v9455
        %v9518 = vadd.f32 %v9080, %v9460
        %v9519 = vadd.f32 %v9081, %v9463
        %v9520 = vadd.f32 %v9082, %v9468
        %v9521 = vadd.f32 %v9083, %v9471
        %v9522 = vld [vmem:[#allocation3 + $0xd8] sm:$0x1f]
        %s9523 = smul.addr %s4729, 4
        %s9524 = scalar_lea.vmem [#allocation9], %s9523
        %v9525 = vld [vmem:[%s9524] sm:$0xf]
        %v9526 = vld [vmem:[%s9524 + $0x4] sm:$0xf]
        %v9527 = vld [vmem:[%s9524 + $0x8] sm:$0xf]
        %v9528 = vld [vmem:[%s9524 + $0xc] sm:$0xf]
        %v9529 = vld [vmem:[%s9524 + $0x10] sm:$0xf]
        %v9530 = vld [vmem:[%s9524 + $0x14] sm:$0xf]
        %v9531 = vld [vmem:[%s9524 + $0x18] sm:$0xf]
        %v9532 = vld [vmem:[%s9524 + $0x1c] sm:$0xf]
        %v9533 = vld [vmem:[%s9524 + $0x20] sm:$0xf]
        %v9534 = vld [vmem:[%s9524 + $0x24] sm:$0xf]
        %v9535 = vld [vmem:[%s9524 + $0x28] sm:$0xf]
        %v9536 = vld [vmem:[%s9524 + $0x2c] sm:$0xf]
        %v9537 = vld [vmem:[%s9524 + $0x30] sm:$0xf]
        %v9538 = vld [vmem:[%s9524 + $0x34] sm:$0xf]
        %v9539 = vld [vmem:[%s9524 + $0x38] sm:$0xf]
        %v9540 = vld [vmem:[%s9524 + $0x3c] sm:$0xf]
        %v9542 = vshrl.u32 %v9084, 16
        %v9544 = vrot.slane %v9542, 4
        %v9545 = vshll.u32 %v9084, 16
        %v9547 = vrot.slane %v9545, 5
        %v9548 = vor.u32 %v9544, %v9547
        %v9549 = vrot.slane %v8524, 4
        %v9550 = vrot.slane %v8527, 5
        %v9551 = vor.u32 %v9549, %v9550
        %v9552 = vsel %vm1709, %v9548, %v9551
        %v9553 = vrot.slane %v8533, 4
        %v9554 = vrot.slane %v8536, 5
        %v9555 = vor.u32 %v9553, %v9554
        %v9556 = vsel %vm1709, %v9551, %v9555
        %v9557 = vrot.slane %v8542, 4
        %v9558 = vrot.slane %v8545, 5
        %v9559 = vor.u32 %v9557, %v9558
        %v9560 = vsel %vm1709, %v9555, %v9559
        %v9561 = vrot.slane %v8551, 4
        %v9562 = vrot.slane %v8554, 5
        %v9563 = vor.u32 %v9561, %v9562
        %v9564 = vsel %vm1709, %v9559, %v9563
        %v9565 = vrot.slane %v8560, 4
        %v9566 = vrot.slane %v8563, 5
        %v9567 = vor.u32 %v9565, %v9566
        %v9568 = vsel %vm1709, %v9563, %v9567
        %v9569 = vrot.slane %v8569, 4
        %v9570 = vrot.slane %v8572, 5
        %v9571 = vor.u32 %v9569, %v9570
        %v9572 = vsel %vm1709, %v9567, %v9571
        %v9573 = vrot.slane %v8578, 4
        %v9574 = vrot.slane %v8581, 5
        %v9575 = vor.u32 %v9573, %v9574
        %v9576 = vsel %vm1709, %v9571, %v9575
        %v9577 = vrot.slane %v8587, 4
        %v9578 = vrot.slane %v8590, 5
        %v9579 = vor.u32 %v9577, %v9578
        %v9580 = vsel %vm1709, %v9575, %v9579
        %v9581 = vrot.slane %v8596, 4
        %v9582 = vrot.slane %v8599, 5
        %v9583 = vor.u32 %v9581, %v9582
        %v9584 = vsel %vm1709, %v9579, %v9583
        %v9585 = vrot.slane %v8605, 4
        %v9586 = vrot.slane %v8608, 5
        %v9587 = vor.u32 %v9585, %v9586
        %v9588 = vsel %vm1709, %v9583, %v9587
        %v9589 = vrot.slane %v8614, 4
        %v9590 = vrot.slane %v8617, 5
        %v9591 = vor.u32 %v9589, %v9590
        %v9592 = vsel %vm1709, %v9587, %v9591
        %v9593 = vrot.slane %v8623, 4
        %v9594 = vrot.slane %v8626, 5
        %v9595 = vor.u32 %v9593, %v9594
        %v9596 = vsel %vm1709, %v9591, %v9595
        %v9597 = vrot.slane %v8632, 4
        %v9598 = vrot.slane %v8635, 5
        %v9599 = vor.u32 %v9597, %v9598
        %v9600 = vsel %vm1709, %v9595, %v9599
        %v9601 = vrot.slane %v8641, 4
        %v9602 = vrot.slane %v8644, 5
        %v9603 = vor.u32 %v9601, %v9602
        %v9604 = vsel %vm1709, %v9599, %v9603
        %v9605 = vrot.slane %v8650, 4
        %v9606 = vrot.slane %v8653, 5
        %v9607 = vor.u32 %v9605, %v9606
        %v9608 = vsel %vm1709, %v9603, %v9607
        %v9609 = vrot.slane %v8659, 4
        %v9610 = vrot.slane %v8662, 5
        %v9611 = vor.u32 %v9609, %v9610
        %v9612 = vsel %vm1709, %v9607, %v9611
        %v9613 = vrot.slane %v8668, 4
        %v9614 = vrot.slane %v8671, 5
        %v9615 = vor.u32 %v9613, %v9614
        %v9616 = vsel %vm1709, %v9611, %v9615
        %v9617 = vrot.slane %v8677, 4
        %v9618 = vrot.slane %v8680, 5
        %v9619 = vor.u32 %v9617, %v9618
        %v9620 = vsel %vm1709, %v9615, %v9619
        %v9621 = vrot.slane %v8686, 4
        %v9622 = vrot.slane %v8689, 5
        %v9623 = vor.u32 %v9621, %v9622
        %v9624 = vsel %vm1709, %v9619, %v9623
        %v9625 = vrot.slane %v8695, 4
        %v9626 = vrot.slane %v8698, 5
        %v9627 = vor.u32 %v9625, %v9626
        %v9628 = vsel %vm1709, %v9623, %v9627
        %v9629 = vrot.slane %v8704, 4
        %v9630 = vrot.slane %v8707, 5
        %v9631 = vor.u32 %v9629, %v9630
        %v9632 = vsel %vm1709, %v9627, %v9631
        %v9633 = vrot.slane %v8713, 4
        %v9634 = vrot.slane %v8716, 5
        %v9635 = vor.u32 %v9633, %v9634
        %v9636 = vsel %vm1709, %v9631, %v9635
        %v9637 = vrot.slane %v8722, 4
        %v9638 = vrot.slane %v8725, 5
        %v9639 = vor.u32 %v9637, %v9638
        %v9640 = vsel %vm1709, %v9635, %v9639
        %v9642 = vshrl.u32 %v9522, 16
        %v9644 = vrot.slane %v9642, 4
        %v9645 = vshll.u32 %v9522, 16
        %v9647 = vrot.slane %v9645, 5
        %v9648 = vor.u32 %v9644, %v9647
        %v9649 = vsel %vm1709, %v9639, %v9648
        %v9690 = vunpack.c.l.b16 %v9525
        %v9691 = vunpack.c.l.b16 %v9526
        %v9692 = vunpack.c.l.b16 %v9527
        %v9693 = vunpack.c.l.b16 %v9528
        %v9694 = vunpack.c.l.b16 %v9529
        %v9695 = vunpack.c.l.b16 %v9530
        %v9696 = vunpack.c.l.b16 %v9531
        %v9697 = vunpack.c.l.b16 %v9532
        %v9698 = vunpack.c.l.b16 %v9533
        %v9699 = vunpack.c.l.b16 %v9534
        %v9700 = vunpack.c.l.b16 %v9535
        %v9701 = vunpack.c.l.b16 %v9536
        %v9702 = vunpack.c.l.b16 %v9537
        %v9703 = vunpack.c.l.b16 %v9538
        %v9704 = vunpack.c.l.b16 %v9539
        %v9705 = vunpack.c.l.b16 %v9540
        %v9706 = vpack.c.b16 %v9691, %v9690
        %v9707 = vpack.c.b16 %v9693, %v9692
        %v9708 = vpack.c.b16 %v9695, %v9694
        %v9709 = vpack.c.b16 %v9697, %v9696
        %v9710 = vpack.c.b16 %v9699, %v9698
        %v9711 = vpack.c.b16 %v9701, %v9700
        %v9712 = vpack.c.b16 %v9703, %v9702
        %v9713 = vpack.c.b16 %v9705, %v9704
        %9722 = vmatprep.subr.bf16.mxu0 0
        %9723 = vmatpush1.bf16.msra.mxu0 %v9706
        %9724 = vmatprep.subr.bf16.mxu0 0
        %9725 = vmatpush1.bf16.msra.mxu0 %v9707
        %9726 = vmatprep.subr.bf16.mxu0 0
        %9727 = vmatpush1.bf16.msra.mxu0 %v9708
        %9728 = vmatprep.subr.bf16.mxu0 0
        %9729 = vmatpush1.bf16.msra.mxu0 %v9709
        %9730 = vmatprep.subr.bf16.mxu0 0
        %9731 = vmatpush1.bf16.msra.mxu0 %v9710
        %9732 = vmatprep.subr.bf16.mxu0 0
        %9733 = vmatpush1.bf16.msra.mxu0 %v9711
        %9734 = vmatprep.subr.bf16.mxu0 0
        %9735 = vmatpush1.bf16.msra.mxu0 %v9712
        %9736 = vmatprep.subr.bf16.mxu0 0
        %9737 = vmatpush1.bf16.msra.mxu0 %v9713
        %9738 = vmatprep.subr.bf16.mxu0 0
        %9739 = vmatpush1.bf16.msra.mxu0 0
        %9740 = vmatprep.subr.bf16.mxu0 0
        %9741 = vmatpush1.bf16.msra.mxu0 0
        %9742 = vmatprep.subr.bf16.mxu0 0
        %9743 = vmatpush1.bf16.msra.mxu0 0
        %9744 = vmatprep.subr.bf16.mxu0 0
        %9745 = vmatpush1.bf16.msra.mxu0 0
        %9746 = vmatprep.subr.bf16.mxu0 0
        %9747 = vmatpush1.bf16.msra.mxu0 0
        %9748 = vmatprep.subr.bf16.mxu0 0
        %9749 = vmatpush1.bf16.msra.mxu0 0
        %9750 = vmatprep.subr.bf16.mxu0 0
        %9751 = vmatpush1.bf16.msra.mxu0 0
        %9752 = vmatprep.subr.bf16.mxu0 0
        %9753 = vmatpush1.bf16.msra.mxu0 0
        %9754 = vmatprep.mubr.bf16.mxu0 0
        %9755 = vmatmul.mubr.bf16.gmra.mrb[0].mxu0 %v9552
        %v9756 = vpop.f32.mrb[0].mxu0
        %v9757 = vadd.f32 0.0, %v9756
        %v9758 = vpop.f32.mrb[0].mxu0
        %v9759 = vpop.f32.mrb[0].mxu0
        %v9760 = vadd.f32 0.0, %v9759
        %v9761 = vpop.f32.mrb[0].mxu0
        %9762 = vmatprep.mubr.bf16.mxu0 0
        %9763 = vmatmul.mubr.bf16.gmra.mrb[0].mxu0 %v9556
        %v9764 = vpop.f32.mrb[0].mxu0
        %v9765 = vadd.f32 0.0, %v9764
        %v9766 = vpop.f32.mrb[0].mxu0
        %v9767 = vpop.f32.mrb[0].mxu0
        %v9768 = vadd.f32 0.0, %v9767
        %v9769 = vpop.f32.mrb[0].mxu0
        %9770 = vmatprep.mubr.bf16.mxu0 0
        %9771 = vmatmul.mubr.bf16.gmra.mrb[0].mxu0 %v9560
        %v9772 = vpop.f32.mrb[0].mxu0
        %v9773 = vadd.f32 0.0, %v9772
        %v9774 = vpop.f32.mrb[0].mxu0
        %v9775 = vpop.f32.mrb[0].mxu0
        %v9776 = vadd.f32 0.0, %v9775
        %v9777 = vpop.f32.mrb[0].mxu0
        %9778 = vmatprep.mubr.bf16.mxu0 0
        %9779 = vmatmul.mubr.bf16.gmra.mrb[0].mxu0 %v9564
        %v9780 = vpop.f32.mrb[0].mxu0
        %v9781 = vadd.f32 0.0, %v9780
        %v9782 = vpop.f32.mrb[0].mxu0
        %v9783 = vpop.f32.mrb[0].mxu0
        %v9784 = vadd.f32 0.0, %v9783
        %v9785 = vpop.f32.mrb[0].mxu0
        %9786 = vmatprep.mubr.bf16.mxu0 0
        %9787 = vmatmul.mubr.bf16.gmra.mrb[0].mxu0 %v9568
        %v9788 = vpop.f32.mrb[0].mxu0
        %v9789 = vadd.f32 0.0, %v9788
        %v9790 = vpop.f32.mrb[0].mxu0
        %v9791 = vpop.f32.mrb[0].mxu0
        %v9792 = vadd.f32 0.0, %v9791
        %v9793 = vpop.f32.mrb[0].mxu0
        %9794 = vmatprep.mubr.bf16.mxu0 0
        %9795 = vmatmul.mubr.bf16.gmra.mrb[0].mxu0 %v9572
        %v9796 = vpop.f32.mrb[0].mxu0
        %v9797 = vadd.f32 0.0, %v9796
        %v9798 = vpop.f32.mrb[0].mxu0
        %v9799 = vpop.f32.mrb[0].mxu0
        %v9800 = vadd.f32 0.0, %v9799
        %v9801 = vpop.f32.mrb[0].mxu0
        %9802 = vmatprep.mubr.bf16.mxu0 0
        %9803 = vmatmul.mubr.bf16.gmra.mrb[0].mxu0 %v9576
        %v9804 = vpop.f32.mrb[0].mxu0
        %v9805 = vadd.f32 0.0, %v9804
        %v9806 = vpop.f32.mrb[0].mxu0
        %v9807 = vpop.f32.mrb[0].mxu0
        %v9808 = vadd.f32 0.0, %v9807
        %v9809 = vpop.f32.mrb[0].mxu0
        %9810 = vmatprep.mubr.bf16.mxu0 0
        %9811 = vmatmul.mubr.bf16.gmra.mrb[0].mxu0 %v9580
        %v9812 = vpop.f32.mrb[0].mxu0
        %v9813 = vadd.f32 0.0, %v9812
        %v9814 = vpop.f32.mrb[0].mxu0
        %v9815 = vpop.f32.mrb[0].mxu0
        %v9816 = vadd.f32 0.0, %v9815
        %v9817 = vpop.f32.mrb[0].mxu0
        %9818 = vmatprep.mubr.bf16.mxu0 0
        %9819 = vmatmul.mubr.bf16.gmra.mrb[0].mxu0 %v9584
        %v9820 = vpop.f32.mrb[0].mxu0
        %v9821 = vadd.f32 0.0, %v9820
        %v9822 = vpop.f32.mrb[0].mxu0
        %v9823 = vpop.f32.mrb[0].mxu0
        %v9824 = vadd.f32 0.0, %v9823
        %v9825 = vpop.f32.mrb[0].mxu0
        %9826 = vmatprep.mubr.bf16.mxu0 0
        %9827 = vmatmul.mubr.bf16.gmra.mrb[0].mxu0 %v9588
        %v9828 = vpop.f32.mrb[0].mxu0
        %v9829 = vadd.f32 0.0, %v9828
        %v9830 = vpop.f32.mrb[0].mxu0
        %v9831 = vpop.f32.mrb[0].mxu0
        %v9832 = vadd.f32 0.0, %v9831
        %v9833 = vpop.f32.mrb[0].mxu0
        %9834 = vmatprep.mubr.bf16.mxu0 0
        %9835 = vmatmul.mubr.bf16.gmra.mrb[0].mxu0 %v9592
        %v9836 = vpop.f32.mrb[0].mxu0
        %v9837 = vadd.f32 0.0, %v9836
        %v9838 = vpop.f32.mrb[0].mxu0
        %v9839 = vpop.f32.mrb[0].mxu0
        %v9840 = vadd.f32 0.0, %v9839
        %v9841 = vpop.f32.mrb[0].mxu0
        %9842 = vmatprep.mubr.bf16.mxu0 0
        %9843 = vmatmul.mubr.bf16.gmra.mrb[0].mxu0 %v9596
        %v9844 = vpop.f32.mrb[0].mxu0
        %v9845 = vadd.f32 0.0, %v9844
        %v9846 = vpop.f32.mrb[0].mxu0
        %v9847 = vpop.f32.mrb[0].mxu0
        %v9848 = vadd.f32 0.0, %v9847
        %v9849 = vpop.f32.mrb[0].mxu0
        %9850 = vmatprep.mubr.bf16.mxu0 0
        %9851 = vmatmul.mubr.bf16.gmra.mrb[0].mxu0 %v9600
        %v9852 = vpop.f32.mrb[0].mxu0
        %v9853 = vadd.f32 0.0, %v9852
        %v9854 = vpop.f32.mrb[0].mxu0
        %v9855 = vpop.f32.mrb[0].mxu0
        %v9856 = vadd.f32 0.0, %v9855
        %v9857 = vpop.f32.mrb[0].mxu0
        %9858 = vmatprep.mubr.bf16.mxu0 0
        %9859 = vmatmul.mubr.bf16.gmra.mrb[0].mxu0 %v9604
        %v9860 = vpop.f32.mrb[0].mxu0
        %v9861 = vadd.f32 0.0, %v9860
        %v9862 = vpop.f32.mrb[0].mxu0
        %v9863 = vpop.f32.mrb[0].mxu0
        %v9864 = vadd.f32 0.0, %v9863
        %v9865 = vpop.f32.mrb[0].mxu0
        %9866 = vmatprep.mubr.bf16.mxu0 0
        %9867 = vmatmul.mubr.bf16.gmra.mrb[0].mxu0 %v9608
        %v9868 = vpop.f32.mrb[0].mxu0
        %v9869 = vadd.f32 0.0, %v9868
        %v9870 = vpop.f32.mrb[0].mxu0
        %v9871 = vpop.f32.mrb[0].mxu0
        %v9872 = vadd.f32 0.0, %v9871
        %v9873 = vpop.f32.mrb[0].mxu0
        %9874 = vmatprep.mubr.bf16.mxu0 0
        %9875 = vmatmul.mubr.bf16.gmra.mrb[0].mxu0 %v9612
        %v9876 = vpop.f32.mrb[0].mxu0
        %v9877 = vadd.f32 0.0, %v9876
        %v9878 = vpop.f32.mrb[0].mxu0
        %v9879 = vpop.f32.mrb[0].mxu0
        %v9880 = vadd.f32 0.0, %v9879
        %v9881 = vpop.f32.mrb[0].mxu0
        %9882 = vmatprep.mubr.bf16.mxu0 0
        %9883 = vmatmul.mubr.bf16.gmra.mrb[0].mxu0 %v9616
        %v9884 = vpop.f32.mrb[0].mxu0
        %v9885 = vadd.f32 0.0, %v9884
        %v9886 = vpop.f32.mrb[0].mxu0
        %v9887 = vpop.f32.mrb[0].mxu0
        %v9888 = vadd.f32 0.0, %v9887
        %v9889 = vpop.f32.mrb[0].mxu0
        %9890 = vmatprep.mubr.bf16.mxu0 0
        %9891 = vmatmul.mubr.bf16.gmra.mrb[0].mxu0 %v9620
        %v9892 = vpop.f32.mrb[0].mxu0
        %v9893 = vadd.f32 0.0, %v9892
        %v9894 = vpop.f32.mrb[0].mxu0
        %v9895 = vpop.f32.mrb[0].mxu0
        %v9896 = vadd.f32 0.0, %v9895
        %v9897 = vpop.f32.mrb[0].mxu0
        %9898 = vmatprep.mubr.bf16.mxu0 0
        %9899 = vmatmul.mubr.bf16.gmra.mrb[0].mxu0 %v9624
        %v9900 = vpop.f32.mrb[0].mxu0
        %v9901 = vadd.f32 0.0, %v9900
        %v9902 = vpop.f32.mrb[0].mxu0
        %v9903 = vpop.f32.mrb[0].mxu0
        %v9904 = vadd.f32 0.0, %v9903
        %v9905 = vpop.f32.mrb[0].mxu0
        %9906 = vmatprep.mubr.bf16.mxu0 0
        %9907 = vmatmul.mubr.bf16.gmra.mrb[0].mxu0 %v9628
        %v9908 = vpop.f32.mrb[0].mxu0
        %v9909 = vadd.f32 0.0, %v9908
        %v9910 = vpop.f32.mrb[0].mxu0
        %v9911 = vpop.f32.mrb[0].mxu0
        %v9912 = vadd.f32 0.0, %v9911
        %v9913 = vpop.f32.mrb[0].mxu0
        %9914 = vmatprep.mubr.bf16.mxu0 0
        %9915 = vmatmul.mubr.bf16.gmra.mrb[0].mxu0 %v9632
        %v9916 = vpop.f32.mrb[0].mxu0
        %v9917 = vadd.f32 0.0, %v9916
        %v9918 = vpop.f32.mrb[0].mxu0
        %v9919 = vpop.f32.mrb[0].mxu0
        %v9920 = vadd.f32 0.0, %v9919
        %v9921 = vpop.f32.mrb[0].mxu0
        %9922 = vmatprep.mubr.bf16.mxu0 0
        %9923 = vmatmul.mubr.bf16.gmra.mrb[0].mxu0 %v9636
        %v9924 = vpop.f32.mrb[0].mxu0
        %v9925 = vadd.f32 0.0, %v9924
        %v9926 = vpop.f32.mrb[0].mxu0
        %v9927 = vpop.f32.mrb[0].mxu0
        %v9928 = vadd.f32 0.0, %v9927
        %v9929 = vpop.f32.mrb[0].mxu0
        %9930 = vmatprep.mubr.bf16.mxu0 0
        %9931 = vmatmul.mubr.bf16.gmra.mrb[0].mxu0 %v9640
        %v9932 = vpop.f32.mrb[0].mxu0
        %v9933 = vadd.f32 0.0, %v9932
        %v9934 = vpop.f32.mrb[0].mxu0
        %v9935 = vpop.f32.mrb[0].mxu0
        %v9936 = vadd.f32 0.0, %v9935
        %v9937 = vpop.f32.mrb[0].mxu0
        %9938 = vmatprep.mubr.bf16.mxu0 0
        %9939 = vmatmul.mubr.bf16.gmra.mrb[0].mxu0 %v9649
        %v9940 = vpop.f32.mrb[0].mxu0
        %v9941 = vadd.f32 0.0, %v9940
        %v9942 = vpop.f32.mrb[0].mxu0
        %v9943 = vpop.f32.mrb[0].mxu0
        %v9944 = vadd.f32 0.0, %v9943
        %v9945 = vpop.f32.mrb[0].mxu0
        %9946 = vdwg.mxu0
        %v9947 = vadd.f32 %v9474, %v9757
        %v9948 = vadd.f32 %v9475, %v9760
        %v9949 = vadd.f32 %v9476, %v9765
        %v9950 = vadd.f32 %v9477, %v9768
        %v9951 = vadd.f32 %v9478, %v9773
        %v9952 = vadd.f32 %v9479, %v9776
        %v9953 = vadd.f32 %v9480, %v9781
        %v9954 = vadd.f32 %v9481, %v9784
        %v9955 = vadd.f32 %v9482, %v9789
        %v9956 = vadd.f32 %v9483, %v9792
        %v9957 = vadd.f32 %v9484, %v9797
        %v9958 = vadd.f32 %v9485, %v9800
        %v9959 = vadd.f32 %v9486, %v9805
        %v9960 = vadd.f32 %v9487, %v9808
        %v9961 = vadd.f32 %v9488, %v9813
        %v9962 = vadd.f32 %v9489, %v9816
        %v9963 = vadd.f32 %v9490, %v9821
        %v9964 = vadd.f32 %v9491, %v9824
        %v9965 = vadd.f32 %v9492, %v9829
        %v9966 = vadd.f32 %v9493, %v9832
        %v9967 = vadd.f32 %v9494, %v9837
        %v9968 = vadd.f32 %v9495, %v9840
        %v9969 = vadd.f32 %v9496, %v9845
        %v9970 = vadd.f32 %v9497, %v9848
        %v9971 = vadd.f32 %v9498, %v9853
        %v9972 = vadd.f32 %v9499, %v9856
        %v9973 = vadd.f32 %v9500, %v9861
        %v9974 = vadd.f32 %v9501, %v9864
        %v9975 = vadd.f32 %v9502, %v9869
        %v9976 = vadd.f32 %v9503, %v9872
        %v9977 = vadd.f32 %v9504, %v9877
        %v9978 = vadd.f32 %v9505, %v9880
        %v9979 = vadd.f32 %v9506, %v9885
        %v9980 = vadd.f32 %v9507, %v9888
        %v9981 = vadd.f32 %v9508, %v9893
        %v9982 = vadd.f32 %v9509, %v9896
        %v9983 = vadd.f32 %v9510, %v9901
        %v9984 = vadd.f32 %v9511, %v9904
        %v9985 = vadd.f32 %v9512, %v9909
        %v9986 = vadd.f32 %v9513, %v9912
        %v9987 = vadd.f32 %v9514, %v9917
        %v9988 = vadd.f32 %v9515, %v9920
        %v9989 = vadd.f32 %v9516, %v9925
        %v9990 = vadd.f32 %v9517, %v9928
        %v9991 = vadd.f32 %v9518, %v9933
        %v9992 = vadd.f32 %v9519, %v9936
        %v9993 = vadd.f32 %v9520, %v9941
        %v9994 = vadd.f32 %v9521, %v9944
        %s9995 = scalar_lea.vmem %s4, %s28
        %v9996 = vld [vmem:[%s9995] sm:$0x1]
        %v9998 = vlaneseq
        %v9999 = vshrl.u32 %v9998, 7
        %v10000 = vsub.s32 0, %v9999
        %v10001 = vrot.slane %v9996, %v10000
        %v10003 = vadd.f32 %v9947, %v10001
        %v10004 = vadd.f32 %v9948, %v10001
        %v10005 = vadd.f32 %v9949, %v10001
        %v10006 = vadd.f32 %v9950, %v10001
        %v10007 = vadd.f32 %v9951, %v10001
        %v10008 = vadd.f32 %v9952, %v10001
        %v10009 = vadd.f32 %v9953, %v10001
        %v10010 = vadd.f32 %v9954, %v10001
        %v10011 = vadd.f32 %v9955, %v10001
        %v10012 = vadd.f32 %v9956, %v10001
        %v10013 = vadd.f32 %v9957, %v10001
        %v10014 = vadd.f32 %v9958, %v10001
        %v10015 = vadd.f32 %v9959, %v10001
        %v10016 = vadd.f32 %v9960, %v10001
        %v10017 = vadd.f32 %v9961, %v10001
        %v10018 = vadd.f32 %v9962, %v10001
        %v10019 = vadd.f32 %v9963, %v10001
        %v10020 = vadd.f32 %v9964, %v10001
        %v10021 = vadd.f32 %v9965, %v10001
        %v10022 = vadd.f32 %v9966, %v10001
        %v10023 = vadd.f32 %v9967, %v10001
        %v10024 = vadd.f32 %v9968, %v10001
        %v10025 = vadd.f32 %v9969, %v10001
        %v10026 = vadd.f32 %v9970, %v10001
        %v10027 = vadd.f32 %v9971, %v10001
        %v10028 = vadd.f32 %v9972, %v10001
        %v10029 = vadd.f32 %v9973, %v10001
        %v10030 = vadd.f32 %v9974, %v10001
        %v10031 = vadd.f32 %v9975, %v10001
        %v10032 = vadd.f32 %v9976, %v10001
        %v10033 = vadd.f32 %v9977, %v10001
        %v10034 = vadd.f32 %v9978, %v10001
        %v10035 = vadd.f32 %v9979, %v10001
        %v10036 = vadd.f32 %v9980, %v10001
        %v10037 = vadd.f32 %v9981, %v10001
        %v10038 = vadd.f32 %v9982, %v10001
        %v10039 = vadd.f32 %v9983, %v10001
        %v10040 = vadd.f32 %v9984, %v10001
        %v10041 = vadd.f32 %v9985, %v10001
        %v10042 = vadd.f32 %v9986, %v10001
        %v10043 = vadd.f32 %v9987, %v10001
        %v10044 = vadd.f32 %v9988, %v10001
        %v10045 = vadd.f32 %v9989, %v10001
        %v10046 = vadd.f32 %v9990, %v10001
        %v10047 = vadd.f32 %v9991, %v10001
        %v10048 = vadd.f32 %v9992, %v10001
        %v10049 = vadd.f32 %v9993, %v10001
        %v10050 = vadd.f32 %v9994, %v10001
        %v10051 = vadd.f32 %v403, %v10003
        %v10052 = vadd.f32 %v404, %v10004
        %v10053 = vadd.f32 %v405, %v10005
        %v10054 = vadd.f32 %v406, %v10006
        %v10055 = vadd.f32 %v407, %v10007
        %v10056 = vadd.f32 %v408, %v10008
        %v10057 = vadd.f32 %v409, %v10009
        %v10058 = vadd.f32 %v410, %v10010
        %v10059 = vadd.f32 %v411, %v10011
        %v10060 = vadd.f32 %v412, %v10012
        %v10061 = vadd.f32 %v413, %v10013
        %v10062 = vadd.f32 %v414, %v10014
        %v10063 = vadd.f32 %v415, %v10015
        %v10064 = vadd.f32 %v416, %v10016
        %v10065 = vadd.f32 %v417, %v10017
        %v10066 = vadd.f32 %v418, %v10018
        %v10067 = vadd.f32 %v419, %v10019
        %v10068 = vadd.f32 %v420, %v10020
        %v10069 = vadd.f32 %v421, %v10021
        %v10070 = vadd.f32 %v422, %v10022
        %v10071 = vadd.f32 %v423, %v10023
        %v10072 = vadd.f32 %v424, %v10024
        %v10073 = vadd.f32 %v425, %v10025
        %v10074 = vadd.f32 %v426, %v10026
        %v10075 = vadd.f32 %v427, %v10027
        %v10076 = vadd.f32 %v428, %v10028
        %v10077 = vadd.f32 %v429, %v10029
        %v10078 = vadd.f32 %v430, %v10030
        %v10079 = vadd.f32 %v431, %v10031
        %v10080 = vadd.f32 %v432, %v10032
        %v10081 = vadd.f32 %v433, %v10033
        %v10082 = vadd.f32 %v434, %v10034
        %v10083 = vadd.f32 %v435, %v10035
        %v10084 = vadd.f32 %v436, %v10036
        %v10085 = vadd.f32 %v437, %v10037
        %v10086 = vadd.f32 %v438, %v10038
        %v10087 = vadd.f32 %v439, %v10039
        %v10088 = vadd.f32 %v440, %v10040
        %v10089 = vadd.f32 %v441, %v10041
        %v10090 = vadd.f32 %v442, %v10042
        %v10091 = vadd.f32 %v443, %v10043
        %v10092 = vadd.f32 %v444, %v10044
        %v10093 = vadd.f32 %v445, %v10045
        %v10094 = vadd.f32 %v446, %v10046
        %v10095 = vadd.f32 %v447, %v10047
        %v10096 = vadd.f32 %v448, %v10048
        %v10097 = vadd.f32 %v449, %v10049
        %v10098 = vadd.f32 %v450, %v10050
        %10099 = vst [vmem:[#allocation2] sm:$0xff] %v10051
        %10100 = vst [vmem:[#allocation2 + $0x8] sm:$0xff] %v10052
        %10101 = vst [vmem:[#allocation2 + $0x10] sm:$0xff] %v10053
        %10102 = vst [vmem:[#allocation2 + $0x18] sm:$0xff] %v10054
        %10103 = vst [vmem:[#allocation2 + $0x20] sm:$0xff] %v10055
        %10104 = vst [vmem:[#allocation2 + $0x28] sm:$0xff] %v10056
        %10105 = vst [vmem:[#allocation2 + $0x30] sm:$0xff] %v10057
        %10106 = vst [vmem:[#allocation2 + $0x38] sm:$0xff] %v10058
        %10107 = vst [vmem:[#allocation2 + $0x40] sm:$0xff] %v10059
        %10108 = vst [vmem:[#allocation2 + $0x48] sm:$0xff] %v10060
        %10109 = vst [vmem:[#allocation2 + $0x50] sm:$0xff] %v10061
        %10110 = vst [vmem:[#allocation2 + $0x58] sm:$0xff] %v10062
        %10111 = vst [vmem:[#allocation2 + $0x60] sm:$0xff] %v10063
        %10112 = vst [vmem:[#allocation2 + $0x68] sm:$0xff] %v10064
        %10113 = vst [vmem:[#allocation2 + $0x70] sm:$0xff] %v10065
        %10114 = vst [vmem:[#allocation2 + $0x78] sm:$0xff] %v10066
        %10115 = vst [vmem:[#allocation2 + $0x80] sm:$0xff] %v10067
        %10116 = vst [vmem:[#allocation2 + $0x88] sm:$0xff] %v10068
        %10117 = vst [vmem:[#allocation2 + $0x90] sm:$0xff] %v10069
        %10118 = vst [vmem:[#allocation2 + $0x98] sm:$0xff] %v10070
        %10119 = vst [vmem:[#allocation2 + $0xa0] sm:$0xff] %v10071
        %10120 = vst [vmem:[#allocation2 + $0xa8] sm:$0xff] %v10072
        %10121 = vst [vmem:[#allocation2 + $0xb0] sm:$0xff] %v10073
        %10122 = vst [vmem:[#allocation2 + $0xb8] sm:$0xff] %v10074
        %10123 = vst [vmem:[#allocation2 + $0xc0] sm:$0xff] %v10075
        %10124 = vst [vmem:[#allocation2 + $0xc8] sm:$0xff] %v10076
        %10125 = vst [vmem:[#allocation2 + $0xd0] sm:$0xff] %v10077
        %10126 = vst [vmem:[#allocation2 + $0xd8] sm:$0xff] %v10078
        %10127 = vst [vmem:[#allocation2 + $0xe0] sm:$0xff] %v10079
        %10128 = vst [vmem:[#allocation2 + $0xe8] sm:$0xff] %v10080
        %10129 = vst [vmem:[#allocation2 + $0xf0] sm:$0xff] %v10081
        %10130 = vst [vmem:[#allocation2 + $0xf8] sm:$0xff] %v10082
        %10131 = vst [vmem:[#allocation2 + $0x100] sm:$0xff] %v10083
        %10132 = vst [vmem:[#allocation2 + $0x108] sm:$0xff] %v10084
        %10133 = vst [vmem:[#allocation2 + $0x110] sm:$0xff] %v10085
        %10134 = vst [vmem:[#allocation2 + $0x118] sm:$0xff] %v10086
        %10135 = vst [vmem:[#allocation2 + $0x120] sm:$0xff] %v10087
        %10136 = vst [vmem:[#allocation2 + $0x128] sm:$0xff] %v10088
        %10137 = vst [vmem:[#allocation2 + $0x130] sm:$0xff] %v10089
        %10138 = vst [vmem:[#allocation2 + $0x138] sm:$0xff] %v10090
        %10139 = vst [vmem:[#allocation2 + $0x140] sm:$0xff] %v10091
        %10140 = vst [vmem:[#allocation2 + $0x148] sm:$0xff] %v10092
        %10141 = vst [vmem:[#allocation2 + $0x150] sm:$0xff] %v10093
        %10142 = vst [vmem:[#allocation2 + $0x158] sm:$0xff] %v10094
        %10143 = vst [vmem:[#allocation2 + $0x160] sm:$0xff] %v10095
        %10144 = vst [vmem:[#allocation2 + $0x168] sm:$0xff] %v10096
        %10145 = vst [vmem:[#allocation2 + $0x170] sm:$0xff] %v10097
        %10146 = vst [vmem:[#allocation2 + $0x178] sm:$0xff] %v10098
        %p10147 = scmp.eq.s32.totalorder %s28, 1
        // Predicated region
        $region57: #{tpu_custom_call.1} parent=39 // pred_check
          %p10148 = pneg %p10147
        $region58: #{tpu_custom_call.1} parent=39 // pred_check_branch
          %10150 = sbr.rel (%p10148) target = $region60
        $region59: #{tpu_custom_call.1} parent=39 // pred_region
          %v10151 = vld [vmem:[%s249] sm:$0xff]
          %v10152 = vld [vmem:[%s249 + $0x8] sm:$0xff]
          %v10153 = vld [vmem:[%s249 + $0x10] sm:$0xff]
          %v10154 = vld [vmem:[%s249 + $0x18] sm:$0xff]
          %v10155 = vld [vmem:[%s249 + $0x20] sm:$0xff]
          %v10156 = vld [vmem:[%s249 + $0x28] sm:$0xff]
          %v10157 = vld [vmem:[%s249 + $0x30] sm:$0xff]
          %v10158 = vld [vmem:[%s249 + $0x38] sm:$0xff]
          %v10159 = vld [vmem:[%s249 + $0x40] sm:$0xff]
          %v10160 = vld [vmem:[%s249 + $0x48] sm:$0xff]
          %v10161 = vld [vmem:[%s249 + $0x50] sm:$0xff]
          %v10162 = vld [vmem:[%s249 + $0x58] sm:$0xff]
          %v10163 = vld [vmem:[%s249 + $0x60] sm:$0xff]
          %v10164 = vld [vmem:[%s249 + $0x68] sm:$0xff]
          %v10165 = vld [vmem:[%s249 + $0x70] sm:$0xff]
          %v10166 = vld [vmem:[%s249 + $0x78] sm:$0xff]
          %v10167 = vld [vmem:[%s249 + $0x80] sm:$0xff]
          %v10168 = vld [vmem:[%s249 + $0x88] sm:$0xff]
          %v10169 = vld [vmem:[%s249 + $0x90] sm:$0xff]
          %v10170 = vld [vmem:[%s249 + $0x98] sm:$0xff]
          %v10171 = vld [vmem:[%s249 + $0xa0] sm:$0xff]
          %v10172 = vld [vmem:[%s249 + $0xa8] sm:$0xff]
          %v10173 = vld [vmem:[%s249 + $0xb0] sm:$0xff]
          %v10174 = vld [vmem:[%s249 + $0xb8] sm:$0xff]
          %v10175 = vld [vmem:[%s249 + $0xc0] sm:$0xff]
          %v10176 = vld [vmem:[%s249 + $0xc8] sm:$0xff]
          %v10177 = vld [vmem:[%s249 + $0xd0] sm:$0xff]
          %v10178 = vld [vmem:[%s249 + $0xd8] sm:$0xff]
          %v10179 = vld [vmem:[%s249 + $0xe0] sm:$0xff]
          %v10180 = vld [vmem:[%s249 + $0xe8] sm:$0xff]
          %v10181 = vld [vmem:[%s249 + $0xf0] sm:$0xff]
          %v10182 = vld [vmem:[%s249 + $0xf8] sm:$0xff]
          %v10183 = vadd.f32 %v10051, %v10151
          %v10184 = vadd.f32 %v10052, %v10152
          %v10185 = vadd.f32 %v10054, %v10153
          %v10186 = vadd.f32 %v10055, %v10154
          %v10187 = vadd.f32 %v10057, %v10155
          %v10188 = vadd.f32 %v10058, %v10156
          %v10189 = vadd.f32 %v10060, %v10157
          %v10190 = vadd.f32 %v10061, %v10158
          %v10191 = vadd.f32 %v10063, %v10159
          %v10192 = vadd.f32 %v10064, %v10160
          %v10193 = vadd.f32 %v10066, %v10161
          %v10194 = vadd.f32 %v10067, %v10162
          %v10195 = vadd.f32 %v10069, %v10163
          %v10196 = vadd.f32 %v10070, %v10164
          %v10197 = vadd.f32 %v10072, %v10165
          %v10198 = vadd.f32 %v10073, %v10166
          %v10199 = vadd.f32 %v10075, %v10167
          %v10200 = vadd.f32 %v10076, %v10168
          %v10201 = vadd.f32 %v10078, %v10169
          %v10202 = vadd.f32 %v10079, %v10170
          %v10203 = vadd.f32 %v10081, %v10171
          %v10204 = vadd.f32 %v10082, %v10172
          %v10205 = vadd.f32 %v10084, %v10173
          %v10206 = vadd.f32 %v10085, %v10174
          %v10207 = vadd.f32 %v10087, %v10175
          %v10208 = vadd.f32 %v10088, %v10176
          %v10209 = vadd.f32 %v10090, %v10177
          %v10210 = vadd.f32 %v10091, %v10178
          %v10211 = vadd.f32 %v10093, %v10179
          %v10212 = vadd.f32 %v10094, %v10180
          %v10213 = vadd.f32 %v10096, %v10181
          %v10214 = vadd.f32 %v10097, %v10182
          %10215 = vst [vmem:[%s283] sm:$0xff] %v10183
          %10216 = vst [vmem:[%s283 + $0x8] sm:$0xff] %v10184
          %10217 = vst [vmem:[%s283 + $0x10] sm:$0xff] %v10185
          %10218 = vst [vmem:[%s283 + $0x18] sm:$0xff] %v10186
          %10219 = vst [vmem:[%s283 + $0x20] sm:$0xff] %v10187
          %10220 = vst [vmem:[%s283 + $0x28] sm:$0xff] %v10188
          %10221 = vst [vmem:[%s283 + $0x30] sm:$0xff] %v10189
          %10222 = vst [vmem:[%s283 + $0x38] sm:$0xff] %v10190
          %10223 = vst [vmem:[%s283 + $0x40] sm:$0xff] %v10191
          %10224 = vst [vmem:[%s283 + $0x48] sm:$0xff] %v10192
          %10225 = vst [vmem:[%s283 + $0x50] sm:$0xff] %v10193
          %10226 = vst [vmem:[%s283 + $0x58] sm:$0xff] %v10194
          %10227 = vst [vmem:[%s283 + $0x60] sm:$0xff] %v10195
          %10228 = vst [vmem:[%s283 + $0x68] sm:$0xff] %v10196
          %10229 = vst [vmem:[%s283 + $0x70] sm:$0xff] %v10197
          %10230 = vst [vmem:[%s283 + $0x78] sm:$0xff] %v10198
          %10231 = vst [vmem:[%s283 + $0x80] sm:$0xff] %v10199
          %10232 = vst [vmem:[%s283 + $0x88] sm:$0xff] %v10200
          %10233 = vst [vmem:[%s283 + $0x90] sm:$0xff] %v10201
          %10234 = vst [vmem:[%s283 + $0x98] sm:$0xff] %v10202
          %10235 = vst [vmem:[%s283 + $0xa0] sm:$0xff] %v10203
          %10236 = vst [vmem:[%s283 + $0xa8] sm:$0xff] %v10204
          %10237 = vst [vmem:[%s283 + $0xb0] sm:$0xff] %v10205
          %10238 = vst [vmem:[%s283 + $0xb8] sm:$0xff] %v10206
          %10239 = vst [vmem:[%s283 + $0xc0] sm:$0xff] %v10207
          %10240 = vst [vmem:[%s283 + $0xc8] sm:$0xff] %v10208
          %10241 = vst [vmem:[%s283 + $0xd0] sm:$0xff] %v10209
          %10242 = vst [vmem:[%s283 + $0xd8] sm:$0xff] %v10210
          %10243 = vst [vmem:[%s283 + $0xe0] sm:$0xff] %v10211
          %10244 = vst [vmem:[%s283 + $0xe8] sm:$0xff] %v10212
          %10245 = vst [vmem:[%s283 + $0xf0] sm:$0xff] %v10213
          %10246 = vst [vmem:[%s283 + $0xf8] sm:$0xff] %v10214
        $region60: #{tpu_custom_call.1} parent=39 // pred_fallthru
          _
        %s10247 = sand.u32 %s153, 1
        %s10248 = scalar_lea.sflag [#allocation6], %s10247
        %s10249 = sand.u32 %s153, 1
        %s10250 = smul.addr %s10249, 256
        %s10251 = scalar_lea.vmem [#allocation10], %s10250
        // Predicated region
        $region61: #{tpu_custom_call.1} parent=39 // pred_check
          %p10252 = pneg %p163
        $region62: #{tpu_custom_call.1} parent=39 // pred_check_branch
          %10254 = sbr.rel (%p10252) target = $region64
        $region63: #{tpu_custom_call.1} parent=39 // pred_region
          %s10256 = ssub.s32 4096, 4096
          %10257 = vsyncadd %s10248, %s10256
          %s10258 = smul.addr %s27, 32
          %s10259 = smul.addr %s10258, 128
          %s10260 = scalar_lea.hbm %s5, %s10259
          %s10261 = sshll.u32 %s10251, 4
          %s10262 = int_to_ptr.vmem [resolvable:$true] %s10261
          %10267 = dma.vmem_to_hbm [thread:$0]  %s10262, 4096, %s10260, %s10248, 128, 128, 8
        $region64: #{tpu_custom_call.1} parent=39 // pred_fallthru
          _
      $region40: #{tpu_custom_call.1} parent=5 // pred_fallthru
        _
      %p10268 = scmp.le.s32.totalorder 2, %s18
      // Predicated region
      $region65: #{tpu_custom_call.1} parent=5 // pred_check
        %p10269 = pneg %p10268
      $region66: #{tpu_custom_call.1} parent=5 // pred_check_branch
        %10271 = sbr.rel (%p10269) target = $region68
      $region67: #{tpu_custom_call.1} parent=5 // pred_region
        %s10272 = ssub.s32 %s18, 2
        // Predicated region
        $region69: #{tpu_custom_call.1} parent=67 // pred_check
          %p10273 = pneg %p169
        $region70: #{tpu_custom_call.1} parent=67 // pred_check_branch
          %10275 = sbr.rel (%p10273) target = $region72
        $region71: #{tpu_custom_call.1} parent=67 // pred_region
          %s10276 = sand.u32 %s154, 1
          %s10277 = scalar_lea.sflag [#allocation6], %s10276
          %s10278 = sand.u32 %s154, 1
          %s10279 = smul.addr %s10278, 256
          %s10280 = scalar_lea.vmem [#allocation10], %s10279
          %10281 = dma.done %s10277, 4096
        $region72: #{tpu_custom_call.1} parent=67 // pred_fallthru
          _
      $region68: #{tpu_custom_call.1} parent=5 // pred_fallthru
        _
    $region6: #{tpu_custom_call.1} parent=1 // loop_footer
      %s22 = sadd.s32 1, %s18
    $region7: #{tpu_custom_call.1} parent=1 // loop_footer_branch
      %17 = sbr.rel target = $region3
    $region8: #{tpu_custom_call.1} parent=1 // loop_exit
      _
    %10282 = vsyncpa [#allocation5], 1
    %s10283 = scalar_lea.sflag [#allocation5], 1
    %10284 = vsyncpa %s10283, 1
    %10285 = vsyncpa [#allocation8], 1
    %10286 = vsyncpa [#allocation6], 1
    %s10287 = scalar_lea.sflag [#allocation6], 1
    %10288 = vsyncpa %s10287, 1

</llo_original>
